<compile_context>
chip_gen: v6e
topology: v6e:2x2x1
jax: 0.10.0
libtpu: 0.0.40
codegen_flags: <defaults>
</compile_context>

<pallas_src>
import functools

import jax
import jax.numpy as jnp
from jax import lax
from jax.experimental import pallas as pl
from jax.experimental.pallas import tpu as pltpu


def _fused_basic_block_kernel(x_ref, t1_ref, b1_ref, t2_ref, b2_ref, o_ref,
                              ipad, *, d_true):
    """One (batch, D-tile) grid step of the fused BasicBlock3d forward pass."""
    i = pl.program_id(1)
    _, tD, H, WCp = o_ref.shape
    d0 = pl.multiple_of(i * tD, tD)          # first output D row of this tile

    # ---- conv1 (BN1 scale folded into t1) over tD+2 halo rows -------------------
    # x_ref holds the host-padded bf16 volume: padded D index p == original row p-2,
    # padded H index q == original col q-1.  Accumulate the 9 taps in registers.
    acc1 = None
    for kd in range(3):
        for kh in range(3):
            slab = x_ref[0, pl.ds(d0 + kd, tD + 2), kh:kh + H, :]
            part = lax.dot_general(
                slab.reshape((tD + 2) * H, WCp), t1_ref[kd, kh],
                (((1,), (0,)), ((), ())),
                preferred_element_type=jnp.float32)
            acc1 = part if acc1 is None else acc1 + part

    inter = jnp.maximum(acc1 + b1_ref[...], 0.0)          # +bias1, ReLU (f32)
    inter = inter.reshape(tD + 2, H, WCp)

    # Intermediate D rows outside the volume are conv2's zero padding, not conv1
    # outputs; this also masks the ceil-division tail tile.
    drow = d0 - 1 + lax.broadcasted_iota(jnp.int32, (tD + 2, 1, 1), 0)
    inter = jnp.where((drow >= 0) & (drow < d_true), inter, 0.0)

    # Store interior; zero only the H-pad border rows (tiny, and done every tile so
    # no grid-order / per-core-scratch-init dependence).
    ipad[:, 0:1, :] = jnp.zeros((tD + 2, 1, WCp), ipad.dtype)
    ipad[:, H + 1:H + 2, :] = jnp.zeros((tD + 2, 1, WCp), ipad.dtype)
    ipad[:, 1:H + 1, :] = inter.astype(ipad.dtype)

    # ---- conv2 (BN2 scale folded into t2) + bias2 + residual + ReLU -------------
    acc2 = None
    for kd in range(3):
        for kh in range(3):
            slab = ipad[kd:kd + tD, kh:kh + H, :]
            part = lax.dot_general(
                slab.reshape(tD * H, WCp), t2_ref[kd, kh],
                (((1,), (0,)), ((), ())),
                preferred_element_type=jnp.float32)
            acc2 = part if acc2 is None else acc2 + part

    residual = x_ref[0, pl.ds(d0 + 2, tD), 1:H + 1, :].astype(jnp.float32)
    out = jnp.maximum(acc2 + b2_ref[...] + residual.reshape(tD * H, WCp), 0.0)
    o_ref[0] = out.reshape(tD, H, WCp).astype(o_ref.dtype)


def _fold_bn(gamma, beta, mean, var, eps=1e-5):
    scale = gamma / jnp.sqrt(var + eps)
    return scale, beta - mean * scale


def _banded_weights(w_folded, W, wcp):
    """(3,3,3,Ci,Co) conv weights -> (3,3,WCp,WCp) banded matmul weights.

    Column block w of t[kd, kh] produces output W-position w; row block w_in reads
    input W-position w_in; entries are zero unless w_in == w + kw - 1, which also
    absorbs the conv's zero padding along W.  Lane-padded to WCp (multiple of 128).
    """
    kD, kH, kW, Ci, Co = w_folded.shape
    t = jnp.zeros((kD, kH, W, Ci, W, Co), w_folded.dtype)
    for kw in range(kW):
        for w in range(W):
            w_in = w + kw - 1
            if 0 <= w_in < W:
                t = t.at[:, :, w_in, :, w, :].set(w_folded[:, :, kw])
    t = t.reshape(kD, kH, W * Ci, W * Co)
    return jnp.pad(t, ((0, 0), (0, 0), (0, wcp - W * Ci), (0, wcp - W * Co)))


@functools.partial(jax.jit, static_argnames=("block_d", "out_dtype"))
def basic_block_3d(x_ncdhw, params, block_d=16, out_dtype=jnp.bfloat16):
    """Forward pass of BasicBlock3d (stride=1, downsample=None, eval-mode BN)."""
    N, Cin, D, H, W = x_ncdhw.shape
    C = params["w1"].shape[-1]
    if Cin != C or params["w2"].shape[3] != C or params["w2"].shape[-1] != C:
        raise ValueError("stride=1 / downsample=None requires planes == inplanes")

    WC = W * C
    WCp = ((WC + 127) // 128) * 128              # lane-dense last dim

    # Fold BN (eval mode) into the conv weights + a per-channel bias.
    s1, b1 = _fold_bn(params["gamma1"], params["beta1"], params["mean1"], params["var1"])
    s2, b2 = _fold_bn(params["gamma2"], params["beta2"], params["mean2"], params["var2"])
    t1 = _banded_weights((params["w1"] * s1).astype(jnp.bfloat16), W, WCp)
    t2 = _banded_weights((params["w2"] * s2).astype(jnp.bfloat16), W, WCp)
    b1t = jnp.pad(jnp.tile(b1, W), (0, WCp - WC)).reshape(1, WCp).astype(jnp.float32)
    b2t = jnp.pad(jnp.tile(b2, W), (0, WCp - WC)).reshape(1, WCp).astype(jnp.float32)

    # Ceil-division D tiling with masked tail tile.
    tD = min(block_d, D)
    n_tiles = pl.cdiv(D, tD)
    D_pad = n_tiles * tD

    # NCDHW -> (N, D, H, W*C) bf16, host-padded: +2 D halo each side (two-conv halo),
    # +(D_pad - D) masked tail rows, +1 H halo each side, lanes padded to WCp.
    x = jnp.transpose(x_ncdhw, (0, 2, 3, 4, 1)).reshape(N, D, H, WC)
    x = x.astype(jnp.bfloat16)
    x = jnp.pad(x, ((0, 0), (2, (D_pad - D) + 2), (1, 1), (0, WCp - WC)))

    # VMEM footprint (inputs/outputs double-buffered by the pipeline) + headroom.
    bytes_x = (D_pad + 4) * (H + 2) * WCp * 2
    bytes_w = 2 * 9 * WCp * WCp * 2
    bytes_b = 2 * WCp * 4
    bytes_o = tD * H * WCp * 2
    bytes_ipad = (tD + 2) * (H + 2) * WCp * 2
    footprint = 2 * (bytes_x + bytes_w + bytes_b + bytes_o) + bytes_ipad
    vmem_limit = int(min(64 * 2**20, footprint + 16 * 2**20))

    flops = int(N * n_tiles * 9 * 2 * WCp * WCp * ((tD + 2) * H + tD * H))
    bytes_accessed = int(N * bytes_x + N * n_tiles * bytes_o + bytes_w + bytes_b)

    kernel = functools.partial(_fused_basic_block_kernel, d_true=D)

    out = pl.pallas_call(
        kernel,
        grid=(N, n_tiles),
        in_specs=[
            pl.BlockSpec((1, D_pad + 4, H + 2, WCp), lambda n, i: (n, 0, 0, 0)),
            pl.BlockSpec((3, 3, WCp, WCp), lambda n, i: (0, 0, 0, 0)),
            pl.BlockSpec((1, WCp), lambda n, i: (0, 0)),
            pl.BlockSpec((3, 3, WCp, WCp), lambda n, i: (0, 0, 0, 0)),
            pl.BlockSpec((1, WCp), lambda n, i: (0, 0)),
        ],
        out_specs=pl.BlockSpec((1, tD, H, WCp), lambda n, i: (n, i, 0, 0)),
        out_shape=jax.ShapeDtypeStruct((N, D_pad, H, WCp), out_dtype),
        scratch_shapes=[
            pltpu.VMEM((tD + 2, H + 2, WCp), jnp.bfloat16),   # padded intermediate
        ],
        compiler_params=pltpu.CompilerParams(
            dimension_semantics=("parallel", "parallel"),
            vmem_limit_bytes=vmem_limit),
        cost_estimate=pl.CostEstimate(
            flops=flops, transcendentals=0, bytes_accessed=bytes_accessed),
    )(x, t1, b1t, t2, b2t)

    # (N, D_pad, H, WCp) bf16 -> NCDHW (valid rows / lanes only).
    out = out[:, :D, :, :WC].reshape(N, D, H, W, C)
    return jnp.transpose(out, (0, 4, 1, 2, 3))


def _reference(x_ncdhw, params):
    """Pure-JAX reference mirroring the kernel's bf16-operand / f32-accumulate math."""
    x = jnp.transpose(x_ncdhw, (0, 2, 3, 4, 1))
    s1, b1 = _fold_bn(params["gamma1"], params["beta1"], params["mean1"], params["var1"])
    s2, b2 = _fold_bn(params["gamma2"], params["beta2"], params["mean2"], params["var2"])
    wf1 = (params["w1"] * s1).astype(jnp.bfloat16).astype(jnp.float32)
    wf2 = (params["w2"] * s2).astype(jnp.bfloat16).astype(jnp.float32)
    xb = x.astype(jnp.bfloat16).astype(jnp.float32)

    dn = jax.lax.conv_dimension_numbers(x.shape, wf1.shape, ("NDHWC", "DHWIO", "NDHWC"))

    def conv(a, w):
        return jax.lax.conv_general_dilated(
            a, w, window_strides=(1, 1, 1),
            padding=((1, 1), (1, 1), (1, 1)), dimension_numbers=dn,
            precision=jax.lax.Precision.HIGHEST)

    h = jnp.maximum(conv(xb, wf1) + b1, 0.0)
    hb = h.astype(jnp.bfloat16).astype(jnp.float32)
    # Residual uses the same bf16-rounded x the kernel reads.
    y = jnp.maximum(conv(hb, wf2) + b2 + xb, 0.0)
    return jnp.transpose(y, (0, 4, 1, 2, 3))


if __name__ == "__main__":
    key = jax.random.PRNGKey(0)
    N, C, D, H, W = 2, 4, 8, 16, 16   # planes == inplanes (stride=1, no downsample)

    ks = jax.random.split(key, 11)
    x = jax.random.normal(ks[0], (N, C, D, H, W), jnp.float32)
    params = {
        "w1": jax.random.normal(ks[1], (3, 3, 3, C, C), jnp.float32) * 0.1,
        "w2": jax.random.normal(ks[2], (3, 3, 3, C, C), jnp.float32) * 0.1,
        "gamma1": jax.random.uniform(ks[3], (C,), jnp.float32, 0.5, 1.5),
        "beta1": jax.random.normal(ks[4], (C,), jnp.float32) * 0.1,
        "mean1": jax.random.normal(ks[5], (C,), jnp.float32) * 0.1,
        "var1": jax.random.uniform(ks[6], (C,), jnp.float32, 0.5, 1.5),
        "gamma2": jax.random.uniform(ks[7], (C,), jnp.float32, 0.5, 1.5),
        "beta2": jax.random.normal(ks[8], (C,), jnp.float32) * 0.1,
        "mean2": jax.random.normal(ks[9], (C,), jnp.float32) * 0.1,
        "var2": jax.random.uniform(ks[10], (C,), jnp.float32, 0.5, 1.5),
    }

    out = jax.block_until_ready(basic_block_3d(x, params))
    ref = jax.block_until_ready(_reference(x, params))

    assert out.shape == (N, C, D, H, W), out.shape
    abs_err = jnp.abs(out.astype(jnp.float32) - ref)
    max_err = float(jnp.max(abs_err))
    mean_err = float(jnp.mean(abs_err))
    # bf16 MXU operands + bf16 output store: tolerance covers the final bf16 output
    # rounding plus f32 summation-order differences (real indexing bugs are O(1)).
    assert max_err < 8e-2 and mean_err < 6e-3, (max_err, mean_err)

    print("KERNEL_OK")
</pallas_src>

<mosaic_0001>
module attributes {stable_mosaic.version = 11 : i64} {
  func.func @_fused_basic_block_kernel(%arg0: i32, %arg1: i32, %arg2: memref<1x12x18x128xbf16, #tpu.memory_space<vmem>>, %arg3: memref<3x3x128x128xbf16, #tpu.memory_space<vmem>>, %arg4: memref<1x128xf32, #tpu.memory_space<vmem>>, %arg5: memref<3x3x128x128xbf16, #tpu.memory_space<vmem>>, %arg6: memref<1x128xf32, #tpu.memory_space<vmem>>, %arg7: memref<1x8x16x128xbf16, #tpu.memory_space<vmem>>, %arg8: memref<10x18x128xbf16, #tpu.memory_space<vmem>>) attributes {dimension_semantics = [#tpu.dimension_semantics<parallel>, #tpu.dimension_semantics<parallel>], iteration_bounds = array<i64: 2, 1>, scalar_prefetch = 0 : i64, scratch_operands = 1 : i64, tpu.core_type = #tpu.core_type<tc>, window_params = [{transform_indices = @transform_0, window_bounds = array<i64: 1, 12, 18, 128>}, {pipeline_mode = #tpu.pipeline_mode<synchronous>, transform_indices = @transform_1, window_bounds = array<i64: 3, 3, 128, 128>}, {pipeline_mode = #tpu.pipeline_mode<synchronous>, transform_indices = @transform_2, window_bounds = array<i64: 1, 128>}, {pipeline_mode = #tpu.pipeline_mode<synchronous>, transform_indices = @transform_3, window_bounds = array<i64: 3, 3, 128, 128>}, {pipeline_mode = #tpu.pipeline_mode<synchronous>, transform_indices = @transform_4, window_bounds = array<i64: 1, 128>}, {transform_indices = @transform_5, window_bounds = array<i64: 1, 8, 16, 128>}]} {
    %c8_i32 = arith.constant 8 : i32
    %0 = arith.muli %arg1, %c8_i32 : i32
    %1 = tpu.assume_multiple %0, 8 : i32
    %c0_i32 = arith.constant 0 : i32
    %2 = arith.addi %1, %c0_i32 : i32
    %c0 = arith.constant 0 : index
    %3 = arith.index_cast %2 : i32 to index
    %c0_0 = arith.constant 0 : index
    %c0_1 = arith.constant 0 : index
    %4 = vector.load %arg2[%c0, %3, %c0_0, %c0_1] : memref<1x12x18x128xbf16, #tpu.memory_space<vmem>>, vector<1x10x16x128xbf16>
    %5 = vector.shape_cast %4 : vector<1x10x16x128xbf16> to vector<10x16x128xbf16>
    %6 = vector.shape_cast %5 : vector<10x16x128xbf16> to vector<160x128xbf16>
    %c0_2 = arith.constant 0 : index
    %c0_3 = arith.constant 0 : index
    %c0_4 = arith.constant 0 : index
    %c0_5 = arith.constant 0 : index
    %7 = vector.load %arg3[%c0_2, %c0_3, %c0_4, %c0_5] : memref<3x3x128x128xbf16, #tpu.memory_space<vmem>>, vector<1x1x128x128xbf16>
    %8 = vector.shape_cast %7 : vector<1x1x128x128xbf16> to vector<128x128xbf16>
    %cst = arith.constant dense<0.000000e+00> : vector<160x128xf32>
    %9 = tpu.matmul %6, %8, %cst {dimension_numbers = #tpu.dot_dimension_numbers<[1], [0], [0], [1], [0, 0, 1, 1], [], []>} : vector<160x128xbf16>, vector<128x128xbf16>, vector<160x128xf32> -> vector<160x128xf32>
    %c0_i32_6 = arith.constant 0 : i32
    %10 = arith.addi %1, %c0_i32_6 : i32
    %c0_7 = arith.constant 0 : index
    %11 = arith.index_cast %10 : i32 to index
    %c1 = arith.constant 1 : index
    %c0_8 = arith.constant 0 : index
    %12 = vector.load %arg2[%c0_7, %11, %c1, %c0_8] : memref<1x12x18x128xbf16, #tpu.memory_space<vmem>>, vector<1x10x16x128xbf16>
    %13 = vector.shape_cast %12 : vector<1x10x16x128xbf16> to vector<10x16x128xbf16>
    %14 = vector.shape_cast %13 : vector<10x16x128xbf16> to vector<160x128xbf16>
    %c0_9 = arith.constant 0 : index
    %c1_10 = arith.constant 1 : index
    %c0_11 = arith.constant 0 : index
    %c0_12 = arith.constant 0 : index
    %15 = vector.load %arg3[%c0_9, %c1_10, %c0_11, %c0_12] : memref<3x3x128x128xbf16, #tpu.memory_space<vmem>>, vector<1x1x128x128xbf16>
    %16 = vector.shape_cast %15 : vector<1x1x128x128xbf16> to vector<128x128xbf16>
    %cst_13 = arith.constant dense<0.000000e+00> : vector<160x128xf32>
    %17 = tpu.matmul %14, %16, %cst_13 {dimension_numbers = #tpu.dot_dimension_numbers<[1], [0], [0], [1], [0, 0, 1, 1], [], []>} : vector<160x128xbf16>, vector<128x128xbf16>, vector<160x128xf32> -> vector<160x128xf32>
    %18 = arith.addf %9, %17 : vector<160x128xf32>
    %c0_i32_14 = arith.constant 0 : i32
    %19 = arith.addi %1, %c0_i32_14 : i32
    %c0_15 = arith.constant 0 : index
    %20 = arith.index_cast %19 : i32 to index
    %c2 = arith.constant 2 : index
    %c0_16 = arith.constant 0 : index
    %21 = vector.load %arg2[%c0_15, %20, %c2, %c0_16] : memref<1x12x18x128xbf16, #tpu.memory_space<vmem>>, vector<1x10x16x128xbf16>
    %22 = vector.shape_cast %21 : vector<1x10x16x128xbf16> to vector<10x16x128xbf16>
    %23 = vector.shape_cast %22 : vector<10x16x128xbf16> to vector<160x128xbf16>
    %c0_17 = arith.constant 0 : index
    %c2_18 = arith.constant 2 : index
    %c0_19 = arith.constant 0 : index
    %c0_20 = arith.constant 0 : index
    %24 = vector.load %arg3[%c0_17, %c2_18, %c0_19, %c0_20] : memref<3x3x128x128xbf16, #tpu.memory_space<vmem>>, vector<1x1x128x128xbf16>
    %25 = vector.shape_cast %24 : vector<1x1x128x128xbf16> to vector<128x128xbf16>
    %cst_21 = arith.constant dense<0.000000e+00> : vector<160x128xf32>
    %26 = tpu.matmul %23, %25, %cst_21 {dimension_numbers = #tpu.dot_dimension_numbers<[1], [0], [0], [1], [0, 0, 1, 1], [], []>} : vector<160x128xbf16>, vector<128x128xbf16>, vector<160x128xf32> -> vector<160x128xf32>
    %27 = arith.addf %18, %26 : vector<160x128xf32>
    %c1_i32 = arith.constant 1 : i32
    %28 = arith.addi %1, %c1_i32 : i32
    %c0_22 = arith.constant 0 : index
    %29 = arith.index_cast %28 : i32 to index
    %c0_23 = arith.constant 0 : index
    %c0_24 = arith.constant 0 : index
    %30 = vector.load %arg2[%c0_22, %29, %c0_23, %c0_24] : memref<1x12x18x128xbf16, #tpu.memory_space<vmem>>, vector<1x10x16x128xbf16>
    %31 = vector.shape_cast %30 : vector<1x10x16x128xbf16> to vector<10x16x128xbf16>
    %32 = vector.shape_cast %31 : vector<10x16x128xbf16> to vector<160x128xbf16>
    %c1_25 = arith.constant 1 : index
    %c0_26 = arith.constant 0 : index
    %c0_27 = arith.constant 0 : index
    %c0_28 = arith.constant 0 : index
    %33 = vector.load %arg3[%c1_25, %c0_26, %c0_27, %c0_28] : memref<3x3x128x128xbf16, #tpu.memory_space<vmem>>, vector<1x1x128x128xbf16>
    %34 = vector.shape_cast %33 : vector<1x1x128x128xbf16> to vector<128x128xbf16>
    %cst_29 = arith.constant dense<0.000000e+00> : vector<160x128xf32>
    %35 = tpu.matmul %32, %34, %cst_29 {dimension_numbers = #tpu.dot_dimension_numbers<[1], [0], [0], [1], [0, 0, 1, 1], [], []>} : vector<160x128xbf16>, vector<128x128xbf16>, vector<160x128xf32> -> vector<160x128xf32>
    %36 = arith.addf %27, %35 : vector<160x128xf32>
    %c1_i32_30 = arith.constant 1 : i32
    %37 = arith.addi %1, %c1_i32_30 : i32
    %c0_31 = arith.constant 0 : index
    %38 = arith.index_cast %37 : i32 to index
    %c1_32 = arith.constant 1 : index
    %c0_33 = arith.constant 0 : index
    %39 = vector.load %arg2[%c0_31, %38, %c1_32, %c0_33] : memref<1x12x18x128xbf16, #tpu.memory_space<vmem>>, vector<1x10x16x128xbf16>
    %40 = vector.shape_cast %39 : vector<1x10x16x128xbf16> to vector<10x16x128xbf16>
    %41 = vector.shape_cast %40 : vector<10x16x128xbf16> to vector<160x128xbf16>
    %c1_34 = arith.constant 1 : index
    %c1_35 = arith.constant 1 : index
    %c0_36 = arith.constant 0 : index
    %c0_37 = arith.constant 0 : index
    %42 = vector.load %arg3[%c1_34, %c1_35, %c0_36, %c0_37] : memref<3x3x128x128xbf16, #tpu.memory_space<vmem>>, vector<1x1x128x128xbf16>
    %43 = vector.shape_cast %42 : vector<1x1x128x128xbf16> to vector<128x128xbf16>
    %cst_38 = arith.constant dense<0.000000e+00> : vector<160x128xf32>
    %44 = tpu.matmul %41, %43, %cst_38 {dimension_numbers = #tpu.dot_dimension_numbers<[1], [0], [0], [1], [0, 0, 1, 1], [], []>} : vector<160x128xbf16>, vector<128x128xbf16>, vector<160x128xf32> -> vector<160x128xf32>
    %45 = arith.addf %36, %44 : vector<160x128xf32>
    %c1_i32_39 = arith.constant 1 : i32
    %46 = arith.addi %1, %c1_i32_39 : i32
    %c0_40 = arith.constant 0 : index
    %47 = arith.index_cast %46 : i32 to index
    %c2_41 = arith.constant 2 : index
    %c0_42 = arith.constant 0 : index
    %48 = vector.load %arg2[%c0_40, %47, %c2_41, %c0_42] : memref<1x12x18x128xbf16, #tpu.memory_space<vmem>>, vector<1x10x16x128xbf16>
    %49 = vector.shape_cast %48 : vector<1x10x16x128xbf16> to vector<10x16x128xbf16>
    %50 = vector.shape_cast %49 : vector<10x16x128xbf16> to vector<160x128xbf16>
    %c1_43 = arith.constant 1 : index
    %c2_44 = arith.constant 2 : index
    %c0_45 = arith.constant 0 : index
    %c0_46 = arith.constant 0 : index
    %51 = vector.load %arg3[%c1_43, %c2_44, %c0_45, %c0_46] : memref<3x3x128x128xbf16, #tpu.memory_space<vmem>>, vector<1x1x128x128xbf16>
    %52 = vector.shape_cast %51 : vector<1x1x128x128xbf16> to vector<128x128xbf16>
    %cst_47 = arith.constant dense<0.000000e+00> : vector<160x128xf32>
    %53 = tpu.matmul %50, %52, %cst_47 {dimension_numbers = #tpu.dot_dimension_numbers<[1], [0], [0], [1], [0, 0, 1, 1], [], []>} : vector<160x128xbf16>, vector<128x128xbf16>, vector<160x128xf32> -> vector<160x128xf32>
    %54 = arith.addf %45, %53 : vector<160x128xf32>
    %c2_i32 = arith.constant 2 : i32
    %55 = arith.addi %1, %c2_i32 : i32
    %c0_48 = arith.constant 0 : index
    %56 = arith.index_cast %55 : i32 to index
    %c0_49 = arith.constant 0 : index
    %c0_50 = arith.constant 0 : index
    %57 = vector.load %arg2[%c0_48, %56, %c0_49, %c0_50] : memref<1x12x18x128xbf16, #tpu.memory_space<vmem>>, vector<1x10x16x128xbf16>
    %58 = vector.shape_cast %57 : vector<1x10x16x128xbf16> to vector<10x16x128xbf16>
    %59 = vector.shape_cast %58 : vector<10x16x128xbf16> to vector<160x128xbf16>
    %c2_51 = arith.constant 2 : index
    %c0_52 = arith.constant 0 : index
    %c0_53 = arith.constant 0 : index
    %c0_54 = arith.constant 0 : index
    %60 = vector.load %arg3[%c2_51, %c0_52, %c0_53, %c0_54] : memref<3x3x128x128xbf16, #tpu.memory_space<vmem>>, vector<1x1x128x128xbf16>
    %61 = vector.shape_cast %60 : vector<1x1x128x128xbf16> to vector<128x128xbf16>
    %cst_55 = arith.constant dense<0.000000e+00> : vector<160x128xf32>
    %62 = tpu.matmul %59, %61, %cst_55 {dimension_numbers = #tpu.dot_dimension_numbers<[1], [0], [0], [1], [0, 0, 1, 1], [], []>} : vector<160x128xbf16>, vector<128x128xbf16>, vector<160x128xf32> -> vector<160x128xf32>
    %63 = arith.addf %54, %62 : vector<160x128xf32>
    %c2_i32_56 = arith.constant 2 : i32
    %64 = arith.addi %1, %c2_i32_56 : i32
    %c0_57 = arith.constant 0 : index
    %65 = arith.index_cast %64 : i32 to index
    %c1_58 = arith.constant 1 : index
    %c0_59 = arith.constant 0 : index
    %66 = vector.load %arg2[%c0_57, %65, %c1_58, %c0_59] : memref<1x12x18x128xbf16, #tpu.memory_space<vmem>>, vector<1x10x16x128xbf16>
    %67 = vector.shape_cast %66 : vector<1x10x16x128xbf16> to vector<10x16x128xbf16>
    %68 = vector.shape_cast %67 : vector<10x16x128xbf16> to vector<160x128xbf16>
    %c2_60 = arith.constant 2 : index
    %c1_61 = arith.constant 1 : index
    %c0_62 = arith.constant 0 : index
    %c0_63 = arith.constant 0 : index
    %69 = vector.load %arg3[%c2_60, %c1_61, %c0_62, %c0_63] : memref<3x3x128x128xbf16, #tpu.memory_space<vmem>>, vector<1x1x128x128xbf16>
    %70 = vector.shape_cast %69 : vector<1x1x128x128xbf16> to vector<128x128xbf16>
    %cst_64 = arith.constant dense<0.000000e+00> : vector<160x128xf32>
    %71 = tpu.matmul %68, %70, %cst_64 {dimension_numbers = #tpu.dot_dimension_numbers<[1], [0], [0], [1], [0, 0, 1, 1], [], []>} : vector<160x128xbf16>, vector<128x128xbf16>, vector<160x128xf32> -> vector<160x128xf32>
    %72 = arith.addf %63, %71 : vector<160x128xf32>
    %c2_i32_65 = arith.constant 2 : i32
    %73 = arith.addi %1, %c2_i32_65 : i32
    %c0_66 = arith.constant 0 : index
    %74 = arith.index_cast %73 : i32 to index
    %c2_67 = arith.constant 2 : index
    %c0_68 = arith.constant 0 : index
    %75 = vector.load %arg2[%c0_66, %74, %c2_67, %c0_68] : memref<1x12x18x128xbf16, #tpu.memory_space<vmem>>, vector<1x10x16x128xbf16>
    %76 = vector.shape_cast %75 : vector<1x10x16x128xbf16> to vector<10x16x128xbf16>
    %77 = vector.shape_cast %76 : vector<10x16x128xbf16> to vector<160x128xbf16>
    %c2_69 = arith.constant 2 : index
    %c2_70 = arith.constant 2 : index
    %c0_71 = arith.constant 0 : index
    %c0_72 = arith.constant 0 : index
    %78 = vector.load %arg3[%c2_69, %c2_70, %c0_71, %c0_72] : memref<3x3x128x128xbf16, #tpu.memory_space<vmem>>, vector<1x1x128x128xbf16>
    %79 = vector.shape_cast %78 : vector<1x1x128x128xbf16> to vector<128x128xbf16>
    %cst_73 = arith.constant dense<0.000000e+00> : vector<160x128xf32>
    %80 = tpu.matmul %77, %79, %cst_73 {dimension_numbers = #tpu.dot_dimension_numbers<[1], [0], [0], [1], [0, 0, 1, 1], [], []>} : vector<160x128xbf16>, vector<128x128xbf16>, vector<160x128xf32> -> vector<160x128xf32>
    %81 = arith.addf %72, %80 : vector<160x128xf32>
    %c0_74 = arith.constant 0 : index
    %c0_75 = arith.constant 0 : index
    %82 = vector.load %arg4[%c0_74, %c0_75] : memref<1x128xf32, #tpu.memory_space<vmem>>, vector<1x128xf32>
    %83 = vector.broadcast %82 : vector<1x128xf32> to vector<160x128xf32>
    %84 = arith.addf %81, %83 : vector<160x128xf32>
    %cst_76 = arith.constant 0.000000e+00 : f32
    %85 = vector.broadcast %cst_76 : f32 to vector<160x128xf32>
    %86 = arith.maximumf %84, %85 : vector<160x128xf32>
    %87 = vector.shape_cast %86 : vector<160x128xf32> to vector<10x16x128xf32>
    %c1_i32_77 = arith.constant 1 : i32
    %88 = arith.subi %1, %c1_i32_77 : i32
    %89 = tpu.iota {dimensions = array<i32: 0>} : vector<10x1x1xi32>
    %90 = vector.broadcast %88 : i32 to vector<10x1x1xi32>
    %91 = arith.addi %90, %89 : vector<10x1x1xi32>
    %c0_i32_78 = arith.constant 0 : i32
    %92 = vector.broadcast %c0_i32_78 : i32 to vector<10x1x1xi32>
    %93 = arith.cmpi sge, %91, %92 : vector<10x1x1xi32>
    %c8_i32_79 = arith.constant 8 : i32
    %94 = vector.broadcast %c8_i32_79 : i32 to vector<10x1x1xi32>
    %95 = arith.cmpi slt, %91, %94 : vector<10x1x1xi32>
    %96 = arith.andi %93, %95 : vector<10x1x1xi1>
    %cst_80 = arith.constant 0.000000e+00 : f32
    %97 = vector.shape_cast %96 : vector<10x1x1xi1> to vector<10x1x1xi1>
    %98 = vector.broadcast %97 : vector<10x1x1xi1> to vector<10x16x128xi1>
    %99 = vector.broadcast %cst_80 : f32 to vector<10x16x128xf32>
    %100 = arith.select %98, %87, %99 : vector<10x16x128xi1>, vector<10x16x128xf32>
    %cst_81 = arith.constant 0.000000e+00 : bf16
    %101 = vector.broadcast %cst_81 : bf16 to vector<10x1x128xbf16>
    %c0_82 = arith.constant 0 : index
    %c0_83 = arith.constant 0 : index
    %c0_84 = arith.constant 0 : index
    %102 = vector.load %arg8[%c0_82, %c0_83, %c0_84] : memref<10x18x128xbf16, #tpu.memory_space<vmem>>, vector<10x1x128xbf16>
    tpu.vector_store %arg8[%c0_82, %c0_83, %c0_84], %101 {strides = array<i32>} : memref<10x18x128xbf16, #tpu.memory_space<vmem>>, vector<10x1x128xbf16>,
    %cst_85 = arith.constant 0.000000e+00 : bf16
    %103 = vector.broadcast %cst_85 : bf16 to vector<10x1x128xbf16>
    %c0_86 = arith.constant 0 : index
    %c17 = arith.constant 17 : index
    %c0_87 = arith.constant 0 : index
    %104 = vector.load %arg8[%c0_86, %c17, %c0_87] : memref<10x18x128xbf16, #tpu.memory_space<vmem>>, vector<10x1x128xbf16>
    tpu.vector_store %arg8[%c0_86, %c17, %c0_87], %103 {strides = array<i32>} : memref<10x18x128xbf16, #tpu.memory_space<vmem>>, vector<10x1x128xbf16>,
    %105 = arith.truncf %100 : vector<10x16x128xf32> to vector<10x16x128xbf16>
    %c0_88 = arith.constant 0 : index
    %c1_89 = arith.constant 1 : index
    %c0_90 = arith.constant 0 : index
    %106 = vector.load %arg8[%c0_88, %c1_89, %c0_90] : memref<10x18x128xbf16, #tpu.memory_space<vmem>>, vector<10x16x128xbf16>
    tpu.vector_store %arg8[%c0_88, %c1_89, %c0_90], %105 {strides = array<i32>} : memref<10x18x128xbf16, #tpu.memory_space<vmem>>, vector<10x16x128xbf16>,
    %c0_91 = arith.constant 0 : index
    %c0_92 = arith.constant 0 : index
    %c0_93 = arith.constant 0 : index
    %107 = vector.load %arg8[%c0_91, %c0_92, %c0_93] : memref<10x18x128xbf16, #tpu.memory_space<vmem>>, vector<8x16x128xbf16>
    %108 = vector.shape_cast %107 : vector<8x16x128xbf16> to vector<128x128xbf16>
    %c0_94 = arith.constant 0 : index
    %c0_95 = arith.constant 0 : index
    %c0_96 = arith.constant 0 : index
    %c0_97 = arith.constant 0 : index
    %109 = vector.load %arg5[%c0_94, %c0_95, %c0_96, %c0_97] : memref<3x3x128x128xbf16, #tpu.memory_space<vmem>>, vector<1x1x128x128xbf16>
    %110 = vector.shape_cast %109 : vector<1x1x128x128xbf16> to vector<128x128xbf16>
    %cst_98 = arith.constant dense<0.000000e+00> : vector<128x128xf32>
    %111 = tpu.matmul %108, %110, %cst_98 {dimension_numbers = #tpu.dot_dimension_numbers<[1], [0], [0], [1], [0, 0, 1, 1], [], []>} : vector<128x128xbf16>, vector<128x128xbf16>, vector<128x128xf32> -> vector<128x128xf32>
    %c0_99 = arith.constant 0 : index
    %c1_100 = arith.constant 1 : index
    %c0_101 = arith.constant 0 : index
    %112 = vector.load %arg8[%c0_99, %c1_100, %c0_101] : memref<10x18x128xbf16, #tpu.memory_space<vmem>>, vector<8x16x128xbf16>
    %113 = vector.shape_cast %112 : vector<8x16x128xbf16> to vector<128x128xbf16>
    %c0_102 = arith.constant 0 : index
    %c1_103 = arith.constant 1 : index
    %c0_104 = arith.constant 0 : index
    %c0_105 = arith.constant 0 : index
    %114 = vector.load %arg5[%c0_102, %c1_103, %c0_104, %c0_105] : memref<3x3x128x128xbf16, #tpu.memory_space<vmem>>, vector<1x1x128x128xbf16>
    %115 = vector.shape_cast %114 : vector<1x1x128x128xbf16> to vector<128x128xbf16>
    %cst_106 = arith.constant dense<0.000000e+00> : vector<128x128xf32>
    %116 = tpu.matmul %113, %115, %cst_106 {dimension_numbers = #tpu.dot_dimension_numbers<[1], [0], [0], [1], [0, 0, 1, 1], [], []>} : vector<128x128xbf16>, vector<128x128xbf16>, vector<128x128xf32> -> vector<128x128xf32>
    %117 = arith.addf %111, %116 : vector<128x128xf32>
    %c0_107 = arith.constant 0 : index
    %c2_108 = arith.constant 2 : index
    %c0_109 = arith.constant 0 : index
    %118 = vector.load %arg8[%c0_107, %c2_108, %c0_109] : memref<10x18x128xbf16, #tpu.memory_space<vmem>>, vector<8x16x128xbf16>
    %119 = vector.shape_cast %118 : vector<8x16x128xbf16> to vector<128x128xbf16>
    %c0_110 = arith.constant 0 : index
    %c2_111 = arith.constant 2 : index
    %c0_112 = arith.constant 0 : index
    %c0_113 = arith.constant 0 : index
    %120 = vector.load %arg5[%c0_110, %c2_111, %c0_112, %c0_113] : memref<3x3x128x128xbf16, #tpu.memory_space<vmem>>, vector<1x1x128x128xbf16>
    %121 = vector.shape_cast %120 : vector<1x1x128x128xbf16> to vector<128x128xbf16>
    %cst_114 = arith.constant dense<0.000000e+00> : vector<128x128xf32>
    %122 = tpu.matmul %119, %121, %cst_114 {dimension_numbers = #tpu.dot_dimension_numbers<[1], [0], [0], [1], [0, 0, 1, 1], [], []>} : vector<128x128xbf16>, vector<128x128xbf16>, vector<128x128xf32> -> vector<128x128xf32>
    %123 = arith.addf %117, %122 : vector<128x128xf32>
    %c1_115 = arith.constant 1 : index
    %c0_116 = arith.constant 0 : index
    %c0_117 = arith.constant 0 : index
    %124 = vector.load %arg8[%c1_115, %c0_116, %c0_117] : memref<10x18x128xbf16, #tpu.memory_space<vmem>>, vector<8x16x128xbf16>
    %125 = vector.shape_cast %124 : vector<8x16x128xbf16> to vector<128x128xbf16>
    %c1_118 = arith.constant 1 : index
    %c0_119 = arith.constant 0 : index
    %c0_120 = arith.constant 0 : index
    %c0_121 = arith.constant 0 : index
    %126 = vector.load %arg5[%c1_118, %c0_119, %c0_120, %c0_121] : memref<3x3x128x128xbf16, #tpu.memory_space<vmem>>, vector<1x1x128x128xbf16>
    %127 = vector.shape_cast %126 : vector<1x1x128x128xbf16> to vector<128x128xbf16>
    %cst_122 = arith.constant dense<0.000000e+00> : vector<128x128xf32>
    %128 = tpu.matmul %125, %127, %cst_122 {dimension_numbers = #tpu.dot_dimension_numbers<[1], [0], [0], [1], [0, 0, 1, 1], [], []>} : vector<128x128xbf16>, vector<128x128xbf16>, vector<128x128xf32> -> vector<128x128xf32>
    %129 = arith.addf %123, %128 : vector<128x128xf32>
    %c1_123 = arith.constant 1 : index
    %c1_124 = arith.constant 1 : index
    %c0_125 = arith.constant 0 : index
    %130 = vector.load %arg8[%c1_123, %c1_124, %c0_125] : memref<10x18x128xbf16, #tpu.memory_space<vmem>>, vector<8x16x128xbf16>
    %131 = vector.shape_cast %130 : vector<8x16x128xbf16> to vector<128x128xbf16>
    %c1_126 = arith.constant 1 : index
    %c1_127 = arith.constant 1 : index
    %c0_128 = arith.constant 0 : index
    %c0_129 = arith.constant 0 : index
    %132 = vector.load %arg5[%c1_126, %c1_127, %c0_128, %c0_129] : memref<3x3x128x128xbf16, #tpu.memory_space<vmem>>, vector<1x1x128x128xbf16>
    %133 = vector.shape_cast %132 : vector<1x1x128x128xbf16> to vector<128x128xbf16>
    %cst_130 = arith.constant dense<0.000000e+00> : vector<128x128xf32>
    %134 = tpu.matmul %131, %133, %cst_130 {dimension_numbers = #tpu.dot_dimension_numbers<[1], [0], [0], [1], [0, 0, 1, 1], [], []>} : vector<128x128xbf16>, vector<128x128xbf16>, vector<128x128xf32> -> vector<128x128xf32>
    %135 = arith.addf %129, %134 : vector<128x128xf32>
    %c1_131 = arith.constant 1 : index
    %c2_132 = arith.constant 2 : index
    %c0_133 = arith.constant 0 : index
    %136 = vector.load %arg8[%c1_131, %c2_132, %c0_133] : memref<10x18x128xbf16, #tpu.memory_space<vmem>>, vector<8x16x128xbf16>
    %137 = vector.shape_cast %136 : vector<8x16x128xbf16> to vector<128x128xbf16>
    %c1_134 = arith.constant 1 : index
    %c2_135 = arith.constant 2 : index
    %c0_136 = arith.constant 0 : index
    %c0_137 = arith.constant 0 : index
    %138 = vector.load %arg5[%c1_134, %c2_135, %c0_136, %c0_137] : memref<3x3x128x128xbf16, #tpu.memory_space<vmem>>, vector<1x1x128x128xbf16>
    %139 = vector.shape_cast %138 : vector<1x1x128x128xbf16> to vector<128x128xbf16>
    %cst_138 = arith.constant dense<0.000000e+00> : vector<128x128xf32>
    %140 = tpu.matmul %137, %139, %cst_138 {dimension_numbers = #tpu.dot_dimension_numbers<[1], [0], [0], [1], [0, 0, 1, 1], [], []>} : vector<128x128xbf16>, vector<128x128xbf16>, vector<128x128xf32> -> vector<128x128xf32>
    %141 = arith.addf %135, %140 : vector<128x128xf32>
    %c2_139 = arith.constant 2 : index
    %c0_140 = arith.constant 0 : index
    %c0_141 = arith.constant 0 : index
    %142 = vector.load %arg8[%c2_139, %c0_140, %c0_141] : memref<10x18x128xbf16, #tpu.memory_space<vmem>>, vector<8x16x128xbf16>
    %143 = vector.shape_cast %142 : vector<8x16x128xbf16> to vector<128x128xbf16>
    %c2_142 = arith.constant 2 : index
    %c0_143 = arith.constant 0 : index
    %c0_144 = arith.constant 0 : index
    %c0_145 = arith.constant 0 : index
    %144 = vector.load %arg5[%c2_142, %c0_143, %c0_144, %c0_145] : memref<3x3x128x128xbf16, #tpu.memory_space<vmem>>, vector<1x1x128x128xbf16>
    %145 = vector.shape_cast %144 : vector<1x1x128x128xbf16> to vector<128x128xbf16>
    %cst_146 = arith.constant dense<0.000000e+00> : vector<128x128xf32>
    %146 = tpu.matmul %143, %145, %cst_146 {dimension_numbers = #tpu.dot_dimension_numbers<[1], [0], [0], [1], [0, 0, 1, 1], [], []>} : vector<128x128xbf16>, vector<128x128xbf16>, vector<128x128xf32> -> vector<128x128xf32>
    %147 = arith.addf %141, %146 : vector<128x128xf32>
    %c2_147 = arith.constant 2 : index
    %c1_148 = arith.constant 1 : index
    %c0_149 = arith.constant 0 : index
    %148 = vector.load %arg8[%c2_147, %c1_148, %c0_149] : memref<10x18x128xbf16, #tpu.memory_space<vmem>>, vector<8x16x128xbf16>
    %149 = vector.shape_cast %148 : vector<8x16x128xbf16> to vector<128x128xbf16>
    %c2_150 = arith.constant 2 : index
    %c1_151 = arith.constant 1 : index
    %c0_152 = arith.constant 0 : index
    %c0_153 = arith.constant 0 : index
    %150 = vector.load %arg5[%c2_150, %c1_151, %c0_152, %c0_153] : memref<3x3x128x128xbf16, #tpu.memory_space<vmem>>, vector<1x1x128x128xbf16>
    %151 = vector.shape_cast %150 : vector<1x1x128x128xbf16> to vector<128x128xbf16>
    %cst_154 = arith.constant dense<0.000000e+00> : vector<128x128xf32>
    %152 = tpu.matmul %149, %151, %cst_154 {dimension_numbers = #tpu.dot_dimension_numbers<[1], [0], [0], [1], [0, 0, 1, 1], [], []>} : vector<128x128xbf16>, vector<128x128xbf16>, vector<128x128xf32> -> vector<128x128xf32>
    %153 = arith.addf %147, %152 : vector<128x128xf32>
    %c2_155 = arith.constant 2 : index
    %c2_156 = arith.constant 2 : index
    %c0_157 = arith.constant 0 : index
    %154 = vector.load %arg8[%c2_155, %c2_156, %c0_157] : memref<10x18x128xbf16, #tpu.memory_space<vmem>>, vector<8x16x128xbf16>
    %155 = vector.shape_cast %154 : vector<8x16x128xbf16> to vector<128x128xbf16>
    %c2_158 = arith.constant 2 : index
    %c2_159 = arith.constant 2 : index
    %c0_160 = arith.constant 0 : index
    %c0_161 = arith.constant 0 : index
    %156 = vector.load %arg5[%c2_158, %c2_159, %c0_160, %c0_161] : memref<3x3x128x128xbf16, #tpu.memory_space<vmem>>, vector<1x1x128x128xbf16>
    %157 = vector.shape_cast %156 : vector<1x1x128x128xbf16> to vector<128x128xbf16>
    %cst_162 = arith.constant dense<0.000000e+00> : vector<128x128xf32>
    %158 = tpu.matmul %155, %157, %cst_162 {dimension_numbers = #tpu.dot_dimension_numbers<[1], [0], [0], [1], [0, 0, 1, 1], [], []>} : vector<128x128xbf16>, vector<128x128xbf16>, vector<128x128xf32> -> vector<128x128xf32>
    %159 = arith.addf %153, %158 : vector<128x128xf32>
    %c2_i32_163 = arith.constant 2 : i32
    %160 = arith.addi %1, %c2_i32_163 : i32
    %c0_164 = arith.constant 0 : index
    %161 = arith.index_cast %160 : i32 to index
    %c1_165 = arith.constant 1 : index
    %c0_166 = arith.constant 0 : index
    %162 = vector.load %arg2[%c0_164, %161, %c1_165, %c0_166] : memref<1x12x18x128xbf16, #tpu.memory_space<vmem>>, vector<1x8x16x128xbf16>
    %163 = vector.shape_cast %162 : vector<1x8x16x128xbf16> to vector<8x16x128xbf16>
    %164 = arith.extf %163 : vector<8x16x128xbf16> to vector<8x16x128xf32>
    %c0_167 = arith.constant 0 : index
    %c0_168 = arith.constant 0 : index
    %165 = vector.load %arg6[%c0_167, %c0_168] : memref<1x128xf32, #tpu.memory_space<vmem>>, vector<1x128xf32>
    %166 = vector.broadcast %165 : vector<1x128xf32> to vector<128x128xf32>
    %167 = arith.addf %159, %166 : vector<128x128xf32>
    %168 = vector.shape_cast %164 : vector<8x16x128xf32> to vector<128x128xf32>
    %169 = arith.addf %167, %168 : vector<128x128xf32>
    %cst_169 = arith.constant 0.000000e+00 : f32
    %170 = vector.broadcast %cst_169 : f32 to vector<128x128xf32>
    %171 = arith.maximumf %169, %170 : vector<128x128xf32>
    %172 = vector.shape_cast %171 : vector<128x128xf32> to vector<8x16x128xf32>
    %173 = arith.truncf %172 : vector<8x16x128xf32> to vector<8x16x128xbf16>
    %c0_170 = arith.constant 0 : index
    %c0_171 = arith.constant 0 : index
    %c0_172 = arith.constant 0 : index
    %c0_173 = arith.constant 0 : index
    %174 = vector.load %arg7[%c0_170, %c0_171, %c0_172, %c0_173] : memref<1x8x16x128xbf16, #tpu.memory_space<vmem>>, vector<1x8x16x128xbf16>
    %175 = vector.shape_cast %174 : vector<1x8x16x128xbf16> to vector<8x16x128xbf16>
    %176 = vector.shape_cast %173 : vector<8x16x128xbf16> to vector<1x8x16x128xbf16>
    tpu.vector_store %arg7[%c0_170, %c0_171, %c0_172, %c0_173], %176 {strides = array<i32>} : memref<1x8x16x128xbf16, #tpu.memory_space<vmem>>, vector<1x8x16x128xbf16>,
    return
  }
  func.func @transform_0(%arg0: i32, %arg1: i32) -> (i32, i32, i32, i32) {
    %c0_i32 = arith.constant 0 : i32
    %c0_i32_0 = arith.constant 0 : i32
    %c0_i32_1 = arith.constant 0 : i32
    %c0_i32_2 = arith.constant 0 : i32
    return %arg0, %c0_i32, %c0_i32_0, %c0_i32_1 : i32, i32, i32, i32
  }
  func.func @transform_1(%arg0: i32, %arg1: i32) -> (i32, i32, i32, i32) {
    %c0_i32 = arith.constant 0 : i32
    %c0_i32_0 = arith.constant 0 : i32
    %c0_i32_1 = arith.constant 0 : i32
    %c0_i32_2 = arith.constant 0 : i32
    %c0_i32_3 = arith.constant 0 : i32
    return %c0_i32, %c0_i32_0, %c0_i32_1, %c0_i32_2 : i32, i32, i32, i32
  }
  func.func @transform_2(%arg0: i32, %arg1: i32) -> (i32, i32) {
    %c0_i32 = arith.constant 0 : i32
    %c0_i32_0 = arith.constant 0 : i32
    %c0_i32_1 = arith.constant 0 : i32
    return %c0_i32, %c0_i32_0 : i32, i32
  }
  func.func @transform_3(%arg0: i32, %arg1: i32) -> (i32, i32, i32, i32) {
    %c0_i32 = arith.constant 0 : i32
    %c0_i32_0 = arith.constant 0 : i32
    %c0_i32_1 = arith.constant 0 : i32
    %c0_i32_2 = arith.constant 0 : i32
    %c0_i32_3 = arith.constant 0 : i32
    return %c0_i32, %c0_i32_0, %c0_i32_1, %c0_i32_2 : i32, i32, i32, i32
  }
  func.func @transform_4(%arg0: i32, %arg1: i32) -> (i32, i32) {
    %c0_i32 = arith.constant 0 : i32
    %c0_i32_0 = arith.constant 0 : i32
    %c0_i32_1 = arith.constant 0 : i32
    return %c0_i32, %c0_i32_0 : i32, i32
  }
  func.func @transform_5(%arg0: i32, %arg1: i32) -> (i32, i32, i32, i32) {
    %c0_i32 = arith.constant 0 : i32
    %c0_i32_0 = arith.constant 0 : i32
    %c0_i32_1 = arith.constant 0 : i32
    return %arg0, %arg1, %c0_i32, %c0_i32_0 : i32, i32, i32, i32
  }
}

</mosaic_0001>

<llo_original>
// kernel: tile.13
$region0: #{tile.13}
  #allocation0 [shape = 's32[1]{0}', space=sflag, size = 0x4, scoped, tag = 'scoped memory for tile.13']
  %s0 = inlined_call_operand.vmem [shape: f32[4], index: 0, kind: input, shape index: {}]
  %s1 = inlined_call_operand.vmem [shape: f32[16,4], index: 1, kind: output, shape index: {}]
  // Predicated region
  $region2: #{tile.13} parent=0 // pred_check
    _
  $region3: #{tile.13} parent=0 // pred_check_branch
    %3 = sbr.rel (0) target = $region5
  $region4: #{tile.13} parent=0 // pred_region
    _
  $region5: #{tile.13} parent=0 // pred_fallthru
    _
  %v4 = vld [vmem:[%s0] ss:$0 sm:$0xff]
  %5 = vst [vmem:[%s1] sm:$0xff] %v4
  %s6 = scalar_lea.vmem %s1, 8
  %7 = vst [vmem:[%s6] sm:$0xff] %v4

// kernel: tile.14
$region0: #{tile.14}
  %s0 = inlined_call_operand.vmem [shape: f32[16,4], index: 0, kind: input, shape index: {}]
  %s1 = inlined_call_operand.vmem [shape: f32[64], index: 1, kind: output, shape index: {}]
  $region1: #{tile.14} parent=0
    #allocation0 [shape = 'u8[4096]{0}', space=vmem, size = 0x1000, scoped, tag = 'scoped mem for output reshape']
    %v2 = vld [vmem:[%s0] sm:$0x1]
    %vm3 = vcmask 31744
    %4 = vst.msk [vmem:[#allocation0] sm:$0x1] %vm3, %v2
    %s5 = scalar_lea.vmem %s0, 15
    %v6 = vld [vmem:[%s5] sm:$0x1]
    %7 = vrot.lane.b32.xlu0 %v6, 60
    %v8 = vpop.permute.xlu0 %7
    %vm9 = vcmask 523744
    %10 = vst.msk [vmem:[#allocation0] sm:$0x1] %vm9, %v8
    %s11 = scalar_lea.vmem %s0, 14
    %v12 = vld [vmem:[%s11] sm:$0x1]
    %13 = vrot.lane.b32.xlu0 %v12, 56
    %v14 = vpop.permute.xlu0 %13
    %vm15 = vcmask 490944
    %16 = vst.msk [vmem:[#allocation0] sm:$0x1] %vm15, %v14
    %s17 = scalar_lea.vmem %s0, 13
    %v18 = vld [vmem:[%s17] sm:$0x1]
    %19 = vrot.lane.b32.xlu0 %v18, 52
    %v20 = vpop.permute.xlu0 %19
    %vm21 = vcmask 458144
    %22 = vst.msk [vmem:[#allocation0] sm:$0x1] %vm21, %v20
    %s23 = scalar_lea.vmem %s0, 12
    %v24 = vld [vmem:[%s23] sm:$0x1]
    %25 = vrot.lane.b32.xlu0 %v24, 48
    %v26 = vpop.permute.xlu0 %25
    %vm27 = vcmask 425344
    %28 = vst.msk [vmem:[#allocation0] sm:$0x1] %vm27, %v26
    %s29 = scalar_lea.vmem %s0, 11
    %v30 = vld [vmem:[%s29] sm:$0x1]
    %31 = vrot.lane.b32.xlu0 %v30, 44
    %v32 = vpop.permute.xlu0 %31
    %vm33 = vcmask 392544
    %34 = vst.msk [vmem:[#allocation0] sm:$0x1] %vm33, %v32
    %s35 = scalar_lea.vmem %s0, 10
    %v36 = vld [vmem:[%s35] sm:$0x1]
    %37 = vrot.lane.b32.xlu0 %v36, 40
    %v38 = vpop.permute.xlu0 %37
    %vm39 = vcmask 359744
    %40 = vst.msk [vmem:[#allocation0] sm:$0x1] %vm39, %v38
    %s41 = scalar_lea.vmem %s0, 9
    %v42 = vld [vmem:[%s41] sm:$0x1]
    %43 = vrot.lane.b32.xlu0 %v42, 36
    %v44 = vpop.permute.xlu0 %43
    %vm45 = vcmask 326944
    %46 = vst.msk [vmem:[#allocation0] sm:$0x1] %vm45, %v44
    %s47 = scalar_lea.vmem %s0, 8
    %v48 = vld [vmem:[%s47] sm:$0x1]
    %49 = vrot.lane.b32.xlu0 %v48, 32
    %v50 = vpop.permute.xlu0 %49
    %vm51 = vcmask 294144
    %52 = vst.msk [vmem:[#allocation0] sm:$0x1] %vm51, %v50
    %s53 = scalar_lea.vmem %s0, 7
    %v54 = vld [vmem:[%s53] sm:$0x1]
    %55 = vrot.lane.b32.xlu0 %v54, 28
    %v56 = vpop.permute.xlu0 %55
    %vm57 = vcmask 261344
    %58 = vst.msk [vmem:[#allocation0] sm:$0x1] %vm57, %v56
    %s59 = scalar_lea.vmem %s0, 6
    %v60 = vld [vmem:[%s59] sm:$0x1]
    %61 = vrot.lane.b32.xlu0 %v60, 24
    %v62 = vpop.permute.xlu0 %61
    %vm63 = vcmask 228544
    %64 = vst.msk [vmem:[#allocation0] sm:$0x1] %vm63, %v62
    %s65 = scalar_lea.vmem %s0, 5
    %v66 = vld [vmem:[%s65] sm:$0x1]
    %67 = vrot.lane.b32.xlu0 %v66, 20
    %v68 = vpop.permute.xlu0 %67
    %vm69 = vcmask 195744
    %70 = vst.msk [vmem:[#allocation0] sm:$0x1] %vm69, %v68
    %s71 = scalar_lea.vmem %s0, 4
    %v72 = vld [vmem:[%s71] sm:$0x1]
    %73 = vrot.lane.b32.xlu0 %v72, 16
    %v74 = vpop.permute.xlu0 %73
    %vm75 = vcmask 162944
    %76 = vst.msk [vmem:[#allocation0] sm:$0x1] %vm75, %v74
    %s77 = scalar_lea.vmem %s0, 3
    %v78 = vld [vmem:[%s77] sm:$0x1]
    %79 = vrot.lane.b32.xlu0 %v78, 12
    %v80 = vpop.permute.xlu0 %79
    %vm81 = vcmask 130144
    %82 = vst.msk [vmem:[#allocation0] sm:$0x1] %vm81, %v80
    %s83 = scalar_lea.vmem %s0, 2
    %v84 = vld [vmem:[%s83] sm:$0x1]
    %85 = vrot.lane.b32.xlu0 %v84, 8
    %v86 = vpop.permute.xlu0 %85
    %vm87 = vcmask 97344
    %88 = vst.msk [vmem:[#allocation0] sm:$0x1] %vm87, %v86
    %s89 = scalar_lea.vmem %s0, 1
    %v90 = vld [vmem:[%s89] sm:$0x1]
    %91 = vrot.lane.b32.xlu0 %v90, 4
    %v92 = vpop.permute.xlu0 %91
    %vm93 = vcmask 64544
    %94 = vst.msk [vmem:[#allocation0] sm:$0x1] %vm93, %v92
    %s96 = sshll.u32 1, 1
    %s97 = ssub.s32 %s96, 1
    %v99 = vld [vmem:[#allocation0] sm:%s97]
    %s100 = sshll.u32 1, 1
    %s101 = ssub.s32 %s100, 1
    %102 = vst [vmem:[%s1] sm:%s101] %v99

// kernel: basic_block_3d.1
$region0: #{basic_block_3d.1}
  #allocation0 [shape = 'u32[]', space=smem, size = 0x4, offset = 0x4, fixed_abs, tag = 'smem constant byte address 0x4 - core index']
  #allocation1 [shape = 'u32[144,128]{1,0:T(1,128)}', space=vmem, size = 0x12000, scoped, tag = 'internal scratch']
  #allocation2 [shape = 'bf16[10,18,128]{2,1,0:T(8,128)(2,1)}', space=vmem, size = 0xf000, scoped, tag = 'scratch operand']
  %s0 = inlined_call_operand.vmem [shape: bf16[2,12,18,128], index: 0, kind: input, shape index: {}]
  %s1 = inlined_call_operand.vmem [shape: bf16[3,3,128,128], index: 1, kind: input, shape index: {}]
  %s2 = inlined_call_operand.vmem [shape: f32[1,128], index: 2, kind: input, shape index: {}]
  %s3 = inlined_call_operand.vmem [shape: bf16[3,3,128,128], index: 3, kind: input, shape index: {}]
  %s4 = inlined_call_operand.vmem [shape: f32[1,128], index: 4, kind: input, shape index: {}]
  %s5 = inlined_call_operand.vmem [shape: bf16[2,8,16,128], index: 5, kind: output, shape index: {}]
  %s6 = sld [smem:[#allocation0]]
  $region53: #{basic_block_3d.1} parent=0
    _
  %s8 = ssub.s32 1, %s6
  %s9 = scalar_select 0, %s8, %s6
  loop: start=0, step=1, limit=4
  $region2: #{basic_block_3d.1} parent=0 // loop_pre_header
    _
  $region3: #{basic_block_3d.1} parent=0 // loop_header
    %s11 = sphi 0, %s15
    %p12 = scmp.ge.s32.totalorder %s11, 4
    %s18 = sphi 0, %s30
    %s19 = sphi 0, %s26
    %s20 = sphi 0, %s18
    %s21 = sphi 0, %s19
    %s22 = sphi 0, %s20
    %s23 = sphi 0, %s21
    %s33 = sphi 0, %s35
    %s36 = sphi 0, %s33
    %s37 = sphi 0, %s36
    %s53 = sphi 0, %s37
    %s57 = sphi 0, %s57
    %s59 = sphi 0, %s57
    %s60 = sphi 0, %s59
    %s74 = sphi 0, %s60
    %s78 = sphi 0, %s78
    %s80 = sphi 0, %s78
    %s81 = sphi 0, %s80
    %s95 = sphi 0, %s81
    %s99 = sphi 0, %s99
    %s101 = sphi 0, %s99
    %s102 = sphi 0, %s101
    %s116 = sphi 0, %s102
    %s120 = sphi 0, %s120
    %s122 = sphi 0, %s120
    %s123 = sphi 0, %s122
    %s137 = sphi 0, %s123
    %s145 = sphi 0, %s147
    %s148 = sphi 0, %s145
    %s149 = sphi 0, %s148
    %s165 = sphi 0, %s149
  $region4: #{basic_block_3d.1} parent=0 // loop_header_branch
    %14 = sbr.rel (%p12) target = $region8
  $region5: #{basic_block_3d.1} parent=0 // loop_body
    %s16 = ssub.s32 %s11, 1
    %s17 = ssub.s32 %s11, 2
    %s24 = sadd.s32 1, %s19
    %p25 = scmp.ge.s32.totalorder %s24, 1
    %s26 = scalar_select %p25, 0, %s24
    %s27 = sadd.s32 1, %s18
    %s28 = scalar_select %p25, %s27, %s18
    %p29 = scmp.ge.s32.totalorder %s28, 2
    %s30 = scalar_select %p29, 0, %s28
    %s31 = ssub.s32 %s18, %s30
    %p32 = scmp.eq.s32.totalorder %s31, 0
    %s34 = sadd.s32 %s33, 1
    %s35 = scalar_select %p32, %s33, %s34
    %p38 = pneg %p32
    %p39 = scmp.eq.s32.totalorder %s11, 1
    %p40 = por %p38, %p39
    %p41 = scmp.ne.s32.totalorder %s33, %s36
    %p42 = scmp.eq.s32.totalorder %s11, 0
    %p43 = por %p41, %p42
    %p44 = scmp.ne.s32.totalorder %s33, %s36
    %p45 = scmp.eq.s32.totalorder %s16, 1
    %p46 = por %p44, %p45
    %p47 = scmp.ne.s32.totalorder %s36, %s37
    %p48 = scmp.eq.s32.totalorder %s16, 0
    %p49 = por %p47, %p48
    %p50 = scmp.ne.s32.totalorder %s36, %s37
    %p51 = scmp.eq.s32.totalorder %s17, 1
    %p52 = por %p50, %p51
    %p54 = scmp.ne.s32.totalorder %s37, %s53
    %p55 = scmp.eq.s32.totalorder %s17, 0
    %p56 = por %p54, %p55
    %s58 = sadd.s32 %s57, 1
    %p61 = scmp.eq.s32.totalorder %s11, 1
    %p62 = scmp.ne.s32.totalorder %s57, %s59
    %p63 = scmp.eq.s32.totalorder %s11, 0
    %p64 = por %p62, %p63
    %p65 = scmp.ne.s32.totalorder %s57, %s59
    %p66 = scmp.eq.s32.totalorder %s16, 1
    %p67 = por %p65, %p66
    %p68 = scmp.ne.s32.totalorder %s59, %s60
    %p69 = scmp.eq.s32.totalorder %s16, 0
    %p70 = por %p68, %p69
    %p71 = scmp.ne.s32.totalorder %s59, %s60
    %p72 = scmp.eq.s32.totalorder %s17, 1
    %p73 = por %p71, %p72
    %p75 = scmp.ne.s32.totalorder %s60, %s74
    %p76 = scmp.eq.s32.totalorder %s17, 0
    %p77 = por %p75, %p76
    %s79 = sadd.s32 %s78, 1
    %p82 = scmp.eq.s32.totalorder %s11, 1
    %p83 = scmp.ne.s32.totalorder %s78, %s80
    %p84 = scmp.eq.s32.totalorder %s11, 0
    %p85 = por %p83, %p84
    %p86 = scmp.ne.s32.totalorder %s78, %s80
    %p87 = scmp.eq.s32.totalorder %s16, 1
    %p88 = por %p86, %p87
    %p89 = scmp.ne.s32.totalorder %s80, %s81
    %p90 = scmp.eq.s32.totalorder %s16, 0
    %p91 = por %p89, %p90
    %p92 = scmp.ne.s32.totalorder %s80, %s81
    %p93 = scmp.eq.s32.totalorder %s17, 1
    %p94 = por %p92, %p93
    %p96 = scmp.ne.s32.totalorder %s81, %s95
    %p97 = scmp.eq.s32.totalorder %s17, 0
    %p98 = por %p96, %p97
    %s100 = sadd.s32 %s99, 1
    %p103 = scmp.eq.s32.totalorder %s11, 1
    %p104 = scmp.ne.s32.totalorder %s99, %s101
    %p105 = scmp.eq.s32.totalorder %s11, 0
    %p106 = por %p104, %p105
    %p107 = scmp.ne.s32.totalorder %s99, %s101
    %p108 = scmp.eq.s32.totalorder %s16, 1
    %p109 = por %p107, %p108
    %p110 = scmp.ne.s32.totalorder %s101, %s102
    %p111 = scmp.eq.s32.totalorder %s16, 0
    %p112 = por %p110, %p111
    %p113 = scmp.ne.s32.totalorder %s101, %s102
    %p114 = scmp.eq.s32.totalorder %s17, 1
    %p115 = por %p113, %p114
    %p117 = scmp.ne.s32.totalorder %s102, %s116
    %p118 = scmp.eq.s32.totalorder %s17, 0
    %p119 = por %p117, %p118
    %s121 = sadd.s32 %s120, 1
    %p124 = scmp.eq.s32.totalorder %s11, 1
    %p125 = scmp.ne.s32.totalorder %s120, %s122
    %p126 = scmp.eq.s32.totalorder %s11, 0
    %p127 = por %p125, %p126
    %p128 = scmp.ne.s32.totalorder %s120, %s122
    %p129 = scmp.eq.s32.totalorder %s16, 1
    %p130 = por %p128, %p129
    %p131 = scmp.ne.s32.totalorder %s122, %s123
    %p132 = scmp.eq.s32.totalorder %s16, 0
    %p133 = por %p131, %p132
    %p134 = scmp.ne.s32.totalorder %s122, %s123
    %p135 = scmp.eq.s32.totalorder %s17, 1
    %p136 = por %p134, %p135
    %p138 = scmp.ne.s32.totalorder %s123, %s137
    %p139 = scmp.eq.s32.totalorder %s17, 0
    %p140 = por %p138, %p139
    %s141 = ssub.s32 %s18, %s30
    %s142 = ssub.s32 %s19, %s26
    %s143 = sor.u32 %s141, %s142
    %p144 = scmp.eq.s32.totalorder %s143, 0
    %s146 = sadd.s32 %s145, 1
    %s147 = scalar_select %p144, %s145, %s146
    %p150 = pneg %p144
    %p151 = scmp.eq.s32.totalorder %s11, 1
    %p152 = por %p150, %p151
    %p153 = scmp.ne.s32.totalorder %s145, %s148
    %p154 = scmp.eq.s32.totalorder %s11, 0
    %p155 = por %p153, %p154
    %p156 = scmp.ne.s32.totalorder %s145, %s148
    %p157 = scmp.eq.s32.totalorder %s16, 1
    %p158 = por %p156, %p157
    %p159 = scmp.ne.s32.totalorder %s148, %s149
    %p160 = scmp.eq.s32.totalorder %s16, 0
    %p161 = por %p159, %p160
    %p162 = scmp.ne.s32.totalorder %s148, %s149
    %p163 = scmp.eq.s32.totalorder %s17, 1
    %p164 = por %p162, %p163
    %p166 = scmp.ne.s32.totalorder %s149, %s165
    %p167 = scmp.eq.s32.totalorder %s17, 0
    %p168 = por %p166, %p167
    %p169 = scmp.le.s32.totalorder 1, %s11
    %p170 = scmp.lt.s32.totalorder %s11, 3
    %p171 = pnand %p169, %p170
    %p172 = pneg %p171
    // Predicated region
    $region9: #{basic_block_3d.1} parent=5 // pred_check
      _
    $region10: #{basic_block_3d.1} parent=5 // pred_check_branch
      %174 = sbr.rel (%p171) target = $region12
    $region11: #{basic_block_3d.1} parent=5 // pred_region
      %s175 = ssub.s32 %s11, 1
      // Predicated region
      $region13: #{basic_block_3d.1} parent=11 // pred_check
        %p176 = pneg %p70
      $region14: #{basic_block_3d.1} parent=11 // pred_check_branch
        %178 = sbr.rel (%p176) target = $region16
      $region15: #{basic_block_3d.1} parent=11 // pred_region
        _
      $region16: #{basic_block_3d.1} parent=11 // pred_fallthru
        _
      // Predicated region
      $region17: #{basic_block_3d.1} parent=11 // pred_check
        %p179 = pneg %p91
      $region18: #{basic_block_3d.1} parent=11 // pred_check_branch
        %181 = sbr.rel (%p179) target = $region20
      $region19: #{basic_block_3d.1} parent=11 // pred_region
        _
      $region20: #{basic_block_3d.1} parent=11 // pred_fallthru
        _
      // Predicated region
      $region21: #{basic_block_3d.1} parent=11 // pred_check
        %p182 = pneg %p112
      $region22: #{basic_block_3d.1} parent=11 // pred_check_branch
        %184 = sbr.rel (%p182) target = $region24
      $region23: #{basic_block_3d.1} parent=11 // pred_region
        _
      $region24: #{basic_block_3d.1} parent=11 // pred_fallthru
        _
      // Predicated region
      $region25: #{basic_block_3d.1} parent=11 // pred_check
        %p185 = pneg %p133
      $region26: #{basic_block_3d.1} parent=11 // pred_check_branch
        %187 = sbr.rel (%p185) target = $region28
      $region27: #{basic_block_3d.1} parent=11 // pred_region
        _
      $region28: #{basic_block_3d.1} parent=11 // pred_fallthru
        _
    $region12: #{basic_block_3d.1} parent=5 // pred_fallthru
      _
    %p188 = scmp.lt.s32.totalorder %s11, 2
    // Predicated region
    $region29: #{basic_block_3d.1} parent=5 // pred_check
      %p189 = pneg %p188
    $region30: #{basic_block_3d.1} parent=5 // pred_check_branch
      %191 = sbr.rel (%p189) target = $region32
    $region31: #{basic_block_3d.1} parent=5 // pred_region
      // Predicated region
      $region33: #{basic_block_3d.1} parent=31 // pred_check
        %p192 = pneg %p43
      $region34: #{basic_block_3d.1} parent=31 // pred_check_branch
        %194 = sbr.rel (%p192) target = $region36
      $region35: #{basic_block_3d.1} parent=31 // pred_region
        %p195 = scmp.lt.s32.totalorder %s18, 1
        %s196 = scalar_select %p195, %s18, 1
        %s197 = smul.addr %s196, 36
        %s198 = smul.addr %s197, 4
        %s199 = scalar_lea.vmem %s0, %s198
      $region36: #{basic_block_3d.1} parent=31 // pred_fallthru
        _
    $region32: #{basic_block_3d.1} parent=5 // pred_fallthru
      _
    %p200 = scmp.le.s32.totalorder 1, %s11
    %p201 = scmp.lt.s32.totalorder %s11, 3
    %p202 = pnand %p200, %p201
    %p203 = pneg %p202
    // Predicated region
    $region37: #{basic_block_3d.1} parent=5 // pred_check
      _
    $region38: #{basic_block_3d.1} parent=5 // pred_check_branch
      %205 = sbr.rel (%p202) target = $region40
    $region39: #{basic_block_3d.1} parent=5 // pred_region
      %s206 = ssub.s32 %s11, 1
      %p207 = scmp.lt.s32.totalorder %s20, 1
      %s208 = scalar_select %p207, %s20, 1
      %s209 = smul.addr %s208, 36
      %s210 = smul.addr %s209, 4
      %s211 = scalar_lea.vmem %s0, %s210
      %p212 = pneg %p49
      %p213 = pneg %p46
      %p214 = pneg %p70
      %p215 = pneg %p67
      %p216 = pneg %p91
      %p217 = pneg %p88
      %p218 = pneg %p112
      %p219 = pneg %p109
      %p220 = pneg %p133
      %p221 = pneg %p130
      %p222 = pneg %p161
      %p223 = pneg %p158
      %s224 = smul.u32 8, %s21
      %p225 = scmp.lt.s32.totalorder %s20, 1
      %s226 = scalar_select %p225, %s20, 1
      %p227 = scmp.lt.s32.totalorder %s224, 7
      %s228 = scalar_select %p227, %s224, 7
      %s229 = smul.addr %s228, 2
      %s230 = smul.addr %s226, 16
      %s231 = sadd.s32 %s229, %s230
      %s232 = smul.addr %s231, 4
      %s233 = scalar_lea.vmem %s5, %s232
      %p234 = scmp.lt.s32.totalorder %s20, 1
      %s235 = scalar_select %p234, %s20, 1
      %s236 = smul.addr %s235, 36
      %s237 = smul.addr %s236, 4
      %s238 = scalar_lea.vmem %s0, %s237
      %s239 = smul.u32 8, %s21
      %p240 = scmp.lt.s32.totalorder %s20, 1
      %s241 = scalar_select %p240, %s20, 1
      %p242 = scmp.lt.s32.totalorder %s239, 7
      %s243 = scalar_select %p242, %s239, 7
      %s244 = smul.addr %s243, 2
      %s245 = smul.addr %s241, 16
      %s246 = sadd.s32 %s244, %s245
      %s247 = smul.addr %s246, 4
      %s248 = scalar_lea.vmem %s5, %s247
      %s249 = smul.u32 8, %s21
      %s251 = smul.u32 %s21, 8
      %s252 = smul.u32 %s251, 3
      %s253 = smul.addr %s252, 4
      %s254 = scalar_lea.vmem %s238, %s253
      %v255 = vld [vmem:[%s254] sm:$0xf]
      %v256 = vld [vmem:[%s254 + $0x4] sm:$0xf]
      %v257 = vld [vmem:[%s254 + $0xc] sm:$0xf]
      %v258 = vld [vmem:[%s254 + $0x10] sm:$0xf]
      %v259 = vld [vmem:[%s254 + $0x18] sm:$0xf]
      %v260 = vld [vmem:[%s254 + $0x1c] sm:$0xf]
      %v261 = vld [vmem:[%s254 + $0x24] sm:$0xf]
      %v262 = vld [vmem:[%s254 + $0x28] sm:$0xf]
      %v263 = vld [vmem:[%s254 + $0x30] sm:$0xf]
      %v264 = vld [vmem:[%s254 + $0x34] sm:$0xf]
      %v265 = vld [vmem:[%s254 + $0x3c] sm:$0xf]
      %v266 = vld [vmem:[%s254 + $0x40] sm:$0xf]
      %v267 = vld [vmem:[%s254 + $0x48] sm:$0xf]
      %v268 = vld [vmem:[%s254 + $0x4c] sm:$0xf]
      %v269 = vld [vmem:[%s254 + $0x54] sm:$0xf]
      %v270 = vld [vmem:[%s254 + $0x58] sm:$0xf]
      %v271 = vld [vmem:[%s254 + $0x60] sm:$0xf]
      %v272 = vld [vmem:[%s254 + $0x64] sm:$0xf]
      %v273 = vld [vmem:[%s254 + $0x6c] sm:$0xf]
      %v274 = vld [vmem:[%s254 + $0x70] sm:$0xf]
      %v275 = vld [vmem:[%s1] sm:$0xf]
      %v276 = vld [vmem:[%s1 + $0x4] sm:$0xf]
      %v277 = vld [vmem:[%s1 + $0x8] sm:$0xf]
      %v278 = vld [vmem:[%s1 + $0xc] sm:$0xf]
      %v279 = vld [vmem:[%s1 + $0x10] sm:$0xf]
      %v280 = vld [vmem:[%s1 + $0x14] sm:$0xf]
      %v281 = vld [vmem:[%s1 + $0x18] sm:$0xf]
      %v282 = vld [vmem:[%s1 + $0x1c] sm:$0xf]
      %v283 = vld [vmem:[%s1 + $0x20] sm:$0xf]
      %v284 = vld [vmem:[%s1 + $0x24] sm:$0xf]
      %v285 = vld [vmem:[%s1 + $0x28] sm:$0xf]
      %v286 = vld [vmem:[%s1 + $0x2c] sm:$0xf]
      %v287 = vld [vmem:[%s1 + $0x30] sm:$0xf]
      %v288 = vld [vmem:[%s1 + $0x34] sm:$0xf]
      %v289 = vld [vmem:[%s1 + $0x38] sm:$0xf]
      %v290 = vld [vmem:[%s1 + $0x3c] sm:$0xf]
      %v291 = vld [vmem:[%s254 + $0x8] sm:$0x1]
      %v292 = vld [vmem:[%s254 + $0x14] sm:$0x1]
      %v293 = vld [vmem:[%s254 + $0x20] sm:$0x1]
      %v294 = vld [vmem:[%s254 + $0x2c] sm:$0x1]
      %v295 = vld [vmem:[%s254 + $0x38] sm:$0x1]
      %v296 = vld [vmem:[%s254 + $0x44] sm:$0x1]
      %v297 = vld [vmem:[%s254 + $0x50] sm:$0x1]
      %v298 = vld [vmem:[%s254 + $0x5c] sm:$0x1]
      %v299 = vld [vmem:[%s254 + $0x68] sm:$0x1]
      %v300 = vld [vmem:[%s254 + $0x74] sm:$0x1]
      %vm301 = vsmask.f32 3328
      %vm302 = vsmask.f32 7440
      %vm303 = vmor %vm301, %vm302
      %v305 = vshrl.u32 %v255, 16
      %v307 = vrot.slane %v305, 4
      %v308 = vshll.u32 %v255, 16
      %v310 = vrot.slane %v308, 5
      %v311 = vor.u32 %v307, %v310
      %v312 = vrot.slane %v311, 4
      %v314 = vshll.u32 %v256, 16
      %v316 = vrot.slane %v314, 5
      %v317 = vsel %vm303, %v312, %v316
      %v318 = vshrl.u32 %v256, 16
      %v320 = vrot.slane %v318, 4
      %v321 = vor.u32 %v320, %v316
      %v322 = vrot.slane %v321, 4
      %v324 = vshll.u32 %v291, 16
      %v326 = vrot.slane %v324, 5
      %v327 = vsel %vm303, %v322, %v326
      %v329 = vshrl.u32 %v257, 16
      %v331 = vrot.slane %v329, 4
      %v332 = vshll.u32 %v257, 16
      %v334 = vrot.slane %v332, 5
      %v335 = vor.u32 %v331, %v334
      %v336 = vrot.slane %v335, 4
      %v338 = vshll.u32 %v258, 16
      %v340 = vrot.slane %v338, 5
      %v341 = vsel %vm303, %v336, %v340
      %v342 = vshrl.u32 %v258, 16
      %v344 = vrot.slane %v342, 4
      %v345 = vor.u32 %v344, %v340
      %v346 = vrot.slane %v345, 4
      %v348 = vshll.u32 %v292, 16
      %v350 = vrot.slane %v348, 5
      %v351 = vsel %vm303, %v346, %v350
      %v353 = vshrl.u32 %v259, 16
      %v355 = vrot.slane %v353, 4
      %v356 = vshll.u32 %v259, 16
      %v358 = vrot.slane %v356, 5
      %v359 = vor.u32 %v355, %v358
      %v360 = vrot.slane %v359, 4
      %v362 = vshll.u32 %v260, 16
      %v364 = vrot.slane %v362, 5
      %v365 = vsel %vm303, %v360, %v364
      %v366 = vshrl.u32 %v260, 16
      %v368 = vrot.slane %v366, 4
      %v369 = vor.u32 %v368, %v364
      %v370 = vrot.slane %v369, 4
      %v372 = vshll.u32 %v293, 16
      %v374 = vrot.slane %v372, 5
      %v375 = vsel %vm303, %v370, %v374
      %v377 = vshrl.u32 %v261, 16
      %v379 = vrot.slane %v377, 4
      %v380 = vshll.u32 %v261, 16
      %v382 = vrot.slane %v380, 5
      %v383 = vor.u32 %v379, %v382
      %v384 = vrot.slane %v383, 4
      %v386 = vshll.u32 %v262, 16
      %v388 = vrot.slane %v386, 5
      %v389 = vsel %vm303, %v384, %v388
      %v390 = vshrl.u32 %v262, 16
      %v392 = vrot.slane %v390, 4
      %v393 = vor.u32 %v392, %v388
      %v394 = vrot.slane %v393, 4
      %v396 = vshll.u32 %v294, 16
      %v398 = vrot.slane %v396, 5
      %v399 = vsel %vm303, %v394, %v398
      %v401 = vshrl.u32 %v263, 16
      %v403 = vrot.slane %v401, 4
      %v404 = vshll.u32 %v263, 16
      %v406 = vrot.slane %v404, 5
      %v407 = vor.u32 %v403, %v406
      %v408 = vrot.slane %v407, 4
      %v410 = vshll.u32 %v264, 16
      %v412 = vrot.slane %v410, 5
      %v413 = vsel %vm303, %v408, %v412
      %v414 = vshrl.u32 %v264, 16
      %v416 = vrot.slane %v414, 4
      %v417 = vor.u32 %v416, %v412
      %v418 = vrot.slane %v417, 4
      %v420 = vshll.u32 %v295, 16
      %v422 = vrot.slane %v420, 5
      %v423 = vsel %vm303, %v418, %v422
      %v425 = vshrl.u32 %v265, 16
      %v427 = vrot.slane %v425, 4
      %v428 = vshll.u32 %v265, 16
      %v430 = vrot.slane %v428, 5
      %v431 = vor.u32 %v427, %v430
      %v432 = vrot.slane %v431, 4
      %v434 = vshll.u32 %v266, 16
      %v436 = vrot.slane %v434, 5
      %v437 = vsel %vm303, %v432, %v436
      %v438 = vshrl.u32 %v266, 16
      %v440 = vrot.slane %v438, 4
      %v441 = vor.u32 %v440, %v436
      %v442 = vrot.slane %v441, 4
      %v444 = vshll.u32 %v296, 16
      %v446 = vrot.slane %v444, 5
      %v447 = vsel %vm303, %v442, %v446
      %v449 = vshrl.u32 %v267, 16
      %v451 = vrot.slane %v449, 4
      %v452 = vshll.u32 %v267, 16
      %v454 = vrot.slane %v452, 5
      %v455 = vor.u32 %v451, %v454
      %v456 = vrot.slane %v455, 4
      %v458 = vshll.u32 %v268, 16
      %v460 = vrot.slane %v458, 5
      %v461 = vsel %vm303, %v456, %v460
      %v462 = vshrl.u32 %v268, 16
      %v464 = vrot.slane %v462, 4
      %v465 = vor.u32 %v464, %v460
      %v466 = vrot.slane %v465, 4
      %v468 = vshll.u32 %v297, 16
      %v470 = vrot.slane %v468, 5
      %v471 = vsel %vm303, %v466, %v470
      %v473 = vshrl.u32 %v269, 16
      %v475 = vrot.slane %v473, 4
      %v476 = vshll.u32 %v269, 16
      %v478 = vrot.slane %v476, 5
      %v479 = vor.u32 %v475, %v478
      %v480 = vrot.slane %v479, 4
      %v482 = vshll.u32 %v270, 16
      %v484 = vrot.slane %v482, 5
      %v485 = vsel %vm303, %v480, %v484
      %v486 = vshrl.u32 %v270, 16
      %v488 = vrot.slane %v486, 4
      %v489 = vor.u32 %v488, %v484
      %v490 = vrot.slane %v489, 4
      %v492 = vshll.u32 %v298, 16
      %v494 = vrot.slane %v492, 5
      %v495 = vsel %vm303, %v490, %v494
      %v497 = vshrl.u32 %v271, 16
      %v499 = vrot.slane %v497, 4
      %v500 = vshll.u32 %v271, 16
      %v502 = vrot.slane %v500, 5
      %v503 = vor.u32 %v499, %v502
      %v504 = vrot.slane %v503, 4
      %v506 = vshll.u32 %v272, 16
      %v508 = vrot.slane %v506, 5
      %v509 = vsel %vm303, %v504, %v508
      %v510 = vshrl.u32 %v272, 16
      %v512 = vrot.slane %v510, 4
      %v513 = vor.u32 %v512, %v508
      %v514 = vrot.slane %v513, 4
      %v516 = vshll.u32 %v299, 16
      %v518 = vrot.slane %v516, 5
      %v519 = vsel %vm303, %v514, %v518
      %v521 = vshrl.u32 %v273, 16
      %v523 = vrot.slane %v521, 4
      %v524 = vshll.u32 %v273, 16
      %v526 = vrot.slane %v524, 5
      %v527 = vor.u32 %v523, %v526
      %v528 = vrot.slane %v527, 4
      %v530 = vshll.u32 %v274, 16
      %v532 = vrot.slane %v530, 5
      %v533 = vsel %vm303, %v528, %v532
      %v534 = vshrl.u32 %v274, 16
      %v536 = vrot.slane %v534, 4
      %v537 = vor.u32 %v536, %v532
      %v538 = vrot.slane %v537, 4
      %v540 = vshll.u32 %v300, 16
      %v542 = vrot.slane %v540, 5
      %v543 = vsel %vm303, %v538, %v542
      %s544 = scalar_lea.vmem %s1, 64
      %v545 = vld [vmem:[%s544] sm:$0xf]
      %v546 = vld [vmem:[%s544 + $0x4] sm:$0xf]
      %v547 = vld [vmem:[%s544 + $0x8] sm:$0xf]
      %v548 = vld [vmem:[%s544 + $0xc] sm:$0xf]
      %v549 = vld [vmem:[%s544 + $0x10] sm:$0xf]
      %v550 = vld [vmem:[%s544 + $0x14] sm:$0xf]
      %v551 = vld [vmem:[%s544 + $0x18] sm:$0xf]
      %v552 = vld [vmem:[%s544 + $0x1c] sm:$0xf]
      %v553 = vld [vmem:[%s544 + $0x20] sm:$0xf]
      %v554 = vld [vmem:[%s544 + $0x24] sm:$0xf]
      %v555 = vld [vmem:[%s544 + $0x28] sm:$0xf]
      %v556 = vld [vmem:[%s544 + $0x2c] sm:$0xf]
      %v557 = vld [vmem:[%s544 + $0x30] sm:$0xf]
      %v558 = vld [vmem:[%s544 + $0x34] sm:$0xf]
      %v559 = vld [vmem:[%s544 + $0x38] sm:$0xf]
      %v560 = vld [vmem:[%s544 + $0x3c] sm:$0xf]
      %v561 = vunpack.c.l.b16 %v317
      %v562 = vunpack.c.l.b16 %v327
      %v563 = vunpack.c.l.b16 %v341
      %v564 = vunpack.c.l.b16 %v351
      %v565 = vunpack.c.l.b16 %v365
      %v566 = vunpack.c.l.b16 %v375
      %v567 = vunpack.c.l.b16 %v389
      %v568 = vunpack.c.l.b16 %v399
      %v569 = vunpack.c.l.b16 %v413
      %v570 = vunpack.c.l.b16 %v423
      %v571 = vunpack.c.l.b16 %v437
      %v572 = vunpack.c.l.b16 %v447
      %v573 = vunpack.c.l.b16 %v461
      %v574 = vunpack.c.l.b16 %v471
      %v575 = vunpack.c.l.b16 %v485
      %v576 = vunpack.c.l.b16 %v495
      %v577 = vunpack.c.l.b16 %v509
      %v578 = vunpack.c.l.b16 %v519
      %v579 = vunpack.c.l.b16 %v533
      %v580 = vunpack.c.l.b16 %v543
      %v581 = vpack.c.b16 %v562, %v561
      %v582 = vpack.c.b16 %v564, %v563
      %v583 = vpack.c.b16 %v566, %v565
      %v584 = vpack.c.b16 %v568, %v567
      %v585 = vpack.c.b16 %v570, %v569
      %v586 = vpack.c.b16 %v572, %v571
      %v587 = vpack.c.b16 %v574, %v573
      %v588 = vpack.c.b16 %v576, %v575
      %v589 = vpack.c.b16 %v578, %v577
      %v590 = vpack.c.b16 %v580, %v579
      %v617 = vunpack.c.l.b16 %v545
      %v618 = vunpack.c.l.b16 %v546
      %v619 = vunpack.c.l.b16 %v547
      %v620 = vunpack.c.l.b16 %v548
      %v621 = vunpack.c.l.b16 %v549
      %v622 = vunpack.c.l.b16 %v550
      %v623 = vunpack.c.l.b16 %v551
      %v624 = vunpack.c.l.b16 %v552
      %v625 = vunpack.c.l.b16 %v553
      %v626 = vunpack.c.l.b16 %v554
      %v627 = vunpack.c.l.b16 %v555
      %v628 = vunpack.c.l.b16 %v556
      %v629 = vunpack.c.l.b16 %v557
      %v630 = vunpack.c.l.b16 %v558
      %v631 = vunpack.c.l.b16 %v559
      %v632 = vunpack.c.l.b16 %v560
      %v633 = vpack.c.b16 %v618, %v617
      %v634 = vpack.c.b16 %v620, %v619
      %v635 = vpack.c.b16 %v622, %v621
      %v636 = vpack.c.b16 %v624, %v623
      %v637 = vpack.c.b16 %v626, %v625
      %v638 = vpack.c.b16 %v628, %v627
      %v639 = vpack.c.b16 %v630, %v629
      %v640 = vpack.c.b16 %v632, %v631
      %649 = vmatprep.subr.bf16.mxu0 0
      %650 = vmatpush1.bf16.msra.mxu0 %v640
      %651 = vmatprep.subr.bf16.mxu0 0
      %652 = vmatpush1.bf16.msra.mxu0 %v639
      %653 = vmatprep.subr.bf16.mxu0 0
      %654 = vmatpush1.bf16.msra.mxu0 %v638
      %655 = vmatprep.subr.bf16.mxu0 0
      %656 = vmatpush1.bf16.msra.mxu0 %v637
      %657 = vmatprep.subr.bf16.mxu0 0
      %658 = vmatpush1.bf16.msra.mxu0 %v636
      %659 = vmatprep.subr.bf16.mxu0 0
      %660 = vmatpush1.bf16.msra.mxu0 %v635
      %661 = vmatprep.subr.bf16.mxu0 0
      %662 = vmatpush1.bf16.msra.mxu0 %v634
      %663 = vmatprep.subr.bf16.mxu0 0
      %664 = vmatpush1.bf16.msra.mxu0 %v633
      %665 = vmatprep.subr.bf16.mxu0 0
      %666 = vmatpush2.bf16.msra.mxu0 0
      %667 = vmatprep.subr.bf16.mxu0 0
      %668 = vmatpush2.bf16.msra.mxu0 0
      %669 = vmatprep.subr.bf16.mxu0 0
      %670 = vmatpush2.bf16.msra.mxu0 0
      %671 = vmatprep.subr.bf16.mxu0 0
      %672 = vmatpush2.bf16.msra.mxu0 0
      %673 = vmatprep.subr.bf16.mxu0 0
      %674 = vmatpush2.bf16.msra.mxu0 0
      %675 = vmatprep.subr.bf16.mxu0 0
      %676 = vmatpush2.bf16.msra.mxu0 0
      %677 = vmatprep.subr.bf16.mxu0 0
      %678 = vmatpush2.bf16.msra.mxu0 0
      %679 = vmatprep.subr.bf16.mxu0 0
      %680 = vmatpush2.bf16.msra.mxu0 0
      %681 = vmatprep.mubr.bf16.mxu0 0
      %682 = vmatmul.mubr.bf16.gmra.mxu0 %v581
      %v683 = vpop.f32.mrf.mxu0
      %v684 = vadd.f32 0.0, %v683
      %v685 = vpop.f32.mrf.mxu0
      %v686 = vpop.f32.mrf.mxu0
      %v687 = vadd.f32 0.0, %v686
      %v688 = vpop.f32.mrf.mxu0
      %689 = vmatprep.mubr.bf16.mxu0 0
      %690 = vmatmul.mubr.bf16.gmra.mxu0 %v582
      %v691 = vpop.f32.mrf.mxu0
      %v692 = vadd.f32 0.0, %v691
      %v693 = vpop.f32.mrf.mxu0
      %v694 = vpop.f32.mrf.mxu0
      %v695 = vadd.f32 0.0, %v694
      %v696 = vpop.f32.mrf.mxu0
      %697 = vmatprep.mubr.bf16.mxu0 0
      %698 = vmatmul.mubr.bf16.gmra.mxu0 %v583
      %v699 = vpop.f32.mrf.mxu0
      %v700 = vadd.f32 0.0, %v699
      %v701 = vpop.f32.mrf.mxu0
      %v702 = vpop.f32.mrf.mxu0
      %v703 = vadd.f32 0.0, %v702
      %v704 = vpop.f32.mrf.mxu0
      %705 = vmatprep.mubr.bf16.mxu0 0
      %706 = vmatmul.mubr.bf16.gmra.mxu0 %v584
      %v707 = vpop.f32.mrf.mxu0
      %v708 = vadd.f32 0.0, %v707
      %v709 = vpop.f32.mrf.mxu0
      %v710 = vpop.f32.mrf.mxu0
      %v711 = vadd.f32 0.0, %v710
      %v712 = vpop.f32.mrf.mxu0
      %713 = vmatprep.mubr.bf16.mxu0 0
      %714 = vmatmul.mubr.bf16.gmra.mxu0 %v585
      %v715 = vpop.f32.mrf.mxu0
      %v716 = vadd.f32 0.0, %v715
      %v717 = vpop.f32.mrf.mxu0
      %v718 = vpop.f32.mrf.mxu0
      %v719 = vadd.f32 0.0, %v718
      %v720 = vpop.f32.mrf.mxu0
      %721 = vmatprep.mubr.bf16.mxu0 0
      %722 = vmatmul.mubr.bf16.gmra.mxu0 %v586
      %v723 = vpop.f32.mrf.mxu0
      %v724 = vadd.f32 0.0, %v723
      %v725 = vpop.f32.mrf.mxu0
      %v726 = vpop.f32.mrf.mxu0
      %v727 = vadd.f32 0.0, %v726
      %v728 = vpop.f32.mrf.mxu0
      %729 = vmatprep.mubr.bf16.mxu0 0
      %730 = vmatmul.mubr.bf16.gmra.mxu0 %v587
      %v731 = vpop.f32.mrf.mxu0
      %v732 = vadd.f32 0.0, %v731
      %v733 = vpop.f32.mrf.mxu0
      %v734 = vpop.f32.mrf.mxu0
      %v735 = vadd.f32 0.0, %v734
      %v736 = vpop.f32.mrf.mxu0
      %737 = vmatprep.mubr.bf16.mxu0 0
      %738 = vmatmul.mubr.bf16.gmra.mxu0 %v588
      %v739 = vpop.f32.mrf.mxu0
      %v740 = vadd.f32 0.0, %v739
      %v741 = vpop.f32.mrf.mxu0
      %v742 = vpop.f32.mrf.mxu0
      %v743 = vadd.f32 0.0, %v742
      %v744 = vpop.f32.mrf.mxu0
      %745 = vmatprep.mubr.bf16.mxu0 0
      %746 = vmatmul.mubr.bf16.gmra.mxu0 %v589
      %v747 = vpop.f32.mrf.mxu0
      %v748 = vadd.f32 0.0, %v747
      %v749 = vpop.f32.mrf.mxu0
      %v750 = vpop.f32.mrf.mxu0
      %v751 = vadd.f32 0.0, %v750
      %v752 = vpop.f32.mrf.mxu0
      %753 = vmatprep.mubr.bf16.mxu0 0
      %754 = vmatmul.mubr.bf16.gmra.mxu0 %v590
      %v755 = vpop.f32.mrf.mxu0
      %v756 = vadd.f32 0.0, %v755
      %v757 = vpop.f32.mrf.mxu0
      %v758 = vpop.f32.mrf.mxu0
      %v759 = vadd.f32 0.0, %v758
      %v760 = vpop.f32.mrf.mxu0
      %761 = vdwg.mxu0
      %v782 = vunpack.c.l.b16 %v255
      %v783 = vunpack.c.l.b16 %v256
      %v784 = vunpack.c.l.b16 %v257
      %v785 = vunpack.c.l.b16 %v258
      %v786 = vunpack.c.l.b16 %v259
      %v787 = vunpack.c.l.b16 %v260
      %v788 = vunpack.c.l.b16 %v261
      %v789 = vunpack.c.l.b16 %v262
      %v790 = vunpack.c.l.b16 %v263
      %v791 = vunpack.c.l.b16 %v264
      %v792 = vunpack.c.l.b16 %v265
      %v793 = vunpack.c.l.b16 %v266
      %v794 = vunpack.c.l.b16 %v267
      %v795 = vunpack.c.l.b16 %v268
      %v796 = vunpack.c.l.b16 %v269
      %v797 = vunpack.c.l.b16 %v270
      %v798 = vunpack.c.l.b16 %v271
      %v799 = vunpack.c.l.b16 %v272
      %v800 = vunpack.c.l.b16 %v273
      %v801 = vunpack.c.l.b16 %v274
      %v802 = vpack.c.b16 %v783, %v782
      %v803 = vpack.c.b16 %v785, %v784
      %v804 = vpack.c.b16 %v787, %v786
      %v805 = vpack.c.b16 %v789, %v788
      %v806 = vpack.c.b16 %v791, %v790
      %v807 = vpack.c.b16 %v793, %v792
      %v808 = vpack.c.b16 %v795, %v794
      %v809 = vpack.c.b16 %v797, %v796
      %v810 = vpack.c.b16 %v799, %v798
      %v811 = vpack.c.b16 %v801, %v800
      %v838 = vunpack.c.l.b16 %v275
      %v839 = vunpack.c.l.b16 %v276
      %v840 = vunpack.c.l.b16 %v277
      %v841 = vunpack.c.l.b16 %v278
      %v842 = vunpack.c.l.b16 %v279
      %v843 = vunpack.c.l.b16 %v280
      %v844 = vunpack.c.l.b16 %v281
      %v845 = vunpack.c.l.b16 %v282
      %v846 = vunpack.c.l.b16 %v283
      %v847 = vunpack.c.l.b16 %v284
      %v848 = vunpack.c.l.b16 %v285
      %v849 = vunpack.c.l.b16 %v286
      %v850 = vunpack.c.l.b16 %v287
      %v851 = vunpack.c.l.b16 %v288
      %v852 = vunpack.c.l.b16 %v289
      %v853 = vunpack.c.l.b16 %v290
      %v854 = vpack.c.b16 %v839, %v838
      %v855 = vpack.c.b16 %v841, %v840
      %v856 = vpack.c.b16 %v843, %v842
      %v857 = vpack.c.b16 %v845, %v844
      %v858 = vpack.c.b16 %v847, %v846
      %v859 = vpack.c.b16 %v849, %v848
      %v860 = vpack.c.b16 %v851, %v850
      %v861 = vpack.c.b16 %v853, %v852
      %870 = vmatprep.subr.bf16.mxu0 0
      %871 = vmatpush1.bf16.msra.mxu0 %v861
      %872 = vmatprep.subr.bf16.mxu0 0
      %873 = vmatpush1.bf16.msra.mxu0 %v860
      %874 = vmatprep.subr.bf16.mxu0 0
      %875 = vmatpush1.bf16.msra.mxu0 %v859
      %876 = vmatprep.subr.bf16.mxu0 0
      %877 = vmatpush1.bf16.msra.mxu0 %v858
      %878 = vmatprep.subr.bf16.mxu0 0
      %879 = vmatpush1.bf16.msra.mxu0 %v857
      %880 = vmatprep.subr.bf16.mxu0 0
      %881 = vmatpush1.bf16.msra.mxu0 %v856
      %882 = vmatprep.subr.bf16.mxu0 0
      %883 = vmatpush1.bf16.msra.mxu0 %v855
      %884 = vmatprep.subr.bf16.mxu0 0
      %885 = vmatpush1.bf16.msra.mxu0 %v854
      %886 = vmatprep.subr.bf16.mxu0 0
      %887 = vmatpush2.bf16.msra.mxu0 0
      %888 = vmatprep.subr.bf16.mxu0 0
      %889 = vmatpush2.bf16.msra.mxu0 0
      %890 = vmatprep.subr.bf16.mxu0 0
      %891 = vmatpush2.bf16.msra.mxu0 0
      %892 = vmatprep.subr.bf16.mxu0 0
      %893 = vmatpush2.bf16.msra.mxu0 0
      %894 = vmatprep.subr.bf16.mxu0 0
      %895 = vmatpush2.bf16.msra.mxu0 0
      %896 = vmatprep.subr.bf16.mxu0 0
      %897 = vmatpush2.bf16.msra.mxu0 0
      %898 = vmatprep.subr.bf16.mxu0 0
      %899 = vmatpush2.bf16.msra.mxu0 0
      %900 = vmatprep.subr.bf16.mxu0 0
      %901 = vmatpush2.bf16.msra.mxu0 0
      %902 = vmatprep.mubr.bf16.mxu0 0
      %903 = vmatmul.mubr.bf16.gmra.mxu0 %v802
      %v904 = vpop.f32.mrf.mxu0
      %v905 = vadd.f32 %v684, %v904
      %v906 = vpop.f32.mrf.mxu0
      %v907 = vpop.f32.mrf.mxu0
      %v908 = vadd.f32 %v687, %v907
      %v909 = vpop.f32.mrf.mxu0
      %910 = vmatprep.mubr.bf16.mxu0 0
      %911 = vmatmul.mubr.bf16.gmra.mxu0 %v803
      %v912 = vpop.f32.mrf.mxu0
      %v913 = vadd.f32 %v692, %v912
      %v914 = vpop.f32.mrf.mxu0
      %v915 = vpop.f32.mrf.mxu0
      %v916 = vadd.f32 %v695, %v915
      %v917 = vpop.f32.mrf.mxu0
      %918 = vmatprep.mubr.bf16.mxu0 0
      %919 = vmatmul.mubr.bf16.gmra.mxu0 %v804
      %v920 = vpop.f32.mrf.mxu0
      %v921 = vadd.f32 %v700, %v920
      %v922 = vpop.f32.mrf.mxu0
      %v923 = vpop.f32.mrf.mxu0
      %v924 = vadd.f32 %v703, %v923
      %v925 = vpop.f32.mrf.mxu0
      %926 = vmatprep.mubr.bf16.mxu0 0
      %927 = vmatmul.mubr.bf16.gmra.mxu0 %v805
      %v928 = vpop.f32.mrf.mxu0
      %v929 = vadd.f32 %v708, %v928
      %v930 = vpop.f32.mrf.mxu0
      %v931 = vpop.f32.mrf.mxu0
      %v932 = vadd.f32 %v711, %v931
      %v933 = vpop.f32.mrf.mxu0
      %934 = vmatprep.mubr.bf16.mxu0 0
      %935 = vmatmul.mubr.bf16.gmra.mxu0 %v806
      %v936 = vpop.f32.mrf.mxu0
      %v937 = vadd.f32 %v716, %v936
      %v938 = vpop.f32.mrf.mxu0
      %v939 = vpop.f32.mrf.mxu0
      %v940 = vadd.f32 %v719, %v939
      %v941 = vpop.f32.mrf.mxu0
      %942 = vmatprep.mubr.bf16.mxu0 0
      %943 = vmatmul.mubr.bf16.gmra.mxu0 %v807
      %v944 = vpop.f32.mrf.mxu0
      %v945 = vadd.f32 %v724, %v944
      %v946 = vpop.f32.mrf.mxu0
      %v947 = vpop.f32.mrf.mxu0
      %v948 = vadd.f32 %v727, %v947
      %v949 = vpop.f32.mrf.mxu0
      %950 = vmatprep.mubr.bf16.mxu0 0
      %951 = vmatmul.mubr.bf16.gmra.mxu0 %v808
      %v952 = vpop.f32.mrf.mxu0
      %v953 = vadd.f32 %v732, %v952
      %v954 = vpop.f32.mrf.mxu0
      %v955 = vpop.f32.mrf.mxu0
      %v956 = vadd.f32 %v735, %v955
      %v957 = vpop.f32.mrf.mxu0
      %958 = vmatprep.mubr.bf16.mxu0 0
      %959 = vmatmul.mubr.bf16.gmra.mxu0 %v809
      %v960 = vpop.f32.mrf.mxu0
      %v961 = vadd.f32 %v740, %v960
      %v962 = vpop.f32.mrf.mxu0
      %v963 = vpop.f32.mrf.mxu0
      %v964 = vadd.f32 %v743, %v963
      %v965 = vpop.f32.mrf.mxu0
      %966 = vmatprep.mubr.bf16.mxu0 0
      %967 = vmatmul.mubr.bf16.gmra.mxu0 %v810
      %v968 = vpop.f32.mrf.mxu0
      %v969 = vadd.f32 %v748, %v968
      %v970 = vpop.f32.mrf.mxu0
      %v971 = vpop.f32.mrf.mxu0
      %v972 = vadd.f32 %v751, %v971
      %v973 = vpop.f32.mrf.mxu0
      %974 = vmatprep.mubr.bf16.mxu0 0
      %975 = vmatmul.mubr.bf16.gmra.mxu0 %v811
      %v976 = vpop.f32.mrf.mxu0
      %v977 = vadd.f32 %v756, %v976
      %v978 = vpop.f32.mrf.mxu0
      %v979 = vpop.f32.mrf.mxu0
      %v980 = vadd.f32 %v759, %v979
      %v981 = vpop.f32.mrf.mxu0
      %982 = vdwg.mxu0
      %v983 = vld [vmem:[%s254] sm:$0xe]
      %v984 = vld [vmem:[%s254 + $0xc] sm:$0xe]
      %v985 = vld [vmem:[%s254 + $0x18] sm:$0xe]
      %v986 = vld [vmem:[%s254 + $0x24] sm:$0xe]
      %v987 = vld [vmem:[%s254 + $0x30] sm:$0xe]
      %v988 = vld [vmem:[%s254 + $0x3c] sm:$0xe]
      %v989 = vld [vmem:[%s254 + $0x48] sm:$0xe]
      %v990 = vld [vmem:[%s254 + $0x54] sm:$0xe]
      %v991 = vld [vmem:[%s254 + $0x60] sm:$0xe]
      %v992 = vld [vmem:[%s254 + $0x6c] sm:$0xe]
      %vm1013 = vcmask 1042432
      %vm1014 = vcmask 1046532
      %vm1015 = vmor %vm1013, %vm1014
      %v1016 = vrot.slane %v983, 5
      %v1017 = vrot.slane %v1016, 4
      %v1018 = vrot.slane %v256, 5
      %v1019 = vsel %vm1015, %v1017, %v1018
      %v1020 = vrot.slane %v1018, 4
      %v1021 = vrot.slane %v291, 5
      %v1022 = vsel %vm1015, %v1020, %v1021
      %v1023 = vrot.slane %v984, 5
      %v1024 = vrot.slane %v1023, 4
      %v1025 = vrot.slane %v258, 5
      %v1026 = vsel %vm1015, %v1024, %v1025
      %v1027 = vrot.slane %v1025, 4
      %v1028 = vrot.slane %v292, 5
      %v1029 = vsel %vm1015, %v1027, %v1028
      %v1030 = vrot.slane %v985, 5
      %v1031 = vrot.slane %v1030, 4
      %v1032 = vrot.slane %v260, 5
      %v1033 = vsel %vm1015, %v1031, %v1032
      %v1034 = vrot.slane %v1032, 4
      %v1035 = vrot.slane %v293, 5
      %v1036 = vsel %vm1015, %v1034, %v1035
      %v1037 = vrot.slane %v986, 5
      %v1038 = vrot.slane %v1037, 4
      %v1039 = vrot.slane %v262, 5
      %v1040 = vsel %vm1015, %v1038, %v1039
      %v1041 = vrot.slane %v1039, 4
      %v1042 = vrot.slane %v294, 5
      %v1043 = vsel %vm1015, %v1041, %v1042
      %v1044 = vrot.slane %v987, 5
      %v1045 = vrot.slane %v1044, 4
      %v1046 = vrot.slane %v264, 5
      %v1047 = vsel %vm1015, %v1045, %v1046
      %v1048 = vrot.slane %v1046, 4
      %v1049 = vrot.slane %v295, 5
      %v1050 = vsel %vm1015, %v1048, %v1049
      %v1051 = vrot.slane %v988, 5
      %v1052 = vrot.slane %v1051, 4
      %v1053 = vrot.slane %v266, 5
      %v1054 = vsel %vm1015, %v1052, %v1053
      %v1055 = vrot.slane %v1053, 4
      %v1056 = vrot.slane %v296, 5
      %v1057 = vsel %vm1015, %v1055, %v1056
      %v1058 = vrot.slane %v989, 5
      %v1059 = vrot.slane %v1058, 4
      %v1060 = vrot.slane %v268, 5
      %v1061 = vsel %vm1015, %v1059, %v1060
      %v1062 = vrot.slane %v1060, 4
      %v1063 = vrot.slane %v297, 5
      %v1064 = vsel %vm1015, %v1062, %v1063
      %v1065 = vrot.slane %v990, 5
      %v1066 = vrot.slane %v1065, 4
      %v1067 = vrot.slane %v270, 5
      %v1068 = vsel %vm1015, %v1066, %v1067
      %v1069 = vrot.slane %v1067, 4
      %v1070 = vrot.slane %v298, 5
      %v1071 = vsel %vm1015, %v1069, %v1070
      %v1072 = vrot.slane %v991, 5
      %v1073 = vrot.slane %v1072, 4
      %v1074 = vrot.slane %v272, 5
      %v1075 = vsel %vm1015, %v1073, %v1074
      %v1076 = vrot.slane %v1074, 4
      %v1077 = vrot.slane %v299, 5
      %v1078 = vsel %vm1015, %v1076, %v1077
      %v1079 = vrot.slane %v992, 5
      %v1080 = vrot.slane %v1079, 4
      %v1081 = vrot.slane %v274, 5
      %v1082 = vsel %vm1015, %v1080, %v1081
      %v1083 = vrot.slane %v1081, 4
      %v1084 = vrot.slane %v300, 5
      %v1085 = vsel %vm1015, %v1083, %v1084
      %s1086 = scalar_lea.vmem %s1, 128
      %v1087 = vld [vmem:[%s1086] sm:$0xf]
      %v1088 = vld [vmem:[%s1086 + $0x4] sm:$0xf]
      %v1089 = vld [vmem:[%s1086 + $0x8] sm:$0xf]
      %v1090 = vld [vmem:[%s1086 + $0xc] sm:$0xf]
      %v1091 = vld [vmem:[%s1086 + $0x10] sm:$0xf]
      %v1092 = vld [vmem:[%s1086 + $0x14] sm:$0xf]
      %v1093 = vld [vmem:[%s1086 + $0x18] sm:$0xf]
      %v1094 = vld [vmem:[%s1086 + $0x1c] sm:$0xf]
      %v1095 = vld [vmem:[%s1086 + $0x20] sm:$0xf]
      %v1096 = vld [vmem:[%s1086 + $0x24] sm:$0xf]
      %v1097 = vld [vmem:[%s1086 + $0x28] sm:$0xf]
      %v1098 = vld [vmem:[%s1086 + $0x2c] sm:$0xf]
      %v1099 = vld [vmem:[%s1086 + $0x30] sm:$0xf]
      %v1100 = vld [vmem:[%s1086 + $0x34] sm:$0xf]
      %v1101 = vld [vmem:[%s1086 + $0x38] sm:$0xf]
      %v1102 = vld [vmem:[%s1086 + $0x3c] sm:$0xf]
      %v1103 = vunpack.c.l.b16 %v1019
      %v1104 = vunpack.c.l.b16 %v1022
      %v1105 = vunpack.c.l.b16 %v1026
      %v1106 = vunpack.c.l.b16 %v1029
      %v1107 = vunpack.c.l.b16 %v1033
      %v1108 = vunpack.c.l.b16 %v1036
      %v1109 = vunpack.c.l.b16 %v1040
      %v1110 = vunpack.c.l.b16 %v1043
      %v1111 = vunpack.c.l.b16 %v1047
      %v1112 = vunpack.c.l.b16 %v1050
      %v1113 = vunpack.c.l.b16 %v1054
      %v1114 = vunpack.c.l.b16 %v1057
      %v1115 = vunpack.c.l.b16 %v1061
      %v1116 = vunpack.c.l.b16 %v1064
      %v1117 = vunpack.c.l.b16 %v1068
      %v1118 = vunpack.c.l.b16 %v1071
      %v1119 = vunpack.c.l.b16 %v1075
      %v1120 = vunpack.c.l.b16 %v1078
      %v1121 = vunpack.c.l.b16 %v1082
      %v1122 = vunpack.c.l.b16 %v1085
      %v1123 = vpack.c.b16 %v1104, %v1103
      %v1124 = vpack.c.b16 %v1106, %v1105
      %v1125 = vpack.c.b16 %v1108, %v1107
      %v1126 = vpack.c.b16 %v1110, %v1109
      %v1127 = vpack.c.b16 %v1112, %v1111
      %v1128 = vpack.c.b16 %v1114, %v1113
      %v1129 = vpack.c.b16 %v1116, %v1115
      %v1130 = vpack.c.b16 %v1118, %v1117
      %v1131 = vpack.c.b16 %v1120, %v1119
      %v1132 = vpack.c.b16 %v1122, %v1121
      %v1159 = vunpack.c.l.b16 %v1087
      %v1160 = vunpack.c.l.b16 %v1088
      %v1161 = vunpack.c.l.b16 %v1089
      %v1162 = vunpack.c.l.b16 %v1090
      %v1163 = vunpack.c.l.b16 %v1091
      %v1164 = vunpack.c.l.b16 %v1092
      %v1165 = vunpack.c.l.b16 %v1093
      %v1166 = vunpack.c.l.b16 %v1094
      %v1167 = vunpack.c.l.b16 %v1095
      %v1168 = vunpack.c.l.b16 %v1096
      %v1169 = vunpack.c.l.b16 %v1097
      %v1170 = vunpack.c.l.b16 %v1098
      %v1171 = vunpack.c.l.b16 %v1099
      %v1172 = vunpack.c.l.b16 %v1100
      %v1173 = vunpack.c.l.b16 %v1101
      %v1174 = vunpack.c.l.b16 %v1102
      %v1175 = vpack.c.b16 %v1160, %v1159
      %v1176 = vpack.c.b16 %v1162, %v1161
      %v1177 = vpack.c.b16 %v1164, %v1163
      %v1178 = vpack.c.b16 %v1166, %v1165
      %v1179 = vpack.c.b16 %v1168, %v1167
      %v1180 = vpack.c.b16 %v1170, %v1169
      %v1181 = vpack.c.b16 %v1172, %v1171
      %v1182 = vpack.c.b16 %v1174, %v1173
      %1191 = vmatprep.subr.bf16.mxu0 0
      %1192 = vmatpush1.bf16.msra.mxu0 %v1182
      %1193 = vmatprep.subr.bf16.mxu0 0
      %1194 = vmatpush1.bf16.msra.mxu0 %v1181
      %1195 = vmatprep.subr.bf16.mxu0 0
      %1196 = vmatpush1.bf16.msra.mxu0 %v1180
      %1197 = vmatprep.subr.bf16.mxu0 0
      %1198 = vmatpush1.bf16.msra.mxu0 %v1179
      %1199 = vmatprep.subr.bf16.mxu0 0
      %1200 = vmatpush1.bf16.msra.mxu0 %v1178
      %1201 = vmatprep.subr.bf16.mxu0 0
      %1202 = vmatpush1.bf16.msra.mxu0 %v1177
      %1203 = vmatprep.subr.bf16.mxu0 0
      %1204 = vmatpush1.bf16.msra.mxu0 %v1176
      %1205 = vmatprep.subr.bf16.mxu0 0
      %1206 = vmatpush1.bf16.msra.mxu0 %v1175
      %1207 = vmatprep.subr.bf16.mxu0 0
      %1208 = vmatpush2.bf16.msra.mxu0 0
      %1209 = vmatprep.subr.bf16.mxu0 0
      %1210 = vmatpush2.bf16.msra.mxu0 0
      %1211 = vmatprep.subr.bf16.mxu0 0
      %1212 = vmatpush2.bf16.msra.mxu0 0
      %1213 = vmatprep.subr.bf16.mxu0 0
      %1214 = vmatpush2.bf16.msra.mxu0 0
      %1215 = vmatprep.subr.bf16.mxu0 0
      %1216 = vmatpush2.bf16.msra.mxu0 0
      %1217 = vmatprep.subr.bf16.mxu0 0
      %1218 = vmatpush2.bf16.msra.mxu0 0
      %1219 = vmatprep.subr.bf16.mxu0 0
      %1220 = vmatpush2.bf16.msra.mxu0 0
      %1221 = vmatprep.subr.bf16.mxu0 0
      %1222 = vmatpush2.bf16.msra.mxu0 0
      %1223 = vmatprep.mubr.bf16.mxu0 0
      %1224 = vmatmul.mubr.bf16.gmra.mxu0 %v1123
      %v1225 = vpop.f32.mrf.mxu0
      %v1226 = vadd.f32 0.0, %v1225
      %v1227 = vpop.f32.mrf.mxu0
      %v1228 = vpop.f32.mrf.mxu0
      %v1229 = vadd.f32 0.0, %v1228
      %v1230 = vpop.f32.mrf.mxu0
      %1231 = vmatprep.mubr.bf16.mxu0 0
      %1232 = vmatmul.mubr.bf16.gmra.mxu0 %v1124
      %v1233 = vpop.f32.mrf.mxu0
      %v1234 = vadd.f32 0.0, %v1233
      %v1235 = vpop.f32.mrf.mxu0
      %v1236 = vpop.f32.mrf.mxu0
      %v1237 = vadd.f32 0.0, %v1236
      %v1238 = vpop.f32.mrf.mxu0
      %1239 = vmatprep.mubr.bf16.mxu0 0
      %1240 = vmatmul.mubr.bf16.gmra.mxu0 %v1125
      %v1241 = vpop.f32.mrf.mxu0
      %v1242 = vadd.f32 0.0, %v1241
      %v1243 = vpop.f32.mrf.mxu0
      %v1244 = vpop.f32.mrf.mxu0
      %v1245 = vadd.f32 0.0, %v1244
      %v1246 = vpop.f32.mrf.mxu0
      %1247 = vmatprep.mubr.bf16.mxu0 0
      %1248 = vmatmul.mubr.bf16.gmra.mxu0 %v1126
      %v1249 = vpop.f32.mrf.mxu0
      %v1250 = vadd.f32 0.0, %v1249
      %v1251 = vpop.f32.mrf.mxu0
      %v1252 = vpop.f32.mrf.mxu0
      %v1253 = vadd.f32 0.0, %v1252
      %v1254 = vpop.f32.mrf.mxu0
      %1255 = vmatprep.mubr.bf16.mxu0 0
      %1256 = vmatmul.mubr.bf16.gmra.mxu0 %v1127
      %v1257 = vpop.f32.mrf.mxu0
      %v1258 = vadd.f32 0.0, %v1257
      %v1259 = vpop.f32.mrf.mxu0
      %v1260 = vpop.f32.mrf.mxu0
      %v1261 = vadd.f32 0.0, %v1260
      %v1262 = vpop.f32.mrf.mxu0
      %1263 = vmatprep.mubr.bf16.mxu0 0
      %1264 = vmatmul.mubr.bf16.gmra.mxu0 %v1128
      %v1265 = vpop.f32.mrf.mxu0
      %v1266 = vadd.f32 0.0, %v1265
      %v1267 = vpop.f32.mrf.mxu0
      %v1268 = vpop.f32.mrf.mxu0
      %v1269 = vadd.f32 0.0, %v1268
      %v1270 = vpop.f32.mrf.mxu0
      %1271 = vmatprep.mubr.bf16.mxu0 0
      %1272 = vmatmul.mubr.bf16.gmra.mxu0 %v1129
      %v1273 = vpop.f32.mrf.mxu0
      %v1274 = vadd.f32 0.0, %v1273
      %v1275 = vpop.f32.mrf.mxu0
      %v1276 = vpop.f32.mrf.mxu0
      %v1277 = vadd.f32 0.0, %v1276
      %v1278 = vpop.f32.mrf.mxu0
      %1279 = vmatprep.mubr.bf16.mxu0 0
      %1280 = vmatmul.mubr.bf16.gmra.mxu0 %v1130
      %v1281 = vpop.f32.mrf.mxu0
      %v1282 = vadd.f32 0.0, %v1281
      %v1283 = vpop.f32.mrf.mxu0
      %v1284 = vpop.f32.mrf.mxu0
      %v1285 = vadd.f32 0.0, %v1284
      %v1286 = vpop.f32.mrf.mxu0
      %1287 = vmatprep.mubr.bf16.mxu0 0
      %1288 = vmatmul.mubr.bf16.gmra.mxu0 %v1131
      %v1289 = vpop.f32.mrf.mxu0
      %v1290 = vadd.f32 0.0, %v1289
      %v1291 = vpop.f32.mrf.mxu0
      %v1292 = vpop.f32.mrf.mxu0
      %v1293 = vadd.f32 0.0, %v1292
      %v1294 = vpop.f32.mrf.mxu0
      %1295 = vmatprep.mubr.bf16.mxu0 0
      %1296 = vmatmul.mubr.bf16.gmra.mxu0 %v1132
      %v1297 = vpop.f32.mrf.mxu0
      %v1298 = vadd.f32 0.0, %v1297
      %v1299 = vpop.f32.mrf.mxu0
      %v1300 = vpop.f32.mrf.mxu0
      %v1301 = vadd.f32 0.0, %v1300
      %v1302 = vpop.f32.mrf.mxu0
      %1303 = vdwg.mxu0
      %v1304 = vadd.f32 %v905, %v1226
      %v1305 = vadd.f32 %v908, %v1229
      %v1306 = vadd.f32 %v913, %v1234
      %v1307 = vadd.f32 %v916, %v1237
      %v1308 = vadd.f32 %v921, %v1242
      %v1309 = vadd.f32 %v924, %v1245
      %v1310 = vadd.f32 %v929, %v1250
      %v1311 = vadd.f32 %v932, %v1253
      %v1312 = vadd.f32 %v937, %v1258
      %v1313 = vadd.f32 %v940, %v1261
      %v1314 = vadd.f32 %v945, %v1266
      %v1315 = vadd.f32 %v948, %v1269
      %v1316 = vadd.f32 %v953, %v1274
      %v1317 = vadd.f32 %v956, %v1277
      %v1318 = vadd.f32 %v961, %v1282
      %v1319 = vadd.f32 %v964, %v1285
      %v1320 = vadd.f32 %v969, %v1290
      %v1321 = vadd.f32 %v972, %v1293
      %v1322 = vadd.f32 %v977, %v1298
      %v1323 = vadd.f32 %v980, %v1301
      %s1324 = sadd.s32 %s251, 1
      %s1325 = smul.u32 %s1324, 3
      %s1326 = smul.addr %s1325, 4
      %s1327 = scalar_lea.vmem %s238, %s1326
      %v1328 = vld [vmem:[%s1327] sm:$0xf]
      %v1329 = vld [vmem:[%s1327 + $0x4] sm:$0xf]
      %v1330 = vld [vmem:[%s1327 + $0xc] sm:$0xf]
      %v1331 = vld [vmem:[%s1327 + $0x10] sm:$0xf]
      %v1332 = vld [vmem:[%s1327 + $0x18] sm:$0xf]
      %v1333 = vld [vmem:[%s1327 + $0x1c] sm:$0xf]
      %v1334 = vld [vmem:[%s1327 + $0x24] sm:$0xf]
      %v1335 = vld [vmem:[%s1327 + $0x28] sm:$0xf]
      %v1336 = vld [vmem:[%s1327 + $0x30] sm:$0xf]
      %v1337 = vld [vmem:[%s1327 + $0x34] sm:$0xf]
      %v1338 = vld [vmem:[%s1327 + $0x3c] sm:$0xf]
      %v1339 = vld [vmem:[%s1327 + $0x40] sm:$0xf]
      %v1340 = vld [vmem:[%s1327 + $0x48] sm:$0xf]
      %v1341 = vld [vmem:[%s1327 + $0x4c] sm:$0xf]
      %v1342 = vld [vmem:[%s1327 + $0x54] sm:$0xf]
      %v1343 = vld [vmem:[%s1327 + $0x58] sm:$0xf]
      %v1344 = vld [vmem:[%s1327 + $0x60] sm:$0xf]
      %v1345 = vld [vmem:[%s1327 + $0x64] sm:$0xf]
      %v1346 = vld [vmem:[%s1327 + $0x6c] sm:$0xf]
      %v1347 = vld [vmem:[%s1327 + $0x70] sm:$0xf]
      %s1348 = scalar_lea.vmem %s1, 192
      %v1349 = vld [vmem:[%s1348] sm:$0xf]
      %v1350 = vld [vmem:[%s1348 + $0x4] sm:$0xf]
      %v1351 = vld [vmem:[%s1348 + $0x8] sm:$0xf]
      %v1352 = vld [vmem:[%s1348 + $0xc] sm:$0xf]
      %v1353 = vld [vmem:[%s1348 + $0x10] sm:$0xf]
      %v1354 = vld [vmem:[%s1348 + $0x14] sm:$0xf]
      %v1355 = vld [vmem:[%s1348 + $0x18] sm:$0xf]
      %v1356 = vld [vmem:[%s1348 + $0x1c] sm:$0xf]
      %v1357 = vld [vmem:[%s1348 + $0x20] sm:$0xf]
      %v1358 = vld [vmem:[%s1348 + $0x24] sm:$0xf]
      %v1359 = vld [vmem:[%s1348 + $0x28] sm:$0xf]
      %v1360 = vld [vmem:[%s1348 + $0x2c] sm:$0xf]
      %v1361 = vld [vmem:[%s1348 + $0x30] sm:$0xf]
      %v1362 = vld [vmem:[%s1348 + $0x34] sm:$0xf]
      %v1363 = vld [vmem:[%s1348 + $0x38] sm:$0xf]
      %v1364 = vld [vmem:[%s1348 + $0x3c] sm:$0xf]
      %v1385 = vunpack.c.l.b16 %v1328
      %v1386 = vunpack.c.l.b16 %v1329
      %v1387 = vunpack.c.l.b16 %v1330
      %v1388 = vunpack.c.l.b16 %v1331
      %v1389 = vunpack.c.l.b16 %v1332
      %v1390 = vunpack.c.l.b16 %v1333
      %v1391 = vunpack.c.l.b16 %v1334
      %v1392 = vunpack.c.l.b16 %v1335
      %v1393 = vunpack.c.l.b16 %v1336
      %v1394 = vunpack.c.l.b16 %v1337
      %v1395 = vunpack.c.l.b16 %v1338
      %v1396 = vunpack.c.l.b16 %v1339
      %v1397 = vunpack.c.l.b16 %v1340
      %v1398 = vunpack.c.l.b16 %v1341
      %v1399 = vunpack.c.l.b16 %v1342
      %v1400 = vunpack.c.l.b16 %v1343
      %v1401 = vunpack.c.l.b16 %v1344
      %v1402 = vunpack.c.l.b16 %v1345
      %v1403 = vunpack.c.l.b16 %v1346
      %v1404 = vunpack.c.l.b16 %v1347
      %v1405 = vpack.c.b16 %v1386, %v1385
      %v1406 = vpack.c.b16 %v1388, %v1387
      %v1407 = vpack.c.b16 %v1390, %v1389
      %v1408 = vpack.c.b16 %v1392, %v1391
      %v1409 = vpack.c.b16 %v1394, %v1393
      %v1410 = vpack.c.b16 %v1396, %v1395
      %v1411 = vpack.c.b16 %v1398, %v1397
      %v1412 = vpack.c.b16 %v1400, %v1399
      %v1413 = vpack.c.b16 %v1402, %v1401
      %v1414 = vpack.c.b16 %v1404, %v1403
      %v1441 = vunpack.c.l.b16 %v1349
      %v1442 = vunpack.c.l.b16 %v1350
      %v1443 = vunpack.c.l.b16 %v1351
      %v1444 = vunpack.c.l.b16 %v1352
      %v1445 = vunpack.c.l.b16 %v1353
      %v1446 = vunpack.c.l.b16 %v1354
      %v1447 = vunpack.c.l.b16 %v1355
      %v1448 = vunpack.c.l.b16 %v1356
      %v1449 = vunpack.c.l.b16 %v1357
      %v1450 = vunpack.c.l.b16 %v1358
      %v1451 = vunpack.c.l.b16 %v1359
      %v1452 = vunpack.c.l.b16 %v1360
      %v1453 = vunpack.c.l.b16 %v1361
      %v1454 = vunpack.c.l.b16 %v1362
      %v1455 = vunpack.c.l.b16 %v1363
      %v1456 = vunpack.c.l.b16 %v1364
      %v1457 = vpack.c.b16 %v1442, %v1441
      %v1458 = vpack.c.b16 %v1444, %v1443
      %v1459 = vpack.c.b16 %v1446, %v1445
      %v1460 = vpack.c.b16 %v1448, %v1447
      %v1461 = vpack.c.b16 %v1450, %v1449
      %v1462 = vpack.c.b16 %v1452, %v1451
      %v1463 = vpack.c.b16 %v1454, %v1453
      %v1464 = vpack.c.b16 %v1456, %v1455
      %1473 = vmatprep.subr.bf16.mxu0 0
      %1474 = vmatpush1.bf16.msra.mxu0 %v1464
      %1475 = vmatprep.subr.bf16.mxu0 0
      %1476 = vmatpush1.bf16.msra.mxu0 %v1463
      %1477 = vmatprep.subr.bf16.mxu0 0
      %1478 = vmatpush1.bf16.msra.mxu0 %v1462
      %1479 = vmatprep.subr.bf16.mxu0 0
      %1480 = vmatpush1.bf16.msra.mxu0 %v1461
      %1481 = vmatprep.subr.bf16.mxu0 0
      %1482 = vmatpush1.bf16.msra.mxu0 %v1460
      %1483 = vmatprep.subr.bf16.mxu0 0
      %1484 = vmatpush1.bf16.msra.mxu0 %v1459
      %1485 = vmatprep.subr.bf16.mxu0 0
      %1486 = vmatpush1.bf16.msra.mxu0 %v1458
      %1487 = vmatprep.subr.bf16.mxu0 0
      %1488 = vmatpush1.bf16.msra.mxu0 %v1457
      %1489 = vmatprep.subr.bf16.mxu0 0
      %1490 = vmatpush2.bf16.msra.mxu0 0
      %1491 = vmatprep.subr.bf16.mxu0 0
      %1492 = vmatpush2.bf16.msra.mxu0 0
      %1493 = vmatprep.subr.bf16.mxu0 0
      %1494 = vmatpush2.bf16.msra.mxu0 0
      %1495 = vmatprep.subr.bf16.mxu0 0
      %1496 = vmatpush2.bf16.msra.mxu0 0
      %1497 = vmatprep.subr.bf16.mxu0 0
      %1498 = vmatpush2.bf16.msra.mxu0 0
      %1499 = vmatprep.subr.bf16.mxu0 0
      %1500 = vmatpush2.bf16.msra.mxu0 0
      %1501 = vmatprep.subr.bf16.mxu0 0
      %1502 = vmatpush2.bf16.msra.mxu0 0
      %1503 = vmatprep.subr.bf16.mxu0 0
      %1504 = vmatpush2.bf16.msra.mxu0 0
      %1505 = vmatprep.mubr.bf16.mxu0 0
      %1506 = vmatmul.mubr.bf16.gmra.mxu0 %v1405
      %v1507 = vpop.f32.mrf.mxu0
      %v1508 = vadd.f32 0.0, %v1507
      %v1509 = vpop.f32.mrf.mxu0
      %v1510 = vpop.f32.mrf.mxu0
      %v1511 = vadd.f32 0.0, %v1510
      %v1512 = vpop.f32.mrf.mxu0
      %1513 = vmatprep.mubr.bf16.mxu0 0
      %1514 = vmatmul.mubr.bf16.gmra.mxu0 %v1406
      %v1515 = vpop.f32.mrf.mxu0
      %v1516 = vadd.f32 0.0, %v1515
      %v1517 = vpop.f32.mrf.mxu0
      %v1518 = vpop.f32.mrf.mxu0
      %v1519 = vadd.f32 0.0, %v1518
      %v1520 = vpop.f32.mrf.mxu0
      %1521 = vmatprep.mubr.bf16.mxu0 0
      %1522 = vmatmul.mubr.bf16.gmra.mxu0 %v1407
      %v1523 = vpop.f32.mrf.mxu0
      %v1524 = vadd.f32 0.0, %v1523
      %v1525 = vpop.f32.mrf.mxu0
      %v1526 = vpop.f32.mrf.mxu0
      %v1527 = vadd.f32 0.0, %v1526
      %v1528 = vpop.f32.mrf.mxu0
      %1529 = vmatprep.mubr.bf16.mxu0 0
      %1530 = vmatmul.mubr.bf16.gmra.mxu0 %v1408
      %v1531 = vpop.f32.mrf.mxu0
      %v1532 = vadd.f32 0.0, %v1531
      %v1533 = vpop.f32.mrf.mxu0
      %v1534 = vpop.f32.mrf.mxu0
      %v1535 = vadd.f32 0.0, %v1534
      %v1536 = vpop.f32.mrf.mxu0
      %1537 = vmatprep.mubr.bf16.mxu0 0
      %1538 = vmatmul.mubr.bf16.gmra.mxu0 %v1409
      %v1539 = vpop.f32.mrf.mxu0
      %v1540 = vadd.f32 0.0, %v1539
      %v1541 = vpop.f32.mrf.mxu0
      %v1542 = vpop.f32.mrf.mxu0
      %v1543 = vadd.f32 0.0, %v1542
      %v1544 = vpop.f32.mrf.mxu0
      %1545 = vmatprep.mubr.bf16.mxu0 0
      %1546 = vmatmul.mubr.bf16.gmra.mxu0 %v1410
      %v1547 = vpop.f32.mrf.mxu0
      %v1548 = vadd.f32 0.0, %v1547
      %v1549 = vpop.f32.mrf.mxu0
      %v1550 = vpop.f32.mrf.mxu0
      %v1551 = vadd.f32 0.0, %v1550
      %v1552 = vpop.f32.mrf.mxu0
      %1553 = vmatprep.mubr.bf16.mxu0 0
      %1554 = vmatmul.mubr.bf16.gmra.mxu0 %v1411
      %v1555 = vpop.f32.mrf.mxu0
      %v1556 = vadd.f32 0.0, %v1555
      %v1557 = vpop.f32.mrf.mxu0
      %v1558 = vpop.f32.mrf.mxu0
      %v1559 = vadd.f32 0.0, %v1558
      %v1560 = vpop.f32.mrf.mxu0
      %1561 = vmatprep.mubr.bf16.mxu0 0
      %1562 = vmatmul.mubr.bf16.gmra.mxu0 %v1412
      %v1563 = vpop.f32.mrf.mxu0
      %v1564 = vadd.f32 0.0, %v1563
      %v1565 = vpop.f32.mrf.mxu0
      %v1566 = vpop.f32.mrf.mxu0
      %v1567 = vadd.f32 0.0, %v1566
      %v1568 = vpop.f32.mrf.mxu0
      %1569 = vmatprep.mubr.bf16.mxu0 0
      %1570 = vmatmul.mubr.bf16.gmra.mxu0 %v1413
      %v1571 = vpop.f32.mrf.mxu0
      %v1572 = vadd.f32 0.0, %v1571
      %v1573 = vpop.f32.mrf.mxu0
      %v1574 = vpop.f32.mrf.mxu0
      %v1575 = vadd.f32 0.0, %v1574
      %v1576 = vpop.f32.mrf.mxu0
      %1577 = vmatprep.mubr.bf16.mxu0 0
      %1578 = vmatmul.mubr.bf16.gmra.mxu0 %v1414
      %v1579 = vpop.f32.mrf.mxu0
      %v1580 = vadd.f32 0.0, %v1579
      %v1581 = vpop.f32.mrf.mxu0
      %v1582 = vpop.f32.mrf.mxu0
      %v1583 = vadd.f32 0.0, %v1582
      %v1584 = vpop.f32.mrf.mxu0
      %1585 = vdwg.mxu0
      %v1586 = vadd.f32 %v1304, %v1508
      %v1587 = vadd.f32 %v1305, %v1511
      %v1588 = vadd.f32 %v1306, %v1516
      %v1589 = vadd.f32 %v1307, %v1519
      %v1590 = vadd.f32 %v1308, %v1524
      %v1591 = vadd.f32 %v1309, %v1527
      %v1592 = vadd.f32 %v1310, %v1532
      %v1593 = vadd.f32 %v1311, %v1535
      %v1594 = vadd.f32 %v1312, %v1540
      %v1595 = vadd.f32 %v1313, %v1543
      %v1596 = vadd.f32 %v1314, %v1548
      %v1597 = vadd.f32 %v1315, %v1551
      %v1598 = vadd.f32 %v1316, %v1556
      %v1599 = vadd.f32 %v1317, %v1559
      %v1600 = vadd.f32 %v1318, %v1564
      %v1601 = vadd.f32 %v1319, %v1567
      %v1602 = vadd.f32 %v1320, %v1572
      %v1603 = vadd.f32 %v1321, %v1575
      %v1604 = vadd.f32 %v1322, %v1580
      %v1605 = vadd.f32 %v1323, %v1583
      %v1606 = vld [vmem:[%s1327] sm:$0xf]
      %v1607 = vld [vmem:[%s1327 + $0x4] sm:$0xf]
      %v1608 = vld [vmem:[%s1327 + $0x8] sm:$0x1]
      %v1609 = vld [vmem:[%s1327 + $0xc] sm:$0xf]
      %v1610 = vld [vmem:[%s1327 + $0x10] sm:$0xf]
      %v1611 = vld [vmem:[%s1327 + $0x14] sm:$0x1]
      %v1612 = vld [vmem:[%s1327 + $0x18] sm:$0xf]
      %v1613 = vld [vmem:[%s1327 + $0x1c] sm:$0xf]
      %v1614 = vld [vmem:[%s1327 + $0x20] sm:$0x1]
      %v1615 = vld [vmem:[%s1327 + $0x24] sm:$0xf]
      %v1616 = vld [vmem:[%s1327 + $0x28] sm:$0xf]
      %v1617 = vld [vmem:[%s1327 + $0x2c] sm:$0x1]
      %v1618 = vld [vmem:[%s1327 + $0x30] sm:$0xf]
      %v1619 = vld [vmem:[%s1327 + $0x34] sm:$0xf]
      %v1620 = vld [vmem:[%s1327 + $0x38] sm:$0x1]
      %v1621 = vld [vmem:[%s1327 + $0x3c] sm:$0xf]
      %v1622 = vld [vmem:[%s1327 + $0x40] sm:$0xf]
      %v1623 = vld [vmem:[%s1327 + $0x44] sm:$0x1]
      %v1624 = vld [vmem:[%s1327 + $0x48] sm:$0xf]
      %v1625 = vld [vmem:[%s1327 + $0x4c] sm:$0xf]
      %v1626 = vld [vmem:[%s1327 + $0x50] sm:$0x1]
      %v1627 = vld [vmem:[%s1327 + $0x54] sm:$0xf]
      %v1628 = vld [vmem:[%s1327 + $0x58] sm:$0xf]
      %v1629 = vld [vmem:[%s1327 + $0x5c] sm:$0x1]
      %v1630 = vld [vmem:[%s1327 + $0x60] sm:$0xf]
      %v1631 = vld [vmem:[%s1327 + $0x64] sm:$0xf]
      %v1632 = vld [vmem:[%s1327 + $0x68] sm:$0x1]
      %v1633 = vld [vmem:[%s1327 + $0x6c] sm:$0xf]
      %v1634 = vld [vmem:[%s1327 + $0x70] sm:$0xf]
      %v1635 = vld [vmem:[%s1327 + $0x74] sm:$0x1]
      %v1637 = vshrl.u32 %v1606, 16
      %v1639 = vrot.slane %v1637, 4
      %v1640 = vshll.u32 %v1606, 16
      %v1642 = vrot.slane %v1640, 5
      %v1643 = vor.u32 %v1639, %v1642
      %v1644 = vrot.slane %v1643, 4
      %v1646 = vshll.u32 %v1607, 16
      %v1648 = vrot.slane %v1646, 5
      %v1649 = vsel %vm303, %v1644, %v1648
      %v1650 = vshrl.u32 %v1607, 16
      %v1652 = vrot.slane %v1650, 4
      %v1653 = vor.u32 %v1652, %v1648
      %v1654 = vrot.slane %v1653, 4
      %v1656 = vshll.u32 %v1608, 16
      %v1658 = vrot.slane %v1656, 5
      %v1659 = vsel %vm303, %v1654, %v1658
      %v1661 = vshrl.u32 %v1609, 16
      %v1663 = vrot.slane %v1661, 4
      %v1664 = vshll.u32 %v1609, 16
      %v1666 = vrot.slane %v1664, 5
      %v1667 = vor.u32 %v1663, %v1666
      %v1668 = vrot.slane %v1667, 4
      %v1670 = vshll.u32 %v1610, 16
      %v1672 = vrot.slane %v1670, 5
      %v1673 = vsel %vm303, %v1668, %v1672
      %v1674 = vshrl.u32 %v1610, 16
      %v1676 = vrot.slane %v1674, 4
      %v1677 = vor.u32 %v1676, %v1672
      %v1678 = vrot.slane %v1677, 4
      %v1680 = vshll.u32 %v1611, 16
      %v1682 = vrot.slane %v1680, 5
      %v1683 = vsel %vm303, %v1678, %v1682
      %v1685 = vshrl.u32 %v1612, 16
      %v1687 = vrot.slane %v1685, 4
      %v1688 = vshll.u32 %v1612, 16
      %v1690 = vrot.slane %v1688, 5
      %v1691 = vor.u32 %v1687, %v1690
      %v1692 = vrot.slane %v1691, 4
      %v1694 = vshll.u32 %v1613, 16
      %v1696 = vrot.slane %v1694, 5
      %v1697 = vsel %vm303, %v1692, %v1696
      %v1698 = vshrl.u32 %v1613, 16
      %v1700 = vrot.slane %v1698, 4
      %v1701 = vor.u32 %v1700, %v1696
      %v1702 = vrot.slane %v1701, 4
      %v1704 = vshll.u32 %v1614, 16
      %v1706 = vrot.slane %v1704, 5
      %v1707 = vsel %vm303, %v1702, %v1706
      %v1709 = vshrl.u32 %v1615, 16
      %v1711 = vrot.slane %v1709, 4
      %v1712 = vshll.u32 %v1615, 16
      %v1714 = vrot.slane %v1712, 5
      %v1715 = vor.u32 %v1711, %v1714
      %v1716 = vrot.slane %v1715, 4
      %v1718 = vshll.u32 %v1616, 16
      %v1720 = vrot.slane %v1718, 5
      %v1721 = vsel %vm303, %v1716, %v1720
      %v1722 = vshrl.u32 %v1616, 16
      %v1724 = vrot.slane %v1722, 4
      %v1725 = vor.u32 %v1724, %v1720
      %v1726 = vrot.slane %v1725, 4
      %v1728 = vshll.u32 %v1617, 16
      %v1730 = vrot.slane %v1728, 5
      %v1731 = vsel %vm303, %v1726, %v1730
      %v1733 = vshrl.u32 %v1618, 16
      %v1735 = vrot.slane %v1733, 4
      %v1736 = vshll.u32 %v1618, 16
      %v1738 = vrot.slane %v1736, 5
      %v1739 = vor.u32 %v1735, %v1738
      %v1740 = vrot.slane %v1739, 4
      %v1742 = vshll.u32 %v1619, 16
      %v1744 = vrot.slane %v1742, 5
      %v1745 = vsel %vm303, %v1740, %v1744
      %v1746 = vshrl.u32 %v1619, 16
      %v1748 = vrot.slane %v1746, 4
      %v1749 = vor.u32 %v1748, %v1744
      %v1750 = vrot.slane %v1749, 4
      %v1752 = vshll.u32 %v1620, 16
      %v1754 = vrot.slane %v1752, 5
      %v1755 = vsel %vm303, %v1750, %v1754
      %v1757 = vshrl.u32 %v1621, 16
      %v1759 = vrot.slane %v1757, 4
      %v1760 = vshll.u32 %v1621, 16
      %v1762 = vrot.slane %v1760, 5
      %v1763 = vor.u32 %v1759, %v1762
      %v1764 = vrot.slane %v1763, 4
      %v1766 = vshll.u32 %v1622, 16
      %v1768 = vrot.slane %v1766, 5
      %v1769 = vsel %vm303, %v1764, %v1768
      %v1770 = vshrl.u32 %v1622, 16
      %v1772 = vrot.slane %v1770, 4
      %v1773 = vor.u32 %v1772, %v1768
      %v1774 = vrot.slane %v1773, 4
      %v1776 = vshll.u32 %v1623, 16
      %v1778 = vrot.slane %v1776, 5
      %v1779 = vsel %vm303, %v1774, %v1778
      %v1781 = vshrl.u32 %v1624, 16
      %v1783 = vrot.slane %v1781, 4
      %v1784 = vshll.u32 %v1624, 16
      %v1786 = vrot.slane %v1784, 5
      %v1787 = vor.u32 %v1783, %v1786
      %v1788 = vrot.slane %v1787, 4
      %v1790 = vshll.u32 %v1625, 16
      %v1792 = vrot.slane %v1790, 5
      %v1793 = vsel %vm303, %v1788, %v1792
      %v1794 = vshrl.u32 %v1625, 16
      %v1796 = vrot.slane %v1794, 4
      %v1797 = vor.u32 %v1796, %v1792
      %v1798 = vrot.slane %v1797, 4
      %v1800 = vshll.u32 %v1626, 16
      %v1802 = vrot.slane %v1800, 5
      %v1803 = vsel %vm303, %v1798, %v1802
      %v1805 = vshrl.u32 %v1627, 16
      %v1807 = vrot.slane %v1805, 4
      %v1808 = vshll.u32 %v1627, 16
      %v1810 = vrot.slane %v1808, 5
      %v1811 = vor.u32 %v1807, %v1810
      %v1812 = vrot.slane %v1811, 4
      %v1814 = vshll.u32 %v1628, 16
      %v1816 = vrot.slane %v1814, 5
      %v1817 = vsel %vm303, %v1812, %v1816
      %v1818 = vshrl.u32 %v1628, 16
      %v1820 = vrot.slane %v1818, 4
      %v1821 = vor.u32 %v1820, %v1816
      %v1822 = vrot.slane %v1821, 4
      %v1824 = vshll.u32 %v1629, 16
      %v1826 = vrot.slane %v1824, 5
      %v1827 = vsel %vm303, %v1822, %v1826
      %v1829 = vshrl.u32 %v1630, 16
      %v1831 = vrot.slane %v1829, 4
      %v1832 = vshll.u32 %v1630, 16
      %v1834 = vrot.slane %v1832, 5
      %v1835 = vor.u32 %v1831, %v1834
      %v1836 = vrot.slane %v1835, 4
      %v1838 = vshll.u32 %v1631, 16
      %v1840 = vrot.slane %v1838, 5
      %v1841 = vsel %vm303, %v1836, %v1840
      %v1842 = vshrl.u32 %v1631, 16
      %v1844 = vrot.slane %v1842, 4
      %v1845 = vor.u32 %v1844, %v1840
      %v1846 = vrot.slane %v1845, 4
      %v1848 = vshll.u32 %v1632, 16
      %v1850 = vrot.slane %v1848, 5
      %v1851 = vsel %vm303, %v1846, %v1850
      %v1853 = vshrl.u32 %v1633, 16
      %v1855 = vrot.slane %v1853, 4
      %v1856 = vshll.u32 %v1633, 16
      %v1858 = vrot.slane %v1856, 5
      %v1859 = vor.u32 %v1855, %v1858
      %v1860 = vrot.slane %v1859, 4
      %v1862 = vshll.u32 %v1634, 16
      %v1864 = vrot.slane %v1862, 5
      %v1865 = vsel %vm303, %v1860, %v1864
      %v1866 = vshrl.u32 %v1634, 16
      %v1868 = vrot.slane %v1866, 4
      %v1869 = vor.u32 %v1868, %v1864
      %v1870 = vrot.slane %v1869, 4
      %v1872 = vshll.u32 %v1635, 16
      %v1874 = vrot.slane %v1872, 5
      %v1875 = vsel %vm303, %v1870, %v1874
      %s1876 = scalar_lea.vmem %s1, 256
      %v1877 = vld [vmem:[%s1876] sm:$0xf]
      %v1878 = vld [vmem:[%s1876 + $0x4] sm:$0xf]
      %v1879 = vld [vmem:[%s1876 + $0x8] sm:$0xf]
      %v1880 = vld [vmem:[%s1876 + $0xc] sm:$0xf]
      %v1881 = vld [vmem:[%s1876 + $0x10] sm:$0xf]
      %v1882 = vld [vmem:[%s1876 + $0x14] sm:$0xf]
      %v1883 = vld [vmem:[%s1876 + $0x18] sm:$0xf]
      %v1884 = vld [vmem:[%s1876 + $0x1c] sm:$0xf]
      %v1885 = vld [vmem:[%s1876 + $0x20] sm:$0xf]
      %v1886 = vld [vmem:[%s1876 + $0x24] sm:$0xf]
      %v1887 = vld [vmem:[%s1876 + $0x28] sm:$0xf]
      %v1888 = vld [vmem:[%s1876 + $0x2c] sm:$0xf]
      %v1889 = vld [vmem:[%s1876 + $0x30] sm:$0xf]
      %v1890 = vld [vmem:[%s1876 + $0x34] sm:$0xf]
      %v1891 = vld [vmem:[%s1876 + $0x38] sm:$0xf]
      %v1892 = vld [vmem:[%s1876 + $0x3c] sm:$0xf]
      %v1893 = vunpack.c.l.b16 %v1649
      %v1894 = vunpack.c.l.b16 %v1659
      %v1895 = vunpack.c.l.b16 %v1673
      %v1896 = vunpack.c.l.b16 %v1683
      %v1897 = vunpack.c.l.b16 %v1697
      %v1898 = vunpack.c.l.b16 %v1707
      %v1899 = vunpack.c.l.b16 %v1721
      %v1900 = vunpack.c.l.b16 %v1731
      %v1901 = vunpack.c.l.b16 %v1745
      %v1902 = vunpack.c.l.b16 %v1755
      %v1903 = vunpack.c.l.b16 %v1769
      %v1904 = vunpack.c.l.b16 %v1779
      %v1905 = vunpack.c.l.b16 %v1793
      %v1906 = vunpack.c.l.b16 %v1803
      %v1907 = vunpack.c.l.b16 %v1817
      %v1908 = vunpack.c.l.b16 %v1827
      %v1909 = vunpack.c.l.b16 %v1841
      %v1910 = vunpack.c.l.b16 %v1851
      %v1911 = vunpack.c.l.b16 %v1865
      %v1912 = vunpack.c.l.b16 %v1875
      %v1913 = vpack.c.b16 %v1894, %v1893
      %v1914 = vpack.c.b16 %v1896, %v1895
      %v1915 = vpack.c.b16 %v1898, %v1897
      %v1916 = vpack.c.b16 %v1900, %v1899
      %v1917 = vpack.c.b16 %v1902, %v1901
      %v1918 = vpack.c.b16 %v1904, %v1903
      %v1919 = vpack.c.b16 %v1906, %v1905
      %v1920 = vpack.c.b16 %v1908, %v1907
      %v1921 = vpack.c.b16 %v1910, %v1909
      %v1922 = vpack.c.b16 %v1912, %v1911
      %v1949 = vunpack.c.l.b16 %v1877
      %v1950 = vunpack.c.l.b16 %v1878
      %v1951 = vunpack.c.l.b16 %v1879
      %v1952 = vunpack.c.l.b16 %v1880
      %v1953 = vunpack.c.l.b16 %v1881
      %v1954 = vunpack.c.l.b16 %v1882
      %v1955 = vunpack.c.l.b16 %v1883
      %v1956 = vunpack.c.l.b16 %v1884
      %v1957 = vunpack.c.l.b16 %v1885
      %v1958 = vunpack.c.l.b16 %v1886
      %v1959 = vunpack.c.l.b16 %v1887
      %v1960 = vunpack.c.l.b16 %v1888
      %v1961 = vunpack.c.l.b16 %v1889
      %v1962 = vunpack.c.l.b16 %v1890
      %v1963 = vunpack.c.l.b16 %v1891
      %v1964 = vunpack.c.l.b16 %v1892
      %v1965 = vpack.c.b16 %v1950, %v1949
      %v1966 = vpack.c.b16 %v1952, %v1951
      %v1967 = vpack.c.b16 %v1954, %v1953
      %v1968 = vpack.c.b16 %v1956, %v1955
      %v1969 = vpack.c.b16 %v1958, %v1957
      %v1970 = vpack.c.b16 %v1960, %v1959
      %v1971 = vpack.c.b16 %v1962, %v1961
      %v1972 = vpack.c.b16 %v1964, %v1963
      %1981 = vmatprep.subr.bf16.mxu0 0
      %1982 = vmatpush1.bf16.msra.mxu0 %v1972
      %1983 = vmatprep.subr.bf16.mxu0 0
      %1984 = vmatpush1.bf16.msra.mxu0 %v1971
      %1985 = vmatprep.subr.bf16.mxu0 0
      %1986 = vmatpush1.bf16.msra.mxu0 %v1970
      %1987 = vmatprep.subr.bf16.mxu0 0
      %1988 = vmatpush1.bf16.msra.mxu0 %v1969
      %1989 = vmatprep.subr.bf16.mxu0 0
      %1990 = vmatpush1.bf16.msra.mxu0 %v1968
      %1991 = vmatprep.subr.bf16.mxu0 0
      %1992 = vmatpush1.bf16.msra.mxu0 %v1967
      %1993 = vmatprep.subr.bf16.mxu0 0
      %1994 = vmatpush1.bf16.msra.mxu0 %v1966
      %1995 = vmatprep.subr.bf16.mxu0 0
      %1996 = vmatpush1.bf16.msra.mxu0 %v1965
      %1997 = vmatprep.subr.bf16.mxu0 0
      %1998 = vmatpush2.bf16.msra.mxu0 0
      %1999 = vmatprep.subr.bf16.mxu0 0
      %2000 = vmatpush2.bf16.msra.mxu0 0
      %2001 = vmatprep.subr.bf16.mxu0 0
      %2002 = vmatpush2.bf16.msra.mxu0 0
      %2003 = vmatprep.subr.bf16.mxu0 0
      %2004 = vmatpush2.bf16.msra.mxu0 0
      %2005 = vmatprep.subr.bf16.mxu0 0
      %2006 = vmatpush2.bf16.msra.mxu0 0
      %2007 = vmatprep.subr.bf16.mxu0 0
      %2008 = vmatpush2.bf16.msra.mxu0 0
      %2009 = vmatprep.subr.bf16.mxu0 0
      %2010 = vmatpush2.bf16.msra.mxu0 0
      %2011 = vmatprep.subr.bf16.mxu0 0
      %2012 = vmatpush2.bf16.msra.mxu0 0
      %2013 = vmatprep.mubr.bf16.mxu0 0
      %2014 = vmatmul.mubr.bf16.gmra.mxu0 %v1913
      %v2015 = vpop.f32.mrf.mxu0
      %v2016 = vadd.f32 0.0, %v2015
      %v2017 = vpop.f32.mrf.mxu0
      %v2018 = vpop.f32.mrf.mxu0
      %v2019 = vadd.f32 0.0, %v2018
      %v2020 = vpop.f32.mrf.mxu0
      %2021 = vmatprep.mubr.bf16.mxu0 0
      %2022 = vmatmul.mubr.bf16.gmra.mxu0 %v1914
      %v2023 = vpop.f32.mrf.mxu0
      %v2024 = vadd.f32 0.0, %v2023
      %v2025 = vpop.f32.mrf.mxu0
      %v2026 = vpop.f32.mrf.mxu0
      %v2027 = vadd.f32 0.0, %v2026
      %v2028 = vpop.f32.mrf.mxu0
      %2029 = vmatprep.mubr.bf16.mxu0 0
      %2030 = vmatmul.mubr.bf16.gmra.mxu0 %v1915
      %v2031 = vpop.f32.mrf.mxu0
      %v2032 = vadd.f32 0.0, %v2031
      %v2033 = vpop.f32.mrf.mxu0
      %v2034 = vpop.f32.mrf.mxu0
      %v2035 = vadd.f32 0.0, %v2034
      %v2036 = vpop.f32.mrf.mxu0
      %2037 = vmatprep.mubr.bf16.mxu0 0
      %2038 = vmatmul.mubr.bf16.gmra.mxu0 %v1916
      %v2039 = vpop.f32.mrf.mxu0
      %v2040 = vadd.f32 0.0, %v2039
      %v2041 = vpop.f32.mrf.mxu0
      %v2042 = vpop.f32.mrf.mxu0
      %v2043 = vadd.f32 0.0, %v2042
      %v2044 = vpop.f32.mrf.mxu0
      %2045 = vmatprep.mubr.bf16.mxu0 0
      %2046 = vmatmul.mubr.bf16.gmra.mxu0 %v1917
      %v2047 = vpop.f32.mrf.mxu0
      %v2048 = vadd.f32 0.0, %v2047
      %v2049 = vpop.f32.mrf.mxu0
      %v2050 = vpop.f32.mrf.mxu0
      %v2051 = vadd.f32 0.0, %v2050
      %v2052 = vpop.f32.mrf.mxu0
      %2053 = vmatprep.mubr.bf16.mxu0 0
      %2054 = vmatmul.mubr.bf16.gmra.mxu0 %v1918
      %v2055 = vpop.f32.mrf.mxu0
      %v2056 = vadd.f32 0.0, %v2055
      %v2057 = vpop.f32.mrf.mxu0
      %v2058 = vpop.f32.mrf.mxu0
      %v2059 = vadd.f32 0.0, %v2058
      %v2060 = vpop.f32.mrf.mxu0
      %2061 = vmatprep.mubr.bf16.mxu0 0
      %2062 = vmatmul.mubr.bf16.gmra.mxu0 %v1919
      %v2063 = vpop.f32.mrf.mxu0
      %v2064 = vadd.f32 0.0, %v2063
      %v2065 = vpop.f32.mrf.mxu0
      %v2066 = vpop.f32.mrf.mxu0
      %v2067 = vadd.f32 0.0, %v2066
      %v2068 = vpop.f32.mrf.mxu0
      %2069 = vmatprep.mubr.bf16.mxu0 0
      %2070 = vmatmul.mubr.bf16.gmra.mxu0 %v1920
      %v2071 = vpop.f32.mrf.mxu0
      %v2072 = vadd.f32 0.0, %v2071
      %v2073 = vpop.f32.mrf.mxu0
      %v2074 = vpop.f32.mrf.mxu0
      %v2075 = vadd.f32 0.0, %v2074
      %v2076 = vpop.f32.mrf.mxu0
      %2077 = vmatprep.mubr.bf16.mxu0 0
      %2078 = vmatmul.mubr.bf16.gmra.mxu0 %v1921
      %v2079 = vpop.f32.mrf.mxu0
      %v2080 = vadd.f32 0.0, %v2079
      %v2081 = vpop.f32.mrf.mxu0
      %v2082 = vpop.f32.mrf.mxu0
      %v2083 = vadd.f32 0.0, %v2082
      %v2084 = vpop.f32.mrf.mxu0
      %2085 = vmatprep.mubr.bf16.mxu0 0
      %2086 = vmatmul.mubr.bf16.gmra.mxu0 %v1922
      %v2087 = vpop.f32.mrf.mxu0
      %v2088 = vadd.f32 0.0, %v2087
      %v2089 = vpop.f32.mrf.mxu0
      %v2090 = vpop.f32.mrf.mxu0
      %v2091 = vadd.f32 0.0, %v2090
      %v2092 = vpop.f32.mrf.mxu0
      %2093 = vdwg.mxu0
      %v2094 = vadd.f32 %v1586, %v2016
      %v2095 = vadd.f32 %v1587, %v2019
      %v2096 = vadd.f32 %v1588, %v2024
      %v2097 = vadd.f32 %v1589, %v2027
      %v2098 = vadd.f32 %v1590, %v2032
      %v2099 = vadd.f32 %v1591, %v2035
      %v2100 = vadd.f32 %v1592, %v2040
      %v2101 = vadd.f32 %v1593, %v2043
      %v2102 = vadd.f32 %v1594, %v2048
      %v2103 = vadd.f32 %v1595, %v2051
      %v2104 = vadd.f32 %v1596, %v2056
      %v2105 = vadd.f32 %v1597, %v2059
      %v2106 = vadd.f32 %v1598, %v2064
      %v2107 = vadd.f32 %v1599, %v2067
      %v2108 = vadd.f32 %v1600, %v2072
      %v2109 = vadd.f32 %v1601, %v2075
      %v2110 = vadd.f32 %v1602, %v2080
      %v2111 = vadd.f32 %v1603, %v2083
      %v2112 = vadd.f32 %v1604, %v2088
      %v2113 = vadd.f32 %v1605, %v2091
      %v2114 = vld [vmem:[%s1327] sm:$0xe]
      %v2115 = vld [vmem:[%s1327 + $0xc] sm:$0xe]
      %v2116 = vld [vmem:[%s1327 + $0x18] sm:$0xe]
      %v2117 = vld [vmem:[%s1327 + $0x24] sm:$0xe]
      %v2118 = vld [vmem:[%s1327 + $0x30] sm:$0xe]
      %v2119 = vld [vmem:[%s1327 + $0x3c] sm:$0xe]
      %v2120 = vld [vmem:[%s1327 + $0x48] sm:$0xe]
      %v2121 = vld [vmem:[%s1327 + $0x54] sm:$0xe]
      %v2122 = vld [vmem:[%s1327 + $0x60] sm:$0xe]
      %v2123 = vld [vmem:[%s1327 + $0x6c] sm:$0xe]
      %v2154 = vrot.slane %v2114, 5
      %v2155 = vrot.slane %v2154, 4
      %v2156 = vrot.slane %v1607, 5
      %v2157 = vsel %vm1015, %v2155, %v2156
      %v2158 = vrot.slane %v2156, 4
      %v2159 = vrot.slane %v1608, 5
      %v2160 = vsel %vm1015, %v2158, %v2159
      %v2161 = vrot.slane %v2115, 5
      %v2162 = vrot.slane %v2161, 4
      %v2163 = vrot.slane %v1610, 5
      %v2164 = vsel %vm1015, %v2162, %v2163
      %v2165 = vrot.slane %v2163, 4
      %v2166 = vrot.slane %v1611, 5
      %v2167 = vsel %vm1015, %v2165, %v2166
      %v2168 = vrot.slane %v2116, 5
      %v2169 = vrot.slane %v2168, 4
      %v2170 = vrot.slane %v1613, 5
      %v2171 = vsel %vm1015, %v2169, %v2170
      %v2172 = vrot.slane %v2170, 4
      %v2173 = vrot.slane %v1614, 5
      %v2174 = vsel %vm1015, %v2172, %v2173
      %v2175 = vrot.slane %v2117, 5
      %v2176 = vrot.slane %v2175, 4
      %v2177 = vrot.slane %v1616, 5
      %v2178 = vsel %vm1015, %v2176, %v2177
      %v2179 = vrot.slane %v2177, 4
      %v2180 = vrot.slane %v1617, 5
      %v2181 = vsel %vm1015, %v2179, %v2180
      %v2182 = vrot.slane %v2118, 5
      %v2183 = vrot.slane %v2182, 4
      %v2184 = vrot.slane %v1619, 5
      %v2185 = vsel %vm1015, %v2183, %v2184
      %v2186 = vrot.slane %v2184, 4
      %v2187 = vrot.slane %v1620, 5
      %v2188 = vsel %vm1015, %v2186, %v2187
      %v2189 = vrot.slane %v2119, 5
      %v2190 = vrot.slane %v2189, 4
      %v2191 = vrot.slane %v1622, 5
      %v2192 = vsel %vm1015, %v2190, %v2191
      %v2193 = vrot.slane %v2191, 4
      %v2194 = vrot.slane %v1623, 5
      %v2195 = vsel %vm1015, %v2193, %v2194
      %v2196 = vrot.slane %v2120, 5
      %v2197 = vrot.slane %v2196, 4
      %v2198 = vrot.slane %v1625, 5
      %v2199 = vsel %vm1015, %v2197, %v2198
      %v2200 = vrot.slane %v2198, 4
      %v2201 = vrot.slane %v1626, 5
      %v2202 = vsel %vm1015, %v2200, %v2201
      %v2203 = vrot.slane %v2121, 5
      %v2204 = vrot.slane %v2203, 4
      %v2205 = vrot.slane %v1628, 5
      %v2206 = vsel %vm1015, %v2204, %v2205
      %v2207 = vrot.slane %v2205, 4
      %v2208 = vrot.slane %v1629, 5
      %v2209 = vsel %vm1015, %v2207, %v2208
      %v2210 = vrot.slane %v2122, 5
      %v2211 = vrot.slane %v2210, 4
      %v2212 = vrot.slane %v1631, 5
      %v2213 = vsel %vm1015, %v2211, %v2212
      %v2214 = vrot.slane %v2212, 4
      %v2215 = vrot.slane %v1632, 5
      %v2216 = vsel %vm1015, %v2214, %v2215
      %v2217 = vrot.slane %v2123, 5
      %v2218 = vrot.slane %v2217, 4
      %v2219 = vrot.slane %v1634, 5
      %v2220 = vsel %vm1015, %v2218, %v2219
      %v2221 = vrot.slane %v2219, 4
      %v2222 = vrot.slane %v1635, 5
      %v2223 = vsel %vm1015, %v2221, %v2222
      %s2224 = scalar_lea.vmem %s1, 320
      %v2225 = vld [vmem:[%s2224] sm:$0xf]
      %v2226 = vld [vmem:[%s2224 + $0x4] sm:$0xf]
      %v2227 = vld [vmem:[%s2224 + $0x8] sm:$0xf]
      %v2228 = vld [vmem:[%s2224 + $0xc] sm:$0xf]
      %v2229 = vld [vmem:[%s2224 + $0x10] sm:$0xf]
      %v2230 = vld [vmem:[%s2224 + $0x14] sm:$0xf]
      %v2231 = vld [vmem:[%s2224 + $0x18] sm:$0xf]
      %v2232 = vld [vmem:[%s2224 + $0x1c] sm:$0xf]
      %v2233 = vld [vmem:[%s2224 + $0x20] sm:$0xf]
      %v2234 = vld [vmem:[%s2224 + $0x24] sm:$0xf]
      %v2235 = vld [vmem:[%s2224 + $0x28] sm:$0xf]
      %v2236 = vld [vmem:[%s2224 + $0x2c] sm:$0xf]
      %v2237 = vld [vmem:[%s2224 + $0x30] sm:$0xf]
      %v2238 = vld [vmem:[%s2224 + $0x34] sm:$0xf]
      %v2239 = vld [vmem:[%s2224 + $0x38] sm:$0xf]
      %v2240 = vld [vmem:[%s2224 + $0x3c] sm:$0xf]
      %v2241 = vunpack.c.l.b16 %v2157
      %v2242 = vunpack.c.l.b16 %v2160
      %v2243 = vunpack.c.l.b16 %v2164
      %v2244 = vunpack.c.l.b16 %v2167
      %v2245 = vunpack.c.l.b16 %v2171
      %v2246 = vunpack.c.l.b16 %v2174
      %v2247 = vunpack.c.l.b16 %v2178
      %v2248 = vunpack.c.l.b16 %v2181
      %v2249 = vunpack.c.l.b16 %v2185
      %v2250 = vunpack.c.l.b16 %v2188
      %v2251 = vunpack.c.l.b16 %v2192
      %v2252 = vunpack.c.l.b16 %v2195
      %v2253 = vunpack.c.l.b16 %v2199
      %v2254 = vunpack.c.l.b16 %v2202
      %v2255 = vunpack.c.l.b16 %v2206
      %v2256 = vunpack.c.l.b16 %v2209
      %v2257 = vunpack.c.l.b16 %v2213
      %v2258 = vunpack.c.l.b16 %v2216
      %v2259 = vunpack.c.l.b16 %v2220
      %v2260 = vunpack.c.l.b16 %v2223
      %v2261 = vpack.c.b16 %v2242, %v2241
      %v2262 = vpack.c.b16 %v2244, %v2243
      %v2263 = vpack.c.b16 %v2246, %v2245
      %v2264 = vpack.c.b16 %v2248, %v2247
      %v2265 = vpack.c.b16 %v2250, %v2249
      %v2266 = vpack.c.b16 %v2252, %v2251
      %v2267 = vpack.c.b16 %v2254, %v2253
      %v2268 = vpack.c.b16 %v2256, %v2255
      %v2269 = vpack.c.b16 %v2258, %v2257
      %v2270 = vpack.c.b16 %v2260, %v2259
      %v2297 = vunpack.c.l.b16 %v2225
      %v2298 = vunpack.c.l.b16 %v2226
      %v2299 = vunpack.c.l.b16 %v2227
      %v2300 = vunpack.c.l.b16 %v2228
      %v2301 = vunpack.c.l.b16 %v2229
      %v2302 = vunpack.c.l.b16 %v2230
      %v2303 = vunpack.c.l.b16 %v2231
      %v2304 = vunpack.c.l.b16 %v2232
      %v2305 = vunpack.c.l.b16 %v2233
      %v2306 = vunpack.c.l.b16 %v2234
      %v2307 = vunpack.c.l.b16 %v2235
      %v2308 = vunpack.c.l.b16 %v2236
      %v2309 = vunpack.c.l.b16 %v2237
      %v2310 = vunpack.c.l.b16 %v2238
      %v2311 = vunpack.c.l.b16 %v2239
      %v2312 = vunpack.c.l.b16 %v2240
      %v2313 = vpack.c.b16 %v2298, %v2297
      %v2314 = vpack.c.b16 %v2300, %v2299
      %v2315 = vpack.c.b16 %v2302, %v2301
      %v2316 = vpack.c.b16 %v2304, %v2303
      %v2317 = vpack.c.b16 %v2306, %v2305
      %v2318 = vpack.c.b16 %v2308, %v2307
      %v2319 = vpack.c.b16 %v2310, %v2309
      %v2320 = vpack.c.b16 %v2312, %v2311
      %2329 = vmatprep.subr.bf16.mxu0 0
      %2330 = vmatpush1.bf16.msra.mxu0 %v2320
      %2331 = vmatprep.subr.bf16.mxu0 0
      %2332 = vmatpush1.bf16.msra.mxu0 %v2319
      %2333 = vmatprep.subr.bf16.mxu0 0
      %2334 = vmatpush1.bf16.msra.mxu0 %v2318
      %2335 = vmatprep.subr.bf16.mxu0 0
      %2336 = vmatpush1.bf16.msra.mxu0 %v2317
      %2337 = vmatprep.subr.bf16.mxu0 0
      %2338 = vmatpush1.bf16.msra.mxu0 %v2316
      %2339 = vmatprep.subr.bf16.mxu0 0
      %2340 = vmatpush1.bf16.msra.mxu0 %v2315
      %2341 = vmatprep.subr.bf16.mxu0 0
      %2342 = vmatpush1.bf16.msra.mxu0 %v2314
      %2343 = vmatprep.subr.bf16.mxu0 0
      %2344 = vmatpush1.bf16.msra.mxu0 %v2313
      %2345 = vmatprep.subr.bf16.mxu0 0
      %2346 = vmatpush2.bf16.msra.mxu0 0
      %2347 = vmatprep.subr.bf16.mxu0 0
      %2348 = vmatpush2.bf16.msra.mxu0 0
      %2349 = vmatprep.subr.bf16.mxu0 0
      %2350 = vmatpush2.bf16.msra.mxu0 0
      %2351 = vmatprep.subr.bf16.mxu0 0
      %2352 = vmatpush2.bf16.msra.mxu0 0
      %2353 = vmatprep.subr.bf16.mxu0 0
      %2354 = vmatpush2.bf16.msra.mxu0 0
      %2355 = vmatprep.subr.bf16.mxu0 0
      %2356 = vmatpush2.bf16.msra.mxu0 0
      %2357 = vmatprep.subr.bf16.mxu0 0
      %2358 = vmatpush2.bf16.msra.mxu0 0
      %2359 = vmatprep.subr.bf16.mxu0 0
      %2360 = vmatpush2.bf16.msra.mxu0 0
      %2361 = vmatprep.mubr.bf16.mxu0 0
      %2362 = vmatmul.mubr.bf16.gmra.mxu0 %v2261
      %v2363 = vpop.f32.mrf.mxu0
      %v2364 = vadd.f32 0.0, %v2363
      %v2365 = vpop.f32.mrf.mxu0
      %v2366 = vpop.f32.mrf.mxu0
      %v2367 = vadd.f32 0.0, %v2366
      %v2368 = vpop.f32.mrf.mxu0
      %2369 = vmatprep.mubr.bf16.mxu0 0
      %2370 = vmatmul.mubr.bf16.gmra.mxu0 %v2262
      %v2371 = vpop.f32.mrf.mxu0
      %v2372 = vadd.f32 0.0, %v2371
      %v2373 = vpop.f32.mrf.mxu0
      %v2374 = vpop.f32.mrf.mxu0
      %v2375 = vadd.f32 0.0, %v2374
      %v2376 = vpop.f32.mrf.mxu0
      %2377 = vmatprep.mubr.bf16.mxu0 0
      %2378 = vmatmul.mubr.bf16.gmra.mxu0 %v2263
      %v2379 = vpop.f32.mrf.mxu0
      %v2380 = vadd.f32 0.0, %v2379
      %v2381 = vpop.f32.mrf.mxu0
      %v2382 = vpop.f32.mrf.mxu0
      %v2383 = vadd.f32 0.0, %v2382
      %v2384 = vpop.f32.mrf.mxu0
      %2385 = vmatprep.mubr.bf16.mxu0 0
      %2386 = vmatmul.mubr.bf16.gmra.mxu0 %v2264
      %v2387 = vpop.f32.mrf.mxu0
      %v2388 = vadd.f32 0.0, %v2387
      %v2389 = vpop.f32.mrf.mxu0
      %v2390 = vpop.f32.mrf.mxu0
      %v2391 = vadd.f32 0.0, %v2390
      %v2392 = vpop.f32.mrf.mxu0
      %2393 = vmatprep.mubr.bf16.mxu0 0
      %2394 = vmatmul.mubr.bf16.gmra.mxu0 %v2265
      %v2395 = vpop.f32.mrf.mxu0
      %v2396 = vadd.f32 0.0, %v2395
      %v2397 = vpop.f32.mrf.mxu0
      %v2398 = vpop.f32.mrf.mxu0
      %v2399 = vadd.f32 0.0, %v2398
      %v2400 = vpop.f32.mrf.mxu0
      %2401 = vmatprep.mubr.bf16.mxu0 0
      %2402 = vmatmul.mubr.bf16.gmra.mxu0 %v2266
      %v2403 = vpop.f32.mrf.mxu0
      %v2404 = vadd.f32 0.0, %v2403
      %v2405 = vpop.f32.mrf.mxu0
      %v2406 = vpop.f32.mrf.mxu0
      %v2407 = vadd.f32 0.0, %v2406
      %v2408 = vpop.f32.mrf.mxu0
      %2409 = vmatprep.mubr.bf16.mxu0 0
      %2410 = vmatmul.mubr.bf16.gmra.mxu0 %v2267
      %v2411 = vpop.f32.mrf.mxu0
      %v2412 = vadd.f32 0.0, %v2411
      %v2413 = vpop.f32.mrf.mxu0
      %v2414 = vpop.f32.mrf.mxu0
      %v2415 = vadd.f32 0.0, %v2414
      %v2416 = vpop.f32.mrf.mxu0
      %2417 = vmatprep.mubr.bf16.mxu0 0
      %2418 = vmatmul.mubr.bf16.gmra.mxu0 %v2268
      %v2419 = vpop.f32.mrf.mxu0
      %v2420 = vadd.f32 0.0, %v2419
      %v2421 = vpop.f32.mrf.mxu0
      %v2422 = vpop.f32.mrf.mxu0
      %v2423 = vadd.f32 0.0, %v2422
      %v2424 = vpop.f32.mrf.mxu0
      %2425 = vmatprep.mubr.bf16.mxu0 0
      %2426 = vmatmul.mubr.bf16.gmra.mxu0 %v2269
      %v2427 = vpop.f32.mrf.mxu0
      %v2428 = vadd.f32 0.0, %v2427
      %v2429 = vpop.f32.mrf.mxu0
      %v2430 = vpop.f32.mrf.mxu0
      %v2431 = vadd.f32 0.0, %v2430
      %v2432 = vpop.f32.mrf.mxu0
      %2433 = vmatprep.mubr.bf16.mxu0 0
      %2434 = vmatmul.mubr.bf16.gmra.mxu0 %v2270
      %v2435 = vpop.f32.mrf.mxu0
      %v2436 = vadd.f32 0.0, %v2435
      %v2437 = vpop.f32.mrf.mxu0
      %v2438 = vpop.f32.mrf.mxu0
      %v2439 = vadd.f32 0.0, %v2438
      %v2440 = vpop.f32.mrf.mxu0
      %2441 = vdwg.mxu0
      %v2442 = vadd.f32 %v2094, %v2364
      %v2443 = vadd.f32 %v2095, %v2367
      %v2444 = vadd.f32 %v2096, %v2372
      %v2445 = vadd.f32 %v2097, %v2375
      %v2446 = vadd.f32 %v2098, %v2380
      %v2447 = vadd.f32 %v2099, %v2383
      %v2448 = vadd.f32 %v2100, %v2388
      %v2449 = vadd.f32 %v2101, %v2391
      %v2450 = vadd.f32 %v2102, %v2396
      %v2451 = vadd.f32 %v2103, %v2399
      %v2452 = vadd.f32 %v2104, %v2404
      %v2453 = vadd.f32 %v2105, %v2407
      %v2454 = vadd.f32 %v2106, %v2412
      %v2455 = vadd.f32 %v2107, %v2415
      %v2456 = vadd.f32 %v2108, %v2420
      %v2457 = vadd.f32 %v2109, %v2423
      %v2458 = vadd.f32 %v2110, %v2428
      %v2459 = vadd.f32 %v2111, %v2431
      %v2460 = vadd.f32 %v2112, %v2436
      %v2461 = vadd.f32 %v2113, %v2439
      %s2462 = sadd.s32 %s251, 2
      %s2463 = smul.u32 %s2462, 3
      %s2464 = smul.addr %s2463, 4
      %s2465 = scalar_lea.vmem %s238, %s2464
      %v2466 = vld [vmem:[%s2465] sm:$0xf]
      %v2467 = vld [vmem:[%s2465 + $0x4] sm:$0xf]
      %v2468 = vld [vmem:[%s2465 + $0xc] sm:$0xf]
      %v2469 = vld [vmem:[%s2465 + $0x10] sm:$0xf]
      %v2470 = vld [vmem:[%s2465 + $0x18] sm:$0xf]
      %v2471 = vld [vmem:[%s2465 + $0x1c] sm:$0xf]
      %v2472 = vld [vmem:[%s2465 + $0x24] sm:$0xf]
      %v2473 = vld [vmem:[%s2465 + $0x28] sm:$0xf]
      %v2474 = vld [vmem:[%s2465 + $0x30] sm:$0xf]
      %v2475 = vld [vmem:[%s2465 + $0x34] sm:$0xf]
      %v2476 = vld [vmem:[%s2465 + $0x3c] sm:$0xf]
      %v2477 = vld [vmem:[%s2465 + $0x40] sm:$0xf]
      %v2478 = vld [vmem:[%s2465 + $0x48] sm:$0xf]
      %v2479 = vld [vmem:[%s2465 + $0x4c] sm:$0xf]
      %v2480 = vld [vmem:[%s2465 + $0x54] sm:$0xf]
      %v2481 = vld [vmem:[%s2465 + $0x58] sm:$0xf]
      %v2482 = vld [vmem:[%s2465 + $0x60] sm:$0xf]
      %v2483 = vld [vmem:[%s2465 + $0x64] sm:$0xf]
      %v2484 = vld [vmem:[%s2465 + $0x6c] sm:$0xf]
      %v2485 = vld [vmem:[%s2465 + $0x70] sm:$0xf]
      %s2486 = scalar_lea.vmem %s1, 384
      %v2487 = vld [vmem:[%s2486] sm:$0xf]
      %v2488 = vld [vmem:[%s2486 + $0x4] sm:$0xf]
      %v2489 = vld [vmem:[%s2486 + $0x8] sm:$0xf]
      %v2490 = vld [vmem:[%s2486 + $0xc] sm:$0xf]
      %v2491 = vld [vmem:[%s2486 + $0x10] sm:$0xf]
      %v2492 = vld [vmem:[%s2486 + $0x14] sm:$0xf]
      %v2493 = vld [vmem:[%s2486 + $0x18] sm:$0xf]
      %v2494 = vld [vmem:[%s2486 + $0x1c] sm:$0xf]
      %v2495 = vld [vmem:[%s2486 + $0x20] sm:$0xf]
      %v2496 = vld [vmem:[%s2486 + $0x24] sm:$0xf]
      %v2497 = vld [vmem:[%s2486 + $0x28] sm:$0xf]
      %v2498 = vld [vmem:[%s2486 + $0x2c] sm:$0xf]
      %v2499 = vld [vmem:[%s2486 + $0x30] sm:$0xf]
      %v2500 = vld [vmem:[%s2486 + $0x34] sm:$0xf]
      %v2501 = vld [vmem:[%s2486 + $0x38] sm:$0xf]
      %v2502 = vld [vmem:[%s2486 + $0x3c] sm:$0xf]
      %v2523 = vunpack.c.l.b16 %v2466
      %v2524 = vunpack.c.l.b16 %v2467
      %v2525 = vunpack.c.l.b16 %v2468
      %v2526 = vunpack.c.l.b16 %v2469
      %v2527 = vunpack.c.l.b16 %v2470
      %v2528 = vunpack.c.l.b16 %v2471
      %v2529 = vunpack.c.l.b16 %v2472
      %v2530 = vunpack.c.l.b16 %v2473
      %v2531 = vunpack.c.l.b16 %v2474
      %v2532 = vunpack.c.l.b16 %v2475
      %v2533 = vunpack.c.l.b16 %v2476
      %v2534 = vunpack.c.l.b16 %v2477
      %v2535 = vunpack.c.l.b16 %v2478
      %v2536 = vunpack.c.l.b16 %v2479
      %v2537 = vunpack.c.l.b16 %v2480
      %v2538 = vunpack.c.l.b16 %v2481
      %v2539 = vunpack.c.l.b16 %v2482
      %v2540 = vunpack.c.l.b16 %v2483
      %v2541 = vunpack.c.l.b16 %v2484
      %v2542 = vunpack.c.l.b16 %v2485
      %v2543 = vpack.c.b16 %v2524, %v2523
      %v2544 = vpack.c.b16 %v2526, %v2525
      %v2545 = vpack.c.b16 %v2528, %v2527
      %v2546 = vpack.c.b16 %v2530, %v2529
      %v2547 = vpack.c.b16 %v2532, %v2531
      %v2548 = vpack.c.b16 %v2534, %v2533
      %v2549 = vpack.c.b16 %v2536, %v2535
      %v2550 = vpack.c.b16 %v2538, %v2537
      %v2551 = vpack.c.b16 %v2540, %v2539
      %v2552 = vpack.c.b16 %v2542, %v2541
      %v2579 = vunpack.c.l.b16 %v2487
      %v2580 = vunpack.c.l.b16 %v2488
      %v2581 = vunpack.c.l.b16 %v2489
      %v2582 = vunpack.c.l.b16 %v2490
      %v2583 = vunpack.c.l.b16 %v2491
      %v2584 = vunpack.c.l.b16 %v2492
      %v2585 = vunpack.c.l.b16 %v2493
      %v2586 = vunpack.c.l.b16 %v2494
      %v2587 = vunpack.c.l.b16 %v2495
      %v2588 = vunpack.c.l.b16 %v2496
      %v2589 = vunpack.c.l.b16 %v2497
      %v2590 = vunpack.c.l.b16 %v2498
      %v2591 = vunpack.c.l.b16 %v2499
      %v2592 = vunpack.c.l.b16 %v2500
      %v2593 = vunpack.c.l.b16 %v2501
      %v2594 = vunpack.c.l.b16 %v2502
      %v2595 = vpack.c.b16 %v2580, %v2579
      %v2596 = vpack.c.b16 %v2582, %v2581
      %v2597 = vpack.c.b16 %v2584, %v2583
      %v2598 = vpack.c.b16 %v2586, %v2585
      %v2599 = vpack.c.b16 %v2588, %v2587
      %v2600 = vpack.c.b16 %v2590, %v2589
      %v2601 = vpack.c.b16 %v2592, %v2591
      %v2602 = vpack.c.b16 %v2594, %v2593
      %2611 = vmatprep.subr.bf16.mxu0 0
      %2612 = vmatpush1.bf16.msra.mxu0 %v2602
      %2613 = vmatprep.subr.bf16.mxu0 0
      %2614 = vmatpush1.bf16.msra.mxu0 %v2601
      %2615 = vmatprep.subr.bf16.mxu0 0
      %2616 = vmatpush1.bf16.msra.mxu0 %v2600
      %2617 = vmatprep.subr.bf16.mxu0 0
      %2618 = vmatpush1.bf16.msra.mxu0 %v2599
      %2619 = vmatprep.subr.bf16.mxu0 0
      %2620 = vmatpush1.bf16.msra.mxu0 %v2598
      %2621 = vmatprep.subr.bf16.mxu0 0
      %2622 = vmatpush1.bf16.msra.mxu0 %v2597
      %2623 = vmatprep.subr.bf16.mxu0 0
      %2624 = vmatpush1.bf16.msra.mxu0 %v2596
      %2625 = vmatprep.subr.bf16.mxu0 0
      %2626 = vmatpush1.bf16.msra.mxu0 %v2595
      %2627 = vmatprep.subr.bf16.mxu0 0
      %2628 = vmatpush2.bf16.msra.mxu0 0
      %2629 = vmatprep.subr.bf16.mxu0 0
      %2630 = vmatpush2.bf16.msra.mxu0 0
      %2631 = vmatprep.subr.bf16.mxu0 0
      %2632 = vmatpush2.bf16.msra.mxu0 0
      %2633 = vmatprep.subr.bf16.mxu0 0
      %2634 = vmatpush2.bf16.msra.mxu0 0
      %2635 = vmatprep.subr.bf16.mxu0 0
      %2636 = vmatpush2.bf16.msra.mxu0 0
      %2637 = vmatprep.subr.bf16.mxu0 0
      %2638 = vmatpush2.bf16.msra.mxu0 0
      %2639 = vmatprep.subr.bf16.mxu0 0
      %2640 = vmatpush2.bf16.msra.mxu0 0
      %2641 = vmatprep.subr.bf16.mxu0 0
      %2642 = vmatpush2.bf16.msra.mxu0 0
      %2643 = vmatprep.mubr.bf16.mxu0 0
      %2644 = vmatmul.mubr.bf16.gmra.mxu0 %v2543
      %v2645 = vpop.f32.mrf.mxu0
      %v2646 = vadd.f32 0.0, %v2645
      %v2647 = vpop.f32.mrf.mxu0
      %v2648 = vpop.f32.mrf.mxu0
      %v2649 = vadd.f32 0.0, %v2648
      %v2650 = vpop.f32.mrf.mxu0
      %2651 = vmatprep.mubr.bf16.mxu0 0
      %2652 = vmatmul.mubr.bf16.gmra.mxu0 %v2544
      %v2653 = vpop.f32.mrf.mxu0
      %v2654 = vadd.f32 0.0, %v2653
      %v2655 = vpop.f32.mrf.mxu0
      %v2656 = vpop.f32.mrf.mxu0
      %v2657 = vadd.f32 0.0, %v2656
      %v2658 = vpop.f32.mrf.mxu0
      %2659 = vmatprep.mubr.bf16.mxu0 0
      %2660 = vmatmul.mubr.bf16.gmra.mxu0 %v2545
      %v2661 = vpop.f32.mrf.mxu0
      %v2662 = vadd.f32 0.0, %v2661
      %v2663 = vpop.f32.mrf.mxu0
      %v2664 = vpop.f32.mrf.mxu0
      %v2665 = vadd.f32 0.0, %v2664
      %v2666 = vpop.f32.mrf.mxu0
      %2667 = vmatprep.mubr.bf16.mxu0 0
      %2668 = vmatmul.mubr.bf16.gmra.mxu0 %v2546
      %v2669 = vpop.f32.mrf.mxu0
      %v2670 = vadd.f32 0.0, %v2669
      %v2671 = vpop.f32.mrf.mxu0
      %v2672 = vpop.f32.mrf.mxu0
      %v2673 = vadd.f32 0.0, %v2672
      %v2674 = vpop.f32.mrf.mxu0
      %2675 = vmatprep.mubr.bf16.mxu0 0
      %2676 = vmatmul.mubr.bf16.gmra.mxu0 %v2547
      %v2677 = vpop.f32.mrf.mxu0
      %v2678 = vadd.f32 0.0, %v2677
      %v2679 = vpop.f32.mrf.mxu0
      %v2680 = vpop.f32.mrf.mxu0
      %v2681 = vadd.f32 0.0, %v2680
      %v2682 = vpop.f32.mrf.mxu0
      %2683 = vmatprep.mubr.bf16.mxu0 0
      %2684 = vmatmul.mubr.bf16.gmra.mxu0 %v2548
      %v2685 = vpop.f32.mrf.mxu0
      %v2686 = vadd.f32 0.0, %v2685
      %v2687 = vpop.f32.mrf.mxu0
      %v2688 = vpop.f32.mrf.mxu0
      %v2689 = vadd.f32 0.0, %v2688
      %v2690 = vpop.f32.mrf.mxu0
      %2691 = vmatprep.mubr.bf16.mxu0 0
      %2692 = vmatmul.mubr.bf16.gmra.mxu0 %v2549
      %v2693 = vpop.f32.mrf.mxu0
      %v2694 = vadd.f32 0.0, %v2693
      %v2695 = vpop.f32.mrf.mxu0
      %v2696 = vpop.f32.mrf.mxu0
      %v2697 = vadd.f32 0.0, %v2696
      %v2698 = vpop.f32.mrf.mxu0
      %2699 = vmatprep.mubr.bf16.mxu0 0
      %2700 = vmatmul.mubr.bf16.gmra.mxu0 %v2550
      %v2701 = vpop.f32.mrf.mxu0
      %v2702 = vadd.f32 0.0, %v2701
      %v2703 = vpop.f32.mrf.mxu0
      %v2704 = vpop.f32.mrf.mxu0
      %v2705 = vadd.f32 0.0, %v2704
      %v2706 = vpop.f32.mrf.mxu0
      %2707 = vmatprep.mubr.bf16.mxu0 0
      %2708 = vmatmul.mubr.bf16.gmra.mxu0 %v2551
      %v2709 = vpop.f32.mrf.mxu0
      %v2710 = vadd.f32 0.0, %v2709
      %v2711 = vpop.f32.mrf.mxu0
      %v2712 = vpop.f32.mrf.mxu0
      %v2713 = vadd.f32 0.0, %v2712
      %v2714 = vpop.f32.mrf.mxu0
      %2715 = vmatprep.mubr.bf16.mxu0 0
      %2716 = vmatmul.mubr.bf16.gmra.mxu0 %v2552
      %v2717 = vpop.f32.mrf.mxu0
      %v2718 = vadd.f32 0.0, %v2717
      %v2719 = vpop.f32.mrf.mxu0
      %v2720 = vpop.f32.mrf.mxu0
      %v2721 = vadd.f32 0.0, %v2720
      %v2722 = vpop.f32.mrf.mxu0
      %2723 = vdwg.mxu0
      %v2724 = vadd.f32 %v2442, %v2646
      %v2725 = vadd.f32 %v2443, %v2649
      %v2726 = vadd.f32 %v2444, %v2654
      %v2727 = vadd.f32 %v2445, %v2657
      %v2728 = vadd.f32 %v2446, %v2662
      %v2729 = vadd.f32 %v2447, %v2665
      %v2730 = vadd.f32 %v2448, %v2670
      %v2731 = vadd.f32 %v2449, %v2673
      %v2732 = vadd.f32 %v2450, %v2678
      %v2733 = vadd.f32 %v2451, %v2681
      %v2734 = vadd.f32 %v2452, %v2686
      %v2735 = vadd.f32 %v2453, %v2689
      %v2736 = vadd.f32 %v2454, %v2694
      %v2737 = vadd.f32 %v2455, %v2697
      %v2738 = vadd.f32 %v2456, %v2702
      %v2739 = vadd.f32 %v2457, %v2705
      %v2740 = vadd.f32 %v2458, %v2710
      %v2741 = vadd.f32 %v2459, %v2713
      %v2742 = vadd.f32 %v2460, %v2718
      %v2743 = vadd.f32 %v2461, %v2721
      %v2744 = vld [vmem:[%s2465] sm:$0xf]
      %v2745 = vld [vmem:[%s2465 + $0x4] sm:$0xf]
      %v2746 = vld [vmem:[%s2465 + $0x8] sm:$0x1]
      %v2747 = vld [vmem:[%s2465 + $0xc] sm:$0xf]
      %v2748 = vld [vmem:[%s2465 + $0x10] sm:$0xf]
      %v2749 = vld [vmem:[%s2465 + $0x14] sm:$0x1]
      %v2750 = vld [vmem:[%s2465 + $0x18] sm:$0xf]
      %v2751 = vld [vmem:[%s2465 + $0x1c] sm:$0xf]
      %v2752 = vld [vmem:[%s2465 + $0x20] sm:$0x1]
      %v2753 = vld [vmem:[%s2465 + $0x24] sm:$0xf]
      %v2754 = vld [vmem:[%s2465 + $0x28] sm:$0xf]
      %v2755 = vld [vmem:[%s2465 + $0x2c] sm:$0x1]
      %v2756 = vld [vmem:[%s2465 + $0x30] sm:$0xf]
      %v2757 = vld [vmem:[%s2465 + $0x34] sm:$0xf]
      %v2758 = vld [vmem:[%s2465 + $0x38] sm:$0x1]
      %v2759 = vld [vmem:[%s2465 + $0x3c] sm:$0xf]
      %v2760 = vld [vmem:[%s2465 + $0x40] sm:$0xf]
      %v2761 = vld [vmem:[%s2465 + $0x44] sm:$0x1]
      %v2762 = vld [vmem:[%s2465 + $0x48] sm:$0xf]
      %v2763 = vld [vmem:[%s2465 + $0x4c] sm:$0xf]
      %v2764 = vld [vmem:[%s2465 + $0x50] sm:$0x1]
      %v2765 = vld [vmem:[%s2465 + $0x54] sm:$0xf]
      %v2766 = vld [vmem:[%s2465 + $0x58] sm:$0xf]
      %v2767 = vld [vmem:[%s2465 + $0x5c] sm:$0x1]
      %v2768 = vld [vmem:[%s2465 + $0x60] sm:$0xf]
      %v2769 = vld [vmem:[%s2465 + $0x64] sm:$0xf]
      %v2770 = vld [vmem:[%s2465 + $0x68] sm:$0x1]
      %v2771 = vld [vmem:[%s2465 + $0x6c] sm:$0xf]
      %v2772 = vld [vmem:[%s2465 + $0x70] sm:$0xf]
      %v2773 = vld [vmem:[%s2465 + $0x74] sm:$0x1]
      %v2775 = vshrl.u32 %v2744, 16
      %v2777 = vrot.slane %v2775, 4
      %v2778 = vshll.u32 %v2744, 16
      %v2780 = vrot.slane %v2778, 5
      %v2781 = vor.u32 %v2777, %v2780
      %v2782 = vrot.slane %v2781, 4
      %v2784 = vshll.u32 %v2745, 16
      %v2786 = vrot.slane %v2784, 5
      %v2787 = vsel %vm303, %v2782, %v2786
      %v2788 = vshrl.u32 %v2745, 16
      %v2790 = vrot.slane %v2788, 4
      %v2791 = vor.u32 %v2790, %v2786
      %v2792 = vrot.slane %v2791, 4
      %v2794 = vshll.u32 %v2746, 16
      %v2796 = vrot.slane %v2794, 5
      %v2797 = vsel %vm303, %v2792, %v2796
      %v2799 = vshrl.u32 %v2747, 16
      %v2801 = vrot.slane %v2799, 4
      %v2802 = vshll.u32 %v2747, 16
      %v2804 = vrot.slane %v2802, 5
      %v2805 = vor.u32 %v2801, %v2804
      %v2806 = vrot.slane %v2805, 4
      %v2808 = vshll.u32 %v2748, 16
      %v2810 = vrot.slane %v2808, 5
      %v2811 = vsel %vm303, %v2806, %v2810
      %v2812 = vshrl.u32 %v2748, 16
      %v2814 = vrot.slane %v2812, 4
      %v2815 = vor.u32 %v2814, %v2810
      %v2816 = vrot.slane %v2815, 4
      %v2818 = vshll.u32 %v2749, 16
      %v2820 = vrot.slane %v2818, 5
      %v2821 = vsel %vm303, %v2816, %v2820
      %v2823 = vshrl.u32 %v2750, 16
      %v2825 = vrot.slane %v2823, 4
      %v2826 = vshll.u32 %v2750, 16
      %v2828 = vrot.slane %v2826, 5
      %v2829 = vor.u32 %v2825, %v2828
      %v2830 = vrot.slane %v2829, 4
      %v2832 = vshll.u32 %v2751, 16
      %v2834 = vrot.slane %v2832, 5
      %v2835 = vsel %vm303, %v2830, %v2834
      %v2836 = vshrl.u32 %v2751, 16
      %v2838 = vrot.slane %v2836, 4
      %v2839 = vor.u32 %v2838, %v2834
      %v2840 = vrot.slane %v2839, 4
      %v2842 = vshll.u32 %v2752, 16
      %v2844 = vrot.slane %v2842, 5
      %v2845 = vsel %vm303, %v2840, %v2844
      %v2847 = vshrl.u32 %v2753, 16
      %v2849 = vrot.slane %v2847, 4
      %v2850 = vshll.u32 %v2753, 16
      %v2852 = vrot.slane %v2850, 5
      %v2853 = vor.u32 %v2849, %v2852
      %v2854 = vrot.slane %v2853, 4
      %v2856 = vshll.u32 %v2754, 16
      %v2858 = vrot.slane %v2856, 5
      %v2859 = vsel %vm303, %v2854, %v2858
      %v2860 = vshrl.u32 %v2754, 16
      %v2862 = vrot.slane %v2860, 4
      %v2863 = vor.u32 %v2862, %v2858
      %v2864 = vrot.slane %v2863, 4
      %v2866 = vshll.u32 %v2755, 16
      %v2868 = vrot.slane %v2866, 5
      %v2869 = vsel %vm303, %v2864, %v2868
      %v2871 = vshrl.u32 %v2756, 16
      %v2873 = vrot.slane %v2871, 4
      %v2874 = vshll.u32 %v2756, 16
      %v2876 = vrot.slane %v2874, 5
      %v2877 = vor.u32 %v2873, %v2876
      %v2878 = vrot.slane %v2877, 4
      %v2880 = vshll.u32 %v2757, 16
      %v2882 = vrot.slane %v2880, 5
      %v2883 = vsel %vm303, %v2878, %v2882
      %v2884 = vshrl.u32 %v2757, 16
      %v2886 = vrot.slane %v2884, 4
      %v2887 = vor.u32 %v2886, %v2882
      %v2888 = vrot.slane %v2887, 4
      %v2890 = vshll.u32 %v2758, 16
      %v2892 = vrot.slane %v2890, 5
      %v2893 = vsel %vm303, %v2888, %v2892
      %v2895 = vshrl.u32 %v2759, 16
      %v2897 = vrot.slane %v2895, 4
      %v2898 = vshll.u32 %v2759, 16
      %v2900 = vrot.slane %v2898, 5
      %v2901 = vor.u32 %v2897, %v2900
      %v2902 = vrot.slane %v2901, 4
      %v2904 = vshll.u32 %v2760, 16
      %v2906 = vrot.slane %v2904, 5
      %v2907 = vsel %vm303, %v2902, %v2906
      %v2908 = vshrl.u32 %v2760, 16
      %v2910 = vrot.slane %v2908, 4
      %v2911 = vor.u32 %v2910, %v2906
      %v2912 = vrot.slane %v2911, 4
      %v2914 = vshll.u32 %v2761, 16
      %v2916 = vrot.slane %v2914, 5
      %v2917 = vsel %vm303, %v2912, %v2916
      %v2919 = vshrl.u32 %v2762, 16
      %v2921 = vrot.slane %v2919, 4
      %v2922 = vshll.u32 %v2762, 16
      %v2924 = vrot.slane %v2922, 5
      %v2925 = vor.u32 %v2921, %v2924
      %v2926 = vrot.slane %v2925, 4
      %v2928 = vshll.u32 %v2763, 16
      %v2930 = vrot.slane %v2928, 5
      %v2931 = vsel %vm303, %v2926, %v2930
      %v2932 = vshrl.u32 %v2763, 16
      %v2934 = vrot.slane %v2932, 4
      %v2935 = vor.u32 %v2934, %v2930
      %v2936 = vrot.slane %v2935, 4
      %v2938 = vshll.u32 %v2764, 16
      %v2940 = vrot.slane %v2938, 5
      %v2941 = vsel %vm303, %v2936, %v2940
      %v2943 = vshrl.u32 %v2765, 16
      %v2945 = vrot.slane %v2943, 4
      %v2946 = vshll.u32 %v2765, 16
      %v2948 = vrot.slane %v2946, 5
      %v2949 = vor.u32 %v2945, %v2948
      %v2950 = vrot.slane %v2949, 4
      %v2952 = vshll.u32 %v2766, 16
      %v2954 = vrot.slane %v2952, 5
      %v2955 = vsel %vm303, %v2950, %v2954
      %v2956 = vshrl.u32 %v2766, 16
      %v2958 = vrot.slane %v2956, 4
      %v2959 = vor.u32 %v2958, %v2954
      %v2960 = vrot.slane %v2959, 4
      %v2962 = vshll.u32 %v2767, 16
      %v2964 = vrot.slane %v2962, 5
      %v2965 = vsel %vm303, %v2960, %v2964
      %v2967 = vshrl.u32 %v2768, 16
      %v2969 = vrot.slane %v2967, 4
      %v2970 = vshll.u32 %v2768, 16
      %v2972 = vrot.slane %v2970, 5
      %v2973 = vor.u32 %v2969, %v2972
      %v2974 = vrot.slane %v2973, 4
      %v2976 = vshll.u32 %v2769, 16
      %v2978 = vrot.slane %v2976, 5
      %v2979 = vsel %vm303, %v2974, %v2978
      %v2980 = vshrl.u32 %v2769, 16
      %v2982 = vrot.slane %v2980, 4
      %v2983 = vor.u32 %v2982, %v2978
      %v2984 = vrot.slane %v2983, 4
      %v2986 = vshll.u32 %v2770, 16
      %v2988 = vrot.slane %v2986, 5
      %v2989 = vsel %vm303, %v2984, %v2988
      %v2991 = vshrl.u32 %v2771, 16
      %v2993 = vrot.slane %v2991, 4
      %v2994 = vshll.u32 %v2771, 16
      %v2996 = vrot.slane %v2994, 5
      %v2997 = vor.u32 %v2993, %v2996
      %v2998 = vrot.slane %v2997, 4
      %v3000 = vshll.u32 %v2772, 16
      %v3002 = vrot.slane %v3000, 5
      %v3003 = vsel %vm303, %v2998, %v3002
      %v3004 = vshrl.u32 %v2772, 16
      %v3006 = vrot.slane %v3004, 4
      %v3007 = vor.u32 %v3006, %v3002
      %v3008 = vrot.slane %v3007, 4
      %v3010 = vshll.u32 %v2773, 16
      %v3012 = vrot.slane %v3010, 5
      %v3013 = vsel %vm303, %v3008, %v3012
      %s3014 = scalar_lea.vmem %s1, 448
      %v3015 = vld [vmem:[%s3014] sm:$0xf]
      %v3016 = vld [vmem:[%s3014 + $0x4] sm:$0xf]
      %v3017 = vld [vmem:[%s3014 + $0x8] sm:$0xf]
      %v3018 = vld [vmem:[%s3014 + $0xc] sm:$0xf]
      %v3019 = vld [vmem:[%s3014 + $0x10] sm:$0xf]
      %v3020 = vld [vmem:[%s3014 + $0x14] sm:$0xf]
      %v3021 = vld [vmem:[%s3014 + $0x18] sm:$0xf]
      %v3022 = vld [vmem:[%s3014 + $0x1c] sm:$0xf]
      %v3023 = vld [vmem:[%s3014 + $0x20] sm:$0xf]
      %v3024 = vld [vmem:[%s3014 + $0x24] sm:$0xf]
      %v3025 = vld [vmem:[%s3014 + $0x28] sm:$0xf]
      %v3026 = vld [vmem:[%s3014 + $0x2c] sm:$0xf]
      %v3027 = vld [vmem:[%s3014 + $0x30] sm:$0xf]
      %v3028 = vld [vmem:[%s3014 + $0x34] sm:$0xf]
      %v3029 = vld [vmem:[%s3014 + $0x38] sm:$0xf]
      %v3030 = vld [vmem:[%s3014 + $0x3c] sm:$0xf]
      %v3031 = vunpack.c.l.b16 %v2787
      %v3032 = vunpack.c.l.b16 %v2797
      %v3033 = vunpack.c.l.b16 %v2811
      %v3034 = vunpack.c.l.b16 %v2821
      %v3035 = vunpack.c.l.b16 %v2835
      %v3036 = vunpack.c.l.b16 %v2845
      %v3037 = vunpack.c.l.b16 %v2859
      %v3038 = vunpack.c.l.b16 %v2869
      %v3039 = vunpack.c.l.b16 %v2883
      %v3040 = vunpack.c.l.b16 %v2893
      %v3041 = vunpack.c.l.b16 %v2907
      %v3042 = vunpack.c.l.b16 %v2917
      %v3043 = vunpack.c.l.b16 %v2931
      %v3044 = vunpack.c.l.b16 %v2941
      %v3045 = vunpack.c.l.b16 %v2955
      %v3046 = vunpack.c.l.b16 %v2965
      %v3047 = vunpack.c.l.b16 %v2979
      %v3048 = vunpack.c.l.b16 %v2989
      %v3049 = vunpack.c.l.b16 %v3003
      %v3050 = vunpack.c.l.b16 %v3013
      %v3051 = vpack.c.b16 %v3032, %v3031
      %v3052 = vpack.c.b16 %v3034, %v3033
      %v3053 = vpack.c.b16 %v3036, %v3035
      %v3054 = vpack.c.b16 %v3038, %v3037
      %v3055 = vpack.c.b16 %v3040, %v3039
      %v3056 = vpack.c.b16 %v3042, %v3041
      %v3057 = vpack.c.b16 %v3044, %v3043
      %v3058 = vpack.c.b16 %v3046, %v3045
      %v3059 = vpack.c.b16 %v3048, %v3047
      %v3060 = vpack.c.b16 %v3050, %v3049
      %v3087 = vunpack.c.l.b16 %v3015
      %v3088 = vunpack.c.l.b16 %v3016
      %v3089 = vunpack.c.l.b16 %v3017
      %v3090 = vunpack.c.l.b16 %v3018
      %v3091 = vunpack.c.l.b16 %v3019
      %v3092 = vunpack.c.l.b16 %v3020
      %v3093 = vunpack.c.l.b16 %v3021
      %v3094 = vunpack.c.l.b16 %v3022
      %v3095 = vunpack.c.l.b16 %v3023
      %v3096 = vunpack.c.l.b16 %v3024
      %v3097 = vunpack.c.l.b16 %v3025
      %v3098 = vunpack.c.l.b16 %v3026
      %v3099 = vunpack.c.l.b16 %v3027
      %v3100 = vunpack.c.l.b16 %v3028
      %v3101 = vunpack.c.l.b16 %v3029
      %v3102 = vunpack.c.l.b16 %v3030
      %v3103 = vpack.c.b16 %v3088, %v3087
      %v3104 = vpack.c.b16 %v3090, %v3089
      %v3105 = vpack.c.b16 %v3092, %v3091
      %v3106 = vpack.c.b16 %v3094, %v3093
      %v3107 = vpack.c.b16 %v3096, %v3095
      %v3108 = vpack.c.b16 %v3098, %v3097
      %v3109 = vpack.c.b16 %v3100, %v3099
      %v3110 = vpack.c.b16 %v3102, %v3101
      %3119 = vmatprep.subr.bf16.mxu0 0
      %3120 = vmatpush1.bf16.msra.mxu0 %v3110
      %3121 = vmatprep.subr.bf16.mxu0 0
      %3122 = vmatpush1.bf16.msra.mxu0 %v3109
      %3123 = vmatprep.subr.bf16.mxu0 0
      %3124 = vmatpush1.bf16.msra.mxu0 %v3108
      %3125 = vmatprep.subr.bf16.mxu0 0
      %3126 = vmatpush1.bf16.msra.mxu0 %v3107
      %3127 = vmatprep.subr.bf16.mxu0 0
      %3128 = vmatpush1.bf16.msra.mxu0 %v3106
      %3129 = vmatprep.subr.bf16.mxu0 0
      %3130 = vmatpush1.bf16.msra.mxu0 %v3105
      %3131 = vmatprep.subr.bf16.mxu0 0
      %3132 = vmatpush1.bf16.msra.mxu0 %v3104
      %3133 = vmatprep.subr.bf16.mxu0 0
      %3134 = vmatpush1.bf16.msra.mxu0 %v3103
      %3135 = vmatprep.subr.bf16.mxu0 0
      %3136 = vmatpush2.bf16.msra.mxu0 0
      %3137 = vmatprep.subr.bf16.mxu0 0
      %3138 = vmatpush2.bf16.msra.mxu0 0
      %3139 = vmatprep.subr.bf16.mxu0 0
      %3140 = vmatpush2.bf16.msra.mxu0 0
      %3141 = vmatprep.subr.bf16.mxu0 0
      %3142 = vmatpush2.bf16.msra.mxu0 0
      %3143 = vmatprep.subr.bf16.mxu0 0
      %3144 = vmatpush2.bf16.msra.mxu0 0
      %3145 = vmatprep.subr.bf16.mxu0 0
      %3146 = vmatpush2.bf16.msra.mxu0 0
      %3147 = vmatprep.subr.bf16.mxu0 0
      %3148 = vmatpush2.bf16.msra.mxu0 0
      %3149 = vmatprep.subr.bf16.mxu0 0
      %3150 = vmatpush2.bf16.msra.mxu0 0
      %3151 = vmatprep.mubr.bf16.mxu0 0
      %3152 = vmatmul.mubr.bf16.gmra.mxu0 %v3051
      %v3153 = vpop.f32.mrf.mxu0
      %v3154 = vadd.f32 0.0, %v3153
      %v3155 = vpop.f32.mrf.mxu0
      %v3156 = vpop.f32.mrf.mxu0
      %v3157 = vadd.f32 0.0, %v3156
      %v3158 = vpop.f32.mrf.mxu0
      %3159 = vmatprep.mubr.bf16.mxu0 0
      %3160 = vmatmul.mubr.bf16.gmra.mxu0 %v3052
      %v3161 = vpop.f32.mrf.mxu0
      %v3162 = vadd.f32 0.0, %v3161
      %v3163 = vpop.f32.mrf.mxu0
      %v3164 = vpop.f32.mrf.mxu0
      %v3165 = vadd.f32 0.0, %v3164
      %v3166 = vpop.f32.mrf.mxu0
      %3167 = vmatprep.mubr.bf16.mxu0 0
      %3168 = vmatmul.mubr.bf16.gmra.mxu0 %v3053
      %v3169 = vpop.f32.mrf.mxu0
      %v3170 = vadd.f32 0.0, %v3169
      %v3171 = vpop.f32.mrf.mxu0
      %v3172 = vpop.f32.mrf.mxu0
      %v3173 = vadd.f32 0.0, %v3172
      %v3174 = vpop.f32.mrf.mxu0
      %3175 = vmatprep.mubr.bf16.mxu0 0
      %3176 = vmatmul.mubr.bf16.gmra.mxu0 %v3054
      %v3177 = vpop.f32.mrf.mxu0
      %v3178 = vadd.f32 0.0, %v3177
      %v3179 = vpop.f32.mrf.mxu0
      %v3180 = vpop.f32.mrf.mxu0
      %v3181 = vadd.f32 0.0, %v3180
      %v3182 = vpop.f32.mrf.mxu0
      %3183 = vmatprep.mubr.bf16.mxu0 0
      %3184 = vmatmul.mubr.bf16.gmra.mxu0 %v3055
      %v3185 = vpop.f32.mrf.mxu0
      %v3186 = vadd.f32 0.0, %v3185
      %v3187 = vpop.f32.mrf.mxu0
      %v3188 = vpop.f32.mrf.mxu0
      %v3189 = vadd.f32 0.0, %v3188
      %v3190 = vpop.f32.mrf.mxu0
      %3191 = vmatprep.mubr.bf16.mxu0 0
      %3192 = vmatmul.mubr.bf16.gmra.mxu0 %v3056
      %v3193 = vpop.f32.mrf.mxu0
      %v3194 = vadd.f32 0.0, %v3193
      %v3195 = vpop.f32.mrf.mxu0
      %v3196 = vpop.f32.mrf.mxu0
      %v3197 = vadd.f32 0.0, %v3196
      %v3198 = vpop.f32.mrf.mxu0
      %3199 = vmatprep.mubr.bf16.mxu0 0
      %3200 = vmatmul.mubr.bf16.gmra.mxu0 %v3057
      %v3201 = vpop.f32.mrf.mxu0
      %v3202 = vadd.f32 0.0, %v3201
      %v3203 = vpop.f32.mrf.mxu0
      %v3204 = vpop.f32.mrf.mxu0
      %v3205 = vadd.f32 0.0, %v3204
      %v3206 = vpop.f32.mrf.mxu0
      %3207 = vmatprep.mubr.bf16.mxu0 0
      %3208 = vmatmul.mubr.bf16.gmra.mxu0 %v3058
      %v3209 = vpop.f32.mrf.mxu0
      %v3210 = vadd.f32 0.0, %v3209
      %v3211 = vpop.f32.mrf.mxu0
      %v3212 = vpop.f32.mrf.mxu0
      %v3213 = vadd.f32 0.0, %v3212
      %v3214 = vpop.f32.mrf.mxu0
      %3215 = vmatprep.mubr.bf16.mxu0 0
      %3216 = vmatmul.mubr.bf16.gmra.mxu0 %v3059
      %v3217 = vpop.f32.mrf.mxu0
      %v3218 = vadd.f32 0.0, %v3217
      %v3219 = vpop.f32.mrf.mxu0
      %v3220 = vpop.f32.mrf.mxu0
      %v3221 = vadd.f32 0.0, %v3220
      %v3222 = vpop.f32.mrf.mxu0
      %3223 = vmatprep.mubr.bf16.mxu0 0
      %3224 = vmatmul.mubr.bf16.gmra.mxu0 %v3060
      %v3225 = vpop.f32.mrf.mxu0
      %v3226 = vadd.f32 0.0, %v3225
      %v3227 = vpop.f32.mrf.mxu0
      %v3228 = vpop.f32.mrf.mxu0
      %v3229 = vadd.f32 0.0, %v3228
      %v3230 = vpop.f32.mrf.mxu0
      %3231 = vdwg.mxu0
      %v3232 = vadd.f32 %v2724, %v3154
      %v3233 = vadd.f32 %v2725, %v3157
      %v3234 = vadd.f32 %v2726, %v3162
      %v3235 = vadd.f32 %v2727, %v3165
      %v3236 = vadd.f32 %v2728, %v3170
      %v3237 = vadd.f32 %v2729, %v3173
      %v3238 = vadd.f32 %v2730, %v3178
      %v3239 = vadd.f32 %v2731, %v3181
      %v3240 = vadd.f32 %v2732, %v3186
      %v3241 = vadd.f32 %v2733, %v3189
      %v3242 = vadd.f32 %v2734, %v3194
      %v3243 = vadd.f32 %v2735, %v3197
      %v3244 = vadd.f32 %v2736, %v3202
      %v3245 = vadd.f32 %v2737, %v3205
      %v3246 = vadd.f32 %v2738, %v3210
      %v3247 = vadd.f32 %v2739, %v3213
      %v3248 = vadd.f32 %v2740, %v3218
      %v3249 = vadd.f32 %v2741, %v3221
      %v3250 = vadd.f32 %v2742, %v3226
      %v3251 = vadd.f32 %v2743, %v3229
      %v3252 = vld [vmem:[%s2465] sm:$0xe]
      %v3253 = vld [vmem:[%s2465 + $0xc] sm:$0xe]
      %v3254 = vld [vmem:[%s2465 + $0x18] sm:$0xe]
      %v3255 = vld [vmem:[%s2465 + $0x24] sm:$0xe]
      %v3256 = vld [vmem:[%s2465 + $0x30] sm:$0xe]
      %v3257 = vld [vmem:[%s2465 + $0x3c] sm:$0xe]
      %v3258 = vld [vmem:[%s2465 + $0x48] sm:$0xe]
      %v3259 = vld [vmem:[%s2465 + $0x54] sm:$0xe]
      %v3260 = vld [vmem:[%s2465 + $0x60] sm:$0xe]
      %v3261 = vld [vmem:[%s2465 + $0x6c] sm:$0xe]
      %v3292 = vrot.slane %v3252, 5
      %v3293 = vrot.slane %v3292, 4
      %v3294 = vrot.slane %v2745, 5
      %v3295 = vsel %vm1015, %v3293, %v3294
      %v3296 = vrot.slane %v3294, 4
      %v3297 = vrot.slane %v2746, 5
      %v3298 = vsel %vm1015, %v3296, %v3297
      %v3299 = vrot.slane %v3253, 5
      %v3300 = vrot.slane %v3299, 4
      %v3301 = vrot.slane %v2748, 5
      %v3302 = vsel %vm1015, %v3300, %v3301
      %v3303 = vrot.slane %v3301, 4
      %v3304 = vrot.slane %v2749, 5
      %v3305 = vsel %vm1015, %v3303, %v3304
      %v3306 = vrot.slane %v3254, 5
      %v3307 = vrot.slane %v3306, 4
      %v3308 = vrot.slane %v2751, 5
      %v3309 = vsel %vm1015, %v3307, %v3308
      %v3310 = vrot.slane %v3308, 4
      %v3311 = vrot.slane %v2752, 5
      %v3312 = vsel %vm1015, %v3310, %v3311
      %v3313 = vrot.slane %v3255, 5
      %v3314 = vrot.slane %v3313, 4
      %v3315 = vrot.slane %v2754, 5
      %v3316 = vsel %vm1015, %v3314, %v3315
      %v3317 = vrot.slane %v3315, 4
      %v3318 = vrot.slane %v2755, 5
      %v3319 = vsel %vm1015, %v3317, %v3318
      %v3320 = vrot.slane %v3256, 5
      %v3321 = vrot.slane %v3320, 4
      %v3322 = vrot.slane %v2757, 5
      %v3323 = vsel %vm1015, %v3321, %v3322
      %v3324 = vrot.slane %v3322, 4
      %v3325 = vrot.slane %v2758, 5
      %v3326 = vsel %vm1015, %v3324, %v3325
      %v3327 = vrot.slane %v3257, 5
      %v3328 = vrot.slane %v3327, 4
      %v3329 = vrot.slane %v2760, 5
      %v3330 = vsel %vm1015, %v3328, %v3329
      %v3331 = vrot.slane %v3329, 4
      %v3332 = vrot.slane %v2761, 5
      %v3333 = vsel %vm1015, %v3331, %v3332
      %v3334 = vrot.slane %v3258, 5
      %v3335 = vrot.slane %v3334, 4
      %v3336 = vrot.slane %v2763, 5
      %v3337 = vsel %vm1015, %v3335, %v3336
      %v3338 = vrot.slane %v3336, 4
      %v3339 = vrot.slane %v2764, 5
      %v3340 = vsel %vm1015, %v3338, %v3339
      %v3341 = vrot.slane %v3259, 5
      %v3342 = vrot.slane %v3341, 4
      %v3343 = vrot.slane %v2766, 5
      %v3344 = vsel %vm1015, %v3342, %v3343
      %v3345 = vrot.slane %v3343, 4
      %v3346 = vrot.slane %v2767, 5
      %v3347 = vsel %vm1015, %v3345, %v3346
      %v3348 = vrot.slane %v3260, 5
      %v3349 = vrot.slane %v3348, 4
      %v3350 = vrot.slane %v2769, 5
      %v3351 = vsel %vm1015, %v3349, %v3350
      %v3352 = vrot.slane %v3350, 4
      %v3353 = vrot.slane %v2770, 5
      %v3354 = vsel %vm1015, %v3352, %v3353
      %v3355 = vrot.slane %v3261, 5
      %v3356 = vrot.slane %v3355, 4
      %v3357 = vrot.slane %v2772, 5
      %v3358 = vsel %vm1015, %v3356, %v3357
      %v3359 = vrot.slane %v3357, 4
      %v3360 = vrot.slane %v2773, 5
      %v3361 = vsel %vm1015, %v3359, %v3360
      %s3362 = scalar_lea.vmem %s1, 512
      %v3363 = vld [vmem:[%s3362] sm:$0xf]
      %v3364 = vld [vmem:[%s3362 + $0x4] sm:$0xf]
      %v3365 = vld [vmem:[%s3362 + $0x8] sm:$0xf]
      %v3366 = vld [vmem:[%s3362 + $0xc] sm:$0xf]
      %v3367 = vld [vmem:[%s3362 + $0x10] sm:$0xf]
      %v3368 = vld [vmem:[%s3362 + $0x14] sm:$0xf]
      %v3369 = vld [vmem:[%s3362 + $0x18] sm:$0xf]
      %v3370 = vld [vmem:[%s3362 + $0x1c] sm:$0xf]
      %v3371 = vld [vmem:[%s3362 + $0x20] sm:$0xf]
      %v3372 = vld [vmem:[%s3362 + $0x24] sm:$0xf]
      %v3373 = vld [vmem:[%s3362 + $0x28] sm:$0xf]
      %v3374 = vld [vmem:[%s3362 + $0x2c] sm:$0xf]
      %v3375 = vld [vmem:[%s3362 + $0x30] sm:$0xf]
      %v3376 = vld [vmem:[%s3362 + $0x34] sm:$0xf]
      %v3377 = vld [vmem:[%s3362 + $0x38] sm:$0xf]
      %v3378 = vld [vmem:[%s3362 + $0x3c] sm:$0xf]
      %v3379 = vunpack.c.l.b16 %v3295
      %v3380 = vunpack.c.l.b16 %v3298
      %v3381 = vunpack.c.l.b16 %v3302
      %v3382 = vunpack.c.l.b16 %v3305
      %v3383 = vunpack.c.l.b16 %v3309
      %v3384 = vunpack.c.l.b16 %v3312
      %v3385 = vunpack.c.l.b16 %v3316
      %v3386 = vunpack.c.l.b16 %v3319
      %v3387 = vunpack.c.l.b16 %v3323
      %v3388 = vunpack.c.l.b16 %v3326
      %v3389 = vunpack.c.l.b16 %v3330
      %v3390 = vunpack.c.l.b16 %v3333
      %v3391 = vunpack.c.l.b16 %v3337
      %v3392 = vunpack.c.l.b16 %v3340
      %v3393 = vunpack.c.l.b16 %v3344
      %v3394 = vunpack.c.l.b16 %v3347
      %v3395 = vunpack.c.l.b16 %v3351
      %v3396 = vunpack.c.l.b16 %v3354
      %v3397 = vunpack.c.l.b16 %v3358
      %v3398 = vunpack.c.l.b16 %v3361
      %v3399 = vpack.c.b16 %v3380, %v3379
      %v3400 = vpack.c.b16 %v3382, %v3381
      %v3401 = vpack.c.b16 %v3384, %v3383
      %v3402 = vpack.c.b16 %v3386, %v3385
      %v3403 = vpack.c.b16 %v3388, %v3387
      %v3404 = vpack.c.b16 %v3390, %v3389
      %v3405 = vpack.c.b16 %v3392, %v3391
      %v3406 = vpack.c.b16 %v3394, %v3393
      %v3407 = vpack.c.b16 %v3396, %v3395
      %v3408 = vpack.c.b16 %v3398, %v3397
      %v3435 = vunpack.c.l.b16 %v3363
      %v3436 = vunpack.c.l.b16 %v3364
      %v3437 = vunpack.c.l.b16 %v3365
      %v3438 = vunpack.c.l.b16 %v3366
      %v3439 = vunpack.c.l.b16 %v3367
      %v3440 = vunpack.c.l.b16 %v3368
      %v3441 = vunpack.c.l.b16 %v3369
      %v3442 = vunpack.c.l.b16 %v3370
      %v3443 = vunpack.c.l.b16 %v3371
      %v3444 = vunpack.c.l.b16 %v3372
      %v3445 = vunpack.c.l.b16 %v3373
      %v3446 = vunpack.c.l.b16 %v3374
      %v3447 = vunpack.c.l.b16 %v3375
      %v3448 = vunpack.c.l.b16 %v3376
      %v3449 = vunpack.c.l.b16 %v3377
      %v3450 = vunpack.c.l.b16 %v3378
      %v3451 = vpack.c.b16 %v3436, %v3435
      %v3452 = vpack.c.b16 %v3438, %v3437
      %v3453 = vpack.c.b16 %v3440, %v3439
      %v3454 = vpack.c.b16 %v3442, %v3441
      %v3455 = vpack.c.b16 %v3444, %v3443
      %v3456 = vpack.c.b16 %v3446, %v3445
      %v3457 = vpack.c.b16 %v3448, %v3447
      %v3458 = vpack.c.b16 %v3450, %v3449
      %3467 = vmatprep.subr.bf16.mxu0 0
      %3468 = vmatpush1.bf16.msra.mxu0 %v3458
      %3469 = vmatprep.subr.bf16.mxu0 0
      %3470 = vmatpush1.bf16.msra.mxu0 %v3457
      %3471 = vmatprep.subr.bf16.mxu0 0
      %3472 = vmatpush1.bf16.msra.mxu0 %v3456
      %3473 = vmatprep.subr.bf16.mxu0 0
      %3474 = vmatpush1.bf16.msra.mxu0 %v3455
      %3475 = vmatprep.subr.bf16.mxu0 0
      %3476 = vmatpush1.bf16.msra.mxu0 %v3454
      %3477 = vmatprep.subr.bf16.mxu0 0
      %3478 = vmatpush1.bf16.msra.mxu0 %v3453
      %3479 = vmatprep.subr.bf16.mxu0 0
      %3480 = vmatpush1.bf16.msra.mxu0 %v3452
      %3481 = vmatprep.subr.bf16.mxu0 0
      %3482 = vmatpush1.bf16.msra.mxu0 %v3451
      %3483 = vmatprep.subr.bf16.mxu0 0
      %3484 = vmatpush2.bf16.msra.mxu0 0
      %3485 = vmatprep.subr.bf16.mxu0 0
      %3486 = vmatpush2.bf16.msra.mxu0 0
      %3487 = vmatprep.subr.bf16.mxu0 0
      %3488 = vmatpush2.bf16.msra.mxu0 0
      %3489 = vmatprep.subr.bf16.mxu0 0
      %3490 = vmatpush2.bf16.msra.mxu0 0
      %3491 = vmatprep.subr.bf16.mxu0 0
      %3492 = vmatpush2.bf16.msra.mxu0 0
      %3493 = vmatprep.subr.bf16.mxu0 0
      %3494 = vmatpush2.bf16.msra.mxu0 0
      %3495 = vmatprep.subr.bf16.mxu0 0
      %3496 = vmatpush2.bf16.msra.mxu0 0
      %3497 = vmatprep.subr.bf16.mxu0 0
      %3498 = vmatpush2.bf16.msra.mxu0 0
      %3499 = vmatprep.mubr.bf16.mxu0 0
      %3500 = vmatmul.mubr.bf16.gmra.mxu0 %v3399
      %v3501 = vpop.f32.mrf.mxu0
      %v3502 = vadd.f32 0.0, %v3501
      %v3503 = vpop.f32.mrf.mxu0
      %v3504 = vpop.f32.mrf.mxu0
      %v3505 = vadd.f32 0.0, %v3504
      %v3506 = vpop.f32.mrf.mxu0
      %3507 = vmatprep.mubr.bf16.mxu0 0
      %3508 = vmatmul.mubr.bf16.gmra.mxu0 %v3400
      %v3509 = vpop.f32.mrf.mxu0
      %v3510 = vadd.f32 0.0, %v3509
      %v3511 = vpop.f32.mrf.mxu0
      %v3512 = vpop.f32.mrf.mxu0
      %v3513 = vadd.f32 0.0, %v3512
      %v3514 = vpop.f32.mrf.mxu0
      %3515 = vmatprep.mubr.bf16.mxu0 0
      %3516 = vmatmul.mubr.bf16.gmra.mxu0 %v3401
      %v3517 = vpop.f32.mrf.mxu0
      %v3518 = vadd.f32 0.0, %v3517
      %v3519 = vpop.f32.mrf.mxu0
      %v3520 = vpop.f32.mrf.mxu0
      %v3521 = vadd.f32 0.0, %v3520
      %v3522 = vpop.f32.mrf.mxu0
      %3523 = vmatprep.mubr.bf16.mxu0 0
      %3524 = vmatmul.mubr.bf16.gmra.mxu0 %v3402
      %v3525 = vpop.f32.mrf.mxu0
      %v3526 = vadd.f32 0.0, %v3525
      %v3527 = vpop.f32.mrf.mxu0
      %v3528 = vpop.f32.mrf.mxu0
      %v3529 = vadd.f32 0.0, %v3528
      %v3530 = vpop.f32.mrf.mxu0
      %3531 = vmatprep.mubr.bf16.mxu0 0
      %3532 = vmatmul.mubr.bf16.gmra.mxu0 %v3403
      %v3533 = vpop.f32.mrf.mxu0
      %v3534 = vadd.f32 0.0, %v3533
      %v3535 = vpop.f32.mrf.mxu0
      %v3536 = vpop.f32.mrf.mxu0
      %v3537 = vadd.f32 0.0, %v3536
      %v3538 = vpop.f32.mrf.mxu0
      %3539 = vmatprep.mubr.bf16.mxu0 0
      %3540 = vmatmul.mubr.bf16.gmra.mxu0 %v3404
      %v3541 = vpop.f32.mrf.mxu0
      %v3542 = vadd.f32 0.0, %v3541
      %v3543 = vpop.f32.mrf.mxu0
      %v3544 = vpop.f32.mrf.mxu0
      %v3545 = vadd.f32 0.0, %v3544
      %v3546 = vpop.f32.mrf.mxu0
      %3547 = vmatprep.mubr.bf16.mxu0 0
      %3548 = vmatmul.mubr.bf16.gmra.mxu0 %v3405
      %v3549 = vpop.f32.mrf.mxu0
      %v3550 = vadd.f32 0.0, %v3549
      %v3551 = vpop.f32.mrf.mxu0
      %v3552 = vpop.f32.mrf.mxu0
      %v3553 = vadd.f32 0.0, %v3552
      %v3554 = vpop.f32.mrf.mxu0
      %3555 = vmatprep.mubr.bf16.mxu0 0
      %3556 = vmatmul.mubr.bf16.gmra.mxu0 %v3406
      %v3557 = vpop.f32.mrf.mxu0
      %v3558 = vadd.f32 0.0, %v3557
      %v3559 = vpop.f32.mrf.mxu0
      %v3560 = vpop.f32.mrf.mxu0
      %v3561 = vadd.f32 0.0, %v3560
      %v3562 = vpop.f32.mrf.mxu0
      %3563 = vmatprep.mubr.bf16.mxu0 0
      %3564 = vmatmul.mubr.bf16.gmra.mxu0 %v3407
      %v3565 = vpop.f32.mrf.mxu0
      %v3566 = vadd.f32 0.0, %v3565
      %v3567 = vpop.f32.mrf.mxu0
      %v3568 = vpop.f32.mrf.mxu0
      %v3569 = vadd.f32 0.0, %v3568
      %v3570 = vpop.f32.mrf.mxu0
      %3571 = vmatprep.mubr.bf16.mxu0 0
      %3572 = vmatmul.mubr.bf16.gmra.mxu0 %v3408
      %v3573 = vpop.f32.mrf.mxu0
      %v3574 = vadd.f32 0.0, %v3573
      %v3575 = vpop.f32.mrf.mxu0
      %v3576 = vpop.f32.mrf.mxu0
      %v3577 = vadd.f32 0.0, %v3576
      %v3578 = vpop.f32.mrf.mxu0
      %3579 = vdwg.mxu0
      %v3580 = vadd.f32 %v3232, %v3502
      %v3581 = vadd.f32 %v3233, %v3505
      %v3582 = vadd.f32 %v3234, %v3510
      %v3583 = vadd.f32 %v3235, %v3513
      %v3584 = vadd.f32 %v3236, %v3518
      %v3585 = vadd.f32 %v3237, %v3521
      %v3586 = vadd.f32 %v3238, %v3526
      %v3587 = vadd.f32 %v3239, %v3529
      %v3588 = vadd.f32 %v3240, %v3534
      %v3589 = vadd.f32 %v3241, %v3537
      %v3590 = vadd.f32 %v3242, %v3542
      %v3591 = vadd.f32 %v3243, %v3545
      %v3592 = vadd.f32 %v3244, %v3550
      %v3593 = vadd.f32 %v3245, %v3553
      %v3594 = vadd.f32 %v3246, %v3558
      %v3595 = vadd.f32 %v3247, %v3561
      %v3596 = vadd.f32 %v3248, %v3566
      %v3597 = vadd.f32 %v3249, %v3569
      %v3598 = vadd.f32 %v3250, %v3574
      %v3599 = vadd.f32 %v3251, %v3577
      %v3600 = vld [vmem:[%s2] sm:$0x1]
      %v3602 = vlaneseq
      %v3603 = vshrl.u32 %v3602, 7
      %v3604 = vsub.s32 0, %v3603
      %v3605 = vrot.slane %v3600, %v3604
      %v3607 = vadd.f32 %v3580, %v3605
      %v3608 = vadd.f32 %v3581, %v3605
      %v3609 = vadd.f32 %v3582, %v3605
      %v3610 = vadd.f32 %v3583, %v3605
      %v3611 = vadd.f32 %v3584, %v3605
      %v3612 = vadd.f32 %v3585, %v3605
      %v3613 = vadd.f32 %v3586, %v3605
      %v3614 = vadd.f32 %v3587, %v3605
      %v3615 = vadd.f32 %v3588, %v3605
      %v3616 = vadd.f32 %v3589, %v3605
      %v3617 = vadd.f32 %v3590, %v3605
      %v3618 = vadd.f32 %v3591, %v3605
      %v3619 = vadd.f32 %v3592, %v3605
      %v3620 = vadd.f32 %v3593, %v3605
      %v3621 = vadd.f32 %v3594, %v3605
      %v3622 = vadd.f32 %v3595, %v3605
      %v3623 = vadd.f32 %v3596, %v3605
      %v3624 = vadd.f32 %v3597, %v3605
      %v3625 = vadd.f32 %v3598, %v3605
      %v3626 = vadd.f32 %v3599, %v3605
      %v3627 = vmax.f32 %v3607, 0.0
      %v3628 = vmax.f32 %v3608, 0.0
      %v3629 = vmax.f32 %v3609, 0.0
      %v3630 = vmax.f32 %v3610, 0.0
      %v3631 = vmax.f32 %v3611, 0.0
      %v3632 = vmax.f32 %v3612, 0.0
      %v3633 = vmax.f32 %v3613, 0.0
      %v3634 = vmax.f32 %v3614, 0.0
      %v3635 = vmax.f32 %v3615, 0.0
      %v3636 = vmax.f32 %v3616, 0.0
      %v3637 = vmax.f32 %v3617, 0.0
      %v3638 = vmax.f32 %v3618, 0.0
      %v3639 = vmax.f32 %v3619, 0.0
      %v3640 = vmax.f32 %v3620, 0.0
      %v3641 = vmax.f32 %v3621, 0.0
      %v3642 = vmax.f32 %v3622, 0.0
      %v3643 = vmax.f32 %v3623, 0.0
      %v3644 = vmax.f32 %v3624, 0.0
      %v3645 = vmax.f32 %v3625, 0.0
      %v3646 = vmax.f32 %v3626, 0.0
      %s3647 = ssub.s32 %s251, 1
      %v3648 = vstv %s3647
      %v3649 = vadd.s32 %v3648, 1
      %v3650 = vadd.s32 %v3648, 2
      %v3651 = vadd.s32 %v3648, 3
      %v3652 = vadd.s32 %v3648, 4
      %v3653 = vadd.s32 %v3648, 5
      %v3654 = vadd.s32 %v3648, 6
      %v3655 = vadd.s32 %v3648, 7
      %v3656 = vadd.s32 %v3648, 8
      %v3657 = vadd.s32 %v3648, 9
      %vm3658 = vcmp.ge.s32.totalorder %v3648, 0
      %vm3659 = vcmp.ge.s32.totalorder %v3649, 0
      %vm3660 = vcmp.ge.s32.totalorder %v3650, 0
      %vm3661 = vcmp.ge.s32.totalorder %v3651, 0
      %vm3662 = vcmp.ge.s32.totalorder %v3652, 0
      %vm3663 = vcmp.ge.s32.totalorder %v3653, 0
      %vm3664 = vcmp.ge.s32.totalorder %v3654, 0
      %vm3665 = vcmp.ge.s32.totalorder %v3655, 0
      %vm3666 = vcmp.ge.s32.totalorder %v3656, 0
      %vm3667 = vcmp.ge.s32.totalorder %v3657, 0
      %vm3668 = vcmp.lt.s32.totalorder %v3648, 8
      %vm3669 = vcmp.lt.s32.totalorder %v3649, 8
      %vm3670 = vcmp.lt.s32.totalorder %v3650, 8
      %vm3671 = vcmp.lt.s32.totalorder %v3651, 8
      %vm3672 = vcmp.lt.s32.totalorder %v3652, 8
      %vm3673 = vcmp.lt.s32.totalorder %v3653, 8
      %vm3674 = vcmp.lt.s32.totalorder %v3654, 8
      %vm3675 = vcmp.lt.s32.totalorder %v3655, 8
      %vm3676 = vcmp.lt.s32.totalorder %v3656, 8
      %vm3677 = vcmp.lt.s32.totalorder %v3657, 8
      %vm3678 = vmand %vm3658, %vm3668
      %vm3679 = vmand %vm3659, %vm3669
      %vm3680 = vmand %vm3660, %vm3670
      %vm3681 = vmand %vm3661, %vm3671
      %vm3682 = vmand %vm3662, %vm3672
      %vm3683 = vmand %vm3663, %vm3673
      %vm3684 = vmand %vm3664, %vm3674
      %vm3685 = vmand %vm3665, %vm3675
      %vm3686 = vmand %vm3666, %vm3676
      %vm3687 = vmand %vm3667, %vm3677
      %v3688 = vsel %vm3678, 1, 0
      %v3689 = vsel %vm3679, 1, 0
      %v3690 = vsel %vm3680, 1, 0
      %v3691 = vsel %vm3681, 1, 0
      %v3692 = vsel %vm3682, 1, 0
      %v3693 = vsel %vm3683, 1, 0
      %v3694 = vsel %vm3684, 1, 0
      %v3695 = vsel %vm3685, 1, 0
      %v3696 = vsel %vm3686, 1, 0
      %v3697 = vsel %vm3687, 1, 0
      %vm3698 = vcmp.eq.s32.totalorder %v3688, 1
      %vm3699 = vcmp.eq.s32.totalorder %v3689, 1
      %vm3700 = vcmp.eq.s32.totalorder %v3690, 1
      %vm3701 = vcmp.eq.s32.totalorder %v3691, 1
      %vm3702 = vcmp.eq.s32.totalorder %v3692, 1
      %vm3703 = vcmp.eq.s32.totalorder %v3693, 1
      %vm3704 = vcmp.eq.s32.totalorder %v3694, 1
      %vm3705 = vcmp.eq.s32.totalorder %v3695, 1
      %vm3706 = vcmp.eq.s32.totalorder %v3696, 1
      %vm3707 = vcmp.eq.s32.totalorder %v3697, 1
      %v3708 = vsel %vm3698, %v3627, 0.0
      %v3709 = vsel %vm3698, %v3628, 0.0
      %v3710 = vsel %vm3699, %v3629, 0.0
      %v3711 = vsel %vm3699, %v3630, 0.0
      %v3712 = vsel %vm3700, %v3631, 0.0
      %v3713 = vsel %vm3700, %v3632, 0.0
      %v3714 = vsel %vm3701, %v3633, 0.0
      %v3715 = vsel %vm3701, %v3634, 0.0
      %v3716 = vsel %vm3702, %v3635, 0.0
      %v3717 = vsel %vm3702, %v3636, 0.0
      %v3718 = vsel %vm3703, %v3637, 0.0
      %v3719 = vsel %vm3703, %v3638, 0.0
      %v3720 = vsel %vm3704, %v3639, 0.0
      %v3721 = vsel %vm3704, %v3640, 0.0
      %v3722 = vsel %vm3705, %v3641, 0.0
      %v3723 = vsel %vm3705, %v3642, 0.0
      %v3724 = vsel %vm3706, %v3643, 0.0
      %v3725 = vsel %vm3706, %v3644, 0.0
      %v3726 = vsel %vm3707, %v3645, 0.0
      %v3727 = vsel %vm3707, %v3646, 0.0
      %vm3728 = vcmask 1040384
      %vm3729 = vsmask.f32 256
      %vm3730 = vmand %vm3728, %vm3729
      %v3731 = vld [vmem:[#allocation2] sm:$0x1]
      %v3732 = vsel %vm3730, 0, %v3731
      %3733 = vst [vmem:[#allocation2] sm:$0x1] %v3732
      %v3734 = vld [vmem:[#allocation2 + $0xc] sm:$0x1]
      %v3735 = vsel %vm3730, 0, %v3734
      %3736 = vst [vmem:[#allocation2 + $0xc] sm:$0x1] %v3735
      %v3737 = vld [vmem:[#allocation2 + $0x18] sm:$0x1]
      %v3738 = vsel %vm3730, 0, %v3737
      %3739 = vst [vmem:[#allocation2 + $0x18] sm:$0x1] %v3738
      %v3740 = vld [vmem:[#allocation2 + $0x24] sm:$0x1]
      %v3741 = vsel %vm3730, 0, %v3740
      %3742 = vst [vmem:[#allocation2 + $0x24] sm:$0x1] %v3741
      %v3743 = vld [vmem:[#allocation2 + $0x30] sm:$0x1]
      %v3744 = vsel %vm3730, 0, %v3743
      %3745 = vst [vmem:[#allocation2 + $0x30] sm:$0x1] %v3744
      %v3746 = vld [vmem:[#allocation2 + $0x3c] sm:$0x1]
      %v3747 = vsel %vm3730, 0, %v3746
      %3748 = vst [vmem:[#allocation2 + $0x3c] sm:$0x1] %v3747
      %v3749 = vld [vmem:[#allocation2 + $0x48] sm:$0x1]
      %v3750 = vsel %vm3730, 0, %v3749
      %3751 = vst [vmem:[#allocation2 + $0x48] sm:$0x1] %v3750
      %v3752 = vld [vmem:[#allocation2 + $0x54] sm:$0x1]
      %v3753 = vsel %vm3730, 0, %v3752
      %3754 = vst [vmem:[#allocation2 + $0x54] sm:$0x1] %v3753
      %v3755 = vld [vmem:[#allocation2 + $0x60] sm:$0x1]
      %v3756 = vsel %vm3730, 0, %v3755
      %3757 = vst [vmem:[#allocation2 + $0x60] sm:$0x1] %v3756
      %v3758 = vld [vmem:[#allocation2 + $0x6c] sm:$0x1]
      %v3759 = vsel %vm3730, 0, %v3758
      %3760 = vst [vmem:[#allocation2 + $0x6c] sm:$0x1] %v3759
      %vm3761 = vsmask.f32 7938
      %vm3762 = vmand %vm3728, %vm3761
      %v3763 = vld [vmem:[#allocation2 + $0x8] sm:$0x1]
      %v3764 = vsel %vm3762, 0, %v3763
      %3765 = vst [vmem:[#allocation2 + $0x8] sm:$0x1] %v3764
      %v3766 = vld [vmem:[#allocation2 + $0x14] sm:$0x1]
      %v3767 = vsel %vm3762, 0, %v3766
      %3768 = vst [vmem:[#allocation2 + $0x14] sm:$0x1] %v3767
      %v3769 = vld [vmem:[#allocation2 + $0x20] sm:$0x1]
      %v3770 = vsel %vm3762, 0, %v3769
      %3771 = vst [vmem:[#allocation2 + $0x20] sm:$0x1] %v3770
      %v3772 = vld [vmem:[#allocation2 + $0x2c] sm:$0x1]
      %v3773 = vsel %vm3762, 0, %v3772
      %3774 = vst [vmem:[#allocation2 + $0x2c] sm:$0x1] %v3773
      %v3775 = vld [vmem:[#allocation2 + $0x38] sm:$0x1]
      %v3776 = vsel %vm3762, 0, %v3775
      %3777 = vst [vmem:[#allocation2 + $0x38] sm:$0x1] %v3776
      %v3778 = vld [vmem:[#allocation2 + $0x44] sm:$0x1]
      %v3779 = vsel %vm3762, 0, %v3778
      %3780 = vst [vmem:[#allocation2 + $0x44] sm:$0x1] %v3779
      %v3781 = vld [vmem:[#allocation2 + $0x50] sm:$0x1]
      %v3782 = vsel %vm3762, 0, %v3781
      %3783 = vst [vmem:[#allocation2 + $0x50] sm:$0x1] %v3782
      %v3784 = vld [vmem:[#allocation2 + $0x5c] sm:$0x1]
      %v3785 = vsel %vm3762, 0, %v3784
      %3786 = vst [vmem:[#allocation2 + $0x5c] sm:$0x1] %v3785
      %v3787 = vld [vmem:[#allocation2 + $0x68] sm:$0x1]
      %v3788 = vsel %vm3762, 0, %v3787
      %3789 = vst [vmem:[#allocation2 + $0x68] sm:$0x1] %v3788
      %v3790 = vld [vmem:[#allocation2 + $0x74] sm:$0x1]
      %v3791 = vsel %vm3762, 0, %v3790
      %3792 = vst [vmem:[#allocation2 + $0x74] sm:$0x1] %v3791
      %v3793 = vpack.c.bf16 %v3709, %v3708
      %v3794 = vpack.c.bf16 %v3711, %v3710
      %v3795 = vpack.c.bf16 %v3713, %v3712
      %v3796 = vpack.c.bf16 %v3715, %v3714
      %v3797 = vpack.c.bf16 %v3717, %v3716
      %v3798 = vpack.c.bf16 %v3719, %v3718
      %v3799 = vpack.c.bf16 %v3721, %v3720
      %v3800 = vpack.c.bf16 %v3723, %v3722
      %v3801 = vpack.c.bf16 %v3725, %v3724
      %v3802 = vpack.c.bf16 %v3727, %v3726
      %v3813 = vunpack.c.l.b16 %v3793
      %v3814 = vunpack.c.h.b16 %v3793
      %v3815 = vunpack.c.l.b16 %v3794
      %v3816 = vunpack.c.h.b16 %v3794
      %v3817 = vunpack.c.l.b16 %v3795
      %v3818 = vunpack.c.h.b16 %v3795
      %v3819 = vunpack.c.l.b16 %v3796
      %v3820 = vunpack.c.h.b16 %v3796
      %v3821 = vunpack.c.l.b16 %v3797
      %v3822 = vunpack.c.h.b16 %v3797
      %v3823 = vunpack.c.l.b16 %v3798
      %v3824 = vunpack.c.h.b16 %v3798
      %v3825 = vunpack.c.l.b16 %v3799
      %v3826 = vunpack.c.h.b16 %v3799
      %v3827 = vunpack.c.l.b16 %v3800
      %v3828 = vunpack.c.h.b16 %v3800
      %v3829 = vunpack.c.l.b16 %v3801
      %v3830 = vunpack.c.h.b16 %v3801
      %v3831 = vunpack.c.l.b16 %v3802
      %v3832 = vunpack.c.h.b16 %v3802
      %v3833 = vpack.c.b16 %v3813, %v3813
      %v3834 = vpack.c.b16 %v3814, %v3814
      %v3835 = vpack.c.b16 %v3815, %v3815
      %v3836 = vpack.c.b16 %v3816, %v3816
      %v3837 = vpack.c.b16 %v3817, %v3817
      %v3838 = vpack.c.b16 %v3818, %v3818
      %v3839 = vpack.c.b16 %v3819, %v3819
      %v3840 = vpack.c.b16 %v3820, %v3820
      %v3841 = vpack.c.b16 %v3821, %v3821
      %v3842 = vpack.c.b16 %v3822, %v3822
      %v3843 = vpack.c.b16 %v3823, %v3823
      %v3844 = vpack.c.b16 %v3824, %v3824
      %v3845 = vpack.c.b16 %v3825, %v3825
      %v3846 = vpack.c.b16 %v3826, %v3826
      %v3847 = vpack.c.b16 %v3827, %v3827
      %v3848 = vpack.c.b16 %v3828, %v3828
      %v3849 = vpack.c.b16 %v3829, %v3829
      %v3850 = vpack.c.b16 %v3830, %v3830
      %v3851 = vpack.c.b16 %v3831, %v3831
      %v3852 = vpack.c.b16 %v3832, %v3832
      %vm3853 = vsmask.f32 4368
      %vm3854 = vmor %vm3729, %vm3853
      %v3856 = vshrl.u32 %v3833, 16
      %v3858 = vrot.slane %v3856, 7
      %v3859 = vshll.u32 %v3833, 16
      %v3861 = vor.u32 %v3858, %v3859
      %v3862 = vrot.slane %v3858, 4
      %v3864 = vshrl.u32 %v3834, 16
      %v3866 = vrot.slane %v3864, 7
      %v3867 = vshll.u32 %v3834, 16
      %v3869 = vor.u32 %v3866, %v3867
      %v3870 = vsel %vm3854, %v3862, %v3869
      %v3871 = vrot.slane %v3866, 4
      %v3873 = vshrl.u32 %v3835, 16
      %v3875 = vrot.slane %v3873, 7
      %v3876 = vshll.u32 %v3835, 16
      %v3878 = vor.u32 %v3875, %v3876
      %v3879 = vrot.slane %v3875, 4
      %v3881 = vshrl.u32 %v3836, 16
      %v3883 = vrot.slane %v3881, 7
      %v3884 = vshll.u32 %v3836, 16
      %v3886 = vor.u32 %v3883, %v3884
      %v3887 = vsel %vm3854, %v3879, %v3886
      %v3888 = vrot.slane %v3883, 4
      %v3890 = vshrl.u32 %v3837, 16
      %v3892 = vrot.slane %v3890, 7
      %v3893 = vshll.u32 %v3837, 16
      %v3895 = vor.u32 %v3892, %v3893
      %v3896 = vrot.slane %v3892, 4
      %v3898 = vshrl.u32 %v3838, 16
      %v3900 = vrot.slane %v3898, 7
      %v3901 = vshll.u32 %v3838, 16
      %v3903 = vor.u32 %v3900, %v3901
      %v3904 = vsel %vm3854, %v3896, %v3903
      %v3905 = vrot.slane %v3900, 4
      %v3907 = vshrl.u32 %v3839, 16
      %v3909 = vrot.slane %v3907, 7
      %v3910 = vshll.u32 %v3839, 16
      %v3912 = vor.u32 %v3909, %v3910
      %v3913 = vrot.slane %v3909, 4
      %v3915 = vshrl.u32 %v3840, 16
      %v3917 = vrot.slane %v3915, 7
      %v3918 = vshll.u32 %v3840, 16
      %v3920 = vor.u32 %v3917, %v3918
      %v3921 = vsel %vm3854, %v3913, %v3920
      %v3922 = vrot.slane %v3917, 4
      %v3924 = vshrl.u32 %v3841, 16
      %v3926 = vrot.slane %v3924, 7
      %v3927 = vshll.u32 %v3841, 16
      %v3929 = vor.u32 %v3926, %v3927
      %v3930 = vrot.slane %v3926, 4
      %v3932 = vshrl.u32 %v3842, 16
      %v3934 = vrot.slane %v3932, 7
      %v3935 = vshll.u32 %v3842, 16
      %v3937 = vor.u32 %v3934, %v3935
      %v3938 = vsel %vm3854, %v3930, %v3937
      %v3939 = vrot.slane %v3934, 4
      %v3941 = vshrl.u32 %v3843, 16
      %v3943 = vrot.slane %v3941, 7
      %v3944 = vshll.u32 %v3843, 16
      %v3946 = vor.u32 %v3943, %v3944
      %v3947 = vrot.slane %v3943, 4
      %v3949 = vshrl.u32 %v3844, 16
      %v3951 = vrot.slane %v3949, 7
      %v3952 = vshll.u32 %v3844, 16
      %v3954 = vor.u32 %v3951, %v3952
      %v3955 = vsel %vm3854, %v3947, %v3954
      %v3956 = vrot.slane %v3951, 4
      %v3958 = vshrl.u32 %v3845, 16
      %v3960 = vrot.slane %v3958, 7
      %v3961 = vshll.u32 %v3845, 16
      %v3963 = vor.u32 %v3960, %v3961
      %v3964 = vrot.slane %v3960, 4
      %v3966 = vshrl.u32 %v3846, 16
      %v3968 = vrot.slane %v3966, 7
      %v3969 = vshll.u32 %v3846, 16
      %v3971 = vor.u32 %v3968, %v3969
      %v3972 = vsel %vm3854, %v3964, %v3971
      %v3973 = vrot.slane %v3968, 4
      %v3975 = vshrl.u32 %v3847, 16
      %v3977 = vrot.slane %v3975, 7
      %v3978 = vshll.u32 %v3847, 16
      %v3980 = vor.u32 %v3977, %v3978
      %v3981 = vrot.slane %v3977, 4
      %v3983 = vshrl.u32 %v3848, 16
      %v3985 = vrot.slane %v3983, 7
      %v3986 = vshll.u32 %v3848, 16
      %v3988 = vor.u32 %v3985, %v3986
      %v3989 = vsel %vm3854, %v3981, %v3988
      %v3990 = vrot.slane %v3985, 4
      %v3992 = vshrl.u32 %v3849, 16
      %v3994 = vrot.slane %v3992, 7
      %v3995 = vshll.u32 %v3849, 16
      %v3997 = vor.u32 %v3994, %v3995
      %v3998 = vrot.slane %v3994, 4
      %v4000 = vshrl.u32 %v3850, 16
      %v4002 = vrot.slane %v4000, 7
      %v4003 = vshll.u32 %v3850, 16
      %v4005 = vor.u32 %v4002, %v4003
      %v4006 = vsel %vm3854, %v3998, %v4005
      %v4007 = vrot.slane %v4002, 4
      %v4009 = vshrl.u32 %v3851, 16
      %v4011 = vrot.slane %v4009, 7
      %v4012 = vshll.u32 %v3851, 16
      %v4014 = vor.u32 %v4011, %v4012
      %v4015 = vrot.slane %v4011, 4
      %v4017 = vshrl.u32 %v3852, 16
      %v4019 = vrot.slane %v4017, 7
      %v4020 = vshll.u32 %v3852, 16
      %v4022 = vor.u32 %v4019, %v4020
      %v4023 = vsel %vm3854, %v4015, %v4022
      %v4024 = vrot.slane %v4019, 4
      %vm4055 = vcmask 1043456
      %vm4056 = vmand %vm4055, %vm3761
      %v4057 = vld [vmem:[#allocation2] sm:$0xf]
      %v4058 = vsel %vm4056, %v3861, %v4057
      %4059 = vst [vmem:[#allocation2] sm:$0xf] %v4058
      %4060 = vst [vmem:[#allocation2 + $0x4] sm:$0xf] %v3870
      %v4061 = vld [vmem:[#allocation2 + $0x8] sm:$0x1]
      %v4062 = vsel %vm3730, %v3871, %v4061
      %4063 = vst [vmem:[#allocation2 + $0x8] sm:$0x1] %v4062
      %v4064 = vld [vmem:[#allocation2 + $0xc] sm:$0xf]
      %v4065 = vsel %vm4056, %v3878, %v4064
      %4066 = vst [vmem:[#allocation2 + $0xc] sm:$0xf] %v4065
      %4067 = vst [vmem:[#allocation2 + $0x10] sm:$0xf] %v3887
      %v4068 = vld [vmem:[#allocation2 + $0x14] sm:$0x1]
      %v4069 = vsel %vm3730, %v3888, %v4068
      %4070 = vst [vmem:[#allocation2 + $0x14] sm:$0x1] %v4069
      %v4071 = vld [vmem:[#allocation2 + $0x18] sm:$0xf]
      %v4072 = vsel %vm4056, %v3895, %v4071
      %4073 = vst [vmem:[#allocation2 + $0x18] sm:$0xf] %v4072
      %4074 = vst [vmem:[#allocation2 + $0x1c] sm:$0xf] %v3904
      %v4075 = vld [vmem:[#allocation2 + $0x20] sm:$0x1]
      %v4076 = vsel %vm3730, %v3905, %v4075
      %4077 = vst [vmem:[#allocation2 + $0x20] sm:$0x1] %v4076
      %v4078 = vld [vmem:[#allocation2 + $0x24] sm:$0xf]
      %v4079 = vsel %vm4056, %v3912, %v4078
      %4080 = vst [vmem:[#allocation2 + $0x24] sm:$0xf] %v4079
      %4081 = vst [vmem:[#allocation2 + $0x28] sm:$0xf] %v3921
      %v4082 = vld [vmem:[#allocation2 + $0x2c] sm:$0x1]
      %v4083 = vsel %vm3730, %v3922, %v4082
      %4084 = vst [vmem:[#allocation2 + $0x2c] sm:$0x1] %v4083
      %v4085 = vld [vmem:[#allocation2 + $0x30] sm:$0xf]
      %v4086 = vsel %vm4056, %v3929, %v4085
      %4087 = vst [vmem:[#allocation2 + $0x30] sm:$0xf] %v4086
      %4088 = vst [vmem:[#allocation2 + $0x34] sm:$0xf] %v3938
      %v4089 = vld [vmem:[#allocation2 + $0x38] sm:$0x1]
      %v4090 = vsel %vm3730, %v3939, %v4089
      %4091 = vst [vmem:[#allocation2 + $0x38] sm:$0x1] %v4090
      %v4092 = vld [vmem:[#allocation2 + $0x3c] sm:$0xf]
      %v4093 = vsel %vm4056, %v3946, %v4092
      %4094 = vst [vmem:[#allocation2 + $0x3c] sm:$0xf] %v4093
      %4095 = vst [vmem:[#allocation2 + $0x40] sm:$0xf] %v3955
      %v4096 = vld [vmem:[#allocation2 + $0x44] sm:$0x1]
      %v4097 = vsel %vm3730, %v3956, %v4096
      %4098 = vst [vmem:[#allocation2 + $0x44] sm:$0x1] %v4097
      %v4099 = vld [vmem:[#allocation2 + $0x48] sm:$0xf]
      %v4100 = vsel %vm4056, %v3963, %v4099
      %4101 = vst [vmem:[#allocation2 + $0x48] sm:$0xf] %v4100
      %4102 = vst [vmem:[#allocation2 + $0x4c] sm:$0xf] %v3972
      %v4103 = vld [vmem:[#allocation2 + $0x50] sm:$0x1]
      %v4104 = vsel %vm3730, %v3973, %v4103
      %4105 = vst [vmem:[#allocation2 + $0x50] sm:$0x1] %v4104
      %v4106 = vld [vmem:[#allocation2 + $0x54] sm:$0xf]
      %v4107 = vsel %vm4056, %v3980, %v4106
      %4108 = vst [vmem:[#allocation2 + $0x54] sm:$0xf] %v4107
      %4109 = vst [vmem:[#allocation2 + $0x58] sm:$0xf] %v3989
      %v4110 = vld [vmem:[#allocation2 + $0x5c] sm:$0x1]
      %v4111 = vsel %vm3730, %v3990, %v4110
      %4112 = vst [vmem:[#allocation2 + $0x5c] sm:$0x1] %v4111
      %v4113 = vld [vmem:[#allocation2 + $0x60] sm:$0xf]
      %v4114 = vsel %vm4056, %v3997, %v4113
      %4115 = vst [vmem:[#allocation2 + $0x60] sm:$0xf] %v4114
      %4116 = vst [vmem:[#allocation2 + $0x64] sm:$0xf] %v4006
      %v4117 = vld [vmem:[#allocation2 + $0x68] sm:$0x1]
      %v4118 = vsel %vm3730, %v4007, %v4117
      %4119 = vst [vmem:[#allocation2 + $0x68] sm:$0x1] %v4118
      %v4120 = vld [vmem:[#allocation2 + $0x6c] sm:$0xf]
      %v4121 = vsel %vm4056, %v4014, %v4120
      %4122 = vst [vmem:[#allocation2 + $0x6c] sm:$0xf] %v4121
      %4123 = vst [vmem:[#allocation2 + $0x70] sm:$0xf] %v4023
      %v4124 = vld [vmem:[#allocation2 + $0x74] sm:$0x1]
      %v4125 = vsel %vm3730, %v4024, %v4124
      %4126 = vst [vmem:[#allocation2 + $0x74] sm:$0x1] %v4125
      %v4127 = vld [vmem:[#allocation2] sm:$0xf]
      %v4128 = vld [vmem:[#allocation2 + $0x4] sm:$0xf]
      %v4129 = vld [vmem:[#allocation2 + $0xc] sm:$0xf]
      %v4130 = vld [vmem:[#allocation2 + $0x10] sm:$0xf]
      %v4131 = vld [vmem:[#allocation2 + $0x18] sm:$0xf]
      %v4132 = vld [vmem:[#allocation2 + $0x1c] sm:$0xf]
      %v4133 = vld [vmem:[#allocation2 + $0x24] sm:$0xf]
      %v4134 = vld [vmem:[#allocation2 + $0x28] sm:$0xf]
      %v4135 = vld [vmem:[#allocation2 + $0x30] sm:$0xf]
      %v4136 = vld [vmem:[#allocation2 + $0x34] sm:$0xf]
      %v4137 = vld [vmem:[#allocation2 + $0x3c] sm:$0xf]
      %v4138 = vld [vmem:[#allocation2 + $0x40] sm:$0xf]
      %v4139 = vld [vmem:[#allocation2 + $0x48] sm:$0xf]
      %v4140 = vld [vmem:[#allocation2 + $0x4c] sm:$0xf]
      %v4141 = vld [vmem:[#allocation2 + $0x54] sm:$0xf]
      %v4142 = vld [vmem:[#allocation2 + $0x58] sm:$0xf]
      %v4143 = vld [vmem:[%s3] sm:$0xf]
      %v4144 = vld [vmem:[%s3 + $0x4] sm:$0xf]
      %v4145 = vld [vmem:[%s3 + $0x8] sm:$0xf]
      %v4146 = vld [vmem:[%s3 + $0xc] sm:$0xf]
      %v4147 = vld [vmem:[%s3 + $0x10] sm:$0xf]
      %v4148 = vld [vmem:[%s3 + $0x14] sm:$0xf]
      %v4149 = vld [vmem:[%s3 + $0x18] sm:$0xf]
      %v4150 = vld [vmem:[%s3 + $0x1c] sm:$0xf]
      %v4151 = vld [vmem:[%s3 + $0x20] sm:$0xf]
      %v4152 = vld [vmem:[%s3 + $0x24] sm:$0xf]
      %v4153 = vld [vmem:[%s3 + $0x28] sm:$0xf]
      %v4154 = vld [vmem:[%s3 + $0x2c] sm:$0xf]
      %v4155 = vld [vmem:[%s3 + $0x30] sm:$0xf]
      %v4156 = vld [vmem:[%s3 + $0x34] sm:$0xf]
      %v4157 = vld [vmem:[%s3 + $0x38] sm:$0xf]
      %v4158 = vld [vmem:[%s3 + $0x3c] sm:$0xf]
      %v4159 = vld [vmem:[#allocation2 + $0x8] sm:$0x1]
      %v4160 = vld [vmem:[#allocation2 + $0x14] sm:$0x1]
      %v4161 = vld [vmem:[#allocation2 + $0x20] sm:$0x1]
      %v4162 = vld [vmem:[#allocation2 + $0x2c] sm:$0x1]
      %v4163 = vld [vmem:[#allocation2 + $0x38] sm:$0x1]
      %v4164 = vld [vmem:[#allocation2 + $0x44] sm:$0x1]
      %v4165 = vld [vmem:[#allocation2 + $0x50] sm:$0x1]
      %v4166 = vld [vmem:[#allocation2 + $0x5c] sm:$0x1]
      %v4168 = vshrl.u32 %v4127, 16
      %v4170 = vrot.slane %v4168, 4
      %v4171 = vshll.u32 %v4127, 16
      %v4173 = vrot.slane %v4171, 5
      %v4174 = vor.u32 %v4170, %v4173
      %v4175 = vrot.slane %v4174, 4
      %v4177 = vshll.u32 %v4128, 16
      %v4179 = vrot.slane %v4177, 5
      %v4180 = vsel %vm303, %v4175, %v4179
      %v4181 = vshrl.u32 %v4128, 16
      %v4183 = vrot.slane %v4181, 4
      %v4184 = vor.u32 %v4183, %v4179
      %v4185 = vrot.slane %v4184, 4
      %v4187 = vshll.u32 %v4159, 16
      %v4189 = vrot.slane %v4187, 5
      %v4190 = vsel %vm303, %v4185, %v4189
      %v4192 = vshrl.u32 %v4129, 16
      %v4194 = vrot.slane %v4192, 4
      %v4195 = vshll.u32 %v4129, 16
      %v4197 = vrot.slane %v4195, 5
      %v4198 = vor.u32 %v4194, %v4197
      %v4199 = vrot.slane %v4198, 4
      %v4201 = vshll.u32 %v4130, 16
      %v4203 = vrot.slane %v4201, 5
      %v4204 = vsel %vm303, %v4199, %v4203
      %v4205 = vshrl.u32 %v4130, 16
      %v4207 = vrot.slane %v4205, 4
      %v4208 = vor.u32 %v4207, %v4203
      %v4209 = vrot.slane %v4208, 4
      %v4211 = vshll.u32 %v4160, 16
      %v4213 = vrot.slane %v4211, 5
      %v4214 = vsel %vm303, %v4209, %v4213
      %v4216 = vshrl.u32 %v4131, 16
      %v4218 = vrot.slane %v4216, 4
      %v4219 = vshll.u32 %v4131, 16
      %v4221 = vrot.slane %v4219, 5
      %v4222 = vor.u32 %v4218, %v4221
      %v4223 = vrot.slane %v4222, 4
      %v4225 = vshll.u32 %v4132, 16
      %v4227 = vrot.slane %v4225, 5
      %v4228 = vsel %vm303, %v4223, %v4227
      %v4229 = vshrl.u32 %v4132, 16
      %v4231 = vrot.slane %v4229, 4
      %v4232 = vor.u32 %v4231, %v4227
      %v4233 = vrot.slane %v4232, 4
      %v4235 = vshll.u32 %v4161, 16
      %v4237 = vrot.slane %v4235, 5
      %v4238 = vsel %vm303, %v4233, %v4237
      %v4240 = vshrl.u32 %v4133, 16
      %v4242 = vrot.slane %v4240, 4
      %v4243 = vshll.u32 %v4133, 16
      %v4245 = vrot.slane %v4243, 5
      %v4246 = vor.u32 %v4242, %v4245
      %v4247 = vrot.slane %v4246, 4
      %v4249 = vshll.u32 %v4134, 16
      %v4251 = vrot.slane %v4249, 5
      %v4252 = vsel %vm303, %v4247, %v4251
      %v4253 = vshrl.u32 %v4134, 16
      %v4255 = vrot.slane %v4253, 4
      %v4256 = vor.u32 %v4255, %v4251
      %v4257 = vrot.slane %v4256, 4
      %v4259 = vshll.u32 %v4162, 16
      %v4261 = vrot.slane %v4259, 5
      %v4262 = vsel %vm303, %v4257, %v4261
      %v4264 = vshrl.u32 %v4135, 16
      %v4266 = vrot.slane %v4264, 4
      %v4267 = vshll.u32 %v4135, 16
      %v4269 = vrot.slane %v4267, 5
      %v4270 = vor.u32 %v4266, %v4269
      %v4271 = vrot.slane %v4270, 4
      %v4273 = vshll.u32 %v4136, 16
      %v4275 = vrot.slane %v4273, 5
      %v4276 = vsel %vm303, %v4271, %v4275
      %v4277 = vshrl.u32 %v4136, 16
      %v4279 = vrot.slane %v4277, 4
      %v4280 = vor.u32 %v4279, %v4275
      %v4281 = vrot.slane %v4280, 4
      %v4283 = vshll.u32 %v4163, 16
      %v4285 = vrot.slane %v4283, 5
      %v4286 = vsel %vm303, %v4281, %v4285
      %v4288 = vshrl.u32 %v4137, 16
      %v4290 = vrot.slane %v4288, 4
      %v4291 = vshll.u32 %v4137, 16
      %v4293 = vrot.slane %v4291, 5
      %v4294 = vor.u32 %v4290, %v4293
      %v4295 = vrot.slane %v4294, 4
      %v4297 = vshll.u32 %v4138, 16
      %v4299 = vrot.slane %v4297, 5
      %v4300 = vsel %vm303, %v4295, %v4299
      %v4301 = vshrl.u32 %v4138, 16
      %v4303 = vrot.slane %v4301, 4
      %v4304 = vor.u32 %v4303, %v4299
      %v4305 = vrot.slane %v4304, 4
      %v4307 = vshll.u32 %v4164, 16
      %v4309 = vrot.slane %v4307, 5
      %v4310 = vsel %vm303, %v4305, %v4309
      %v4312 = vshrl.u32 %v4139, 16
      %v4314 = vrot.slane %v4312, 4
      %v4315 = vshll.u32 %v4139, 16
      %v4317 = vrot.slane %v4315, 5
      %v4318 = vor.u32 %v4314, %v4317
      %v4319 = vrot.slane %v4318, 4
      %v4321 = vshll.u32 %v4140, 16
      %v4323 = vrot.slane %v4321, 5
      %v4324 = vsel %vm303, %v4319, %v4323
      %v4325 = vshrl.u32 %v4140, 16
      %v4327 = vrot.slane %v4325, 4
      %v4328 = vor.u32 %v4327, %v4323
      %v4329 = vrot.slane %v4328, 4
      %v4331 = vshll.u32 %v4165, 16
      %v4333 = vrot.slane %v4331, 5
      %v4334 = vsel %vm303, %v4329, %v4333
      %v4336 = vshrl.u32 %v4141, 16
      %v4338 = vrot.slane %v4336, 4
      %v4339 = vshll.u32 %v4141, 16
      %v4341 = vrot.slane %v4339, 5
      %v4342 = vor.u32 %v4338, %v4341
      %v4343 = vrot.slane %v4342, 4
      %v4345 = vshll.u32 %v4142, 16
      %v4347 = vrot.slane %v4345, 5
      %v4348 = vsel %vm303, %v4343, %v4347
      %v4349 = vshrl.u32 %v4142, 16
      %v4351 = vrot.slane %v4349, 4
      %v4352 = vor.u32 %v4351, %v4347
      %v4353 = vrot.slane %v4352, 4
      %v4355 = vshll.u32 %v4166, 16
      %v4357 = vrot.slane %v4355, 5
      %v4358 = vsel %vm303, %v4353, %v4357
      %s4359 = scalar_lea.vmem %s3, 64
      %v4360 = vld [vmem:[%s4359] sm:$0xf]
      %v4361 = vld [vmem:[%s4359 + $0x4] sm:$0xf]
      %v4362 = vld [vmem:[%s4359 + $0x8] sm:$0xf]
      %v4363 = vld [vmem:[%s4359 + $0xc] sm:$0xf]
      %v4364 = vld [vmem:[%s4359 + $0x10] sm:$0xf]
      %v4365 = vld [vmem:[%s4359 + $0x14] sm:$0xf]
      %v4366 = vld [vmem:[%s4359 + $0x18] sm:$0xf]
      %v4367 = vld [vmem:[%s4359 + $0x1c] sm:$0xf]
      %v4368 = vld [vmem:[%s4359 + $0x20] sm:$0xf]
      %v4369 = vld [vmem:[%s4359 + $0x24] sm:$0xf]
      %v4370 = vld [vmem:[%s4359 + $0x28] sm:$0xf]
      %v4371 = vld [vmem:[%s4359 + $0x2c] sm:$0xf]
      %v4372 = vld [vmem:[%s4359 + $0x30] sm:$0xf]
      %v4373 = vld [vmem:[%s4359 + $0x34] sm:$0xf]
      %v4374 = vld [vmem:[%s4359 + $0x38] sm:$0xf]
      %v4375 = vld [vmem:[%s4359 + $0x3c] sm:$0xf]
      %v4376 = vunpack.c.l.b16 %v4180
      %v4377 = vunpack.c.l.b16 %v4190
      %v4378 = vunpack.c.l.b16 %v4204
      %v4379 = vunpack.c.l.b16 %v4214
      %v4380 = vunpack.c.l.b16 %v4228
      %v4381 = vunpack.c.l.b16 %v4238
      %v4382 = vunpack.c.l.b16 %v4252
      %v4383 = vunpack.c.l.b16 %v4262
      %v4384 = vunpack.c.l.b16 %v4276
      %v4385 = vunpack.c.l.b16 %v4286
      %v4386 = vunpack.c.l.b16 %v4300
      %v4387 = vunpack.c.l.b16 %v4310
      %v4388 = vunpack.c.l.b16 %v4324
      %v4389 = vunpack.c.l.b16 %v4334
      %v4390 = vunpack.c.l.b16 %v4348
      %v4391 = vunpack.c.l.b16 %v4358
      %v4392 = vpack.c.b16 %v4377, %v4376
      %v4393 = vpack.c.b16 %v4379, %v4378
      %v4394 = vpack.c.b16 %v4381, %v4380
      %v4395 = vpack.c.b16 %v4383, %v4382
      %v4396 = vpack.c.b16 %v4385, %v4384
      %v4397 = vpack.c.b16 %v4387, %v4386
      %v4398 = vpack.c.b16 %v4389, %v4388
      %v4399 = vpack.c.b16 %v4391, %v4390
      %v4424 = vunpack.c.l.b16 %v4360
      %v4425 = vunpack.c.l.b16 %v4361
      %v4426 = vunpack.c.l.b16 %v4362
      %v4427 = vunpack.c.l.b16 %v4363
      %v4428 = vunpack.c.l.b16 %v4364
      %v4429 = vunpack.c.l.b16 %v4365
      %v4430 = vunpack.c.l.b16 %v4366
      %v4431 = vunpack.c.l.b16 %v4367
      %v4432 = vunpack.c.l.b16 %v4368
      %v4433 = vunpack.c.l.b16 %v4369
      %v4434 = vunpack.c.l.b16 %v4370
      %v4435 = vunpack.c.l.b16 %v4371
      %v4436 = vunpack.c.l.b16 %v4372
      %v4437 = vunpack.c.l.b16 %v4373
      %v4438 = vunpack.c.l.b16 %v4374
      %v4439 = vunpack.c.l.b16 %v4375
      %v4440 = vpack.c.b16 %v4425, %v4424
      %v4441 = vpack.c.b16 %v4427, %v4426
      %v4442 = vpack.c.b16 %v4429, %v4428
      %v4443 = vpack.c.b16 %v4431, %v4430
      %v4444 = vpack.c.b16 %v4433, %v4432
      %v4445 = vpack.c.b16 %v4435, %v4434
      %v4446 = vpack.c.b16 %v4437, %v4436
      %v4447 = vpack.c.b16 %v4439, %v4438
      %4456 = vmatprep.subr.bf16.mxu0 0
      %4457 = vmatpush1.bf16.msra.mxu0 %v4447
      %4458 = vmatprep.subr.bf16.mxu0 0
      %4459 = vmatpush1.bf16.msra.mxu0 %v4446
      %4460 = vmatprep.subr.bf16.mxu0 0
      %4461 = vmatpush1.bf16.msra.mxu0 %v4445
      %4462 = vmatprep.subr.bf16.mxu0 0
      %4463 = vmatpush1.bf16.msra.mxu0 %v4444
      %4464 = vmatprep.subr.bf16.mxu0 0
      %4465 = vmatpush1.bf16.msra.mxu0 %v4443
      %4466 = vmatprep.subr.bf16.mxu0 0
      %4467 = vmatpush1.bf16.msra.mxu0 %v4442
      %4468 = vmatprep.subr.bf16.mxu0 0
      %4469 = vmatpush1.bf16.msra.mxu0 %v4441
      %4470 = vmatprep.subr.bf16.mxu0 0
      %4471 = vmatpush1.bf16.msra.mxu0 %v4440
      %4472 = vmatprep.subr.bf16.mxu0 0
      %4473 = vmatpush2.bf16.msra.mxu0 0
      %4474 = vmatprep.subr.bf16.mxu0 0
      %4475 = vmatpush2.bf16.msra.mxu0 0
      %4476 = vmatprep.subr.bf16.mxu0 0
      %4477 = vmatpush2.bf16.msra.mxu0 0
      %4478 = vmatprep.subr.bf16.mxu0 0
      %4479 = vmatpush2.bf16.msra.mxu0 0
      %4480 = vmatprep.subr.bf16.mxu0 0
      %4481 = vmatpush2.bf16.msra.mxu0 0
      %4482 = vmatprep.subr.bf16.mxu0 0
      %4483 = vmatpush2.bf16.msra.mxu0 0
      %4484 = vmatprep.subr.bf16.mxu0 0
      %4485 = vmatpush2.bf16.msra.mxu0 0
      %4486 = vmatprep.subr.bf16.mxu0 0
      %4487 = vmatpush2.bf16.msra.mxu0 0
      %4488 = vmatprep.mubr.bf16.mxu0 0
      %4489 = vmatmul.mubr.bf16.gmra.mxu0 %v4392
      %v4490 = vpop.f32.mrf.mxu0
      %v4491 = vadd.f32 0.0, %v4490
      %v4492 = vpop.f32.mrf.mxu0
      %v4493 = vpop.f32.mrf.mxu0
      %v4494 = vadd.f32 0.0, %v4493
      %v4495 = vpop.f32.mrf.mxu0
      %4496 = vmatprep.mubr.bf16.mxu0 0
      %4497 = vmatmul.mubr.bf16.gmra.mxu0 %v4393
      %v4498 = vpop.f32.mrf.mxu0
      %v4499 = vadd.f32 0.0, %v4498
      %v4500 = vpop.f32.mrf.mxu0
      %v4501 = vpop.f32.mrf.mxu0
      %v4502 = vadd.f32 0.0, %v4501
      %v4503 = vpop.f32.mrf.mxu0
      %4504 = vmatprep.mubr.bf16.mxu0 0
      %4505 = vmatmul.mubr.bf16.gmra.mxu0 %v4394
      %v4506 = vpop.f32.mrf.mxu0
      %v4507 = vadd.f32 0.0, %v4506
      %v4508 = vpop.f32.mrf.mxu0
      %v4509 = vpop.f32.mrf.mxu0
      %v4510 = vadd.f32 0.0, %v4509
      %v4511 = vpop.f32.mrf.mxu0
      %4512 = vmatprep.mubr.bf16.mxu0 0
      %4513 = vmatmul.mubr.bf16.gmra.mxu0 %v4395
      %v4514 = vpop.f32.mrf.mxu0
      %v4515 = vadd.f32 0.0, %v4514
      %v4516 = vpop.f32.mrf.mxu0
      %v4517 = vpop.f32.mrf.mxu0
      %v4518 = vadd.f32 0.0, %v4517
      %v4519 = vpop.f32.mrf.mxu0
      %4520 = vmatprep.mubr.bf16.mxu0 0
      %4521 = vmatmul.mubr.bf16.gmra.mxu0 %v4396
      %v4522 = vpop.f32.mrf.mxu0
      %v4523 = vadd.f32 0.0, %v4522
      %v4524 = vpop.f32.mrf.mxu0
      %v4525 = vpop.f32.mrf.mxu0
      %v4526 = vadd.f32 0.0, %v4525
      %v4527 = vpop.f32.mrf.mxu0
      %4528 = vmatprep.mubr.bf16.mxu0 0
      %4529 = vmatmul.mubr.bf16.gmra.mxu0 %v4397
      %v4530 = vpop.f32.mrf.mxu0
      %v4531 = vadd.f32 0.0, %v4530
      %v4532 = vpop.f32.mrf.mxu0
      %v4533 = vpop.f32.mrf.mxu0
      %v4534 = vadd.f32 0.0, %v4533
      %v4535 = vpop.f32.mrf.mxu0
      %4536 = vmatprep.mubr.bf16.mxu0 0
      %4537 = vmatmul.mubr.bf16.gmra.mxu0 %v4398
      %v4538 = vpop.f32.mrf.mxu0
      %v4539 = vadd.f32 0.0, %v4538
      %v4540 = vpop.f32.mrf.mxu0
      %v4541 = vpop.f32.mrf.mxu0
      %v4542 = vadd.f32 0.0, %v4541
      %v4543 = vpop.f32.mrf.mxu0
      %4544 = vmatprep.mubr.bf16.mxu0 0
      %4545 = vmatmul.mubr.bf16.gmra.mxu0 %v4399
      %v4546 = vpop.f32.mrf.mxu0
      %v4547 = vadd.f32 0.0, %v4546
      %v4548 = vpop.f32.mrf.mxu0
      %v4549 = vpop.f32.mrf.mxu0
      %v4550 = vadd.f32 0.0, %v4549
      %v4551 = vpop.f32.mrf.mxu0
      %4552 = vdwg.mxu0
      %v4569 = vunpack.c.l.b16 %v4127
      %v4570 = vunpack.c.l.b16 %v4128
      %v4571 = vunpack.c.l.b16 %v4129
      %v4572 = vunpack.c.l.b16 %v4130
      %v4573 = vunpack.c.l.b16 %v4131
      %v4574 = vunpack.c.l.b16 %v4132
      %v4575 = vunpack.c.l.b16 %v4133
      %v4576 = vunpack.c.l.b16 %v4134
      %v4577 = vunpack.c.l.b16 %v4135
      %v4578 = vunpack.c.l.b16 %v4136
      %v4579 = vunpack.c.l.b16 %v4137
      %v4580 = vunpack.c.l.b16 %v4138
      %v4581 = vunpack.c.l.b16 %v4139
      %v4582 = vunpack.c.l.b16 %v4140
      %v4583 = vunpack.c.l.b16 %v4141
      %v4584 = vunpack.c.l.b16 %v4142
      %v4585 = vpack.c.b16 %v4570, %v4569
      %v4586 = vpack.c.b16 %v4572, %v4571
      %v4587 = vpack.c.b16 %v4574, %v4573
      %v4588 = vpack.c.b16 %v4576, %v4575
      %v4589 = vpack.c.b16 %v4578, %v4577
      %v4590 = vpack.c.b16 %v4580, %v4579
      %v4591 = vpack.c.b16 %v4582, %v4581
      %v4592 = vpack.c.b16 %v4584, %v4583
      %v4617 = vunpack.c.l.b16 %v4143
      %v4618 = vunpack.c.l.b16 %v4144
      %v4619 = vunpack.c.l.b16 %v4145
      %v4620 = vunpack.c.l.b16 %v4146
      %v4621 = vunpack.c.l.b16 %v4147
      %v4622 = vunpack.c.l.b16 %v4148
      %v4623 = vunpack.c.l.b16 %v4149
      %v4624 = vunpack.c.l.b16 %v4150
      %v4625 = vunpack.c.l.b16 %v4151
      %v4626 = vunpack.c.l.b16 %v4152
      %v4627 = vunpack.c.l.b16 %v4153
      %v4628 = vunpack.c.l.b16 %v4154
      %v4629 = vunpack.c.l.b16 %v4155
      %v4630 = vunpack.c.l.b16 %v4156
      %v4631 = vunpack.c.l.b16 %v4157
      %v4632 = vunpack.c.l.b16 %v4158
      %v4633 = vpack.c.b16 %v4618, %v4617
      %v4634 = vpack.c.b16 %v4620, %v4619
      %v4635 = vpack.c.b16 %v4622, %v4621
      %v4636 = vpack.c.b16 %v4624, %v4623
      %v4637 = vpack.c.b16 %v4626, %v4625
      %v4638 = vpack.c.b16 %v4628, %v4627
      %v4639 = vpack.c.b16 %v4630, %v4629
      %v4640 = vpack.c.b16 %v4632, %v4631
      %4649 = vmatprep.subr.bf16.mxu0 0
      %4650 = vmatpush1.bf16.msra.mxu0 %v4640
      %4651 = vmatprep.subr.bf16.mxu0 0
      %4652 = vmatpush1.bf16.msra.mxu0 %v4639
      %4653 = vmatprep.subr.bf16.mxu0 0
      %4654 = vmatpush1.bf16.msra.mxu0 %v4638
      %4655 = vmatprep.subr.bf16.mxu0 0
      %4656 = vmatpush1.bf16.msra.mxu0 %v4637
      %4657 = vmatprep.subr.bf16.mxu0 0
      %4658 = vmatpush1.bf16.msra.mxu0 %v4636
      %4659 = vmatprep.subr.bf16.mxu0 0
      %4660 = vmatpush1.bf16.msra.mxu0 %v4635
      %4661 = vmatprep.subr.bf16.mxu0 0
      %4662 = vmatpush1.bf16.msra.mxu0 %v4634
      %4663 = vmatprep.subr.bf16.mxu0 0
      %4664 = vmatpush1.bf16.msra.mxu0 %v4633
      %4665 = vmatprep.subr.bf16.mxu0 0
      %4666 = vmatpush2.bf16.msra.mxu0 0
      %4667 = vmatprep.subr.bf16.mxu0 0
      %4668 = vmatpush2.bf16.msra.mxu0 0
      %4669 = vmatprep.subr.bf16.mxu0 0
      %4670 = vmatpush2.bf16.msra.mxu0 0
      %4671 = vmatprep.subr.bf16.mxu0 0
      %4672 = vmatpush2.bf16.msra.mxu0 0
      %4673 = vmatprep.subr.bf16.mxu0 0
      %4674 = vmatpush2.bf16.msra.mxu0 0
      %4675 = vmatprep.subr.bf16.mxu0 0
      %4676 = vmatpush2.bf16.msra.mxu0 0
      %4677 = vmatprep.subr.bf16.mxu0 0
      %4678 = vmatpush2.bf16.msra.mxu0 0
      %4679 = vmatprep.subr.bf16.mxu0 0
      %4680 = vmatpush2.bf16.msra.mxu0 0
      %4681 = vmatprep.mubr.bf16.mxu0 0
      %4682 = vmatmul.mubr.bf16.gmra.mxu0 %v4585
      %v4683 = vpop.f32.mrf.mxu0
      %v4684 = vadd.f32 %v4491, %v4683
      %v4685 = vpop.f32.mrf.mxu0
      %v4686 = vpop.f32.mrf.mxu0
      %v4687 = vadd.f32 %v4494, %v4686
      %v4688 = vpop.f32.mrf.mxu0
      %4689 = vmatprep.mubr.bf16.mxu0 0
      %4690 = vmatmul.mubr.bf16.gmra.mxu0 %v4586
      %v4691 = vpop.f32.mrf.mxu0
      %v4692 = vadd.f32 %v4499, %v4691
      %v4693 = vpop.f32.mrf.mxu0
      %v4694 = vpop.f32.mrf.mxu0
      %v4695 = vadd.f32 %v4502, %v4694
      %v4696 = vpop.f32.mrf.mxu0
      %4697 = vmatprep.mubr.bf16.mxu0 0
      %4698 = vmatmul.mubr.bf16.gmra.mxu0 %v4587
      %v4699 = vpop.f32.mrf.mxu0
      %v4700 = vadd.f32 %v4507, %v4699
      %v4701 = vpop.f32.mrf.mxu0
      %v4702 = vpop.f32.mrf.mxu0
      %v4703 = vadd.f32 %v4510, %v4702
      %v4704 = vpop.f32.mrf.mxu0
      %4705 = vmatprep.mubr.bf16.mxu0 0
      %4706 = vmatmul.mubr.bf16.gmra.mxu0 %v4588
      %v4707 = vpop.f32.mrf.mxu0
      %v4708 = vadd.f32 %v4515, %v4707
      %v4709 = vpop.f32.mrf.mxu0
      %v4710 = vpop.f32.mrf.mxu0
      %v4711 = vadd.f32 %v4518, %v4710
      %v4712 = vpop.f32.mrf.mxu0
      %4713 = vmatprep.mubr.bf16.mxu0 0
      %4714 = vmatmul.mubr.bf16.gmra.mxu0 %v4589
      %v4715 = vpop.f32.mrf.mxu0
      %v4716 = vadd.f32 %v4523, %v4715
      %v4717 = vpop.f32.mrf.mxu0
      %v4718 = vpop.f32.mrf.mxu0
      %v4719 = vadd.f32 %v4526, %v4718
      %v4720 = vpop.f32.mrf.mxu0
      %4721 = vmatprep.mubr.bf16.mxu0 0
      %4722 = vmatmul.mubr.bf16.gmra.mxu0 %v4590
      %v4723 = vpop.f32.mrf.mxu0
      %v4724 = vadd.f32 %v4531, %v4723
      %v4725 = vpop.f32.mrf.mxu0
      %v4726 = vpop.f32.mrf.mxu0
      %v4727 = vadd.f32 %v4534, %v4726
      %v4728 = vpop.f32.mrf.mxu0
      %4729 = vmatprep.mubr.bf16.mxu0 0
      %4730 = vmatmul.mubr.bf16.gmra.mxu0 %v4591
      %v4731 = vpop.f32.mrf.mxu0
      %v4732 = vadd.f32 %v4539, %v4731
      %v4733 = vpop.f32.mrf.mxu0
      %v4734 = vpop.f32.mrf.mxu0
      %v4735 = vadd.f32 %v4542, %v4734
      %v4736 = vpop.f32.mrf.mxu0
      %4737 = vmatprep.mubr.bf16.mxu0 0
      %4738 = vmatmul.mubr.bf16.gmra.mxu0 %v4592
      %v4739 = vpop.f32.mrf.mxu0
      %v4740 = vadd.f32 %v4547, %v4739
      %v4741 = vpop.f32.mrf.mxu0
      %v4742 = vpop.f32.mrf.mxu0
      %v4743 = vadd.f32 %v4550, %v4742
      %v4744 = vpop.f32.mrf.mxu0
      %4745 = vdwg.mxu0
      %v4746 = vld [vmem:[#allocation2] sm:$0xe]
      %v4747 = vld [vmem:[#allocation2 + $0xc] sm:$0xe]
      %v4748 = vld [vmem:[#allocation2 + $0x18] sm:$0xe]
      %v4749 = vld [vmem:[#allocation2 + $0x24] sm:$0xe]
      %v4750 = vld [vmem:[#allocation2 + $0x30] sm:$0xe]
      %v4751 = vld [vmem:[#allocation2 + $0x3c] sm:$0xe]
      %v4752 = vld [vmem:[#allocation2 + $0x48] sm:$0xe]
      %v4753 = vld [vmem:[#allocation2 + $0x54] sm:$0xe]
      %v4770 = vrot.slane %v4746, 5
      %v4771 = vrot.slane %v4770, 4
      %v4772 = vrot.slane %v4128, 5
      %v4773 = vsel %vm1015, %v4771, %v4772
      %v4774 = vrot.slane %v4772, 4
      %v4775 = vrot.slane %v4159, 5
      %v4776 = vsel %vm1015, %v4774, %v4775
      %v4777 = vrot.slane %v4747, 5
      %v4778 = vrot.slane %v4777, 4
      %v4779 = vrot.slane %v4130, 5
      %v4780 = vsel %vm1015, %v4778, %v4779
      %v4781 = vrot.slane %v4779, 4
      %v4782 = vrot.slane %v4160, 5
      %v4783 = vsel %vm1015, %v4781, %v4782
      %v4784 = vrot.slane %v4748, 5
      %v4785 = vrot.slane %v4784, 4
      %v4786 = vrot.slane %v4132, 5
      %v4787 = vsel %vm1015, %v4785, %v4786
      %v4788 = vrot.slane %v4786, 4
      %v4789 = vrot.slane %v4161, 5
      %v4790 = vsel %vm1015, %v4788, %v4789
      %v4791 = vrot.slane %v4749, 5
      %v4792 = vrot.slane %v4791, 4
      %v4793 = vrot.slane %v4134, 5
      %v4794 = vsel %vm1015, %v4792, %v4793
      %v4795 = vrot.slane %v4793, 4
      %v4796 = vrot.slane %v4162, 5
      %v4797 = vsel %vm1015, %v4795, %v4796
      %v4798 = vrot.slane %v4750, 5
      %v4799 = vrot.slane %v4798, 4
      %v4800 = vrot.slane %v4136, 5
      %v4801 = vsel %vm1015, %v4799, %v4800
      %v4802 = vrot.slane %v4800, 4
      %v4803 = vrot.slane %v4163, 5
      %v4804 = vsel %vm1015, %v4802, %v4803
      %v4805 = vrot.slane %v4751, 5
      %v4806 = vrot.slane %v4805, 4
      %v4807 = vrot.slane %v4138, 5
      %v4808 = vsel %vm1015, %v4806, %v4807
      %v4809 = vrot.slane %v4807, 4
      %v4810 = vrot.slane %v4164, 5
      %v4811 = vsel %vm1015, %v4809, %v4810
      %v4812 = vrot.slane %v4752, 5
      %v4813 = vrot.slane %v4812, 4
      %v4814 = vrot.slane %v4140, 5
      %v4815 = vsel %vm1015, %v4813, %v4814
      %v4816 = vrot.slane %v4814, 4
      %v4817 = vrot.slane %v4165, 5
      %v4818 = vsel %vm1015, %v4816, %v4817
      %v4819 = vrot.slane %v4753, 5
      %v4820 = vrot.slane %v4819, 4
      %v4821 = vrot.slane %v4142, 5
      %v4822 = vsel %vm1015, %v4820, %v4821
      %v4823 = vrot.slane %v4821, 4
      %v4824 = vrot.slane %v4166, 5
      %v4825 = vsel %vm1015, %v4823, %v4824
      %s4826 = scalar_lea.vmem %s3, 128
      %v4827 = vld [vmem:[%s4826] sm:$0xf]
      %v4828 = vld [vmem:[%s4826 + $0x4] sm:$0xf]
      %v4829 = vld [vmem:[%s4826 + $0x8] sm:$0xf]
      %v4830 = vld [vmem:[%s4826 + $0xc] sm:$0xf]
      %v4831 = vld [vmem:[%s4826 + $0x10] sm:$0xf]
      %v4832 = vld [vmem:[%s4826 + $0x14] sm:$0xf]
      %v4833 = vld [vmem:[%s4826 + $0x18] sm:$0xf]
      %v4834 = vld [vmem:[%s4826 + $0x1c] sm:$0xf]
      %v4835 = vld [vmem:[%s4826 + $0x20] sm:$0xf]
      %v4836 = vld [vmem:[%s4826 + $0x24] sm:$0xf]
      %v4837 = vld [vmem:[%s4826 + $0x28] sm:$0xf]
      %v4838 = vld [vmem:[%s4826 + $0x2c] sm:$0xf]
      %v4839 = vld [vmem:[%s4826 + $0x30] sm:$0xf]
      %v4840 = vld [vmem:[%s4826 + $0x34] sm:$0xf]
      %v4841 = vld [vmem:[%s4826 + $0x38] sm:$0xf]
      %v4842 = vld [vmem:[%s4826 + $0x3c] sm:$0xf]
      %v4843 = vunpack.c.l.b16 %v4773
      %v4844 = vunpack.c.l.b16 %v4776
      %v4845 = vunpack.c.l.b16 %v4780
      %v4846 = vunpack.c.l.b16 %v4783
      %v4847 = vunpack.c.l.b16 %v4787
      %v4848 = vunpack.c.l.b16 %v4790
      %v4849 = vunpack.c.l.b16 %v4794
      %v4850 = vunpack.c.l.b16 %v4797
      %v4851 = vunpack.c.l.b16 %v4801
      %v4852 = vunpack.c.l.b16 %v4804
      %v4853 = vunpack.c.l.b16 %v4808
      %v4854 = vunpack.c.l.b16 %v4811
      %v4855 = vunpack.c.l.b16 %v4815
      %v4856 = vunpack.c.l.b16 %v4818
      %v4857 = vunpack.c.l.b16 %v4822
      %v4858 = vunpack.c.l.b16 %v4825
      %v4859 = vpack.c.b16 %v4844, %v4843
      %v4860 = vpack.c.b16 %v4846, %v4845
      %v4861 = vpack.c.b16 %v4848, %v4847
      %v4862 = vpack.c.b16 %v4850, %v4849
      %v4863 = vpack.c.b16 %v4852, %v4851
      %v4864 = vpack.c.b16 %v4854, %v4853
      %v4865 = vpack.c.b16 %v4856, %v4855
      %v4866 = vpack.c.b16 %v4858, %v4857
      %v4891 = vunpack.c.l.b16 %v4827
      %v4892 = vunpack.c.l.b16 %v4828
      %v4893 = vunpack.c.l.b16 %v4829
      %v4894 = vunpack.c.l.b16 %v4830
      %v4895 = vunpack.c.l.b16 %v4831
      %v4896 = vunpack.c.l.b16 %v4832
      %v4897 = vunpack.c.l.b16 %v4833
      %v4898 = vunpack.c.l.b16 %v4834
      %v4899 = vunpack.c.l.b16 %v4835
      %v4900 = vunpack.c.l.b16 %v4836
      %v4901 = vunpack.c.l.b16 %v4837
      %v4902 = vunpack.c.l.b16 %v4838
      %v4903 = vunpack.c.l.b16 %v4839
      %v4904 = vunpack.c.l.b16 %v4840
      %v4905 = vunpack.c.l.b16 %v4841
      %v4906 = vunpack.c.l.b16 %v4842
      %v4907 = vpack.c.b16 %v4892, %v4891
      %v4908 = vpack.c.b16 %v4894, %v4893
      %v4909 = vpack.c.b16 %v4896, %v4895
      %v4910 = vpack.c.b16 %v4898, %v4897
      %v4911 = vpack.c.b16 %v4900, %v4899
      %v4912 = vpack.c.b16 %v4902, %v4901
      %v4913 = vpack.c.b16 %v4904, %v4903
      %v4914 = vpack.c.b16 %v4906, %v4905
      %4923 = vmatprep.subr.bf16.mxu0 0
      %4924 = vmatpush1.bf16.msra.mxu0 %v4914
      %4925 = vmatprep.subr.bf16.mxu0 0
      %4926 = vmatpush1.bf16.msra.mxu0 %v4913
      %4927 = vmatprep.subr.bf16.mxu0 0
      %4928 = vmatpush1.bf16.msra.mxu0 %v4912
      %4929 = vmatprep.subr.bf16.mxu0 0
      %4930 = vmatpush1.bf16.msra.mxu0 %v4911
      %4931 = vmatprep.subr.bf16.mxu0 0
      %4932 = vmatpush1.bf16.msra.mxu0 %v4910
      %4933 = vmatprep.subr.bf16.mxu0 0
      %4934 = vmatpush1.bf16.msra.mxu0 %v4909
      %4935 = vmatprep.subr.bf16.mxu0 0
      %4936 = vmatpush1.bf16.msra.mxu0 %v4908
      %4937 = vmatprep.subr.bf16.mxu0 0
      %4938 = vmatpush1.bf16.msra.mxu0 %v4907
      %4939 = vmatprep.subr.bf16.mxu0 0
      %4940 = vmatpush2.bf16.msra.mxu0 0
      %4941 = vmatprep.subr.bf16.mxu0 0
      %4942 = vmatpush2.bf16.msra.mxu0 0
      %4943 = vmatprep.subr.bf16.mxu0 0
      %4944 = vmatpush2.bf16.msra.mxu0 0
      %4945 = vmatprep.subr.bf16.mxu0 0
      %4946 = vmatpush2.bf16.msra.mxu0 0
      %4947 = vmatprep.subr.bf16.mxu0 0
      %4948 = vmatpush2.bf16.msra.mxu0 0
      %4949 = vmatprep.subr.bf16.mxu0 0
      %4950 = vmatpush2.bf16.msra.mxu0 0
      %4951 = vmatprep.subr.bf16.mxu0 0
      %4952 = vmatpush2.bf16.msra.mxu0 0
      %4953 = vmatprep.subr.bf16.mxu0 0
      %4954 = vmatpush2.bf16.msra.mxu0 0
      %4955 = vmatprep.mubr.bf16.mxu0 0
      %4956 = vmatmul.mubr.bf16.gmra.mxu0 %v4859
      %v4957 = vpop.f32.mrf.mxu0
      %v4958 = vadd.f32 0.0, %v4957
      %v4959 = vpop.f32.mrf.mxu0
      %v4960 = vpop.f32.mrf.mxu0
      %v4961 = vadd.f32 0.0, %v4960
      %v4962 = vpop.f32.mrf.mxu0
      %4963 = vmatprep.mubr.bf16.mxu0 0
      %4964 = vmatmul.mubr.bf16.gmra.mxu0 %v4860
      %v4965 = vpop.f32.mrf.mxu0
      %v4966 = vadd.f32 0.0, %v4965
      %v4967 = vpop.f32.mrf.mxu0
      %v4968 = vpop.f32.mrf.mxu0
      %v4969 = vadd.f32 0.0, %v4968
      %v4970 = vpop.f32.mrf.mxu0
      %4971 = vmatprep.mubr.bf16.mxu0 0
      %4972 = vmatmul.mubr.bf16.gmra.mxu0 %v4861
      %v4973 = vpop.f32.mrf.mxu0
      %v4974 = vadd.f32 0.0, %v4973
      %v4975 = vpop.f32.mrf.mxu0
      %v4976 = vpop.f32.mrf.mxu0
      %v4977 = vadd.f32 0.0, %v4976
      %v4978 = vpop.f32.mrf.mxu0
      %4979 = vmatprep.mubr.bf16.mxu0 0
      %4980 = vmatmul.mubr.bf16.gmra.mxu0 %v4862
      %v4981 = vpop.f32.mrf.mxu0
      %v4982 = vadd.f32 0.0, %v4981
      %v4983 = vpop.f32.mrf.mxu0
      %v4984 = vpop.f32.mrf.mxu0
      %v4985 = vadd.f32 0.0, %v4984
      %v4986 = vpop.f32.mrf.mxu0
      %4987 = vmatprep.mubr.bf16.mxu0 0
      %4988 = vmatmul.mubr.bf16.gmra.mxu0 %v4863
      %v4989 = vpop.f32.mrf.mxu0
      %v4990 = vadd.f32 0.0, %v4989
      %v4991 = vpop.f32.mrf.mxu0
      %v4992 = vpop.f32.mrf.mxu0
      %v4993 = vadd.f32 0.0, %v4992
      %v4994 = vpop.f32.mrf.mxu0
      %4995 = vmatprep.mubr.bf16.mxu0 0
      %4996 = vmatmul.mubr.bf16.gmra.mxu0 %v4864
      %v4997 = vpop.f32.mrf.mxu0
      %v4998 = vadd.f32 0.0, %v4997
      %v4999 = vpop.f32.mrf.mxu0
      %v5000 = vpop.f32.mrf.mxu0
      %v5001 = vadd.f32 0.0, %v5000
      %v5002 = vpop.f32.mrf.mxu0
      %5003 = vmatprep.mubr.bf16.mxu0 0
      %5004 = vmatmul.mubr.bf16.gmra.mxu0 %v4865
      %v5005 = vpop.f32.mrf.mxu0
      %v5006 = vadd.f32 0.0, %v5005
      %v5007 = vpop.f32.mrf.mxu0
      %v5008 = vpop.f32.mrf.mxu0
      %v5009 = vadd.f32 0.0, %v5008
      %v5010 = vpop.f32.mrf.mxu0
      %5011 = vmatprep.mubr.bf16.mxu0 0
      %5012 = vmatmul.mubr.bf16.gmra.mxu0 %v4866
      %v5013 = vpop.f32.mrf.mxu0
      %v5014 = vadd.f32 0.0, %v5013
      %v5015 = vpop.f32.mrf.mxu0
      %v5016 = vpop.f32.mrf.mxu0
      %v5017 = vadd.f32 0.0, %v5016
      %v5018 = vpop.f32.mrf.mxu0
      %5019 = vdwg.mxu0
      %v5020 = vadd.f32 %v4684, %v4958
      %v5021 = vadd.f32 %v4687, %v4961
      %v5022 = vadd.f32 %v4692, %v4966
      %v5023 = vadd.f32 %v4695, %v4969
      %v5024 = vadd.f32 %v4700, %v4974
      %v5025 = vadd.f32 %v4703, %v4977
      %v5026 = vadd.f32 %v4708, %v4982
      %v5027 = vadd.f32 %v4711, %v4985
      %v5028 = vadd.f32 %v4716, %v4990
      %v5029 = vadd.f32 %v4719, %v4993
      %v5030 = vadd.f32 %v4724, %v4998
      %v5031 = vadd.f32 %v4727, %v5001
      %v5032 = vadd.f32 %v4732, %v5006
      %v5033 = vadd.f32 %v4735, %v5009
      %v5034 = vadd.f32 %v4740, %v5014
      %v5035 = vadd.f32 %v4743, %v5017
      %s5036 = scalar_lea.vmem [#allocation2], 12
      %v5037 = vld [vmem:[%s5036] sm:$0xf]
      %v5038 = vld [vmem:[%s5036 + $0x4] sm:$0xf]
      %v5039 = vld [vmem:[%s5036 + $0xc] sm:$0xf]
      %v5040 = vld [vmem:[%s5036 + $0x10] sm:$0xf]
      %v5041 = vld [vmem:[%s5036 + $0x18] sm:$0xf]
      %v5042 = vld [vmem:[%s5036 + $0x1c] sm:$0xf]
      %v5043 = vld [vmem:[%s5036 + $0x24] sm:$0xf]
      %v5044 = vld [vmem:[%s5036 + $0x28] sm:$0xf]
      %v5045 = vld [vmem:[%s5036 + $0x30] sm:$0xf]
      %v5046 = vld [vmem:[%s5036 + $0x34] sm:$0xf]
      %v5047 = vld [vmem:[%s5036 + $0x3c] sm:$0xf]
      %v5048 = vld [vmem:[%s5036 + $0x40] sm:$0xf]
      %v5049 = vld [vmem:[%s5036 + $0x48] sm:$0xf]
      %v5050 = vld [vmem:[%s5036 + $0x4c] sm:$0xf]
      %v5051 = vld [vmem:[%s5036 + $0x54] sm:$0xf]
      %v5052 = vld [vmem:[%s5036 + $0x58] sm:$0xf]
      %s5053 = scalar_lea.vmem %s3, 192
      %v5054 = vld [vmem:[%s5053] sm:$0xf]
      %v5055 = vld [vmem:[%s5053 + $0x4] sm:$0xf]
      %v5056 = vld [vmem:[%s5053 + $0x8] sm:$0xf]
      %v5057 = vld [vmem:[%s5053 + $0xc] sm:$0xf]
      %v5058 = vld [vmem:[%s5053 + $0x10] sm:$0xf]
      %v5059 = vld [vmem:[%s5053 + $0x14] sm:$0xf]
      %v5060 = vld [vmem:[%s5053 + $0x18] sm:$0xf]
      %v5061 = vld [vmem:[%s5053 + $0x1c] sm:$0xf]
      %v5062 = vld [vmem:[%s5053 + $0x20] sm:$0xf]
      %v5063 = vld [vmem:[%s5053 + $0x24] sm:$0xf]
      %v5064 = vld [vmem:[%s5053 + $0x28] sm:$0xf]
      %v5065 = vld [vmem:[%s5053 + $0x2c] sm:$0xf]
      %v5066 = vld [vmem:[%s5053 + $0x30] sm:$0xf]
      %v5067 = vld [vmem:[%s5053 + $0x34] sm:$0xf]
      %v5068 = vld [vmem:[%s5053 + $0x38] sm:$0xf]
      %v5069 = vld [vmem:[%s5053 + $0x3c] sm:$0xf]
      %v5086 = vunpack.c.l.b16 %v5037
      %v5087 = vunpack.c.l.b16 %v5038
      %v5088 = vunpack.c.l.b16 %v5039
      %v5089 = vunpack.c.l.b16 %v5040
      %v5090 = vunpack.c.l.b16 %v5041
      %v5091 = vunpack.c.l.b16 %v5042
      %v5092 = vunpack.c.l.b16 %v5043
      %v5093 = vunpack.c.l.b16 %v5044
      %v5094 = vunpack.c.l.b16 %v5045
      %v5095 = vunpack.c.l.b16 %v5046
      %v5096 = vunpack.c.l.b16 %v5047
      %v5097 = vunpack.c.l.b16 %v5048
      %v5098 = vunpack.c.l.b16 %v5049
      %v5099 = vunpack.c.l.b16 %v5050
      %v5100 = vunpack.c.l.b16 %v5051
      %v5101 = vunpack.c.l.b16 %v5052
      %v5102 = vpack.c.b16 %v5087, %v5086
      %v5103 = vpack.c.b16 %v5089, %v5088
      %v5104 = vpack.c.b16 %v5091, %v5090
      %v5105 = vpack.c.b16 %v5093, %v5092
      %v5106 = vpack.c.b16 %v5095, %v5094
      %v5107 = vpack.c.b16 %v5097, %v5096
      %v5108 = vpack.c.b16 %v5099, %v5098
      %v5109 = vpack.c.b16 %v5101, %v5100
      %v5134 = vunpack.c.l.b16 %v5054
      %v5135 = vunpack.c.l.b16 %v5055
      %v5136 = vunpack.c.l.b16 %v5056
      %v5137 = vunpack.c.l.b16 %v5057
      %v5138 = vunpack.c.l.b16 %v5058
      %v5139 = vunpack.c.l.b16 %v5059
      %v5140 = vunpack.c.l.b16 %v5060
      %v5141 = vunpack.c.l.b16 %v5061
      %v5142 = vunpack.c.l.b16 %v5062
      %v5143 = vunpack.c.l.b16 %v5063
      %v5144 = vunpack.c.l.b16 %v5064
      %v5145 = vunpack.c.l.b16 %v5065
      %v5146 = vunpack.c.l.b16 %v5066
      %v5147 = vunpack.c.l.b16 %v5067
      %v5148 = vunpack.c.l.b16 %v5068
      %v5149 = vunpack.c.l.b16 %v5069
      %v5150 = vpack.c.b16 %v5135, %v5134
      %v5151 = vpack.c.b16 %v5137, %v5136
      %v5152 = vpack.c.b16 %v5139, %v5138
      %v5153 = vpack.c.b16 %v5141, %v5140
      %v5154 = vpack.c.b16 %v5143, %v5142
      %v5155 = vpack.c.b16 %v5145, %v5144
      %v5156 = vpack.c.b16 %v5147, %v5146
      %v5157 = vpack.c.b16 %v5149, %v5148
      %5166 = vmatprep.subr.bf16.mxu0 0
      %5167 = vmatpush1.bf16.msra.mxu0 %v5157
      %5168 = vmatprep.subr.bf16.mxu0 0
      %5169 = vmatpush1.bf16.msra.mxu0 %v5156
      %5170 = vmatprep.subr.bf16.mxu0 0
      %5171 = vmatpush1.bf16.msra.mxu0 %v5155
      %5172 = vmatprep.subr.bf16.mxu0 0
      %5173 = vmatpush1.bf16.msra.mxu0 %v5154
      %5174 = vmatprep.subr.bf16.mxu0 0
      %5175 = vmatpush1.bf16.msra.mxu0 %v5153
      %5176 = vmatprep.subr.bf16.mxu0 0
      %5177 = vmatpush1.bf16.msra.mxu0 %v5152
      %5178 = vmatprep.subr.bf16.mxu0 0
      %5179 = vmatpush1.bf16.msra.mxu0 %v5151
      %5180 = vmatprep.subr.bf16.mxu0 0
      %5181 = vmatpush1.bf16.msra.mxu0 %v5150
      %5182 = vmatprep.subr.bf16.mxu0 0
      %5183 = vmatpush2.bf16.msra.mxu0 0
      %5184 = vmatprep.subr.bf16.mxu0 0
      %5185 = vmatpush2.bf16.msra.mxu0 0
      %5186 = vmatprep.subr.bf16.mxu0 0
      %5187 = vmatpush2.bf16.msra.mxu0 0
      %5188 = vmatprep.subr.bf16.mxu0 0
      %5189 = vmatpush2.bf16.msra.mxu0 0
      %5190 = vmatprep.subr.bf16.mxu0 0
      %5191 = vmatpush2.bf16.msra.mxu0 0
      %5192 = vmatprep.subr.bf16.mxu0 0
      %5193 = vmatpush2.bf16.msra.mxu0 0
      %5194 = vmatprep.subr.bf16.mxu0 0
      %5195 = vmatpush2.bf16.msra.mxu0 0
      %5196 = vmatprep.subr.bf16.mxu0 0
      %5197 = vmatpush2.bf16.msra.mxu0 0
      %5198 = vmatprep.mubr.bf16.mxu0 0
      %5199 = vmatmul.mubr.bf16.gmra.mxu0 %v5102
      %v5200 = vpop.f32.mrf.mxu0
      %v5201 = vadd.f32 0.0, %v5200
      %v5202 = vpop.f32.mrf.mxu0
      %v5203 = vpop.f32.mrf.mxu0
      %v5204 = vadd.f32 0.0, %v5203
      %v5205 = vpop.f32.mrf.mxu0
      %5206 = vmatprep.mubr.bf16.mxu0 0
      %5207 = vmatmul.mubr.bf16.gmra.mxu0 %v5103
      %v5208 = vpop.f32.mrf.mxu0
      %v5209 = vadd.f32 0.0, %v5208
      %v5210 = vpop.f32.mrf.mxu0
      %v5211 = vpop.f32.mrf.mxu0
      %v5212 = vadd.f32 0.0, %v5211
      %v5213 = vpop.f32.mrf.mxu0
      %5214 = vmatprep.mubr.bf16.mxu0 0
      %5215 = vmatmul.mubr.bf16.gmra.mxu0 %v5104
      %v5216 = vpop.f32.mrf.mxu0
      %v5217 = vadd.f32 0.0, %v5216
      %v5218 = vpop.f32.mrf.mxu0
      %v5219 = vpop.f32.mrf.mxu0
      %v5220 = vadd.f32 0.0, %v5219
      %v5221 = vpop.f32.mrf.mxu0
      %5222 = vmatprep.mubr.bf16.mxu0 0
      %5223 = vmatmul.mubr.bf16.gmra.mxu0 %v5105
      %v5224 = vpop.f32.mrf.mxu0
      %v5225 = vadd.f32 0.0, %v5224
      %v5226 = vpop.f32.mrf.mxu0
      %v5227 = vpop.f32.mrf.mxu0
      %v5228 = vadd.f32 0.0, %v5227
      %v5229 = vpop.f32.mrf.mxu0
      %5230 = vmatprep.mubr.bf16.mxu0 0
      %5231 = vmatmul.mubr.bf16.gmra.mxu0 %v5106
      %v5232 = vpop.f32.mrf.mxu0
      %v5233 = vadd.f32 0.0, %v5232
      %v5234 = vpop.f32.mrf.mxu0
      %v5235 = vpop.f32.mrf.mxu0
      %v5236 = vadd.f32 0.0, %v5235
      %v5237 = vpop.f32.mrf.mxu0
      %5238 = vmatprep.mubr.bf16.mxu0 0
      %5239 = vmatmul.mubr.bf16.gmra.mxu0 %v5107
      %v5240 = vpop.f32.mrf.mxu0
      %v5241 = vadd.f32 0.0, %v5240
      %v5242 = vpop.f32.mrf.mxu0
      %v5243 = vpop.f32.mrf.mxu0
      %v5244 = vadd.f32 0.0, %v5243
      %v5245 = vpop.f32.mrf.mxu0
      %5246 = vmatprep.mubr.bf16.mxu0 0
      %5247 = vmatmul.mubr.bf16.gmra.mxu0 %v5108
      %v5248 = vpop.f32.mrf.mxu0
      %v5249 = vadd.f32 0.0, %v5248
      %v5250 = vpop.f32.mrf.mxu0
      %v5251 = vpop.f32.mrf.mxu0
      %v5252 = vadd.f32 0.0, %v5251
      %v5253 = vpop.f32.mrf.mxu0
      %5254 = vmatprep.mubr.bf16.mxu0 0
      %5255 = vmatmul.mubr.bf16.gmra.mxu0 %v5109
      %v5256 = vpop.f32.mrf.mxu0
      %v5257 = vadd.f32 0.0, %v5256
      %v5258 = vpop.f32.mrf.mxu0
      %v5259 = vpop.f32.mrf.mxu0
      %v5260 = vadd.f32 0.0, %v5259
      %v5261 = vpop.f32.mrf.mxu0
      %5262 = vdwg.mxu0
      %v5263 = vadd.f32 %v5020, %v5201
      %v5264 = vadd.f32 %v5021, %v5204
      %v5265 = vadd.f32 %v5022, %v5209
      %v5266 = vadd.f32 %v5023, %v5212
      %v5267 = vadd.f32 %v5024, %v5217
      %v5268 = vadd.f32 %v5025, %v5220
      %v5269 = vadd.f32 %v5026, %v5225
      %v5270 = vadd.f32 %v5027, %v5228
      %v5271 = vadd.f32 %v5028, %v5233
      %v5272 = vadd.f32 %v5029, %v5236
      %v5273 = vadd.f32 %v5030, %v5241
      %v5274 = vadd.f32 %v5031, %v5244
      %v5275 = vadd.f32 %v5032, %v5249
      %v5276 = vadd.f32 %v5033, %v5252
      %v5277 = vadd.f32 %v5034, %v5257
      %v5278 = vadd.f32 %v5035, %v5260
      %v5279 = vld [vmem:[%s5036] sm:$0xf]
      %v5280 = vld [vmem:[%s5036 + $0x4] sm:$0xf]
      %v5281 = vld [vmem:[%s5036 + $0x8] sm:$0x1]
      %v5282 = vld [vmem:[%s5036 + $0xc] sm:$0xf]
      %v5283 = vld [vmem:[%s5036 + $0x10] sm:$0xf]
      %v5284 = vld [vmem:[%s5036 + $0x14] sm:$0x1]
      %v5285 = vld [vmem:[%s5036 + $0x18] sm:$0xf]
      %v5286 = vld [vmem:[%s5036 + $0x1c] sm:$0xf]
      %v5287 = vld [vmem:[%s5036 + $0x20] sm:$0x1]
      %v5288 = vld [vmem:[%s5036 + $0x24] sm:$0xf]
      %v5289 = vld [vmem:[%s5036 + $0x28] sm:$0xf]
      %v5290 = vld [vmem:[%s5036 + $0x2c] sm:$0x1]
      %v5291 = vld [vmem:[%s5036 + $0x30] sm:$0xf]
      %v5292 = vld [vmem:[%s5036 + $0x34] sm:$0xf]
      %v5293 = vld [vmem:[%s5036 + $0x38] sm:$0x1]
      %v5294 = vld [vmem:[%s5036 + $0x3c] sm:$0xf]
      %v5295 = vld [vmem:[%s5036 + $0x40] sm:$0xf]
      %v5296 = vld [vmem:[%s5036 + $0x44] sm:$0x1]
      %v5297 = vld [vmem:[%s5036 + $0x48] sm:$0xf]
      %v5298 = vld [vmem:[%s5036 + $0x4c] sm:$0xf]
      %v5299 = vld [vmem:[%s5036 + $0x50] sm:$0x1]
      %v5300 = vld [vmem:[%s5036 + $0x54] sm:$0xf]
      %v5301 = vld [vmem:[%s5036 + $0x58] sm:$0xf]
      %v5302 = vld [vmem:[%s5036 + $0x5c] sm:$0x1]
      %v5304 = vshrl.u32 %v5279, 16
      %v5306 = vrot.slane %v5304, 4
      %v5307 = vshll.u32 %v5279, 16
      %v5309 = vrot.slane %v5307, 5
      %v5310 = vor.u32 %v5306, %v5309
      %v5311 = vrot.slane %v5310, 4
      %v5313 = vshll.u32 %v5280, 16
      %v5315 = vrot.slane %v5313, 5
      %v5316 = vsel %vm303, %v5311, %v5315
      %v5317 = vshrl.u32 %v5280, 16
      %v5319 = vrot.slane %v5317, 4
      %v5320 = vor.u32 %v5319, %v5315
      %v5321 = vrot.slane %v5320, 4
      %v5323 = vshll.u32 %v5281, 16
      %v5325 = vrot.slane %v5323, 5
      %v5326 = vsel %vm303, %v5321, %v5325
      %v5328 = vshrl.u32 %v5282, 16
      %v5330 = vrot.slane %v5328, 4
      %v5331 = vshll.u32 %v5282, 16
      %v5333 = vrot.slane %v5331, 5
      %v5334 = vor.u32 %v5330, %v5333
      %v5335 = vrot.slane %v5334, 4
      %v5337 = vshll.u32 %v5283, 16
      %v5339 = vrot.slane %v5337, 5
      %v5340 = vsel %vm303, %v5335, %v5339
      %v5341 = vshrl.u32 %v5283, 16
      %v5343 = vrot.slane %v5341, 4
      %v5344 = vor.u32 %v5343, %v5339
      %v5345 = vrot.slane %v5344, 4
      %v5347 = vshll.u32 %v5284, 16
      %v5349 = vrot.slane %v5347, 5
      %v5350 = vsel %vm303, %v5345, %v5349
      %v5352 = vshrl.u32 %v5285, 16
      %v5354 = vrot.slane %v5352, 4
      %v5355 = vshll.u32 %v5285, 16
      %v5357 = vrot.slane %v5355, 5
      %v5358 = vor.u32 %v5354, %v5357
      %v5359 = vrot.slane %v5358, 4
      %v5361 = vshll.u32 %v5286, 16
      %v5363 = vrot.slane %v5361, 5
      %v5364 = vsel %vm303, %v5359, %v5363
      %v5365 = vshrl.u32 %v5286, 16
      %v5367 = vrot.slane %v5365, 4
      %v5368 = vor.u32 %v5367, %v5363
      %v5369 = vrot.slane %v5368, 4
      %v5371 = vshll.u32 %v5287, 16
      %v5373 = vrot.slane %v5371, 5
      %v5374 = vsel %vm303, %v5369, %v5373
      %v5376 = vshrl.u32 %v5288, 16
      %v5378 = vrot.slane %v5376, 4
      %v5379 = vshll.u32 %v5288, 16
      %v5381 = vrot.slane %v5379, 5
      %v5382 = vor.u32 %v5378, %v5381
      %v5383 = vrot.slane %v5382, 4
      %v5385 = vshll.u32 %v5289, 16
      %v5387 = vrot.slane %v5385, 5
      %v5388 = vsel %vm303, %v5383, %v5387
      %v5389 = vshrl.u32 %v5289, 16
      %v5391 = vrot.slane %v5389, 4
      %v5392 = vor.u32 %v5391, %v5387
      %v5393 = vrot.slane %v5392, 4
      %v5395 = vshll.u32 %v5290, 16
      %v5397 = vrot.slane %v5395, 5
      %v5398 = vsel %vm303, %v5393, %v5397
      %v5400 = vshrl.u32 %v5291, 16
      %v5402 = vrot.slane %v5400, 4
      %v5403 = vshll.u32 %v5291, 16
      %v5405 = vrot.slane %v5403, 5
      %v5406 = vor.u32 %v5402, %v5405
      %v5407 = vrot.slane %v5406, 4
      %v5409 = vshll.u32 %v5292, 16
      %v5411 = vrot.slane %v5409, 5
      %v5412 = vsel %vm303, %v5407, %v5411
      %v5413 = vshrl.u32 %v5292, 16
      %v5415 = vrot.slane %v5413, 4
      %v5416 = vor.u32 %v5415, %v5411
      %v5417 = vrot.slane %v5416, 4
      %v5419 = vshll.u32 %v5293, 16
      %v5421 = vrot.slane %v5419, 5
      %v5422 = vsel %vm303, %v5417, %v5421
      %v5424 = vshrl.u32 %v5294, 16
      %v5426 = vrot.slane %v5424, 4
      %v5427 = vshll.u32 %v5294, 16
      %v5429 = vrot.slane %v5427, 5
      %v5430 = vor.u32 %v5426, %v5429
      %v5431 = vrot.slane %v5430, 4
      %v5433 = vshll.u32 %v5295, 16
      %v5435 = vrot.slane %v5433, 5
      %v5436 = vsel %vm303, %v5431, %v5435
      %v5437 = vshrl.u32 %v5295, 16
      %v5439 = vrot.slane %v5437, 4
      %v5440 = vor.u32 %v5439, %v5435
      %v5441 = vrot.slane %v5440, 4
      %v5443 = vshll.u32 %v5296, 16
      %v5445 = vrot.slane %v5443, 5
      %v5446 = vsel %vm303, %v5441, %v5445
      %v5448 = vshrl.u32 %v5297, 16
      %v5450 = vrot.slane %v5448, 4
      %v5451 = vshll.u32 %v5297, 16
      %v5453 = vrot.slane %v5451, 5
      %v5454 = vor.u32 %v5450, %v5453
      %v5455 = vrot.slane %v5454, 4
      %v5457 = vshll.u32 %v5298, 16
      %v5459 = vrot.slane %v5457, 5
      %v5460 = vsel %vm303, %v5455, %v5459
      %v5461 = vshrl.u32 %v5298, 16
      %v5463 = vrot.slane %v5461, 4
      %v5464 = vor.u32 %v5463, %v5459
      %v5465 = vrot.slane %v5464, 4
      %v5467 = vshll.u32 %v5299, 16
      %v5469 = vrot.slane %v5467, 5
      %v5470 = vsel %vm303, %v5465, %v5469
      %v5472 = vshrl.u32 %v5300, 16
      %v5474 = vrot.slane %v5472, 4
      %v5475 = vshll.u32 %v5300, 16
      %v5477 = vrot.slane %v5475, 5
      %v5478 = vor.u32 %v5474, %v5477
      %v5479 = vrot.slane %v5478, 4
      %v5481 = vshll.u32 %v5301, 16
      %v5483 = vrot.slane %v5481, 5
      %v5484 = vsel %vm303, %v5479, %v5483
      %v5485 = vshrl.u32 %v5301, 16
      %v5487 = vrot.slane %v5485, 4
      %v5488 = vor.u32 %v5487, %v5483
      %v5489 = vrot.slane %v5488, 4
      %v5491 = vshll.u32 %v5302, 16
      %v5493 = vrot.slane %v5491, 5
      %v5494 = vsel %vm303, %v5489, %v5493
      %s5495 = scalar_lea.vmem %s3, 256
      %v5496 = vld [vmem:[%s5495] sm:$0xf]
      %v5497 = vld [vmem:[%s5495 + $0x4] sm:$0xf]
      %v5498 = vld [vmem:[%s5495 + $0x8] sm:$0xf]
      %v5499 = vld [vmem:[%s5495 + $0xc] sm:$0xf]
      %v5500 = vld [vmem:[%s5495 + $0x10] sm:$0xf]
      %v5501 = vld [vmem:[%s5495 + $0x14] sm:$0xf]
      %v5502 = vld [vmem:[%s5495 + $0x18] sm:$0xf]
      %v5503 = vld [vmem:[%s5495 + $0x1c] sm:$0xf]
      %v5504 = vld [vmem:[%s5495 + $0x20] sm:$0xf]
      %v5505 = vld [vmem:[%s5495 + $0x24] sm:$0xf]
      %v5506 = vld [vmem:[%s5495 + $0x28] sm:$0xf]
      %v5507 = vld [vmem:[%s5495 + $0x2c] sm:$0xf]
      %v5508 = vld [vmem:[%s5495 + $0x30] sm:$0xf]
      %v5509 = vld [vmem:[%s5495 + $0x34] sm:$0xf]
      %v5510 = vld [vmem:[%s5495 + $0x38] sm:$0xf]
      %v5511 = vld [vmem:[%s5495 + $0x3c] sm:$0xf]
      %v5512 = vunpack.c.l.b16 %v5316
      %v5513 = vunpack.c.l.b16 %v5326
      %v5514 = vunpack.c.l.b16 %v5340
      %v5515 = vunpack.c.l.b16 %v5350
      %v5516 = vunpack.c.l.b16 %v5364
      %v5517 = vunpack.c.l.b16 %v5374
      %v5518 = vunpack.c.l.b16 %v5388
      %v5519 = vunpack.c.l.b16 %v5398
      %v5520 = vunpack.c.l.b16 %v5412
      %v5521 = vunpack.c.l.b16 %v5422
      %v5522 = vunpack.c.l.b16 %v5436
      %v5523 = vunpack.c.l.b16 %v5446
      %v5524 = vunpack.c.l.b16 %v5460
      %v5525 = vunpack.c.l.b16 %v5470
      %v5526 = vunpack.c.l.b16 %v5484
      %v5527 = vunpack.c.l.b16 %v5494
      %v5528 = vpack.c.b16 %v5513, %v5512
      %v5529 = vpack.c.b16 %v5515, %v5514
      %v5530 = vpack.c.b16 %v5517, %v5516
      %v5531 = vpack.c.b16 %v5519, %v5518
      %v5532 = vpack.c.b16 %v5521, %v5520
      %v5533 = vpack.c.b16 %v5523, %v5522
      %v5534 = vpack.c.b16 %v5525, %v5524
      %v5535 = vpack.c.b16 %v5527, %v5526
      %v5560 = vunpack.c.l.b16 %v5496
      %v5561 = vunpack.c.l.b16 %v5497
      %v5562 = vunpack.c.l.b16 %v5498
      %v5563 = vunpack.c.l.b16 %v5499
      %v5564 = vunpack.c.l.b16 %v5500
      %v5565 = vunpack.c.l.b16 %v5501
      %v5566 = vunpack.c.l.b16 %v5502
      %v5567 = vunpack.c.l.b16 %v5503
      %v5568 = vunpack.c.l.b16 %v5504
      %v5569 = vunpack.c.l.b16 %v5505
      %v5570 = vunpack.c.l.b16 %v5506
      %v5571 = vunpack.c.l.b16 %v5507
      %v5572 = vunpack.c.l.b16 %v5508
      %v5573 = vunpack.c.l.b16 %v5509
      %v5574 = vunpack.c.l.b16 %v5510
      %v5575 = vunpack.c.l.b16 %v5511
      %v5576 = vpack.c.b16 %v5561, %v5560
      %v5577 = vpack.c.b16 %v5563, %v5562
      %v5578 = vpack.c.b16 %v5565, %v5564
      %v5579 = vpack.c.b16 %v5567, %v5566
      %v5580 = vpack.c.b16 %v5569, %v5568
      %v5581 = vpack.c.b16 %v5571, %v5570
      %v5582 = vpack.c.b16 %v5573, %v5572
      %v5583 = vpack.c.b16 %v5575, %v5574
      %5592 = vmatprep.subr.bf16.mxu0 0
      %5593 = vmatpush1.bf16.msra.mxu0 %v5583
      %5594 = vmatprep.subr.bf16.mxu0 0
      %5595 = vmatpush1.bf16.msra.mxu0 %v5582
      %5596 = vmatprep.subr.bf16.mxu0 0
      %5597 = vmatpush1.bf16.msra.mxu0 %v5581
      %5598 = vmatprep.subr.bf16.mxu0 0
      %5599 = vmatpush1.bf16.msra.mxu0 %v5580
      %5600 = vmatprep.subr.bf16.mxu0 0
      %5601 = vmatpush1.bf16.msra.mxu0 %v5579
      %5602 = vmatprep.subr.bf16.mxu0 0
      %5603 = vmatpush1.bf16.msra.mxu0 %v5578
      %5604 = vmatprep.subr.bf16.mxu0 0
      %5605 = vmatpush1.bf16.msra.mxu0 %v5577
      %5606 = vmatprep.subr.bf16.mxu0 0
      %5607 = vmatpush1.bf16.msra.mxu0 %v5576
      %5608 = vmatprep.subr.bf16.mxu0 0
      %5609 = vmatpush2.bf16.msra.mxu0 0
      %5610 = vmatprep.subr.bf16.mxu0 0
      %5611 = vmatpush2.bf16.msra.mxu0 0
      %5612 = vmatprep.subr.bf16.mxu0 0
      %5613 = vmatpush2.bf16.msra.mxu0 0
      %5614 = vmatprep.subr.bf16.mxu0 0
      %5615 = vmatpush2.bf16.msra.mxu0 0
      %5616 = vmatprep.subr.bf16.mxu0 0
      %5617 = vmatpush2.bf16.msra.mxu0 0
      %5618 = vmatprep.subr.bf16.mxu0 0
      %5619 = vmatpush2.bf16.msra.mxu0 0
      %5620 = vmatprep.subr.bf16.mxu0 0
      %5621 = vmatpush2.bf16.msra.mxu0 0
      %5622 = vmatprep.subr.bf16.mxu0 0
      %5623 = vmatpush2.bf16.msra.mxu0 0
      %5624 = vmatprep.mubr.bf16.mxu0 0
      %5625 = vmatmul.mubr.bf16.gmra.mxu0 %v5528
      %v5626 = vpop.f32.mrf.mxu0
      %v5627 = vadd.f32 0.0, %v5626
      %v5628 = vpop.f32.mrf.mxu0
      %v5629 = vpop.f32.mrf.mxu0
      %v5630 = vadd.f32 0.0, %v5629
      %v5631 = vpop.f32.mrf.mxu0
      %5632 = vmatprep.mubr.bf16.mxu0 0
      %5633 = vmatmul.mubr.bf16.gmra.mxu0 %v5529
      %v5634 = vpop.f32.mrf.mxu0
      %v5635 = vadd.f32 0.0, %v5634
      %v5636 = vpop.f32.mrf.mxu0
      %v5637 = vpop.f32.mrf.mxu0
      %v5638 = vadd.f32 0.0, %v5637
      %v5639 = vpop.f32.mrf.mxu0
      %5640 = vmatprep.mubr.bf16.mxu0 0
      %5641 = vmatmul.mubr.bf16.gmra.mxu0 %v5530
      %v5642 = vpop.f32.mrf.mxu0
      %v5643 = vadd.f32 0.0, %v5642
      %v5644 = vpop.f32.mrf.mxu0
      %v5645 = vpop.f32.mrf.mxu0
      %v5646 = vadd.f32 0.0, %v5645
      %v5647 = vpop.f32.mrf.mxu0
      %5648 = vmatprep.mubr.bf16.mxu0 0
      %5649 = vmatmul.mubr.bf16.gmra.mxu0 %v5531
      %v5650 = vpop.f32.mrf.mxu0
      %v5651 = vadd.f32 0.0, %v5650
      %v5652 = vpop.f32.mrf.mxu0
      %v5653 = vpop.f32.mrf.mxu0
      %v5654 = vadd.f32 0.0, %v5653
      %v5655 = vpop.f32.mrf.mxu0
      %5656 = vmatprep.mubr.bf16.mxu0 0
      %5657 = vmatmul.mubr.bf16.gmra.mxu0 %v5532
      %v5658 = vpop.f32.mrf.mxu0
      %v5659 = vadd.f32 0.0, %v5658
      %v5660 = vpop.f32.mrf.mxu0
      %v5661 = vpop.f32.mrf.mxu0
      %v5662 = vadd.f32 0.0, %v5661
      %v5663 = vpop.f32.mrf.mxu0
      %5664 = vmatprep.mubr.bf16.mxu0 0
      %5665 = vmatmul.mubr.bf16.gmra.mxu0 %v5533
      %v5666 = vpop.f32.mrf.mxu0
      %v5667 = vadd.f32 0.0, %v5666
      %v5668 = vpop.f32.mrf.mxu0
      %v5669 = vpop.f32.mrf.mxu0
      %v5670 = vadd.f32 0.0, %v5669
      %v5671 = vpop.f32.mrf.mxu0
      %5672 = vmatprep.mubr.bf16.mxu0 0
      %5673 = vmatmul.mubr.bf16.gmra.mxu0 %v5534
      %v5674 = vpop.f32.mrf.mxu0
      %v5675 = vadd.f32 0.0, %v5674
      %v5676 = vpop.f32.mrf.mxu0
      %v5677 = vpop.f32.mrf.mxu0
      %v5678 = vadd.f32 0.0, %v5677
      %v5679 = vpop.f32.mrf.mxu0
      %5680 = vmatprep.mubr.bf16.mxu0 0
      %5681 = vmatmul.mubr.bf16.gmra.mxu0 %v5535
      %v5682 = vpop.f32.mrf.mxu0
      %v5683 = vadd.f32 0.0, %v5682
      %v5684 = vpop.f32.mrf.mxu0
      %v5685 = vpop.f32.mrf.mxu0
      %v5686 = vadd.f32 0.0, %v5685
      %v5687 = vpop.f32.mrf.mxu0
      %5688 = vdwg.mxu0
      %v5689 = vadd.f32 %v5263, %v5627
      %v5690 = vadd.f32 %v5264, %v5630
      %v5691 = vadd.f32 %v5265, %v5635
      %v5692 = vadd.f32 %v5266, %v5638
      %v5693 = vadd.f32 %v5267, %v5643
      %v5694 = vadd.f32 %v5268, %v5646
      %v5695 = vadd.f32 %v5269, %v5651
      %v5696 = vadd.f32 %v5270, %v5654
      %v5697 = vadd.f32 %v5271, %v5659
      %v5698 = vadd.f32 %v5272, %v5662
      %v5699 = vadd.f32 %v5273, %v5667
      %v5700 = vadd.f32 %v5274, %v5670
      %v5701 = vadd.f32 %v5275, %v5675
      %v5702 = vadd.f32 %v5276, %v5678
      %v5703 = vadd.f32 %v5277, %v5683
      %v5704 = vadd.f32 %v5278, %v5686
      %v5705 = vld [vmem:[%s5036] sm:$0xe]
      %v5706 = vld [vmem:[%s5036 + $0xc] sm:$0xe]
      %v5707 = vld [vmem:[%s5036 + $0x18] sm:$0xe]
      %v5708 = vld [vmem:[%s5036 + $0x24] sm:$0xe]
      %v5709 = vld [vmem:[%s5036 + $0x30] sm:$0xe]
      %v5710 = vld [vmem:[%s5036 + $0x3c] sm:$0xe]
      %v5711 = vld [vmem:[%s5036 + $0x48] sm:$0xe]
      %v5712 = vld [vmem:[%s5036 + $0x54] sm:$0xe]
      %v5737 = vrot.slane %v5705, 5
      %v5738 = vrot.slane %v5737, 4
      %v5739 = vrot.slane %v5280, 5
      %v5740 = vsel %vm1015, %v5738, %v5739
      %v5741 = vrot.slane %v5739, 4
      %v5742 = vrot.slane %v5281, 5
      %v5743 = vsel %vm1015, %v5741, %v5742
      %v5744 = vrot.slane %v5706, 5
      %v5745 = vrot.slane %v5744, 4
      %v5746 = vrot.slane %v5283, 5
      %v5747 = vsel %vm1015, %v5745, %v5746
      %v5748 = vrot.slane %v5746, 4
      %v5749 = vrot.slane %v5284, 5
      %v5750 = vsel %vm1015, %v5748, %v5749
      %v5751 = vrot.slane %v5707, 5
      %v5752 = vrot.slane %v5751, 4
      %v5753 = vrot.slane %v5286, 5
      %v5754 = vsel %vm1015, %v5752, %v5753
      %v5755 = vrot.slane %v5753, 4
      %v5756 = vrot.slane %v5287, 5
      %v5757 = vsel %vm1015, %v5755, %v5756
      %v5758 = vrot.slane %v5708, 5
      %v5759 = vrot.slane %v5758, 4
      %v5760 = vrot.slane %v5289, 5
      %v5761 = vsel %vm1015, %v5759, %v5760
      %v5762 = vrot.slane %v5760, 4
      %v5763 = vrot.slane %v5290, 5
      %v5764 = vsel %vm1015, %v5762, %v5763
      %v5765 = vrot.slane %v5709, 5
      %v5766 = vrot.slane %v5765, 4
      %v5767 = vrot.slane %v5292, 5
      %v5768 = vsel %vm1015, %v5766, %v5767
      %v5769 = vrot.slane %v5767, 4
      %v5770 = vrot.slane %v5293, 5
      %v5771 = vsel %vm1015, %v5769, %v5770
      %v5772 = vrot.slane %v5710, 5
      %v5773 = vrot.slane %v5772, 4
      %v5774 = vrot.slane %v5295, 5
      %v5775 = vsel %vm1015, %v5773, %v5774
      %v5776 = vrot.slane %v5774, 4
      %v5777 = vrot.slane %v5296, 5
      %v5778 = vsel %vm1015, %v5776, %v5777
      %v5779 = vrot.slane %v5711, 5
      %v5780 = vrot.slane %v5779, 4
      %v5781 = vrot.slane %v5298, 5
      %v5782 = vsel %vm1015, %v5780, %v5781
      %v5783 = vrot.slane %v5781, 4
      %v5784 = vrot.slane %v5299, 5
      %v5785 = vsel %vm1015, %v5783, %v5784
      %v5786 = vrot.slane %v5712, 5
      %v5787 = vrot.slane %v5786, 4
      %v5788 = vrot.slane %v5301, 5
      %v5789 = vsel %vm1015, %v5787, %v5788
      %v5790 = vrot.slane %v5788, 4
      %v5791 = vrot.slane %v5302, 5
      %v5792 = vsel %vm1015, %v5790, %v5791
      %s5793 = scalar_lea.vmem %s3, 320
      %v5794 = vld [vmem:[%s5793] sm:$0xf]
      %v5795 = vld [vmem:[%s5793 + $0x4] sm:$0xf]
      %v5796 = vld [vmem:[%s5793 + $0x8] sm:$0xf]
      %v5797 = vld [vmem:[%s5793 + $0xc] sm:$0xf]
      %v5798 = vld [vmem:[%s5793 + $0x10] sm:$0xf]
      %v5799 = vld [vmem:[%s5793 + $0x14] sm:$0xf]
      %v5800 = vld [vmem:[%s5793 + $0x18] sm:$0xf]
      %v5801 = vld [vmem:[%s5793 + $0x1c] sm:$0xf]
      %v5802 = vld [vmem:[%s5793 + $0x20] sm:$0xf]
      %v5803 = vld [vmem:[%s5793 + $0x24] sm:$0xf]
      %v5804 = vld [vmem:[%s5793 + $0x28] sm:$0xf]
      %v5805 = vld [vmem:[%s5793 + $0x2c] sm:$0xf]
      %v5806 = vld [vmem:[%s5793 + $0x30] sm:$0xf]
      %v5807 = vld [vmem:[%s5793 + $0x34] sm:$0xf]
      %v5808 = vld [vmem:[%s5793 + $0x38] sm:$0xf]
      %v5809 = vld [vmem:[%s5793 + $0x3c] sm:$0xf]
      %v5810 = vunpack.c.l.b16 %v5740
      %v5811 = vunpack.c.l.b16 %v5743
      %v5812 = vunpack.c.l.b16 %v5747
      %v5813 = vunpack.c.l.b16 %v5750
      %v5814 = vunpack.c.l.b16 %v5754
      %v5815 = vunpack.c.l.b16 %v5757
      %v5816 = vunpack.c.l.b16 %v5761
      %v5817 = vunpack.c.l.b16 %v5764
      %v5818 = vunpack.c.l.b16 %v5768
      %v5819 = vunpack.c.l.b16 %v5771
      %v5820 = vunpack.c.l.b16 %v5775
      %v5821 = vunpack.c.l.b16 %v5778
      %v5822 = vunpack.c.l.b16 %v5782
      %v5823 = vunpack.c.l.b16 %v5785
      %v5824 = vunpack.c.l.b16 %v5789
      %v5825 = vunpack.c.l.b16 %v5792
      %v5826 = vpack.c.b16 %v5811, %v5810
      %v5827 = vpack.c.b16 %v5813, %v5812
      %v5828 = vpack.c.b16 %v5815, %v5814
      %v5829 = vpack.c.b16 %v5817, %v5816
      %v5830 = vpack.c.b16 %v5819, %v5818
      %v5831 = vpack.c.b16 %v5821, %v5820
      %v5832 = vpack.c.b16 %v5823, %v5822
      %v5833 = vpack.c.b16 %v5825, %v5824
      %v5858 = vunpack.c.l.b16 %v5794
      %v5859 = vunpack.c.l.b16 %v5795
      %v5860 = vunpack.c.l.b16 %v5796
      %v5861 = vunpack.c.l.b16 %v5797
      %v5862 = vunpack.c.l.b16 %v5798
      %v5863 = vunpack.c.l.b16 %v5799
      %v5864 = vunpack.c.l.b16 %v5800
      %v5865 = vunpack.c.l.b16 %v5801
      %v5866 = vunpack.c.l.b16 %v5802
      %v5867 = vunpack.c.l.b16 %v5803
      %v5868 = vunpack.c.l.b16 %v5804
      %v5869 = vunpack.c.l.b16 %v5805
      %v5870 = vunpack.c.l.b16 %v5806
      %v5871 = vunpack.c.l.b16 %v5807
      %v5872 = vunpack.c.l.b16 %v5808
      %v5873 = vunpack.c.l.b16 %v5809
      %v5874 = vpack.c.b16 %v5859, %v5858
      %v5875 = vpack.c.b16 %v5861, %v5860
      %v5876 = vpack.c.b16 %v5863, %v5862
      %v5877 = vpack.c.b16 %v5865, %v5864
      %v5878 = vpack.c.b16 %v5867, %v5866
      %v5879 = vpack.c.b16 %v5869, %v5868
      %v5880 = vpack.c.b16 %v5871, %v5870
      %v5881 = vpack.c.b16 %v5873, %v5872
      %5890 = vmatprep.subr.bf16.mxu0 0
      %5891 = vmatpush1.bf16.msra.mxu0 %v5881
      %5892 = vmatprep.subr.bf16.mxu0 0
      %5893 = vmatpush1.bf16.msra.mxu0 %v5880
      %5894 = vmatprep.subr.bf16.mxu0 0
      %5895 = vmatpush1.bf16.msra.mxu0 %v5879
      %5896 = vmatprep.subr.bf16.mxu0 0
      %5897 = vmatpush1.bf16.msra.mxu0 %v5878
      %5898 = vmatprep.subr.bf16.mxu0 0
      %5899 = vmatpush1.bf16.msra.mxu0 %v5877
      %5900 = vmatprep.subr.bf16.mxu0 0
      %5901 = vmatpush1.bf16.msra.mxu0 %v5876
      %5902 = vmatprep.subr.bf16.mxu0 0
      %5903 = vmatpush1.bf16.msra.mxu0 %v5875
      %5904 = vmatprep.subr.bf16.mxu0 0
      %5905 = vmatpush1.bf16.msra.mxu0 %v5874
      %5906 = vmatprep.subr.bf16.mxu0 0
      %5907 = vmatpush2.bf16.msra.mxu0 0
      %5908 = vmatprep.subr.bf16.mxu0 0
      %5909 = vmatpush2.bf16.msra.mxu0 0
      %5910 = vmatprep.subr.bf16.mxu0 0
      %5911 = vmatpush2.bf16.msra.mxu0 0
      %5912 = vmatprep.subr.bf16.mxu0 0
      %5913 = vmatpush2.bf16.msra.mxu0 0
      %5914 = vmatprep.subr.bf16.mxu0 0
      %5915 = vmatpush2.bf16.msra.mxu0 0
      %5916 = vmatprep.subr.bf16.mxu0 0
      %5917 = vmatpush2.bf16.msra.mxu0 0
      %5918 = vmatprep.subr.bf16.mxu0 0
      %5919 = vmatpush2.bf16.msra.mxu0 0
      %5920 = vmatprep.subr.bf16.mxu0 0
      %5921 = vmatpush2.bf16.msra.mxu0 0
      %5922 = vmatprep.mubr.bf16.mxu0 0
      %5923 = vmatmul.mubr.bf16.gmra.mxu0 %v5826
      %v5924 = vpop.f32.mrf.mxu0
      %v5925 = vadd.f32 0.0, %v5924
      %v5926 = vpop.f32.mrf.mxu0
      %v5927 = vpop.f32.mrf.mxu0
      %v5928 = vadd.f32 0.0, %v5927
      %v5929 = vpop.f32.mrf.mxu0
      %5930 = vmatprep.mubr.bf16.mxu0 0
      %5931 = vmatmul.mubr.bf16.gmra.mxu0 %v5827
      %v5932 = vpop.f32.mrf.mxu0
      %v5933 = vadd.f32 0.0, %v5932
      %v5934 = vpop.f32.mrf.mxu0
      %v5935 = vpop.f32.mrf.mxu0
      %v5936 = vadd.f32 0.0, %v5935
      %v5937 = vpop.f32.mrf.mxu0
      %5938 = vmatprep.mubr.bf16.mxu0 0
      %5939 = vmatmul.mubr.bf16.gmra.mxu0 %v5828
      %v5940 = vpop.f32.mrf.mxu0
      %v5941 = vadd.f32 0.0, %v5940
      %v5942 = vpop.f32.mrf.mxu0
      %v5943 = vpop.f32.mrf.mxu0
      %v5944 = vadd.f32 0.0, %v5943
      %v5945 = vpop.f32.mrf.mxu0
      %5946 = vmatprep.mubr.bf16.mxu0 0
      %5947 = vmatmul.mubr.bf16.gmra.mxu0 %v5829
      %v5948 = vpop.f32.mrf.mxu0
      %v5949 = vadd.f32 0.0, %v5948
      %v5950 = vpop.f32.mrf.mxu0
      %v5951 = vpop.f32.mrf.mxu0
      %v5952 = vadd.f32 0.0, %v5951
      %v5953 = vpop.f32.mrf.mxu0
      %5954 = vmatprep.mubr.bf16.mxu0 0
      %5955 = vmatmul.mubr.bf16.gmra.mxu0 %v5830
      %v5956 = vpop.f32.mrf.mxu0
      %v5957 = vadd.f32 0.0, %v5956
      %v5958 = vpop.f32.mrf.mxu0
      %v5959 = vpop.f32.mrf.mxu0
      %v5960 = vadd.f32 0.0, %v5959
      %v5961 = vpop.f32.mrf.mxu0
      %5962 = vmatprep.mubr.bf16.mxu0 0
      %5963 = vmatmul.mubr.bf16.gmra.mxu0 %v5831
      %v5964 = vpop.f32.mrf.mxu0
      %v5965 = vadd.f32 0.0, %v5964
      %v5966 = vpop.f32.mrf.mxu0
      %v5967 = vpop.f32.mrf.mxu0
      %v5968 = vadd.f32 0.0, %v5967
      %v5969 = vpop.f32.mrf.mxu0
      %5970 = vmatprep.mubr.bf16.mxu0 0
      %5971 = vmatmul.mubr.bf16.gmra.mxu0 %v5832
      %v5972 = vpop.f32.mrf.mxu0
      %v5973 = vadd.f32 0.0, %v5972
      %v5974 = vpop.f32.mrf.mxu0
      %v5975 = vpop.f32.mrf.mxu0
      %v5976 = vadd.f32 0.0, %v5975
      %v5977 = vpop.f32.mrf.mxu0
      %5978 = vmatprep.mubr.bf16.mxu0 0
      %5979 = vmatmul.mubr.bf16.gmra.mxu0 %v5833
      %v5980 = vpop.f32.mrf.mxu0
      %v5981 = vadd.f32 0.0, %v5980
      %v5982 = vpop.f32.mrf.mxu0
      %v5983 = vpop.f32.mrf.mxu0
      %v5984 = vadd.f32 0.0, %v5983
      %v5985 = vpop.f32.mrf.mxu0
      %5986 = vdwg.mxu0
      %v5987 = vadd.f32 %v5689, %v5925
      %v5988 = vadd.f32 %v5690, %v5928
      %v5989 = vadd.f32 %v5691, %v5933
      %v5990 = vadd.f32 %v5692, %v5936
      %v5991 = vadd.f32 %v5693, %v5941
      %v5992 = vadd.f32 %v5694, %v5944
      %v5993 = vadd.f32 %v5695, %v5949
      %v5994 = vadd.f32 %v5696, %v5952
      %v5995 = vadd.f32 %v5697, %v5957
      %v5996 = vadd.f32 %v5698, %v5960
      %v5997 = vadd.f32 %v5699, %v5965
      %v5998 = vadd.f32 %v5700, %v5968
      %v5999 = vadd.f32 %v5701, %v5973
      %v6000 = vadd.f32 %v5702, %v5976
      %v6001 = vadd.f32 %v5703, %v5981
      %v6002 = vadd.f32 %v5704, %v5984
      %s6003 = scalar_lea.vmem [#allocation2], 24
      %v6004 = vld [vmem:[%s6003] sm:$0xf]
      %v6005 = vld [vmem:[%s6003 + $0x4] sm:$0xf]
      %v6006 = vld [vmem:[%s6003 + $0xc] sm:$0xf]
      %v6007 = vld [vmem:[%s6003 + $0x10] sm:$0xf]
      %v6008 = vld [vmem:[%s6003 + $0x18] sm:$0xf]
      %v6009 = vld [vmem:[%s6003 + $0x1c] sm:$0xf]
      %v6010 = vld [vmem:[%s6003 + $0x24] sm:$0xf]
      %v6011 = vld [vmem:[%s6003 + $0x28] sm:$0xf]
      %v6012 = vld [vmem:[%s6003 + $0x30] sm:$0xf]
      %v6013 = vld [vmem:[%s6003 + $0x34] sm:$0xf]
      %v6014 = vld [vmem:[%s6003 + $0x3c] sm:$0xf]
      %v6015 = vld [vmem:[%s6003 + $0x40] sm:$0xf]
      %v6016 = vld [vmem:[%s6003 + $0x48] sm:$0xf]
      %v6017 = vld [vmem:[%s6003 + $0x4c] sm:$0xf]
      %v6018 = vld [vmem:[%s6003 + $0x54] sm:$0xf]
      %v6019 = vld [vmem:[%s6003 + $0x58] sm:$0xf]
      %s6020 = scalar_lea.vmem %s3, 384
      %v6021 = vld [vmem:[%s6020] sm:$0xf]
      %v6022 = vld [vmem:[%s6020 + $0x4] sm:$0xf]
      %v6023 = vld [vmem:[%s6020 + $0x8] sm:$0xf]
      %v6024 = vld [vmem:[%s6020 + $0xc] sm:$0xf]
      %v6025 = vld [vmem:[%s6020 + $0x10] sm:$0xf]
      %v6026 = vld [vmem:[%s6020 + $0x14] sm:$0xf]
      %v6027 = vld [vmem:[%s6020 + $0x18] sm:$0xf]
      %v6028 = vld [vmem:[%s6020 + $0x1c] sm:$0xf]
      %v6029 = vld [vmem:[%s6020 + $0x20] sm:$0xf]
      %v6030 = vld [vmem:[%s6020 + $0x24] sm:$0xf]
      %v6031 = vld [vmem:[%s6020 + $0x28] sm:$0xf]
      %v6032 = vld [vmem:[%s6020 + $0x2c] sm:$0xf]
      %v6033 = vld [vmem:[%s6020 + $0x30] sm:$0xf]
      %v6034 = vld [vmem:[%s6020 + $0x34] sm:$0xf]
      %v6035 = vld [vmem:[%s6020 + $0x38] sm:$0xf]
      %v6036 = vld [vmem:[%s6020 + $0x3c] sm:$0xf]
      %v6053 = vunpack.c.l.b16 %v6004
      %v6054 = vunpack.c.l.b16 %v6005
      %v6055 = vunpack.c.l.b16 %v6006
      %v6056 = vunpack.c.l.b16 %v6007
      %v6057 = vunpack.c.l.b16 %v6008
      %v6058 = vunpack.c.l.b16 %v6009
      %v6059 = vunpack.c.l.b16 %v6010
      %v6060 = vunpack.c.l.b16 %v6011
      %v6061 = vunpack.c.l.b16 %v6012
      %v6062 = vunpack.c.l.b16 %v6013
      %v6063 = vunpack.c.l.b16 %v6014
      %v6064 = vunpack.c.l.b16 %v6015
      %v6065 = vunpack.c.l.b16 %v6016
      %v6066 = vunpack.c.l.b16 %v6017
      %v6067 = vunpack.c.l.b16 %v6018
      %v6068 = vunpack.c.l.b16 %v6019
      %v6069 = vpack.c.b16 %v6054, %v6053
      %v6070 = vpack.c.b16 %v6056, %v6055
      %v6071 = vpack.c.b16 %v6058, %v6057
      %v6072 = vpack.c.b16 %v6060, %v6059
      %v6073 = vpack.c.b16 %v6062, %v6061
      %v6074 = vpack.c.b16 %v6064, %v6063
      %v6075 = vpack.c.b16 %v6066, %v6065
      %v6076 = vpack.c.b16 %v6068, %v6067
      %v6101 = vunpack.c.l.b16 %v6021
      %v6102 = vunpack.c.l.b16 %v6022
      %v6103 = vunpack.c.l.b16 %v6023
      %v6104 = vunpack.c.l.b16 %v6024
      %v6105 = vunpack.c.l.b16 %v6025
      %v6106 = vunpack.c.l.b16 %v6026
      %v6107 = vunpack.c.l.b16 %v6027
      %v6108 = vunpack.c.l.b16 %v6028
      %v6109 = vunpack.c.l.b16 %v6029
      %v6110 = vunpack.c.l.b16 %v6030
      %v6111 = vunpack.c.l.b16 %v6031
      %v6112 = vunpack.c.l.b16 %v6032
      %v6113 = vunpack.c.l.b16 %v6033
      %v6114 = vunpack.c.l.b16 %v6034
      %v6115 = vunpack.c.l.b16 %v6035
      %v6116 = vunpack.c.l.b16 %v6036
      %v6117 = vpack.c.b16 %v6102, %v6101
      %v6118 = vpack.c.b16 %v6104, %v6103
      %v6119 = vpack.c.b16 %v6106, %v6105
      %v6120 = vpack.c.b16 %v6108, %v6107
      %v6121 = vpack.c.b16 %v6110, %v6109
      %v6122 = vpack.c.b16 %v6112, %v6111
      %v6123 = vpack.c.b16 %v6114, %v6113
      %v6124 = vpack.c.b16 %v6116, %v6115
      %6133 = vmatprep.subr.bf16.mxu0 0
      %6134 = vmatpush1.bf16.msra.mxu0 %v6124
      %6135 = vmatprep.subr.bf16.mxu0 0
      %6136 = vmatpush1.bf16.msra.mxu0 %v6123
      %6137 = vmatprep.subr.bf16.mxu0 0
      %6138 = vmatpush1.bf16.msra.mxu0 %v6122
      %6139 = vmatprep.subr.bf16.mxu0 0
      %6140 = vmatpush1.bf16.msra.mxu0 %v6121
      %6141 = vmatprep.subr.bf16.mxu0 0
      %6142 = vmatpush1.bf16.msra.mxu0 %v6120
      %6143 = vmatprep.subr.bf16.mxu0 0
      %6144 = vmatpush1.bf16.msra.mxu0 %v6119
      %6145 = vmatprep.subr.bf16.mxu0 0
      %6146 = vmatpush1.bf16.msra.mxu0 %v6118
      %6147 = vmatprep.subr.bf16.mxu0 0
      %6148 = vmatpush1.bf16.msra.mxu0 %v6117
      %6149 = vmatprep.subr.bf16.mxu0 0
      %6150 = vmatpush2.bf16.msra.mxu0 0
      %6151 = vmatprep.subr.bf16.mxu0 0
      %6152 = vmatpush2.bf16.msra.mxu0 0
      %6153 = vmatprep.subr.bf16.mxu0 0
      %6154 = vmatpush2.bf16.msra.mxu0 0
      %6155 = vmatprep.subr.bf16.mxu0 0
      %6156 = vmatpush2.bf16.msra.mxu0 0
      %6157 = vmatprep.subr.bf16.mxu0 0
      %6158 = vmatpush2.bf16.msra.mxu0 0
      %6159 = vmatprep.subr.bf16.mxu0 0
      %6160 = vmatpush2.bf16.msra.mxu0 0
      %6161 = vmatprep.subr.bf16.mxu0 0
      %6162 = vmatpush2.bf16.msra.mxu0 0
      %6163 = vmatprep.subr.bf16.mxu0 0
      %6164 = vmatpush2.bf16.msra.mxu0 0
      %6165 = vmatprep.mubr.bf16.mxu0 0
      %6166 = vmatmul.mubr.bf16.gmra.mxu0 %v6069
      %v6167 = vpop.f32.mrf.mxu0
      %v6168 = vadd.f32 0.0, %v6167
      %v6169 = vpop.f32.mrf.mxu0
      %v6170 = vpop.f32.mrf.mxu0
      %v6171 = vadd.f32 0.0, %v6170
      %v6172 = vpop.f32.mrf.mxu0
      %6173 = vmatprep.mubr.bf16.mxu0 0
      %6174 = vmatmul.mubr.bf16.gmra.mxu0 %v6070
      %v6175 = vpop.f32.mrf.mxu0
      %v6176 = vadd.f32 0.0, %v6175
      %v6177 = vpop.f32.mrf.mxu0
      %v6178 = vpop.f32.mrf.mxu0
      %v6179 = vadd.f32 0.0, %v6178
      %v6180 = vpop.f32.mrf.mxu0
      %6181 = vmatprep.mubr.bf16.mxu0 0
      %6182 = vmatmul.mubr.bf16.gmra.mxu0 %v6071
      %v6183 = vpop.f32.mrf.mxu0
      %v6184 = vadd.f32 0.0, %v6183
      %v6185 = vpop.f32.mrf.mxu0
      %v6186 = vpop.f32.mrf.mxu0
      %v6187 = vadd.f32 0.0, %v6186
      %v6188 = vpop.f32.mrf.mxu0
      %6189 = vmatprep.mubr.bf16.mxu0 0
      %6190 = vmatmul.mubr.bf16.gmra.mxu0 %v6072
      %v6191 = vpop.f32.mrf.mxu0
      %v6192 = vadd.f32 0.0, %v6191
      %v6193 = vpop.f32.mrf.mxu0
      %v6194 = vpop.f32.mrf.mxu0
      %v6195 = vadd.f32 0.0, %v6194
      %v6196 = vpop.f32.mrf.mxu0
      %6197 = vmatprep.mubr.bf16.mxu0 0
      %6198 = vmatmul.mubr.bf16.gmra.mxu0 %v6073
      %v6199 = vpop.f32.mrf.mxu0
      %v6200 = vadd.f32 0.0, %v6199
      %v6201 = vpop.f32.mrf.mxu0
      %v6202 = vpop.f32.mrf.mxu0
      %v6203 = vadd.f32 0.0, %v6202
      %v6204 = vpop.f32.mrf.mxu0
      %6205 = vmatprep.mubr.bf16.mxu0 0
      %6206 = vmatmul.mubr.bf16.gmra.mxu0 %v6074
      %v6207 = vpop.f32.mrf.mxu0
      %v6208 = vadd.f32 0.0, %v6207
      %v6209 = vpop.f32.mrf.mxu0
      %v6210 = vpop.f32.mrf.mxu0
      %v6211 = vadd.f32 0.0, %v6210
      %v6212 = vpop.f32.mrf.mxu0
      %6213 = vmatprep.mubr.bf16.mxu0 0
      %6214 = vmatmul.mubr.bf16.gmra.mxu0 %v6075
      %v6215 = vpop.f32.mrf.mxu0
      %v6216 = vadd.f32 0.0, %v6215
      %v6217 = vpop.f32.mrf.mxu0
      %v6218 = vpop.f32.mrf.mxu0
      %v6219 = vadd.f32 0.0, %v6218
      %v6220 = vpop.f32.mrf.mxu0
      %6221 = vmatprep.mubr.bf16.mxu0 0
      %6222 = vmatmul.mubr.bf16.gmra.mxu0 %v6076
      %v6223 = vpop.f32.mrf.mxu0
      %v6224 = vadd.f32 0.0, %v6223
      %v6225 = vpop.f32.mrf.mxu0
      %v6226 = vpop.f32.mrf.mxu0
      %v6227 = vadd.f32 0.0, %v6226
      %v6228 = vpop.f32.mrf.mxu0
      %6229 = vdwg.mxu0
      %v6230 = vadd.f32 %v5987, %v6168
      %v6231 = vadd.f32 %v5988, %v6171
      %v6232 = vadd.f32 %v5989, %v6176
      %v6233 = vadd.f32 %v5990, %v6179
      %v6234 = vadd.f32 %v5991, %v6184
      %v6235 = vadd.f32 %v5992, %v6187
      %v6236 = vadd.f32 %v5993, %v6192
      %v6237 = vadd.f32 %v5994, %v6195
      %v6238 = vadd.f32 %v5995, %v6200
      %v6239 = vadd.f32 %v5996, %v6203
      %v6240 = vadd.f32 %v5997, %v6208
      %v6241 = vadd.f32 %v5998, %v6211
      %v6242 = vadd.f32 %v5999, %v6216
      %v6243 = vadd.f32 %v6000, %v6219
      %v6244 = vadd.f32 %v6001, %v6224
      %v6245 = vadd.f32 %v6002, %v6227
      %v6246 = vld [vmem:[%s6003] sm:$0xf]
      %v6247 = vld [vmem:[%s6003 + $0x4] sm:$0xf]
      %v6248 = vld [vmem:[%s6003 + $0x8] sm:$0x1]
      %v6249 = vld [vmem:[%s6003 + $0xc] sm:$0xf]
      %v6250 = vld [vmem:[%s6003 + $0x10] sm:$0xf]
      %v6251 = vld [vmem:[%s6003 + $0x14] sm:$0x1]
      %v6252 = vld [vmem:[%s6003 + $0x18] sm:$0xf]
      %v6253 = vld [vmem:[%s6003 + $0x1c] sm:$0xf]
      %v6254 = vld [vmem:[%s6003 + $0x20] sm:$0x1]
      %v6255 = vld [vmem:[%s6003 + $0x24] sm:$0xf]
      %v6256 = vld [vmem:[%s6003 + $0x28] sm:$0xf]
      %v6257 = vld [vmem:[%s6003 + $0x2c] sm:$0x1]
      %v6258 = vld [vmem:[%s6003 + $0x30] sm:$0xf]
      %v6259 = vld [vmem:[%s6003 + $0x34] sm:$0xf]
      %v6260 = vld [vmem:[%s6003 + $0x38] sm:$0x1]
      %v6261 = vld [vmem:[%s6003 + $0x3c] sm:$0xf]
      %v6262 = vld [vmem:[%s6003 + $0x40] sm:$0xf]
      %v6263 = vld [vmem:[%s6003 + $0x44] sm:$0x1]
      %v6264 = vld [vmem:[%s6003 + $0x48] sm:$0xf]
      %v6265 = vld [vmem:[%s6003 + $0x4c] sm:$0xf]
      %v6266 = vld [vmem:[%s6003 + $0x50] sm:$0x1]
      %v6267 = vld [vmem:[%s6003 + $0x54] sm:$0xf]
      %v6268 = vld [vmem:[%s6003 + $0x58] sm:$0xf]
      %v6269 = vld [vmem:[%s6003 + $0x5c] sm:$0x1]
      %v6271 = vshrl.u32 %v6246, 16
      %v6273 = vrot.slane %v6271, 4
      %v6274 = vshll.u32 %v6246, 16
      %v6276 = vrot.slane %v6274, 5
      %v6277 = vor.u32 %v6273, %v6276
      %v6278 = vrot.slane %v6277, 4
      %v6280 = vshll.u32 %v6247, 16
      %v6282 = vrot.slane %v6280, 5
      %v6283 = vsel %vm303, %v6278, %v6282
      %v6284 = vshrl.u32 %v6247, 16
      %v6286 = vrot.slane %v6284, 4
      %v6287 = vor.u32 %v6286, %v6282
      %v6288 = vrot.slane %v6287, 4
      %v6290 = vshll.u32 %v6248, 16
      %v6292 = vrot.slane %v6290, 5
      %v6293 = vsel %vm303, %v6288, %v6292
      %v6295 = vshrl.u32 %v6249, 16
      %v6297 = vrot.slane %v6295, 4
      %v6298 = vshll.u32 %v6249, 16
      %v6300 = vrot.slane %v6298, 5
      %v6301 = vor.u32 %v6297, %v6300
      %v6302 = vrot.slane %v6301, 4
      %v6304 = vshll.u32 %v6250, 16
      %v6306 = vrot.slane %v6304, 5
      %v6307 = vsel %vm303, %v6302, %v6306
      %v6308 = vshrl.u32 %v6250, 16
      %v6310 = vrot.slane %v6308, 4
      %v6311 = vor.u32 %v6310, %v6306
      %v6312 = vrot.slane %v6311, 4
      %v6314 = vshll.u32 %v6251, 16
      %v6316 = vrot.slane %v6314, 5
      %v6317 = vsel %vm303, %v6312, %v6316
      %v6319 = vshrl.u32 %v6252, 16
      %v6321 = vrot.slane %v6319, 4
      %v6322 = vshll.u32 %v6252, 16
      %v6324 = vrot.slane %v6322, 5
      %v6325 = vor.u32 %v6321, %v6324
      %v6326 = vrot.slane %v6325, 4
      %v6328 = vshll.u32 %v6253, 16
      %v6330 = vrot.slane %v6328, 5
      %v6331 = vsel %vm303, %v6326, %v6330
      %v6332 = vshrl.u32 %v6253, 16
      %v6334 = vrot.slane %v6332, 4
      %v6335 = vor.u32 %v6334, %v6330
      %v6336 = vrot.slane %v6335, 4
      %v6338 = vshll.u32 %v6254, 16
      %v6340 = vrot.slane %v6338, 5
      %v6341 = vsel %vm303, %v6336, %v6340
      %v6343 = vshrl.u32 %v6255, 16
      %v6345 = vrot.slane %v6343, 4
      %v6346 = vshll.u32 %v6255, 16
      %v6348 = vrot.slane %v6346, 5
      %v6349 = vor.u32 %v6345, %v6348
      %v6350 = vrot.slane %v6349, 4
      %v6352 = vshll.u32 %v6256, 16
      %v6354 = vrot.slane %v6352, 5
      %v6355 = vsel %vm303, %v6350, %v6354
      %v6356 = vshrl.u32 %v6256, 16
      %v6358 = vrot.slane %v6356, 4
      %v6359 = vor.u32 %v6358, %v6354
      %v6360 = vrot.slane %v6359, 4
      %v6362 = vshll.u32 %v6257, 16
      %v6364 = vrot.slane %v6362, 5
      %v6365 = vsel %vm303, %v6360, %v6364
      %v6367 = vshrl.u32 %v6258, 16
      %v6369 = vrot.slane %v6367, 4
      %v6370 = vshll.u32 %v6258, 16
      %v6372 = vrot.slane %v6370, 5
      %v6373 = vor.u32 %v6369, %v6372
      %v6374 = vrot.slane %v6373, 4
      %v6376 = vshll.u32 %v6259, 16
      %v6378 = vrot.slane %v6376, 5
      %v6379 = vsel %vm303, %v6374, %v6378
      %v6380 = vshrl.u32 %v6259, 16
      %v6382 = vrot.slane %v6380, 4
      %v6383 = vor.u32 %v6382, %v6378
      %v6384 = vrot.slane %v6383, 4
      %v6386 = vshll.u32 %v6260, 16
      %v6388 = vrot.slane %v6386, 5
      %v6389 = vsel %vm303, %v6384, %v6388
      %v6391 = vshrl.u32 %v6261, 16
      %v6393 = vrot.slane %v6391, 4
      %v6394 = vshll.u32 %v6261, 16
      %v6396 = vrot.slane %v6394, 5
      %v6397 = vor.u32 %v6393, %v6396
      %v6398 = vrot.slane %v6397, 4
      %v6400 = vshll.u32 %v6262, 16
      %v6402 = vrot.slane %v6400, 5
      %v6403 = vsel %vm303, %v6398, %v6402
      %v6404 = vshrl.u32 %v6262, 16
      %v6406 = vrot.slane %v6404, 4
      %v6407 = vor.u32 %v6406, %v6402
      %v6408 = vrot.slane %v6407, 4
      %v6410 = vshll.u32 %v6263, 16
      %v6412 = vrot.slane %v6410, 5
      %v6413 = vsel %vm303, %v6408, %v6412
      %v6415 = vshrl.u32 %v6264, 16
      %v6417 = vrot.slane %v6415, 4
      %v6418 = vshll.u32 %v6264, 16
      %v6420 = vrot.slane %v6418, 5
      %v6421 = vor.u32 %v6417, %v6420
      %v6422 = vrot.slane %v6421, 4
      %v6424 = vshll.u32 %v6265, 16
      %v6426 = vrot.slane %v6424, 5
      %v6427 = vsel %vm303, %v6422, %v6426
      %v6428 = vshrl.u32 %v6265, 16
      %v6430 = vrot.slane %v6428, 4
      %v6431 = vor.u32 %v6430, %v6426
      %v6432 = vrot.slane %v6431, 4
      %v6434 = vshll.u32 %v6266, 16
      %v6436 = vrot.slane %v6434, 5
      %v6437 = vsel %vm303, %v6432, %v6436
      %v6439 = vshrl.u32 %v6267, 16
      %v6441 = vrot.slane %v6439, 4
      %v6442 = vshll.u32 %v6267, 16
      %v6444 = vrot.slane %v6442, 5
      %v6445 = vor.u32 %v6441, %v6444
      %v6446 = vrot.slane %v6445, 4
      %v6448 = vshll.u32 %v6268, 16
      %v6450 = vrot.slane %v6448, 5
      %v6451 = vsel %vm303, %v6446, %v6450
      %v6452 = vshrl.u32 %v6268, 16
      %v6454 = vrot.slane %v6452, 4
      %v6455 = vor.u32 %v6454, %v6450
      %v6456 = vrot.slane %v6455, 4
      %v6458 = vshll.u32 %v6269, 16
      %v6460 = vrot.slane %v6458, 5
      %v6461 = vsel %vm303, %v6456, %v6460
      %s6462 = scalar_lea.vmem %s3, 448
      %v6463 = vld [vmem:[%s6462] sm:$0xf]
      %v6464 = vld [vmem:[%s6462 + $0x4] sm:$0xf]
      %v6465 = vld [vmem:[%s6462 + $0x8] sm:$0xf]
      %v6466 = vld [vmem:[%s6462 + $0xc] sm:$0xf]
      %v6467 = vld [vmem:[%s6462 + $0x10] sm:$0xf]
      %v6468 = vld [vmem:[%s6462 + $0x14] sm:$0xf]
      %v6469 = vld [vmem:[%s6462 + $0x18] sm:$0xf]
      %v6470 = vld [vmem:[%s6462 + $0x1c] sm:$0xf]
      %v6471 = vld [vmem:[%s6462 + $0x20] sm:$0xf]
      %v6472 = vld [vmem:[%s6462 + $0x24] sm:$0xf]
      %v6473 = vld [vmem:[%s6462 + $0x28] sm:$0xf]
      %v6474 = vld [vmem:[%s6462 + $0x2c] sm:$0xf]
      %v6475 = vld [vmem:[%s6462 + $0x30] sm:$0xf]
      %v6476 = vld [vmem:[%s6462 + $0x34] sm:$0xf]
      %v6477 = vld [vmem:[%s6462 + $0x38] sm:$0xf]
      %v6478 = vld [vmem:[%s6462 + $0x3c] sm:$0xf]
      %v6479 = vunpack.c.l.b16 %v6283
      %v6480 = vunpack.c.l.b16 %v6293
      %v6481 = vunpack.c.l.b16 %v6307
      %v6482 = vunpack.c.l.b16 %v6317
      %v6483 = vunpack.c.l.b16 %v6331
      %v6484 = vunpack.c.l.b16 %v6341
      %v6485 = vunpack.c.l.b16 %v6355
      %v6486 = vunpack.c.l.b16 %v6365
      %v6487 = vunpack.c.l.b16 %v6379
      %v6488 = vunpack.c.l.b16 %v6389
      %v6489 = vunpack.c.l.b16 %v6403
      %v6490 = vunpack.c.l.b16 %v6413
      %v6491 = vunpack.c.l.b16 %v6427
      %v6492 = vunpack.c.l.b16 %v6437
      %v6493 = vunpack.c.l.b16 %v6451
      %v6494 = vunpack.c.l.b16 %v6461
      %v6495 = vpack.c.b16 %v6480, %v6479
      %v6496 = vpack.c.b16 %v6482, %v6481
      %v6497 = vpack.c.b16 %v6484, %v6483
      %v6498 = vpack.c.b16 %v6486, %v6485
      %v6499 = vpack.c.b16 %v6488, %v6487
      %v6500 = vpack.c.b16 %v6490, %v6489
      %v6501 = vpack.c.b16 %v6492, %v6491
      %v6502 = vpack.c.b16 %v6494, %v6493
      %v6527 = vunpack.c.l.b16 %v6463
      %v6528 = vunpack.c.l.b16 %v6464
      %v6529 = vunpack.c.l.b16 %v6465
      %v6530 = vunpack.c.l.b16 %v6466
      %v6531 = vunpack.c.l.b16 %v6467
      %v6532 = vunpack.c.l.b16 %v6468
      %v6533 = vunpack.c.l.b16 %v6469
      %v6534 = vunpack.c.l.b16 %v6470
      %v6535 = vunpack.c.l.b16 %v6471
      %v6536 = vunpack.c.l.b16 %v6472
      %v6537 = vunpack.c.l.b16 %v6473
      %v6538 = vunpack.c.l.b16 %v6474
      %v6539 = vunpack.c.l.b16 %v6475
      %v6540 = vunpack.c.l.b16 %v6476
      %v6541 = vunpack.c.l.b16 %v6477
      %v6542 = vunpack.c.l.b16 %v6478
      %v6543 = vpack.c.b16 %v6528, %v6527
      %v6544 = vpack.c.b16 %v6530, %v6529
      %v6545 = vpack.c.b16 %v6532, %v6531
      %v6546 = vpack.c.b16 %v6534, %v6533
      %v6547 = vpack.c.b16 %v6536, %v6535
      %v6548 = vpack.c.b16 %v6538, %v6537
      %v6549 = vpack.c.b16 %v6540, %v6539
      %v6550 = vpack.c.b16 %v6542, %v6541
      %6559 = vmatprep.subr.bf16.mxu0 0
      %6560 = vmatpush1.bf16.msra.mxu0 %v6550
      %6561 = vmatprep.subr.bf16.mxu0 0
      %6562 = vmatpush1.bf16.msra.mxu0 %v6549
      %6563 = vmatprep.subr.bf16.mxu0 0
      %6564 = vmatpush1.bf16.msra.mxu0 %v6548
      %6565 = vmatprep.subr.bf16.mxu0 0
      %6566 = vmatpush1.bf16.msra.mxu0 %v6547
      %6567 = vmatprep.subr.bf16.mxu0 0
      %6568 = vmatpush1.bf16.msra.mxu0 %v6546
      %6569 = vmatprep.subr.bf16.mxu0 0
      %6570 = vmatpush1.bf16.msra.mxu0 %v6545
      %6571 = vmatprep.subr.bf16.mxu0 0
      %6572 = vmatpush1.bf16.msra.mxu0 %v6544
      %6573 = vmatprep.subr.bf16.mxu0 0
      %6574 = vmatpush1.bf16.msra.mxu0 %v6543
      %6575 = vmatprep.subr.bf16.mxu0 0
      %6576 = vmatpush2.bf16.msra.mxu0 0
      %6577 = vmatprep.subr.bf16.mxu0 0
      %6578 = vmatpush2.bf16.msra.mxu0 0
      %6579 = vmatprep.subr.bf16.mxu0 0
      %6580 = vmatpush2.bf16.msra.mxu0 0
      %6581 = vmatprep.subr.bf16.mxu0 0
      %6582 = vmatpush2.bf16.msra.mxu0 0
      %6583 = vmatprep.subr.bf16.mxu0 0
      %6584 = vmatpush2.bf16.msra.mxu0 0
      %6585 = vmatprep.subr.bf16.mxu0 0
      %6586 = vmatpush2.bf16.msra.mxu0 0
      %6587 = vmatprep.subr.bf16.mxu0 0
      %6588 = vmatpush2.bf16.msra.mxu0 0
      %6589 = vmatprep.subr.bf16.mxu0 0
      %6590 = vmatpush2.bf16.msra.mxu0 0
      %6591 = vmatprep.mubr.bf16.mxu0 0
      %6592 = vmatmul.mubr.bf16.gmra.mxu0 %v6495
      %v6593 = vpop.f32.mrf.mxu0
      %v6594 = vadd.f32 0.0, %v6593
      %v6595 = vpop.f32.mrf.mxu0
      %v6596 = vpop.f32.mrf.mxu0
      %v6597 = vadd.f32 0.0, %v6596
      %v6598 = vpop.f32.mrf.mxu0
      %6599 = vmatprep.mubr.bf16.mxu0 0
      %6600 = vmatmul.mubr.bf16.gmra.mxu0 %v6496
      %v6601 = vpop.f32.mrf.mxu0
      %v6602 = vadd.f32 0.0, %v6601
      %v6603 = vpop.f32.mrf.mxu0
      %v6604 = vpop.f32.mrf.mxu0
      %v6605 = vadd.f32 0.0, %v6604
      %v6606 = vpop.f32.mrf.mxu0
      %6607 = vmatprep.mubr.bf16.mxu0 0
      %6608 = vmatmul.mubr.bf16.gmra.mxu0 %v6497
      %v6609 = vpop.f32.mrf.mxu0
      %v6610 = vadd.f32 0.0, %v6609
      %v6611 = vpop.f32.mrf.mxu0
      %v6612 = vpop.f32.mrf.mxu0
      %v6613 = vadd.f32 0.0, %v6612
      %v6614 = vpop.f32.mrf.mxu0
      %6615 = vmatprep.mubr.bf16.mxu0 0
      %6616 = vmatmul.mubr.bf16.gmra.mxu0 %v6498
      %v6617 = vpop.f32.mrf.mxu0
      %v6618 = vadd.f32 0.0, %v6617
      %v6619 = vpop.f32.mrf.mxu0
      %v6620 = vpop.f32.mrf.mxu0
      %v6621 = vadd.f32 0.0, %v6620
      %v6622 = vpop.f32.mrf.mxu0
      %6623 = vmatprep.mubr.bf16.mxu0 0
      %6624 = vmatmul.mubr.bf16.gmra.mxu0 %v6499
      %v6625 = vpop.f32.mrf.mxu0
      %v6626 = vadd.f32 0.0, %v6625
      %v6627 = vpop.f32.mrf.mxu0
      %v6628 = vpop.f32.mrf.mxu0
      %v6629 = vadd.f32 0.0, %v6628
      %v6630 = vpop.f32.mrf.mxu0
      %6631 = vmatprep.mubr.bf16.mxu0 0
      %6632 = vmatmul.mubr.bf16.gmra.mxu0 %v6500
      %v6633 = vpop.f32.mrf.mxu0
      %v6634 = vadd.f32 0.0, %v6633
      %v6635 = vpop.f32.mrf.mxu0
      %v6636 = vpop.f32.mrf.mxu0
      %v6637 = vadd.f32 0.0, %v6636
      %v6638 = vpop.f32.mrf.mxu0
      %6639 = vmatprep.mubr.bf16.mxu0 0
      %6640 = vmatmul.mubr.bf16.gmra.mxu0 %v6501
      %v6641 = vpop.f32.mrf.mxu0
      %v6642 = vadd.f32 0.0, %v6641
      %v6643 = vpop.f32.mrf.mxu0
      %v6644 = vpop.f32.mrf.mxu0
      %v6645 = vadd.f32 0.0, %v6644
      %v6646 = vpop.f32.mrf.mxu0
      %6647 = vmatprep.mubr.bf16.mxu0 0
      %6648 = vmatmul.mubr.bf16.gmra.mxu0 %v6502
      %v6649 = vpop.f32.mrf.mxu0
      %v6650 = vadd.f32 0.0, %v6649
      %v6651 = vpop.f32.mrf.mxu0
      %v6652 = vpop.f32.mrf.mxu0
      %v6653 = vadd.f32 0.0, %v6652
      %v6654 = vpop.f32.mrf.mxu0
      %6655 = vdwg.mxu0
      %v6656 = vadd.f32 %v6230, %v6594
      %v6657 = vadd.f32 %v6231, %v6597
      %v6658 = vadd.f32 %v6232, %v6602
      %v6659 = vadd.f32 %v6233, %v6605
      %v6660 = vadd.f32 %v6234, %v6610
      %v6661 = vadd.f32 %v6235, %v6613
      %v6662 = vadd.f32 %v6236, %v6618
      %v6663 = vadd.f32 %v6237, %v6621
      %v6664 = vadd.f32 %v6238, %v6626
      %v6665 = vadd.f32 %v6239, %v6629
      %v6666 = vadd.f32 %v6240, %v6634
      %v6667 = vadd.f32 %v6241, %v6637
      %v6668 = vadd.f32 %v6242, %v6642
      %v6669 = vadd.f32 %v6243, %v6645
      %v6670 = vadd.f32 %v6244, %v6650
      %v6671 = vadd.f32 %v6245, %v6653
      %v6672 = vld [vmem:[%s6003] sm:$0xe]
      %v6673 = vld [vmem:[%s6003 + $0xc] sm:$0xe]
      %v6674 = vld [vmem:[%s6003 + $0x18] sm:$0xe]
      %v6675 = vld [vmem:[%s6003 + $0x24] sm:$0xe]
      %v6676 = vld [vmem:[%s6003 + $0x30] sm:$0xe]
      %v6677 = vld [vmem:[%s6003 + $0x3c] sm:$0xe]
      %v6678 = vld [vmem:[%s6003 + $0x48] sm:$0xe]
      %v6679 = vld [vmem:[%s6003 + $0x54] sm:$0xe]
      %v6704 = vrot.slane %v6672, 5
      %v6705 = vrot.slane %v6704, 4
      %v6706 = vrot.slane %v6247, 5
      %v6707 = vsel %vm1015, %v6705, %v6706
      %v6708 = vrot.slane %v6706, 4
      %v6709 = vrot.slane %v6248, 5
      %v6710 = vsel %vm1015, %v6708, %v6709
      %v6711 = vrot.slane %v6673, 5
      %v6712 = vrot.slane %v6711, 4
      %v6713 = vrot.slane %v6250, 5
      %v6714 = vsel %vm1015, %v6712, %v6713
      %v6715 = vrot.slane %v6713, 4
      %v6716 = vrot.slane %v6251, 5
      %v6717 = vsel %vm1015, %v6715, %v6716
      %v6718 = vrot.slane %v6674, 5
      %v6719 = vrot.slane %v6718, 4
      %v6720 = vrot.slane %v6253, 5
      %v6721 = vsel %vm1015, %v6719, %v6720
      %v6722 = vrot.slane %v6720, 4
      %v6723 = vrot.slane %v6254, 5
      %v6724 = vsel %vm1015, %v6722, %v6723
      %v6725 = vrot.slane %v6675, 5
      %v6726 = vrot.slane %v6725, 4
      %v6727 = vrot.slane %v6256, 5
      %v6728 = vsel %vm1015, %v6726, %v6727
      %v6729 = vrot.slane %v6727, 4
      %v6730 = vrot.slane %v6257, 5
      %v6731 = vsel %vm1015, %v6729, %v6730
      %v6732 = vrot.slane %v6676, 5
      %v6733 = vrot.slane %v6732, 4
      %v6734 = vrot.slane %v6259, 5
      %v6735 = vsel %vm1015, %v6733, %v6734
      %v6736 = vrot.slane %v6734, 4
      %v6737 = vrot.slane %v6260, 5
      %v6738 = vsel %vm1015, %v6736, %v6737
      %v6739 = vrot.slane %v6677, 5
      %v6740 = vrot.slane %v6739, 4
      %v6741 = vrot.slane %v6262, 5
      %v6742 = vsel %vm1015, %v6740, %v6741
      %v6743 = vrot.slane %v6741, 4
      %v6744 = vrot.slane %v6263, 5
      %v6745 = vsel %vm1015, %v6743, %v6744
      %v6746 = vrot.slane %v6678, 5
      %v6747 = vrot.slane %v6746, 4
      %v6748 = vrot.slane %v6265, 5
      %v6749 = vsel %vm1015, %v6747, %v6748
      %v6750 = vrot.slane %v6748, 4
      %v6751 = vrot.slane %v6266, 5
      %v6752 = vsel %vm1015, %v6750, %v6751
      %v6753 = vrot.slane %v6679, 5
      %v6754 = vrot.slane %v6753, 4
      %v6755 = vrot.slane %v6268, 5
      %v6756 = vsel %vm1015, %v6754, %v6755
      %v6757 = vrot.slane %v6755, 4
      %v6758 = vrot.slane %v6269, 5
      %v6759 = vsel %vm1015, %v6757, %v6758
      %s6760 = scalar_lea.vmem %s3, 512
      %v6761 = vld [vmem:[%s6760] sm:$0xf]
      %v6762 = vld [vmem:[%s6760 + $0x4] sm:$0xf]
      %v6763 = vld [vmem:[%s6760 + $0x8] sm:$0xf]
      %v6764 = vld [vmem:[%s6760 + $0xc] sm:$0xf]
      %v6765 = vld [vmem:[%s6760 + $0x10] sm:$0xf]
      %v6766 = vld [vmem:[%s6760 + $0x14] sm:$0xf]
      %v6767 = vld [vmem:[%s6760 + $0x18] sm:$0xf]
      %v6768 = vld [vmem:[%s6760 + $0x1c] sm:$0xf]
      %v6769 = vld [vmem:[%s6760 + $0x20] sm:$0xf]
      %v6770 = vld [vmem:[%s6760 + $0x24] sm:$0xf]
      %v6771 = vld [vmem:[%s6760 + $0x28] sm:$0xf]
      %v6772 = vld [vmem:[%s6760 + $0x2c] sm:$0xf]
      %v6773 = vld [vmem:[%s6760 + $0x30] sm:$0xf]
      %v6774 = vld [vmem:[%s6760 + $0x34] sm:$0xf]
      %v6775 = vld [vmem:[%s6760 + $0x38] sm:$0xf]
      %v6776 = vld [vmem:[%s6760 + $0x3c] sm:$0xf]
      %v6777 = vunpack.c.l.b16 %v6707
      %v6778 = vunpack.c.l.b16 %v6710
      %v6779 = vunpack.c.l.b16 %v6714
      %v6780 = vunpack.c.l.b16 %v6717
      %v6781 = vunpack.c.l.b16 %v6721
      %v6782 = vunpack.c.l.b16 %v6724
      %v6783 = vunpack.c.l.b16 %v6728
      %v6784 = vunpack.c.l.b16 %v6731
      %v6785 = vunpack.c.l.b16 %v6735
      %v6786 = vunpack.c.l.b16 %v6738
      %v6787 = vunpack.c.l.b16 %v6742
      %v6788 = vunpack.c.l.b16 %v6745
      %v6789 = vunpack.c.l.b16 %v6749
      %v6790 = vunpack.c.l.b16 %v6752
      %v6791 = vunpack.c.l.b16 %v6756
      %v6792 = vunpack.c.l.b16 %v6759
      %v6793 = vpack.c.b16 %v6778, %v6777
      %v6794 = vpack.c.b16 %v6780, %v6779
      %v6795 = vpack.c.b16 %v6782, %v6781
      %v6796 = vpack.c.b16 %v6784, %v6783
      %v6797 = vpack.c.b16 %v6786, %v6785
      %v6798 = vpack.c.b16 %v6788, %v6787
      %v6799 = vpack.c.b16 %v6790, %v6789
      %v6800 = vpack.c.b16 %v6792, %v6791
      %v6825 = vunpack.c.l.b16 %v6761
      %v6826 = vunpack.c.l.b16 %v6762
      %v6827 = vunpack.c.l.b16 %v6763
      %v6828 = vunpack.c.l.b16 %v6764
      %v6829 = vunpack.c.l.b16 %v6765
      %v6830 = vunpack.c.l.b16 %v6766
      %v6831 = vunpack.c.l.b16 %v6767
      %v6832 = vunpack.c.l.b16 %v6768
      %v6833 = vunpack.c.l.b16 %v6769
      %v6834 = vunpack.c.l.b16 %v6770
      %v6835 = vunpack.c.l.b16 %v6771
      %v6836 = vunpack.c.l.b16 %v6772
      %v6837 = vunpack.c.l.b16 %v6773
      %v6838 = vunpack.c.l.b16 %v6774
      %v6839 = vunpack.c.l.b16 %v6775
      %v6840 = vunpack.c.l.b16 %v6776
      %v6841 = vpack.c.b16 %v6826, %v6825
      %v6842 = vpack.c.b16 %v6828, %v6827
      %v6843 = vpack.c.b16 %v6830, %v6829
      %v6844 = vpack.c.b16 %v6832, %v6831
      %v6845 = vpack.c.b16 %v6834, %v6833
      %v6846 = vpack.c.b16 %v6836, %v6835
      %v6847 = vpack.c.b16 %v6838, %v6837
      %v6848 = vpack.c.b16 %v6840, %v6839
      %6857 = vmatprep.subr.bf16.mxu0 0
      %6858 = vmatpush1.bf16.msra.mxu0 %v6848
      %6859 = vmatprep.subr.bf16.mxu0 0
      %6860 = vmatpush1.bf16.msra.mxu0 %v6847
      %6861 = vmatprep.subr.bf16.mxu0 0
      %6862 = vmatpush1.bf16.msra.mxu0 %v6846
      %6863 = vmatprep.subr.bf16.mxu0 0
      %6864 = vmatpush1.bf16.msra.mxu0 %v6845
      %6865 = vmatprep.subr.bf16.mxu0 0
      %6866 = vmatpush1.bf16.msra.mxu0 %v6844
      %6867 = vmatprep.subr.bf16.mxu0 0
      %6868 = vmatpush1.bf16.msra.mxu0 %v6843
      %6869 = vmatprep.subr.bf16.mxu0 0
      %6870 = vmatpush1.bf16.msra.mxu0 %v6842
      %6871 = vmatprep.subr.bf16.mxu0 0
      %6872 = vmatpush1.bf16.msra.mxu0 %v6841
      %6873 = vmatprep.subr.bf16.mxu0 0
      %6874 = vmatpush2.bf16.msra.mxu0 0
      %6875 = vmatprep.subr.bf16.mxu0 0
      %6876 = vmatpush2.bf16.msra.mxu0 0
      %6877 = vmatprep.subr.bf16.mxu0 0
      %6878 = vmatpush2.bf16.msra.mxu0 0
      %6879 = vmatprep.subr.bf16.mxu0 0
      %6880 = vmatpush2.bf16.msra.mxu0 0
      %6881 = vmatprep.subr.bf16.mxu0 0
      %6882 = vmatpush2.bf16.msra.mxu0 0
      %6883 = vmatprep.subr.bf16.mxu0 0
      %6884 = vmatpush2.bf16.msra.mxu0 0
      %6885 = vmatprep.subr.bf16.mxu0 0
      %6886 = vmatpush2.bf16.msra.mxu0 0
      %6887 = vmatprep.subr.bf16.mxu0 0
      %6888 = vmatpush2.bf16.msra.mxu0 0
      %6889 = vmatprep.mubr.bf16.mxu0 0
      %6890 = vmatmul.mubr.bf16.gmra.mxu0 %v6793
      %v6891 = vpop.f32.mrf.mxu0
      %v6892 = vadd.f32 0.0, %v6891
      %v6893 = vpop.f32.mrf.mxu0
      %v6894 = vpop.f32.mrf.mxu0
      %v6895 = vadd.f32 0.0, %v6894
      %v6896 = vpop.f32.mrf.mxu0
      %6897 = vmatprep.mubr.bf16.mxu0 0
      %6898 = vmatmul.mubr.bf16.gmra.mxu0 %v6794
      %v6899 = vpop.f32.mrf.mxu0
      %v6900 = vadd.f32 0.0, %v6899
      %v6901 = vpop.f32.mrf.mxu0
      %v6902 = vpop.f32.mrf.mxu0
      %v6903 = vadd.f32 0.0, %v6902
      %v6904 = vpop.f32.mrf.mxu0
      %6905 = vmatprep.mubr.bf16.mxu0 0
      %6906 = vmatmul.mubr.bf16.gmra.mxu0 %v6795
      %v6907 = vpop.f32.mrf.mxu0
      %v6908 = vadd.f32 0.0, %v6907
      %v6909 = vpop.f32.mrf.mxu0
      %v6910 = vpop.f32.mrf.mxu0
      %v6911 = vadd.f32 0.0, %v6910
      %v6912 = vpop.f32.mrf.mxu0
      %6913 = vmatprep.mubr.bf16.mxu0 0
      %6914 = vmatmul.mubr.bf16.gmra.mxu0 %v6796
      %v6915 = vpop.f32.mrf.mxu0
      %v6916 = vadd.f32 0.0, %v6915
      %v6917 = vpop.f32.mrf.mxu0
      %v6918 = vpop.f32.mrf.mxu0
      %v6919 = vadd.f32 0.0, %v6918
      %v6920 = vpop.f32.mrf.mxu0
      %6921 = vmatprep.mubr.bf16.mxu0 0
      %6922 = vmatmul.mubr.bf16.gmra.mxu0 %v6797
      %v6923 = vpop.f32.mrf.mxu0
      %v6924 = vadd.f32 0.0, %v6923
      %v6925 = vpop.f32.mrf.mxu0
      %v6926 = vpop.f32.mrf.mxu0
      %v6927 = vadd.f32 0.0, %v6926
      %v6928 = vpop.f32.mrf.mxu0
      %6929 = vmatprep.mubr.bf16.mxu0 0
      %6930 = vmatmul.mubr.bf16.gmra.mxu0 %v6798
      %v6931 = vpop.f32.mrf.mxu0
      %v6932 = vadd.f32 0.0, %v6931
      %v6933 = vpop.f32.mrf.mxu0
      %v6934 = vpop.f32.mrf.mxu0
      %v6935 = vadd.f32 0.0, %v6934
      %v6936 = vpop.f32.mrf.mxu0
      %6937 = vmatprep.mubr.bf16.mxu0 0
      %6938 = vmatmul.mubr.bf16.gmra.mxu0 %v6799
      %v6939 = vpop.f32.mrf.mxu0
      %v6940 = vadd.f32 0.0, %v6939
      %v6941 = vpop.f32.mrf.mxu0
      %v6942 = vpop.f32.mrf.mxu0
      %v6943 = vadd.f32 0.0, %v6942
      %v6944 = vpop.f32.mrf.mxu0
      %6945 = vmatprep.mubr.bf16.mxu0 0
      %6946 = vmatmul.mubr.bf16.gmra.mxu0 %v6800
      %v6947 = vpop.f32.mrf.mxu0
      %v6948 = vadd.f32 0.0, %v6947
      %v6949 = vpop.f32.mrf.mxu0
      %v6950 = vpop.f32.mrf.mxu0
      %v6951 = vadd.f32 0.0, %v6950
      %v6952 = vpop.f32.mrf.mxu0
      %6953 = vdwg.mxu0
      %v6954 = vadd.f32 %v6656, %v6892
      %v6955 = vadd.f32 %v6657, %v6895
      %v6956 = vadd.f32 %v6658, %v6900
      %v6957 = vadd.f32 %v6659, %v6903
      %v6958 = vadd.f32 %v6660, %v6908
      %v6959 = vadd.f32 %v6661, %v6911
      %v6960 = vadd.f32 %v6662, %v6916
      %v6961 = vadd.f32 %v6663, %v6919
      %v6962 = vadd.f32 %v6664, %v6924
      %v6963 = vadd.f32 %v6665, %v6927
      %v6964 = vadd.f32 %v6666, %v6932
      %v6965 = vadd.f32 %v6667, %v6935
      %v6966 = vadd.f32 %v6668, %v6940
      %v6967 = vadd.f32 %v6669, %v6943
      %v6968 = vadd.f32 %v6670, %v6948
      %v6969 = vadd.f32 %v6671, %v6951
      %v6970 = vld [vmem:[%s2465] sm:$0xf]
      %v6971 = vld [vmem:[%s2465 + $0x4] sm:$0xf]
      %v6972 = vld [vmem:[%s2465 + $0x8] sm:$0x1]
      %v6973 = vld [vmem:[%s2465 + $0xc] sm:$0xf]
      %v6974 = vld [vmem:[%s2465 + $0x10] sm:$0xf]
      %v6975 = vld [vmem:[%s2465 + $0x14] sm:$0x1]
      %v6976 = vld [vmem:[%s2465 + $0x18] sm:$0xf]
      %v6977 = vld [vmem:[%s2465 + $0x1c] sm:$0xf]
      %v6978 = vld [vmem:[%s2465 + $0x20] sm:$0x1]
      %v6979 = vld [vmem:[%s2465 + $0x24] sm:$0xf]
      %v6980 = vld [vmem:[%s2465 + $0x28] sm:$0xf]
      %v6981 = vld [vmem:[%s2465 + $0x2c] sm:$0x1]
      %v6982 = vld [vmem:[%s2465 + $0x30] sm:$0xf]
      %v6983 = vld [vmem:[%s2465 + $0x34] sm:$0xf]
      %v6984 = vld [vmem:[%s2465 + $0x38] sm:$0x1]
      %v6985 = vld [vmem:[%s2465 + $0x3c] sm:$0xf]
      %v6986 = vld [vmem:[%s2465 + $0x40] sm:$0xf]
      %v6987 = vld [vmem:[%s2465 + $0x44] sm:$0x1]
      %v6988 = vld [vmem:[%s2465 + $0x48] sm:$0xf]
      %v6989 = vld [vmem:[%s2465 + $0x4c] sm:$0xf]
      %v6990 = vld [vmem:[%s2465 + $0x50] sm:$0x1]
      %v6991 = vld [vmem:[%s2465 + $0x54] sm:$0xf]
      %v6992 = vld [vmem:[%s2465 + $0x58] sm:$0xf]
      %v6993 = vld [vmem:[%s2465 + $0x5c] sm:$0x1]
      %v6994 = vunpack.c.l.bf16 %v6970
      %v6995 = vunpack.c.l.bf16 %v6971
      %v6996 = vunpack.c.l.bf16 %v6972
      %v6997 = vunpack.c.l.bf16 %v6973
      %v6998 = vunpack.c.l.bf16 %v6974
      %v6999 = vunpack.c.l.bf16 %v6975
      %v7000 = vunpack.c.l.bf16 %v6976
      %v7001 = vunpack.c.l.bf16 %v6977
      %v7002 = vunpack.c.l.bf16 %v6978
      %v7003 = vunpack.c.l.bf16 %v6979
      %v7004 = vunpack.c.l.bf16 %v6980
      %v7005 = vunpack.c.l.bf16 %v6981
      %v7006 = vunpack.c.l.bf16 %v6982
      %v7007 = vunpack.c.l.bf16 %v6983
      %v7008 = vunpack.c.l.bf16 %v6984
      %v7009 = vunpack.c.l.bf16 %v6985
      %v7010 = vunpack.c.l.bf16 %v6986
      %v7011 = vunpack.c.l.bf16 %v6987
      %v7012 = vunpack.c.l.bf16 %v6988
      %v7013 = vunpack.c.l.bf16 %v6989
      %v7014 = vunpack.c.l.bf16 %v6990
      %v7015 = vunpack.c.l.bf16 %v6991
      %v7016 = vunpack.c.l.bf16 %v6992
      %v7017 = vunpack.c.l.bf16 %v6993
      %v7018 = vld [vmem:[%s4] sm:$0x1]
      %v7020 = vlaneseq
      %v7021 = vshrl.u32 %v7020, 7
      %v7022 = vsub.s32 0, %v7021
      %v7023 = vrot.slane %v7018, %v7022
      %v7025 = vadd.f32 %v6954, %v7023
      %v7026 = vadd.f32 %v6955, %v7023
      %v7027 = vadd.f32 %v6956, %v7023
      %v7028 = vadd.f32 %v6957, %v7023
      %v7029 = vadd.f32 %v6958, %v7023
      %v7030 = vadd.f32 %v6959, %v7023
      %v7031 = vadd.f32 %v6960, %v7023
      %v7032 = vadd.f32 %v6961, %v7023
      %v7033 = vadd.f32 %v6962, %v7023
      %v7034 = vadd.f32 %v6963, %v7023
      %v7035 = vadd.f32 %v6964, %v7023
      %v7036 = vadd.f32 %v6965, %v7023
      %v7037 = vadd.f32 %v6966, %v7023
      %v7038 = vadd.f32 %v6967, %v7023
      %v7039 = vadd.f32 %v6968, %v7023
      %v7040 = vadd.f32 %v6969, %v7023
      %vm7065 = vcmask 1046528
      %v7066 = vrot.slane %v6994, 1
      %v7067 = vrot.slane %v6995, 1
      %v7068 = vsel %vm7065, %v7066, %v7067
      %v7069 = vrot.slane %v6996, 1
      %v7070 = vsel %vm7065, %v7067, %v7069
      %v7071 = vrot.slane %v6997, 1
      %v7072 = vrot.slane %v6998, 1
      %v7073 = vsel %vm7065, %v7071, %v7072
      %v7074 = vrot.slane %v6999, 1
      %v7075 = vsel %vm7065, %v7072, %v7074
      %v7076 = vrot.slane %v7000, 1
      %v7077 = vrot.slane %v7001, 1
      %v7078 = vsel %vm7065, %v7076, %v7077
      %v7079 = vrot.slane %v7002, 1
      %v7080 = vsel %vm7065, %v7077, %v7079
      %v7081 = vrot.slane %v7003, 1
      %v7082 = vrot.slane %v7004, 1
      %v7083 = vsel %vm7065, %v7081, %v7082
      %v7084 = vrot.slane %v7005, 1
      %v7085 = vsel %vm7065, %v7082, %v7084
      %v7086 = vrot.slane %v7006, 1
      %v7087 = vrot.slane %v7007, 1
      %v7088 = vsel %vm7065, %v7086, %v7087
      %v7089 = vrot.slane %v7008, 1
      %v7090 = vsel %vm7065, %v7087, %v7089
      %v7091 = vrot.slane %v7009, 1
      %v7092 = vrot.slane %v7010, 1
      %v7093 = vsel %vm7065, %v7091, %v7092
      %v7094 = vrot.slane %v7011, 1
      %v7095 = vsel %vm7065, %v7092, %v7094
      %v7096 = vrot.slane %v7012, 1
      %v7097 = vrot.slane %v7013, 1
      %v7098 = vsel %vm7065, %v7096, %v7097
      %v7099 = vrot.slane %v7014, 1
      %v7100 = vsel %vm7065, %v7097, %v7099
      %v7101 = vrot.slane %v7015, 1
      %v7102 = vrot.slane %v7016, 1
      %v7103 = vsel %vm7065, %v7101, %v7102
      %v7104 = vrot.slane %v7017, 1
      %v7105 = vsel %vm7065, %v7102, %v7104
      %v7122 = vadd.f32 %v7025, %v7068
      %v7123 = vadd.f32 %v7026, %v7070
      %v7124 = vadd.f32 %v7027, %v7073
      %v7125 = vadd.f32 %v7028, %v7075
      %v7126 = vadd.f32 %v7029, %v7078
      %v7127 = vadd.f32 %v7030, %v7080
      %v7128 = vadd.f32 %v7031, %v7083
      %v7129 = vadd.f32 %v7032, %v7085
      %v7130 = vadd.f32 %v7033, %v7088
      %v7131 = vadd.f32 %v7034, %v7090
      %v7132 = vadd.f32 %v7035, %v7093
      %v7133 = vadd.f32 %v7036, %v7095
      %v7134 = vadd.f32 %v7037, %v7098
      %v7135 = vadd.f32 %v7038, %v7100
      %v7136 = vadd.f32 %v7039, %v7103
      %v7137 = vadd.f32 %v7040, %v7105
      %v7138 = vmax.f32 %v7122, 0.0
      %v7139 = vmax.f32 %v7123, 0.0
      %v7140 = vmax.f32 %v7124, 0.0
      %v7141 = vmax.f32 %v7125, 0.0
      %v7142 = vmax.f32 %v7126, 0.0
      %v7143 = vmax.f32 %v7127, 0.0
      %v7144 = vmax.f32 %v7128, 0.0
      %v7145 = vmax.f32 %v7129, 0.0
      %v7146 = vmax.f32 %v7130, 0.0
      %v7147 = vmax.f32 %v7131, 0.0
      %v7148 = vmax.f32 %v7132, 0.0
      %v7149 = vmax.f32 %v7133, 0.0
      %v7150 = vmax.f32 %v7134, 0.0
      %v7151 = vmax.f32 %v7135, 0.0
      %v7152 = vmax.f32 %v7136, 0.0
      %v7153 = vmax.f32 %v7137, 0.0
      %v7154 = vpack.c.bf16 %v7139, %v7138
      %v7155 = vpack.c.bf16 %v7141, %v7140
      %v7156 = vpack.c.bf16 %v7143, %v7142
      %v7157 = vpack.c.bf16 %v7145, %v7144
      %v7158 = vpack.c.bf16 %v7147, %v7146
      %v7159 = vpack.c.bf16 %v7149, %v7148
      %v7160 = vpack.c.bf16 %v7151, %v7150
      %v7161 = vpack.c.bf16 %v7153, %v7152
      %v7170 = vunpack.c.l.b16 %v7154
      %v7171 = vunpack.c.h.b16 %v7154
      %v7172 = vunpack.c.l.b16 %v7155
      %v7173 = vunpack.c.h.b16 %v7155
      %v7174 = vunpack.c.l.b16 %v7156
      %v7175 = vunpack.c.h.b16 %v7156
      %v7176 = vunpack.c.l.b16 %v7157
      %v7177 = vunpack.c.h.b16 %v7157
      %v7178 = vunpack.c.l.b16 %v7158
      %v7179 = vunpack.c.h.b16 %v7158
      %v7180 = vunpack.c.l.b16 %v7159
      %v7181 = vunpack.c.h.b16 %v7159
      %v7182 = vunpack.c.l.b16 %v7160
      %v7183 = vunpack.c.h.b16 %v7160
      %v7184 = vunpack.c.l.b16 %v7161
      %v7185 = vunpack.c.h.b16 %v7161
      %v7186 = vpack.c.b16 %v7170, %v7170
      %v7187 = vpack.c.b16 %v7171, %v7171
      %v7188 = vpack.c.b16 %v7172, %v7172
      %v7189 = vpack.c.b16 %v7173, %v7173
      %v7190 = vpack.c.b16 %v7174, %v7174
      %v7191 = vpack.c.b16 %v7175, %v7175
      %v7192 = vpack.c.b16 %v7176, %v7176
      %v7193 = vpack.c.b16 %v7177, %v7177
      %v7194 = vpack.c.b16 %v7178, %v7178
      %v7195 = vpack.c.b16 %v7179, %v7179
      %v7196 = vpack.c.b16 %v7180, %v7180
      %v7197 = vpack.c.b16 %v7181, %v7181
      %v7198 = vpack.c.b16 %v7182, %v7182
      %v7199 = vpack.c.b16 %v7183, %v7183
      %v7200 = vpack.c.b16 %v7184, %v7184
      %v7201 = vpack.c.b16 %v7185, %v7185
      %7218 = vst [vmem:[%s248] sm:$0xf] %v7186
      %7219 = vst [vmem:[%s248 + $0x4] sm:$0xf] %v7187
      %7220 = vst [vmem:[%s248 + $0x8] sm:$0xf] %v7188
      %7221 = vst [vmem:[%s248 + $0xc] sm:$0xf] %v7189
      %7222 = vst [vmem:[%s248 + $0x10] sm:$0xf] %v7190
      %7223 = vst [vmem:[%s248 + $0x14] sm:$0xf] %v7191
      %7224 = vst [vmem:[%s248 + $0x18] sm:$0xf] %v7192
      %7225 = vst [vmem:[%s248 + $0x1c] sm:$0xf] %v7193
      %7226 = vst [vmem:[%s248 + $0x20] sm:$0xf] %v7194
      %7227 = vst [vmem:[%s248 + $0x24] sm:$0xf] %v7195
      %7228 = vst [vmem:[%s248 + $0x28] sm:$0xf] %v7196
      %7229 = vst [vmem:[%s248 + $0x2c] sm:$0xf] %v7197
      %7230 = vst [vmem:[%s248 + $0x30] sm:$0xf] %v7198
      %7231 = vst [vmem:[%s248 + $0x34] sm:$0xf] %v7199
      %7232 = vst [vmem:[%s248 + $0x38] sm:$0xf] %v7200
      %7233 = vst [vmem:[%s248 + $0x3c] sm:$0xf] %v7201
      %s7234 = smul.u32 8, %s21
      %p7235 = scmp.lt.s32.totalorder %s20, 1
      %s7236 = scalar_select %p7235, %s20, 1
      %p7237 = scmp.lt.s32.totalorder %s7234, 7
      %s7238 = scalar_select %p7237, %s7234, 7
      %s7239 = smul.addr %s7238, 2
      %s7240 = smul.addr %s7236, 16
      %s7241 = sadd.s32 %s7239, %s7240
      %s7242 = smul.addr %s7241, 4
      %s7243 = scalar_lea.vmem %s5, %s7242
      // Predicated region
      $region41: #{basic_block_3d.1} parent=39 // pred_check
        %p7244 = pneg %p158
      $region42: #{basic_block_3d.1} parent=39 // pred_check_branch
        %7246 = sbr.rel (%p7244) target = $region44
      $region43: #{basic_block_3d.1} parent=39 // pred_region
        %s7247 = smul.u32 8, %s21
      $region44: #{basic_block_3d.1} parent=39 // pred_fallthru
        _
    $region40: #{basic_block_3d.1} parent=5 // pred_fallthru
      _
    %p7248 = scmp.le.s32.totalorder 2, %s11
    // Predicated region
    $region45: #{basic_block_3d.1} parent=5 // pred_check
      %p7249 = pneg %p7248
    $region46: #{basic_block_3d.1} parent=5 // pred_check_branch
      %7251 = sbr.rel (%p7249) target = $region48
    $region47: #{basic_block_3d.1} parent=5 // pred_region
      %s7252 = ssub.s32 %s11, 2
      // Predicated region
      $region49: #{basic_block_3d.1} parent=47 // pred_check
        %p7253 = pneg %p164
      $region50: #{basic_block_3d.1} parent=47 // pred_check_branch
        %7255 = sbr.rel (%p7253) target = $region52
      $region51: #{basic_block_3d.1} parent=47 // pred_region
        %s7256 = smul.u32 8, %s23
        %p7257 = scmp.lt.s32.totalorder %s22, 1
        %s7258 = scalar_select %p7257, %s22, 1
        %p7259 = scmp.lt.s32.totalorder %s7256, 7
        %s7260 = scalar_select %p7259, %s7256, 7
        %s7261 = smul.addr %s7260, 2
        %s7262 = smul.addr %s7258, 16
        %s7263 = sadd.s32 %s7261, %s7262
        %s7264 = smul.addr %s7263, 4
        %s7265 = scalar_lea.vmem %s5, %s7264
      $region52: #{basic_block_3d.1} parent=47 // pred_fallthru
        _
    $region48: #{basic_block_3d.1} parent=5 // pred_fallthru
      _
  $region6: #{basic_block_3d.1} parent=0 // loop_footer
    %s15 = sadd.s32 1, %s11
  $region7: #{basic_block_3d.1} parent=0 // loop_footer_branch
    %10 = sbr.rel target = $region3
  $region8: #{basic_block_3d.1} parent=0 // loop_exit
    _

</llo_original>
